<compile_context>
chip_gen: v6e
topology: v6e:2x2x1
jax: 0.10.0
libtpu: 0.0.40
codegen_flags: <defaults>
</compile_context>

<pallas_src>
import functools
import math

import jax
import jax.numpy as jnp
from jax.experimental import pallas as pl
from jax.experimental.pallas import tpu as pltpu

EPS = 1e-5        # nn.BatchNorm2d default eps
TM_MAX = 512      # max rows-of-im2col tile (multiple of 16)
SMALL_M = 64      # M at or below this -> plain XLA dot (dispatch overhead wins)
VMEM_LIMIT = 32 * 1024 * 1024


def _round_up(x, m):
    return (x + m - 1) // m * m


def _pick_tm(m):
    if m < 256:
        return max(16, _round_up(m, 16))
    # Split M >= 256 into >= 2 grid steps so the "parallel" axis can be
    # sharded across both TensorCores on v7x (neutral on v5e/v6e).
    return min(TM_MAX, max(16, _round_up(pl.cdiv(m, 2), 16)))


# --------------------------------------------------------------------------
# Pallas kernels
# --------------------------------------------------------------------------
def _make_mm_kernel(relu, has_res):
    if has_res:
        def kern(a_ref, w_ref, b_ref, r_ref, o_ref):
            acc = jnp.dot(a_ref[...], w_ref[...],
                          preferred_element_type=jnp.float32)
            acc = acc + b_ref[...] + r_ref[...].astype(jnp.float32)
            if relu:
                acc = jnp.maximum(acc, 0.0)
            o_ref[...] = acc.astype(o_ref.dtype)
    else:
        def kern(a_ref, w_ref, b_ref, o_ref):
            acc = jnp.dot(a_ref[...], w_ref[...],
                          preferred_element_type=jnp.float32)
            acc = acc + b_ref[...]
            if relu:
                acc = jnp.maximum(acc, 0.0)
            o_ref[...] = acc.astype(o_ref.dtype)
    return kern


@functools.lru_cache(maxsize=None)
def _build_matmul(tm, mtot, k, n, relu, has_res):
    # True (un-padded) K and N: full-extent last-dim blocks are legal, Mosaic
    # handles the ragged lane layout internally -> no runtime jnp.pad passes.
    in_specs = [
        pl.BlockSpec((tm, k), lambda i: (i, 0)),    # bf16 patches tile
        pl.BlockSpec((k, n), lambda i: (0, 0)),     # bf16 folded weights
        pl.BlockSpec((1, n), lambda i: (0, 0)),     # f32 per-channel bias
    ]
    if has_res:
        in_specs.append(pl.BlockSpec((tm, n), lambda i: (i, 0)))
    return pl.pallas_call(
        _make_mm_kernel(relu, has_res),
        grid=(mtot // tm,),
        in_specs=in_specs,
        out_specs=pl.BlockSpec((tm, n), lambda i: (i, 0)),
        out_shape=jax.ShapeDtypeStruct((mtot, n), jnp.bfloat16),
        compiler_params=pltpu.CompilerParams(
            dimension_semantics=("parallel",),
            vmem_limit_bytes=VMEM_LIMIT),
    )


def matmul_fused(a, w, bias, relu, residual=None):
    """a:[M,K]  w:[K,N]  bias:[N]  residual:[M,N] or None -> bf16 [M,N]."""
    M, K = a.shape
    N = w.shape[1]
    if M <= SMALL_M or N < 8:
        # Tiny layer: XLA fuses this dot with the surrounding bn_relu /
        # resize / sigmoid glue; a pallas_call launch would dominate.
        acc = jnp.dot(a.astype(jnp.bfloat16), w.astype(jnp.bfloat16),
                      preferred_element_type=jnp.float32)
        acc = acc + bias.astype(jnp.float32)
        if residual is not None:
            acc = acc + residual.astype(jnp.float32)
        if relu:
            acc = jnp.maximum(acc, 0.0)
        return acc.astype(jnp.bfloat16)

    tm = _pick_tm(M)
    mtot = _round_up(M, tm)
    kq = _round_up(K, 8)          # only the stem RGB conv (K=27) triggers this
    a_p = a.astype(jnp.bfloat16)
    r_p = None if residual is None else residual.astype(jnp.bfloat16)
    if kq != K:
        a_p = jnp.pad(a_p, ((0, 0), (0, kq - K)))
    if mtot != M:
        a_p = jnp.pad(a_p, ((0, mtot - M), (0, 0)))
        if r_p is not None:
            r_p = jnp.pad(r_p, ((0, mtot - M), (0, 0)))
    w_p = w.astype(jnp.bfloat16)                       # constants: free pads
    if kq != K:
        w_p = jnp.pad(w_p, ((0, kq - K), (0, 0)))
    b_p = bias.astype(jnp.float32).reshape(1, N)
    args = [a_p, w_p, b_p]
    if r_p is not None:
        args.append(r_p)
    out = _build_matmul(tm, mtot, kq, N, bool(relu), r_p is not None)(*args)
    if mtot != M:
        out = out[:M]
    return out


def _pag_kernel(x_ref, xk_ref, y_ref, yq_ref, o_ref):
    # Similarity reduction kept in f32 for accuracy; blend in f32, store bf16.
    xk = xk_ref[...].astype(jnp.float32)
    yq = yq_ref[...].astype(jnp.float32)
    sim = jax.nn.sigmoid(jnp.sum(xk * yq, axis=-1, keepdims=True))
    xv = x_ref[...].astype(jnp.float32)
    yv = y_ref[...].astype(jnp.float32)
    o_ref[...] = ((1.0 - sim) * xv + sim * yv).astype(o_ref.dtype)


@functools.lru_cache(maxsize=None)
def _build_pag(tm, mtot, c, mid):
    spec_c = pl.BlockSpec((tm, c), lambda i: (i, 0))
    spec_m = pl.BlockSpec((tm, mid), lambda i: (i, 0))
    return pl.pallas_call(
        _pag_kernel,
        grid=(mtot // tm,),
        in_specs=[spec_c, spec_m, spec_c, spec_m],
        out_specs=spec_c,
        out_shape=jax.ShapeDtypeStruct((mtot, c), jnp.bfloat16),
        compiler_params=pltpu.CompilerParams(
            dimension_semantics=("parallel",),
            vmem_limit_bytes=VMEM_LIMIT),
    )


def pag_fuse(x_k, y_q, x, y_up):
    """x_k,y_q: (N,H,W,mid)   x,y_up: (N,H,W,C)  -> blended (N,H,W,C)."""
    nb, H, W, C = x.shape
    mid = x_k.shape[-1]
    M = nb * H * W
    xm = x.astype(jnp.bfloat16).reshape(M, C)
    ym = y_up.astype(jnp.bfloat16).reshape(M, C)
    xk = x_k.astype(jnp.bfloat16).reshape(M, mid)
    yq = y_q.astype(jnp.bfloat16).reshape(M, mid)
    if M <= SMALL_M:
        sim = jax.nn.sigmoid(jnp.sum(xk.astype(jnp.float32)
                                     * yq.astype(jnp.float32),
                                     axis=-1, keepdims=True))
        out = (1.0 - sim) * xm.astype(jnp.float32) + sim * ym.astype(jnp.float32)
        return out.astype(jnp.bfloat16).reshape(nb, H, W, C)
    tm = _pick_tm(M)
    mtot = _round_up(M, tm)
    if mtot != M:
        pad = ((0, mtot - M), (0, 0))
        xm, ym, xk, yq = (jnp.pad(t, pad) for t in (xm, ym, xk, yq))
    out = _build_pag(tm, mtot, C, mid)(xm, xk, ym, yq)
    if mtot != M:
        out = out[:M]
    return out.reshape(nb, H, W, C)


# --------------------------------------------------------------------------
# Conv wrapper (im2col glue + fused matmul)
# --------------------------------------------------------------------------
def conv2d(x, w, bias, stride=1, padding=0, relu=False, residual=None, groups=1):
    """x: NHWC, w: [Cout, Cin//groups, kh, kw] (PyTorch layout)."""
    if groups > 1:
        # Block-diagonal dense weight -> one matmul instead of a per-group loop
        # (constant folded; only used by PAPPM's tiny grouped conv).
        cout, cig, kh_, kw_ = w.shape
        cin_full = x.shape[-1]
        cog = cout // groups
        wd = jnp.zeros((cout, cin_full, kh_, kw_), w.dtype)
        for g in range(groups):
            wd = wd.at[g * cog:(g + 1) * cog, g * cig:(g + 1) * cig].set(
                w[g * cog:(g + 1) * cog])
        w = wd

    x = x.astype(jnp.bfloat16)            # bf16 glue halves HBM traffic
    nb, H, W, cin = x.shape
    cout, _, kh, kw = w.shape
    Ho = (H + 2 * padding - kh) // stride + 1
    Wo = (W + 2 * padding - kw) // stride + 1
    xp = jnp.pad(x, ((0, 0), (padding, padding), (padding, padding), (0, 0))) \
        if padding > 0 else x
    cols = []
    for i in range(kh):
        for j in range(kw):
            cols.append(jax.lax.slice(
                xp, (0, i, j, 0),
                (nb, i + stride * (Ho - 1) + 1, j + stride * (Wo - 1) + 1, cin),
                (1, stride, stride, 1)))
    if len(cols) == 1:
        a = cols[0].reshape(nb * Ho * Wo, cin)
    else:
        a = jnp.concatenate(cols, axis=-1).reshape(nb * Ho * Wo, kh * kw * cin)
    wmat = jnp.transpose(w, (2, 3, 1, 0)).reshape(kh * kw * cin, cout)
    r = None if residual is None else residual.reshape(nb * Ho * Wo, cout)
    out = matmul_fused(a, wmat, bias, relu, r)
    return out.reshape(nb, Ho, Wo, cout)


# --------------------------------------------------------------------------
# Parameter construction (deterministic)
# --------------------------------------------------------------------------
class ParamGen:
    def __init__(self, seed=0):
        self.key = jax.random.PRNGKey(seed)
        self.i = 0

    def normal(self, shape, std):
        self.i += 1
        k = jax.random.fold_in(self.key, self.i)
        return std * jax.random.normal(k, shape, jnp.float32)


def make_bn(c):
    return dict(gamma=jnp.ones((c,), jnp.float32), beta=jnp.zeros((c,), jnp.float32),
                mean=jnp.zeros((c,), jnp.float32), var=jnp.ones((c,), jnp.float32))


def conv_layer(pg, cin, cout, k, stride=1, padding=0, bn=True, act=False,
               bias=False, groups=1):
    std = math.sqrt(2.0 / (cout * k * k))  # kaiming_normal fan_out, relu
    return dict(w=pg.normal((cout, cin // groups, k, k), std),
                conv_b=jnp.zeros((cout,), jnp.float32) if bias else None,
                bn=make_bn(cout) if bn else None,
                stride=stride, padding=padding, act=act, groups=groups)


def _folded_wb(p):
    """Fold eval-mode BatchNorm (scale into weights, shift into bias)."""
    w = p['w']
    cout = w.shape[0]
    if p['bn'] is not None:
        bn = p['bn']
        s = bn['gamma'] * jax.lax.rsqrt(bn['var'] + EPS)
        b = bn['beta'] - bn['mean'] * s
        if p['conv_b'] is not None:
            b = b + p['conv_b'] * s
        w = w * s.reshape(-1, 1, 1, 1)
    else:
        b = p['conv_b'] if p['conv_b'] is not None \
            else jnp.zeros((cout,), jnp.float32)
    return w, b


def apply_conv_layer(p, x, residual=None, relu=None):
    w, b = _folded_wb(p)
    do_relu = p['act'] if relu is None else relu
    return conv2d(x, w, b, p['stride'], p['padding'], do_relu, residual,
                  p['groups'])


def apply_bn_relu(bn, x, relu=True):
    s = bn['gamma'] * jax.lax.rsqrt(bn['var'] + EPS)
    b = bn['beta'] - bn['mean'] * s
    y = x.astype(jnp.float32) * s + b
    if relu:
        y = jnp.maximum(y, 0.0)
    return y.astype(jnp.bfloat16)


# --------------------------------------------------------------------------
# Blocks
# --------------------------------------------------------------------------
def make_basic_block(pg, cin, planes, stride=1, downsample=False, no_out_act=False):
    return dict(kind='basic',
                conv1=conv_layer(pg, cin, planes, 3, stride, 1, bn=True, act=True),
                conv2=conv_layer(pg, planes, planes, 3, 1, 1, bn=True, act=False),
                down=conv_layer(pg, cin, planes, 1, stride, 0, bn=True, act=False)
                if downsample else None,
                out_act=not no_out_act)


def make_bottleneck(pg, cin, planes, stride=1, downsample=False, expansion=2,
                    no_out_act=True):
    return dict(kind='bottleneck',
                conv1=conv_layer(pg, cin, planes, 1, 1, 0, bn=True, act=True),
                conv2=conv_layer(pg, planes, planes, 3, stride, 1, bn=True, act=True),
                conv3=conv_layer(pg, planes, planes * expansion, 1, 1, 0,
                                 bn=True, act=False),
                down=conv_layer(pg, cin, planes * expansion, 1, stride, 0,
                                bn=True, act=False) if downsample else None,
                out_act=not no_out_act)


def _mergeable(c1, dn):
    """conv1 + downsample share the same input / stride / spatial output?"""
    if c1['groups'] != 1 or dn['groups'] != 1:
        return False
    if c1['stride'] != dn['stride'] or dn['padding'] != 0:
        return False
    if dn['w'].shape[2] != 1 or dn['w'].shape[3] != 1:
        return False
    k = c1['w'].shape[2]
    if c1['w'].shape[3] != k or k % 2 == 0:
        return False
    return c1['padding'] == (k - 1) // 2


def apply_block(p, x):
    c1, dn = p['conv1'], p['down']
    if dn is not None and _mergeable(c1, dn):
        # Fuse the downsample 1x1 conv into conv1 (embed as the centre tap /
        # concatenate output channels) -> one matmul over the shared input.
        w1, b1 = _folded_wb(c1)
        wd, bd = _folded_wb(dn)
        co1 = w1.shape[0]
        k = w1.shape[2]
        wd_k = jnp.zeros((wd.shape[0], wd.shape[1], k, k), wd.dtype)
        wd_k = wd_k.at[:, :, k // 2, k // 2].set(wd[:, :, 0, 0])
        w_cat = jnp.concatenate([w1, wd_k], axis=0)
        b_cat = jnp.concatenate([b1, bd], axis=0)
        both = conv2d(x, w_cat, b_cat, c1['stride'], c1['padding'], relu=False)
        out = both[..., :co1]
        if c1['act']:
            out = jnp.maximum(out, 0.0)       # tiny elementwise, XLA-fused
        res = both[..., co1:]
    else:
        res = apply_conv_layer(dn, x) if dn is not None else x
        out = apply_conv_layer(c1, x)
    if p['kind'] == 'basic':
        out = apply_conv_layer(p['conv2'], out, residual=res, relu=p['out_act'])
    else:
        out = apply_conv_layer(p['conv2'], out)
        out = apply_conv_layer(p['conv3'], out, residual=res, relu=p['out_act'])
    return out


def apply_layers(layers, x):
    for l in layers:
        x = apply_block(l, x)
    return x


def make_layer(pg, block, inplanes, planes, blocks, stride=1, expansion=None):
    if expansion is None:
        expansion = 1 if block == 'basic' else 2
    downsample = (stride != 1) or (inplanes != planes * expansion)
    layers = []
    if block == 'basic':
        layers.append(make_basic_block(pg, inplanes, planes, stride, downsample,
                                       no_out_act=False))
    else:
        layers.append(make_bottleneck(pg, inplanes, planes, stride, downsample,
                                      expansion, no_out_act=True))
    inplanes = planes * expansion
    for i in range(1, blocks):
        no_out = (i == blocks - 1)
        if block == 'basic':
            layers.append(make_basic_block(pg, inplanes, planes, 1, False,
                                           no_out_act=no_out))
        else:
            layers.append(make_bottleneck(pg, inplanes, planes, 1, False,
                                          expansion, no_out_act=no_out))
    return layers


# --------------------------------------------------------------------------
# Bilinear resize (align_corners=False), avg pool — plain-JAX glue (bf16)
# --------------------------------------------------------------------------
def _resize_idx(in_size, out_size):
    scale = in_size / out_size
    src = jnp.maximum((jnp.arange(out_size, dtype=jnp.float32) + 0.5) * scale - 0.5,
                      0.0)
    i0 = jnp.minimum(jnp.floor(src).astype(jnp.int32), in_size - 1)
    i1 = jnp.minimum(i0 + 1, in_size - 1)
    frac = src - i0.astype(jnp.float32)
    return i0, i1, frac


def bilinear_resize(x, out_h, out_w):
    nb, H, W, C = x.shape
    if H == out_h and W == out_w:
        return x
    y0, y1, fy = _resize_idx(H, out_h)
    x0, x1, fx = _resize_idx(W, out_w)
    xf = x.astype(jnp.float32)
    top = xf[:, y0]                       # gather each source row set once
    bot = xf[:, y1]
    fy = fy[None, :, None, None]
    fx = fx[None, None, :, None]

    def lerp_w(rows):
        return rows[:, :, x0] * (1.0 - fx) + rows[:, :, x1] * fx

    out = lerp_w(top) * (1.0 - fy) + lerp_w(bot) * fy
    return out.astype(jnp.bfloat16)


def avg_pool(x, k, s, p):
    # AvgPool2d default count_include_pad=True
    y = jax.lax.reduce_window(x.astype(jnp.float32), 0.0, jax.lax.add,
                              (1, k, k, 1), (1, s, s, 1),
                              ((0, 0), (p, p), (p, p), (0, 0)))
    return (y / float(k * k)).astype(jnp.bfloat16)


# --------------------------------------------------------------------------
# PIDNet sub-modules
# --------------------------------------------------------------------------
def make_pagfm(pg, in_ch, mid_ch):
    return dict(f_x=conv_layer(pg, in_ch, mid_ch, 1, 1, 0, bn=True, act=False),
                f_y=conv_layer(pg, in_ch, mid_ch, 1, 1, 0, bn=True, act=False))


def apply_pagfm(p, x, y):
    H, W = x.shape[1], x.shape[2]
    y_q = bilinear_resize(apply_conv_layer(p['f_y'], y), H, W)
    x_k = apply_conv_layer(p['f_x'], x)
    y_up = bilinear_resize(y, H, W)
    return pag_fuse(x_k, y_q, x, y_up)


def make_pappm(pg, inplanes, branch, out):
    c1 = lambda ci, co: conv_layer(pg, ci, co, 1, 1, 0, bn=False, act=False)
    return dict(
        bn1=make_bn(inplanes), conv1=c1(inplanes, branch),
        bn2=make_bn(inplanes), conv2=c1(inplanes, branch),
        bn3=make_bn(inplanes), conv3=c1(inplanes, branch),
        bn4=make_bn(inplanes), conv4=c1(inplanes, branch),
        bn0=make_bn(inplanes), conv0=c1(inplanes, branch),
        bn_proc=make_bn(branch * 4),
        conv_proc=conv_layer(pg, branch * 4, branch * 4, 3, 1, 1, bn=False,
                             act=False, groups=4),
        bn_comp=make_bn(branch * 5), conv_comp=c1(branch * 5, out),
        bn_sc=make_bn(inplanes), conv_sc=c1(inplanes, out))


def apply_pappm(p, x):
    # Everything here runs at 1x1..2x2 spatial -> M <= 64 -> XLA fallback,
    # where the bn_relu / resize / add glue fuses into the dots.
    nb, H, W, _ = x.shape
    x0 = apply_conv_layer(p['conv0'], apply_bn_relu(p['bn0'], x))

    def branch(bn, conv, pooled):
        t = apply_conv_layer(conv, apply_bn_relu(bn, pooled))
        return bilinear_resize(t, H, W) + x0

    s1 = branch(p['bn1'], p['conv1'], avg_pool(x, 5, 2, 2))
    s2 = branch(p['bn2'], p['conv2'], avg_pool(x, 9, 4, 4))
    s3 = branch(p['bn3'], p['conv3'], avg_pool(x, 17, 8, 8))
    s4 = branch(p['bn4'], p['conv4'],
                jnp.mean(x.astype(jnp.float32), axis=(1, 2), keepdims=True))
    scale_cat = jnp.concatenate([s1, s2, s3, s4], axis=-1)
    scale_out = apply_conv_layer(p['conv_proc'], apply_bn_relu(p['bn_proc'], scale_cat))
    shortcut = apply_conv_layer(p['conv_sc'], apply_bn_relu(p['bn_sc'], x))
    comp_in = apply_bn_relu(p['bn_comp'], jnp.concatenate([x0, scale_out], axis=-1))
    return apply_conv_layer(p['conv_comp'], comp_in, residual=shortcut)


def make_light_bag(pg, in_ch, out_ch):
    return dict(conv_p=conv_layer(pg, in_ch, out_ch, 1, 1, 0, bn=True, act=False),
                conv_i=conv_layer(pg, in_ch, out_ch, 1, 1, 0, bn=True, act=False))


def apply_light_bag(p, p_feat, i_feat, d_feat):
    edge = jax.nn.sigmoid(d_feat.astype(jnp.float32))
    p_in = ((1.0 - edge) * i_feat.astype(jnp.float32)
            + p_feat.astype(jnp.float32)).astype(jnp.bfloat16)
    i_in = (i_feat.astype(jnp.float32)
            + edge * p_feat.astype(jnp.float32)).astype(jnp.bfloat16)
    p_add = apply_conv_layer(p['conv_p'], p_in)
    return apply_conv_layer(p['conv_i'], i_in, residual=p_add)


def make_seghead(pg, inplanes, inter, out):
    return dict(bn1=make_bn(inplanes),
                conv1=conv_layer(pg, inplanes, inter, 3, 1, 1, bn=False, act=False),
                bn2=make_bn(inter),
                conv2=conv_layer(pg, inter, out, 1, 1, 0, bn=False, act=False,
                                 bias=True))


def apply_seghead(p, x):
    x = apply_conv_layer(p['conv1'], apply_bn_relu(p['bn1'], x))
    return apply_conv_layer(p['conv2'], apply_bn_relu(p['bn2'], x))


# --------------------------------------------------------------------------
# Full PIDNet (m=2 variant: PAPPM + Light_Bag)
# --------------------------------------------------------------------------
def make_pidnet(pg, planes=8, ppm=8, head=16, num_classes=3, m=2, n=3):
    assert m == 2, "this script builds the m==2 (PAPPM / Light_Bag) variant"
    P = {}
    P['conv1a'] = conv_layer(pg, 3, planes, 3, 2, 1, bn=True, act=True, bias=True)
    P['conv1b'] = conv_layer(pg, planes, planes, 3, 2, 1, bn=True, act=True, bias=True)
    P['layer1'] = make_layer(pg, 'basic', planes, planes, m)
    P['layer2'] = make_layer(pg, 'basic', planes, planes * 2, m, stride=2)
    P['layer3'] = make_layer(pg, 'basic', planes * 2, planes * 4, n, stride=2)
    P['layer4'] = make_layer(pg, 'basic', planes * 4, planes * 8, n, stride=2)
    P['layer5'] = make_layer(pg, 'bottleneck', planes * 8, planes * 8, 2, stride=2,
                             expansion=2)
    P['compression3'] = conv_layer(pg, planes * 4, planes * 2, 1, 1, 0, bn=True)
    P['compression4'] = conv_layer(pg, planes * 8, planes * 2, 1, 1, 0, bn=True)
    P['pag3'] = make_pagfm(pg, planes * 2, planes)
    P['pag4'] = make_pagfm(pg, planes * 2, planes)
    P['layer3_'] = make_layer(pg, 'basic', planes * 2, planes * 2, m)
    P['layer4_'] = make_layer(pg, 'basic', planes * 2, planes * 2, m)
    P['layer5_'] = make_layer(pg, 'bottleneck', planes * 2, planes * 2, 1, expansion=2)
    # m == 2 branch
    P['layer3_d'] = [make_basic_block(pg, planes * 2, planes, 1, downsample=True,
                                      no_out_act=True)]
    P['layer4_d'] = make_layer(pg, 'bottleneck', planes, planes, 1, expansion=2)
    P['diff3'] = conv_layer(pg, planes * 4, planes, 3, 1, 1, bn=True)
    P['diff4'] = conv_layer(pg, planes * 8, planes * 2, 3, 1, 1, bn=True)
    P['spp'] = make_pappm(pg, planes * 16, ppm, planes * 4)
    P['dfm'] = make_light_bag(pg, planes * 4, planes * 4)
    P['layer5_d'] = make_layer(pg, 'bottleneck', planes * 2, planes * 2, 1, expansion=2)
    P['seghead_p'] = make_seghead(pg, planes * 2, head, num_classes)
    P['seghead_d'] = make_seghead(pg, planes * 2, planes, 1)
    P['final_layer'] = make_seghead(pg, planes * 4, head, num_classes)
    return P


def _relu(x):
    return jnp.maximum(x, 0.0)


def pidnet_forward(P, x_nchw):
    x = jnp.transpose(x_nchw, (0, 2, 3, 1)).astype(jnp.float32)   # NCHW -> NHWC
    x = apply_conv_layer(P['conv1b'], apply_conv_layer(P['conv1a'], x))
    x = apply_layers(P['layer1'], x)
    x = _relu(apply_layers(P['layer2'], _relu(x)))
    x_ = apply_layers(P['layer3_'], x)
    x_d = apply_layers(P['layer3_d'], x)
    x = _relu(apply_layers(P['layer3'], x))
    x_ = apply_pagfm(P['pag3'], x_, apply_conv_layer(P['compression3'], x))
    x_d = x_d + bilinear_resize(apply_conv_layer(P['diff3'], x),
                                x_d.shape[1], x_d.shape[2])
    temp_p = x_
    x = _relu(apply_layers(P['layer4'], x))
    x_ = apply_layers(P['layer4_'], _relu(x_))
    x_d = apply_layers(P['layer4_d'], _relu(x_d))
    x_ = apply_pagfm(P['pag4'], x_, apply_conv_layer(P['compression4'], x))
    x_d = x_d + bilinear_resize(apply_conv_layer(P['diff4'], x),
                                x_d.shape[1], x_d.shape[2])
    temp_d = x_d
    x_ = apply_layers(P['layer5_'], _relu(x_))
    x_d = apply_layers(P['layer5_d'], _relu(x_d))
    x = bilinear_resize(apply_pappm(P['spp'], apply_layers(P['layer5'], x)),
                        x_d.shape[1], x_d.shape[2])
    pred = apply_seghead(P['final_layer'], apply_light_bag(P['dfm'], x_, x, x_d))
    extra_p = apply_seghead(P['seghead_p'], temp_p)
    extra_d = apply_seghead(P['seghead_d'], temp_d)
    to_nchw = lambda t: jnp.transpose(t.astype(jnp.float32), (0, 3, 1, 2))
    # TODO(synk): torch.jit.is_tracing() / FX-proxy guards have no JAX analogue;
    # the extra heads are always computed here (training-mode semantics).
    return dict(extra_p=to_nchw(extra_p), extra_d=to_nchw(extra_d), pred=to_nchw(pred))


# --------------------------------------------------------------------------
if __name__ == "__main__":
    planes, ppm, head, num_classes = 8, 8, 16, 3
    pg = ParamGen(0)
    P = make_pidnet(pg, planes=planes, ppm=ppm, head=head,
                    num_classes=num_classes, m=2, n=3)

    key = jax.random.PRNGKey(0)
    x = jax.random.normal(key, (2, 3, 64, 64), jnp.float32)   # NCHW like PyTorch

    fwd = jax.jit(lambda inp: pidnet_forward(P, inp))
    out = fwd(x)
    out = jax.block_until_ready(out)

    assert out['pred'].shape == (2, num_classes, 8, 8)
    assert out['extra_p'].shape == (2, num_classes, 8, 8)
    assert out['extra_d'].shape == (2, 1, 8, 8)
    assert all(bool(jnp.all(jnp.isfinite(v))) for v in out.values())
    print("KERNEL_OK")
</pallas_src>

<mosaic_0001>
module attributes {stable_mosaic.version = 11 : i64} {
  func.func @kern(%arg0: i32, %arg1: memref<512x32xbf16, #tpu.memory_space<vmem>>, %arg2: memref<32x8xbf16, #tpu.memory_space<vmem>>, %arg3: memref<1x8xf32, #tpu.memory_space<vmem>>, %arg4: memref<512x8xbf16, #tpu.memory_space<vmem>>) attributes {dimension_semantics = [#tpu.dimension_semantics<parallel>], iteration_bounds = array<i64: 4>, scalar_prefetch = 0 : i64, scratch_operands = 0 : i64, tpu.core_type = #tpu.core_type<tc>, window_params = [{transform_indices = @transform_0, window_bounds = array<i64: 512, 32>}, {pipeline_mode = #tpu.pipeline_mode<synchronous>, transform_indices = @transform_1, window_bounds = array<i64: 32, 8>}, {pipeline_mode = #tpu.pipeline_mode<synchronous>, transform_indices = @transform_2, window_bounds = array<i64: 1, 8>}, {transform_indices = @transform_3, window_bounds = array<i64: 512, 8>}]} {
    %c0 = arith.constant 0 : index
    %c0_0 = arith.constant 0 : index
    %0 = vector.load %arg1[%c0, %c0_0] : memref<512x32xbf16, #tpu.memory_space<vmem>>, vector<512x32xbf16>
    %c0_1 = arith.constant 0 : index
    %c0_2 = arith.constant 0 : index
    %1 = vector.load %arg2[%c0_1, %c0_2] : memref<32x8xbf16, #tpu.memory_space<vmem>>, vector<32x8xbf16>
    %cst = arith.constant dense<0.000000e+00> : vector<512x8xf32>
    %2 = tpu.matmul %0, %1, %cst {dimension_numbers = #tpu.dot_dimension_numbers<[1], [0], [0], [1], [0, 0, 1, 1], [], []>} : vector<512x32xbf16>, vector<32x8xbf16>, vector<512x8xf32> -> vector<512x8xf32>
    %c0_3 = arith.constant 0 : index
    %c0_4 = arith.constant 0 : index
    %3 = vector.load %arg3[%c0_3, %c0_4] : memref<1x8xf32, #tpu.memory_space<vmem>>, vector<1x8xf32>
    %4 = vector.broadcast %3 : vector<1x8xf32> to vector<512x8xf32>
    %5 = arith.addf %2, %4 : vector<512x8xf32>
    %cst_5 = arith.constant 0.000000e+00 : f32
    %6 = vector.broadcast %cst_5 : f32 to vector<512x8xf32>
    %7 = arith.maximumf %5, %6 : vector<512x8xf32>
    %8 = arith.truncf %7 : vector<512x8xf32> to vector<512x8xbf16>
    %c0_6 = arith.constant 0 : index
    %c0_7 = arith.constant 0 : index
    %9 = vector.load %arg4[%c0_6, %c0_7] : memref<512x8xbf16, #tpu.memory_space<vmem>>, vector<512x8xbf16>
    tpu.vector_store %arg4[%c0_6, %c0_7], %8 {strides = array<i32>} : memref<512x8xbf16, #tpu.memory_space<vmem>>, vector<512x8xbf16>,
    return
  }
  func.func @transform_0(%arg0: i32) -> (i32, i32) {
    %c0_i32 = arith.constant 0 : i32
    %c0_i32_0 = arith.constant 0 : i32
    return %arg0, %c0_i32 : i32, i32
  }
  func.func @transform_1(%arg0: i32) -> (i32, i32) {
    %c0_i32 = arith.constant 0 : i32
    %c0_i32_0 = arith.constant 0 : i32
    %c0_i32_1 = arith.constant 0 : i32
    return %c0_i32, %c0_i32_0 : i32, i32
  }
  func.func @transform_2(%arg0: i32) -> (i32, i32) {
    %c0_i32 = arith.constant 0 : i32
    %c0_i32_0 = arith.constant 0 : i32
    %c0_i32_1 = arith.constant 0 : i32
    return %c0_i32, %c0_i32_0 : i32, i32
  }
  func.func @transform_3(%arg0: i32) -> (i32, i32) {
    %c0_i32 = arith.constant 0 : i32
    %c0_i32_0 = arith.constant 0 : i32
    return %arg0, %c0_i32 : i32, i32
  }
}

module attributes {stable_mosaic.version = 11 : i64} {
  func.func @kern(%arg0: i32, %arg1: memref<256x72xbf16, #tpu.memory_space<vmem>>, %arg2: memref<72x8xbf16, #tpu.memory_space<vmem>>, %arg3: memref<1x8xf32, #tpu.memory_space<vmem>>, %arg4: memref<256x8xbf16, #tpu.memory_space<vmem>>) attributes {dimension_semantics = [#tpu.dimension_semantics<parallel>], iteration_bounds = array<i64: 2>, scalar_prefetch = 0 : i64, scratch_operands = 0 : i64, tpu.core_type = #tpu.core_type<tc>, window_params = [{transform_indices = @transform_0, window_bounds = array<i64: 256, 72>}, {pipeline_mode = #tpu.pipeline_mode<synchronous>, transform_indices = @transform_1, window_bounds = array<i64: 72, 8>}, {pipeline_mode = #tpu.pipeline_mode<synchronous>, transform_indices = @transform_2, window_bounds = array<i64: 1, 8>}, {transform_indices = @transform_3, window_bounds = array<i64: 256, 8>}]} {
    %c0 = arith.constant 0 : index
    %c0_0 = arith.constant 0 : index
    %0 = vector.load %arg1[%c0, %c0_0] : memref<256x72xbf16, #tpu.memory_space<vmem>>, vector<256x72xbf16>
    %c0_1 = arith.constant 0 : index
    %c0_2 = arith.constant 0 : index
    %1 = vector.load %arg2[%c0_1, %c0_2] : memref<72x8xbf16, #tpu.memory_space<vmem>>, vector<72x8xbf16>
    %cst = arith.constant dense<0.000000e+00> : vector<256x8xf32>
    %2 = tpu.matmul %0, %1, %cst {dimension_numbers = #tpu.dot_dimension_numbers<[1], [0], [0], [1], [0, 0, 1, 1], [], []>} : vector<256x72xbf16>, vector<72x8xbf16>, vector<256x8xf32> -> vector<256x8xf32>
    %c0_3 = arith.constant 0 : index
    %c0_4 = arith.constant 0 : index
    %3 = vector.load %arg3[%c0_3, %c0_4] : memref<1x8xf32, #tpu.memory_space<vmem>>, vector<1x8xf32>
    %4 = vector.broadcast %3 : vector<1x8xf32> to vector<256x8xf32>
    %5 = arith.addf %2, %4 : vector<256x8xf32>
    %cst_5 = arith.constant 0.000000e+00 : f32
    %6 = vector.broadcast %cst_5 : f32 to vector<256x8xf32>
    %7 = arith.maximumf %5, %6 : vector<256x8xf32>
    %8 = arith.truncf %7 : vector<256x8xf32> to vector<256x8xbf16>
    %c0_6 = arith.constant 0 : index
    %c0_7 = arith.constant 0 : index
    %9 = vector.load %arg4[%c0_6, %c0_7] : memref<256x8xbf16, #tpu.memory_space<vmem>>, vector<256x8xbf16>
    tpu.vector_store %arg4[%c0_6, %c0_7], %8 {strides = array<i32>} : memref<256x8xbf16, #tpu.memory_space<vmem>>, vector<256x8xbf16>,
    return
  }
  func.func @transform_0(%arg0: i32) -> (i32, i32) {
    %c0_i32 = arith.constant 0 : i32
    %c0_i32_0 = arith.constant 0 : i32
    return %arg0, %c0_i32 : i32, i32
  }
  func.func @transform_1(%arg0: i32) -> (i32, i32) {
    %c0_i32 = arith.constant 0 : i32
    %c0_i32_0 = arith.constant 0 : i32
    %c0_i32_1 = arith.constant 0 : i32
    return %c0_i32, %c0_i32_0 : i32, i32
  }
  func.func @transform_2(%arg0: i32) -> (i32, i32) {
    %c0_i32 = arith.constant 0 : i32
    %c0_i32_0 = arith.constant 0 : i32
    %c0_i32_1 = arith.constant 0 : i32
    return %c0_i32, %c0_i32_0 : i32, i32
  }
  func.func @transform_3(%arg0: i32) -> (i32, i32) {
    %c0_i32 = arith.constant 0 : i32
    %c0_i32_0 = arith.constant 0 : i32
    return %arg0, %c0_i32 : i32, i32
  }
}

module attributes {stable_mosaic.version = 11 : i64} {
  func.func @kern(%arg0: i32, %arg1: memref<256x72xbf16, #tpu.memory_space<vmem>>, %arg2: memref<72x8xbf16, #tpu.memory_space<vmem>>, %arg3: memref<1x8xf32, #tpu.memory_space<vmem>>, %arg4: memref<256x8xbf16, #tpu.memory_space<vmem>>, %arg5: memref<256x8xbf16, #tpu.memory_space<vmem>>) attributes {dimension_semantics = [#tpu.dimension_semantics<parallel>], iteration_bounds = array<i64: 2>, scalar_prefetch = 0 : i64, scratch_operands = 0 : i64, tpu.core_type = #tpu.core_type<tc>, window_params = [{transform_indices = @transform_0, window_bounds = array<i64: 256, 72>}, {pipeline_mode = #tpu.pipeline_mode<synchronous>, transform_indices = @transform_1, window_bounds = array<i64: 72, 8>}, {pipeline_mode = #tpu.pipeline_mode<synchronous>, transform_indices = @transform_2, window_bounds = array<i64: 1, 8>}, {transform_indices = @transform_3, window_bounds = array<i64: 256, 8>}, {transform_indices = @transform_4, window_bounds = array<i64: 256, 8>}]} {
    %c0 = arith.constant 0 : index
    %c0_0 = arith.constant 0 : index
    %0 = vector.load %arg1[%c0, %c0_0] : memref<256x72xbf16, #tpu.memory_space<vmem>>, vector<256x72xbf16>
    %c0_1 = arith.constant 0 : index
    %c0_2 = arith.constant 0 : index
    %1 = vector.load %arg2[%c0_1, %c0_2] : memref<72x8xbf16, #tpu.memory_space<vmem>>, vector<72x8xbf16>
    %cst = arith.constant dense<0.000000e+00> : vector<256x8xf32>
    %2 = tpu.matmul %0, %1, %cst {dimension_numbers = #tpu.dot_dimension_numbers<[1], [0], [0], [1], [0, 0, 1, 1], [], []>} : vector<256x72xbf16>, vector<72x8xbf16>, vector<256x8xf32> -> vector<256x8xf32>
    %c0_3 = arith.constant 0 : index
    %c0_4 = arith.constant 0 : index
    %3 = vector.load %arg3[%c0_3, %c0_4] : memref<1x8xf32, #tpu.memory_space<vmem>>, vector<1x8xf32>
    %4 = vector.broadcast %3 : vector<1x8xf32> to vector<256x8xf32>
    %5 = arith.addf %2, %4 : vector<256x8xf32>
    %c0_5 = arith.constant 0 : index
    %c0_6 = arith.constant 0 : index
    %6 = vector.load %arg4[%c0_5, %c0_6] : memref<256x8xbf16, #tpu.memory_space<vmem>>, vector<256x8xbf16>
    %7 = arith.extf %6 : vector<256x8xbf16> to vector<256x8xf32>
    %8 = arith.addf %5, %7 : vector<256x8xf32>
    %cst_7 = arith.constant 0.000000e+00 : f32
    %9 = vector.broadcast %cst_7 : f32 to vector<256x8xf32>
    %10 = arith.maximumf %8, %9 : vector<256x8xf32>
    %11 = arith.truncf %10 : vector<256x8xf32> to vector<256x8xbf16>
    %c0_8 = arith.constant 0 : index
    %c0_9 = arith.constant 0 : index
    %12 = vector.load %arg5[%c0_8, %c0_9] : memref<256x8xbf16, #tpu.memory_space<vmem>>, vector<256x8xbf16>
    tpu.vector_store %arg5[%c0_8, %c0_9], %11 {strides = array<i32>} : memref<256x8xbf16, #tpu.memory_space<vmem>>, vector<256x8xbf16>,
    return
  }
  func.func @transform_0(%arg0: i32) -> (i32, i32) {
    %c0_i32 = arith.constant 0 : i32
    %c0_i32_0 = arith.constant 0 : i32
    return %arg0, %c0_i32 : i32, i32
  }
  func.func @transform_1(%arg0: i32) -> (i32, i32) {
    %c0_i32 = arith.constant 0 : i32
    %c0_i32_0 = arith.constant 0 : i32
    %c0_i32_1 = arith.constant 0 : i32
    return %c0_i32, %c0_i32_0 : i32, i32
  }
  func.func @transform_2(%arg0: i32) -> (i32, i32) {
    %c0_i32 = arith.constant 0 : i32
    %c0_i32_0 = arith.constant 0 : i32
    %c0_i32_1 = arith.constant 0 : i32
    return %c0_i32, %c0_i32_0 : i32, i32
  }
  func.func @transform_3(%arg0: i32) -> (i32, i32) {
    %c0_i32 = arith.constant 0 : i32
    %c0_i32_0 = arith.constant 0 : i32
    return %arg0, %c0_i32 : i32, i32
  }
  func.func @transform_4(%arg0: i32) -> (i32, i32) {
    %c0_i32 = arith.constant 0 : i32
    %c0_i32_0 = arith.constant 0 : i32
    return %arg0, %c0_i32 : i32, i32
  }
}

module attributes {stable_mosaic.version = 11 : i64} {
  func.func @kern(%arg0: i32, %arg1: memref<256x72xbf16, #tpu.memory_space<vmem>>, %arg2: memref<72x8xbf16, #tpu.memory_space<vmem>>, %arg3: memref<1x8xf32, #tpu.memory_space<vmem>>, %arg4: memref<256x8xbf16, #tpu.memory_space<vmem>>, %arg5: memref<256x8xbf16, #tpu.memory_space<vmem>>) attributes {dimension_semantics = [#tpu.dimension_semantics<parallel>], iteration_bounds = array<i64: 2>, scalar_prefetch = 0 : i64, scratch_operands = 0 : i64, tpu.core_type = #tpu.core_type<tc>, window_params = [{transform_indices = @transform_0, window_bounds = array<i64: 256, 72>}, {pipeline_mode = #tpu.pipeline_mode<synchronous>, transform_indices = @transform_1, window_bounds = array<i64: 72, 8>}, {pipeline_mode = #tpu.pipeline_mode<synchronous>, transform_indices = @transform_2, window_bounds = array<i64: 1, 8>}, {transform_indices = @transform_3, window_bounds = array<i64: 256, 8>}, {transform_indices = @transform_4, window_bounds = array<i64: 256, 8>}]} {
    %c0 = arith.constant 0 : index
    %c0_0 = arith.constant 0 : index
    %0 = vector.load %arg1[%c0, %c0_0] : memref<256x72xbf16, #tpu.memory_space<vmem>>, vector<256x72xbf16>
    %c0_1 = arith.constant 0 : index
    %c0_2 = arith.constant 0 : index
    %1 = vector.load %arg2[%c0_1, %c0_2] : memref<72x8xbf16, #tpu.memory_space<vmem>>, vector<72x8xbf16>
    %cst = arith.constant dense<0.000000e+00> : vector<256x8xf32>
    %2 = tpu.matmul %0, %1, %cst {dimension_numbers = #tpu.dot_dimension_numbers<[1], [0], [0], [1], [0, 0, 1, 1], [], []>} : vector<256x72xbf16>, vector<72x8xbf16>, vector<256x8xf32> -> vector<256x8xf32>
    %c0_3 = arith.constant 0 : index
    %c0_4 = arith.constant 0 : index
    %3 = vector.load %arg3[%c0_3, %c0_4] : memref<1x8xf32, #tpu.memory_space<vmem>>, vector<1x8xf32>
    %4 = vector.broadcast %3 : vector<1x8xf32> to vector<256x8xf32>
    %5 = arith.addf %2, %4 : vector<256x8xf32>
    %c0_5 = arith.constant 0 : index
    %c0_6 = arith.constant 0 : index
    %6 = vector.load %arg4[%c0_5, %c0_6] : memref<256x8xbf16, #tpu.memory_space<vmem>>, vector<256x8xbf16>
    %7 = arith.extf %6 : vector<256x8xbf16> to vector<256x8xf32>
    %8 = arith.addf %5, %7 : vector<256x8xf32>
    %9 = arith.truncf %8 : vector<256x8xf32> to vector<256x8xbf16>
    %c0_7 = arith.constant 0 : index
    %c0_8 = arith.constant 0 : index
    %10 = vector.load %arg5[%c0_7, %c0_8] : memref<256x8xbf16, #tpu.memory_space<vmem>>, vector<256x8xbf16>
    tpu.vector_store %arg5[%c0_7, %c0_8], %9 {strides = array<i32>} : memref<256x8xbf16, #tpu.memory_space<vmem>>, vector<256x8xbf16>,
    return
  }
  func.func @transform_0(%arg0: i32) -> (i32, i32) {
    %c0_i32 = arith.constant 0 : i32
    %c0_i32_0 = arith.constant 0 : i32
    return %arg0, %c0_i32 : i32, i32
  }
  func.func @transform_1(%arg0: i32) -> (i32, i32) {
    %c0_i32 = arith.constant 0 : i32
    %c0_i32_0 = arith.constant 0 : i32
    %c0_i32_1 = arith.constant 0 : i32
    return %c0_i32, %c0_i32_0 : i32, i32
  }
  func.func @transform_2(%arg0: i32) -> (i32, i32) {
    %c0_i32 = arith.constant 0 : i32
    %c0_i32_0 = arith.constant 0 : i32
    %c0_i32_1 = arith.constant 0 : i32
    return %c0_i32, %c0_i32_0 : i32, i32
  }
  func.func @transform_3(%arg0: i32) -> (i32, i32) {
    %c0_i32 = arith.constant 0 : i32
    %c0_i32_0 = arith.constant 0 : i32
    return %arg0, %c0_i32 : i32, i32
  }
  func.func @transform_4(%arg0: i32) -> (i32, i32) {
    %c0_i32 = arith.constant 0 : i32
    %c0_i32_0 = arith.constant 0 : i32
    return %arg0, %c0_i32 : i32, i32
  }
}

module attributes {stable_mosaic.version = 11 : i64} {
  func.func @kern(%arg0: i32, %arg1: memref<128x72xbf16, #tpu.memory_space<vmem>>, %arg2: memref<72x32xbf16, #tpu.memory_space<vmem>>, %arg3: memref<1x32xf32, #tpu.memory_space<vmem>>, %arg4: memref<128x32xbf16, #tpu.memory_space<vmem>>) attributes {dimension_semantics = [#tpu.dimension_semantics<parallel>], iteration_bounds = array<i64: 1>, scalar_prefetch = 0 : i64, scratch_operands = 0 : i64, tpu.core_type = #tpu.core_type<tc>, window_params = [{transform_indices = @transform_0, window_bounds = array<i64: 128, 72>}, {pipeline_mode = #tpu.pipeline_mode<synchronous>, transform_indices = @transform_1, window_bounds = array<i64: 72, 32>}, {pipeline_mode = #tpu.pipeline_mode<synchronous>, transform_indices = @transform_2, window_bounds = array<i64: 1, 32>}, {transform_indices = @transform_3, window_bounds = array<i64: 128, 32>}]} {
    %c0 = arith.constant 0 : index
    %c0_0 = arith.constant 0 : index
    %0 = vector.load %arg1[%c0, %c0_0] : memref<128x72xbf16, #tpu.memory_space<vmem>>, vector<128x72xbf16>
    %c0_1 = arith.constant 0 : index
    %c0_2 = arith.constant 0 : index
    %1 = vector.load %arg2[%c0_1, %c0_2] : memref<72x32xbf16, #tpu.memory_space<vmem>>, vector<72x32xbf16>
    %cst = arith.constant dense<0.000000e+00> : vector<128x32xf32>
    %2 = tpu.matmul %0, %1, %cst {dimension_numbers = #tpu.dot_dimension_numbers<[1], [0], [0], [1], [0, 0, 1, 1], [], []>} : vector<128x72xbf16>, vector<72x32xbf16>, vector<128x32xf32> -> vector<128x32xf32>
    %c0_3 = arith.constant 0 : index
    %c0_4 = arith.constant 0 : index
    %3 = vector.load %arg3[%c0_3, %c0_4] : memref<1x32xf32, #tpu.memory_space<vmem>>, vector<1x32xf32>
    %4 = vector.broadcast %3 : vector<1x32xf32> to vector<128x32xf32>
    %5 = arith.addf %2, %4 : vector<128x32xf32>
    %6 = arith.truncf %5 : vector<128x32xf32> to vector<128x32xbf16>
    %c0_5 = arith.constant 0 : index
    %c0_6 = arith.constant 0 : index
    %7 = vector.load %arg4[%c0_5, %c0_6] : memref<128x32xbf16, #tpu.memory_space<vmem>>, vector<128x32xbf16>
    tpu.vector_store %arg4[%c0_5, %c0_6], %6 {strides = array<i32>} : memref<128x32xbf16, #tpu.memory_space<vmem>>, vector<128x32xbf16>,
    return
  }
  func.func @transform_0(%arg0: i32) -> (i32, i32) {
    %c0_i32 = arith.constant 0 : i32
    %c0_i32_0 = arith.constant 0 : i32
    return %arg0, %c0_i32 : i32, i32
  }
  func.func @transform_1(%arg0: i32) -> (i32, i32) {
    %c0_i32 = arith.constant 0 : i32
    %c0_i32_0 = arith.constant 0 : i32
    %c0_i32_1 = arith.constant 0 : i32
    return %c0_i32, %c0_i32_0 : i32, i32
  }
  func.func @transform_2(%arg0: i32) -> (i32, i32) {
    %c0_i32 = arith.constant 0 : i32
    %c0_i32_0 = arith.constant 0 : i32
    %c0_i32_1 = arith.constant 0 : i32
    return %c0_i32, %c0_i32_0 : i32, i32
  }
  func.func @transform_3(%arg0: i32) -> (i32, i32) {
    %c0_i32 = arith.constant 0 : i32
    %c0_i32_0 = arith.constant 0 : i32
    return %arg0, %c0_i32 : i32, i32
  }
}

module attributes {stable_mosaic.version = 11 : i64} {
  func.func @kern(%arg0: i32, %arg1: memref<128x144xbf16, #tpu.memory_space<vmem>>, %arg2: memref<144x16xbf16, #tpu.memory_space<vmem>>, %arg3: memref<1x16xf32, #tpu.memory_space<vmem>>, %arg4: memref<128x16xbf16, #tpu.memory_space<vmem>>, %arg5: memref<128x16xbf16, #tpu.memory_space<vmem>>) attributes {dimension_semantics = [#tpu.dimension_semantics<parallel>], iteration_bounds = array<i64: 1>, scalar_prefetch = 0 : i64, scratch_operands = 0 : i64, tpu.core_type = #tpu.core_type<tc>, window_params = [{transform_indices = @transform_0, window_bounds = array<i64: 128, 144>}, {pipeline_mode = #tpu.pipeline_mode<synchronous>, transform_indices = @transform_1, window_bounds = array<i64: 144, 16>}, {pipeline_mode = #tpu.pipeline_mode<synchronous>, transform_indices = @transform_2, window_bounds = array<i64: 1, 16>}, {transform_indices = @transform_3, window_bounds = array<i64: 128, 16>}, {transform_indices = @transform_4, window_bounds = array<i64: 128, 16>}]} {
    %c0 = arith.constant 0 : index
    %c0_0 = arith.constant 0 : index
    %0 = vector.load %arg1[%c0, %c0_0] : memref<128x144xbf16, #tpu.memory_space<vmem>>, vector<128x144xbf16>
    %c0_1 = arith.constant 0 : index
    %c0_2 = arith.constant 0 : index
    %1 = vector.load %arg2[%c0_1, %c0_2] : memref<144x16xbf16, #tpu.memory_space<vmem>>, vector<144x16xbf16>
    %cst = arith.constant dense<0.000000e+00> : vector<128x16xf32>
    %2 = tpu.matmul %0, %1, %cst {dimension_numbers = #tpu.dot_dimension_numbers<[1], [0], [0], [1], [0, 0, 1, 1], [], []>} : vector<128x144xbf16>, vector<144x16xbf16>, vector<128x16xf32> -> vector<128x16xf32>
    %c0_3 = arith.constant 0 : index
    %c0_4 = arith.constant 0 : index
    %3 = vector.load %arg3[%c0_3, %c0_4] : memref<1x16xf32, #tpu.memory_space<vmem>>, vector<1x16xf32>
    %4 = vector.broadcast %3 : vector<1x16xf32> to vector<128x16xf32>
    %5 = arith.addf %2, %4 : vector<128x16xf32>
    %c0_5 = arith.constant 0 : index
    %c0_6 = arith.constant 0 : index
    %6 = vector.load %arg4[%c0_5, %c0_6] : memref<128x16xbf16, #tpu.memory_space<vmem>>, vector<128x16xbf16>
    %7 = arith.extf %6 : vector<128x16xbf16> to vector<128x16xf32>
    %8 = arith.addf %5, %7 : vector<128x16xf32>
    %cst_7 = arith.constant 0.000000e+00 : f32
    %9 = vector.broadcast %cst_7 : f32 to vector<128x16xf32>
    %10 = arith.maximumf %8, %9 : vector<128x16xf32>
    %11 = arith.truncf %10 : vector<128x16xf32> to vector<128x16xbf16>
    %c0_8 = arith.constant 0 : index
    %c0_9 = arith.constant 0 : index
    %12 = vector.load %arg5[%c0_8, %c0_9] : memref<128x16xbf16, #tpu.memory_space<vmem>>, vector<128x16xbf16>
    tpu.vector_store %arg5[%c0_8, %c0_9], %11 {strides = array<i32>} : memref<128x16xbf16, #tpu.memory_space<vmem>>, vector<128x16xbf16>,
    return
  }
  func.func @transform_0(%arg0: i32) -> (i32, i32) {
    %c0_i32 = arith.constant 0 : i32
    %c0_i32_0 = arith.constant 0 : i32
    return %arg0, %c0_i32 : i32, i32
  }
  func.func @transform_1(%arg0: i32) -> (i32, i32) {
    %c0_i32 = arith.constant 0 : i32
    %c0_i32_0 = arith.constant 0 : i32
    %c0_i32_1 = arith.constant 0 : i32
    return %c0_i32, %c0_i32_0 : i32, i32
  }
  func.func @transform_2(%arg0: i32) -> (i32, i32) {
    %c0_i32 = arith.constant 0 : i32
    %c0_i32_0 = arith.constant 0 : i32
    %c0_i32_1 = arith.constant 0 : i32
    return %c0_i32, %c0_i32_0 : i32, i32
  }
  func.func @transform_3(%arg0: i32) -> (i32, i32) {
    %c0_i32 = arith.constant 0 : i32
    %c0_i32_0 = arith.constant 0 : i32
    return %arg0, %c0_i32 : i32, i32
  }
  func.func @transform_4(%arg0: i32) -> (i32, i32) {
    %c0_i32 = arith.constant 0 : i32
    %c0_i32_0 = arith.constant 0 : i32
    return %arg0, %c0_i32 : i32, i32
  }
}

module attributes {stable_mosaic.version = 11 : i64} {
  func.func @kern(%arg0: i32, %arg1: memref<128x144xbf16, #tpu.memory_space<vmem>>, %arg2: memref<144x16xbf16, #tpu.memory_space<vmem>>, %arg3: memref<1x16xf32, #tpu.memory_space<vmem>>, %arg4: memref<128x16xbf16, #tpu.memory_space<vmem>>) attributes {dimension_semantics = [#tpu.dimension_semantics<parallel>], iteration_bounds = array<i64: 1>, scalar_prefetch = 0 : i64, scratch_operands = 0 : i64, tpu.core_type = #tpu.core_type<tc>, window_params = [{transform_indices = @transform_0, window_bounds = array<i64: 128, 144>}, {pipeline_mode = #tpu.pipeline_mode<synchronous>, transform_indices = @transform_1, window_bounds = array<i64: 144, 16>}, {pipeline_mode = #tpu.pipeline_mode<synchronous>, transform_indices = @transform_2, window_bounds = array<i64: 1, 16>}, {transform_indices = @transform_3, window_bounds = array<i64: 128, 16>}]} {
    %c0 = arith.constant 0 : index
    %c0_0 = arith.constant 0 : index
    %0 = vector.load %arg1[%c0, %c0_0] : memref<128x144xbf16, #tpu.memory_space<vmem>>, vector<128x144xbf16>
    %c0_1 = arith.constant 0 : index
    %c0_2 = arith.constant 0 : index
    %1 = vector.load %arg2[%c0_1, %c0_2] : memref<144x16xbf16, #tpu.memory_space<vmem>>, vector<144x16xbf16>
    %cst = arith.constant dense<0.000000e+00> : vector<128x16xf32>
    %2 = tpu.matmul %0, %1, %cst {dimension_numbers = #tpu.dot_dimension_numbers<[1], [0], [0], [1], [0, 0, 1, 1], [], []>} : vector<128x144xbf16>, vector<144x16xbf16>, vector<128x16xf32> -> vector<128x16xf32>
    %c0_3 = arith.constant 0 : index
    %c0_4 = arith.constant 0 : index
    %3 = vector.load %arg3[%c0_3, %c0_4] : memref<1x16xf32, #tpu.memory_space<vmem>>, vector<1x16xf32>
    %4 = vector.broadcast %3 : vector<1x16xf32> to vector<128x16xf32>
    %5 = arith.addf %2, %4 : vector<128x16xf32>
    %cst_5 = arith.constant 0.000000e+00 : f32
    %6 = vector.broadcast %cst_5 : f32 to vector<128x16xf32>
    %7 = arith.maximumf %5, %6 : vector<128x16xf32>
    %8 = arith.truncf %7 : vector<128x16xf32> to vector<128x16xbf16>
    %c0_6 = arith.constant 0 : index
    %c0_7 = arith.constant 0 : index
    %9 = vector.load %arg4[%c0_6, %c0_7] : memref<128x16xbf16, #tpu.memory_space<vmem>>, vector<128x16xbf16>
    tpu.vector_store %arg4[%c0_6, %c0_7], %8 {strides = array<i32>} : memref<128x16xbf16, #tpu.memory_space<vmem>>, vector<128x16xbf16>,
    return
  }
  func.func @transform_0(%arg0: i32) -> (i32, i32) {
    %c0_i32 = arith.constant 0 : i32
    %c0_i32_0 = arith.constant 0 : i32
    return %arg0, %c0_i32 : i32, i32
  }
  func.func @transform_1(%arg0: i32) -> (i32, i32) {
    %c0_i32 = arith.constant 0 : i32
    %c0_i32_0 = arith.constant 0 : i32
    %c0_i32_1 = arith.constant 0 : i32
    return %c0_i32, %c0_i32_0 : i32, i32
  }
  func.func @transform_2(%arg0: i32) -> (i32, i32) {
    %c0_i32 = arith.constant 0 : i32
    %c0_i32_0 = arith.constant 0 : i32
    %c0_i32_1 = arith.constant 0 : i32
    return %c0_i32, %c0_i32_0 : i32, i32
  }
  func.func @transform_3(%arg0: i32) -> (i32, i32) {
    %c0_i32 = arith.constant 0 : i32
    %c0_i32_0 = arith.constant 0 : i32
    return %arg0, %c0_i32 : i32, i32
  }
}

module attributes {stable_mosaic.version = 11 : i64} {
  func.func @kern(%arg0: i32, %arg1: memref<128x144xbf16, #tpu.memory_space<vmem>>, %arg2: memref<144x16xbf16, #tpu.memory_space<vmem>>, %arg3: memref<1x16xf32, #tpu.memory_space<vmem>>, %arg4: memref<128x16xbf16, #tpu.memory_space<vmem>>, %arg5: memref<128x16xbf16, #tpu.memory_space<vmem>>) attributes {dimension_semantics = [#tpu.dimension_semantics<parallel>], iteration_bounds = array<i64: 1>, scalar_prefetch = 0 : i64, scratch_operands = 0 : i64, tpu.core_type = #tpu.core_type<tc>, window_params = [{transform_indices = @transform_0, window_bounds = array<i64: 128, 144>}, {pipeline_mode = #tpu.pipeline_mode<synchronous>, transform_indices = @transform_1, window_bounds = array<i64: 144, 16>}, {pipeline_mode = #tpu.pipeline_mode<synchronous>, transform_indices = @transform_2, window_bounds = array<i64: 1, 16>}, {transform_indices = @transform_3, window_bounds = array<i64: 128, 16>}, {transform_indices = @transform_4, window_bounds = array<i64: 128, 16>}]} {
    %c0 = arith.constant 0 : index
    %c0_0 = arith.constant 0 : index
    %0 = vector.load %arg1[%c0, %c0_0] : memref<128x144xbf16, #tpu.memory_space<vmem>>, vector<128x144xbf16>
    %c0_1 = arith.constant 0 : index
    %c0_2 = arith.constant 0 : index
    %1 = vector.load %arg2[%c0_1, %c0_2] : memref<144x16xbf16, #tpu.memory_space<vmem>>, vector<144x16xbf16>
    %cst = arith.constant dense<0.000000e+00> : vector<128x16xf32>
    %2 = tpu.matmul %0, %1, %cst {dimension_numbers = #tpu.dot_dimension_numbers<[1], [0], [0], [1], [0, 0, 1, 1], [], []>} : vector<128x144xbf16>, vector<144x16xbf16>, vector<128x16xf32> -> vector<128x16xf32>
    %c0_3 = arith.constant 0 : index
    %c0_4 = arith.constant 0 : index
    %3 = vector.load %arg3[%c0_3, %c0_4] : memref<1x16xf32, #tpu.memory_space<vmem>>, vector<1x16xf32>
    %4 = vector.broadcast %3 : vector<1x16xf32> to vector<128x16xf32>
    %5 = arith.addf %2, %4 : vector<128x16xf32>
    %c0_5 = arith.constant 0 : index
    %c0_6 = arith.constant 0 : index
    %6 = vector.load %arg4[%c0_5, %c0_6] : memref<128x16xbf16, #tpu.memory_space<vmem>>, vector<128x16xbf16>
    %7 = arith.extf %6 : vector<128x16xbf16> to vector<128x16xf32>
    %8 = arith.addf %5, %7 : vector<128x16xf32>
    %9 = arith.truncf %8 : vector<128x16xf32> to vector<128x16xbf16>
    %c0_7 = arith.constant 0 : index
    %c0_8 = arith.constant 0 : index
    %10 = vector.load %arg5[%c0_7, %c0_8] : memref<128x16xbf16, #tpu.memory_space<vmem>>, vector<128x16xbf16>
    tpu.vector_store %arg5[%c0_7, %c0_8], %9 {strides = array<i32>} : memref<128x16xbf16, #tpu.memory_space<vmem>>, vector<128x16xbf16>,
    return
  }
  func.func @transform_0(%arg0: i32) -> (i32, i32) {
    %c0_i32 = arith.constant 0 : i32
    %c0_i32_0 = arith.constant 0 : i32
    return %arg0, %c0_i32 : i32, i32
  }
  func.func @transform_1(%arg0: i32) -> (i32, i32) {
    %c0_i32 = arith.constant 0 : i32
    %c0_i32_0 = arith.constant 0 : i32
    %c0_i32_1 = arith.constant 0 : i32
    return %c0_i32, %c0_i32_0 : i32, i32
  }
  func.func @transform_2(%arg0: i32) -> (i32, i32) {
    %c0_i32 = arith.constant 0 : i32
    %c0_i32_0 = arith.constant 0 : i32
    %c0_i32_1 = arith.constant 0 : i32
    return %c0_i32, %c0_i32_0 : i32, i32
  }
  func.func @transform_3(%arg0: i32) -> (i32, i32) {
    %c0_i32 = arith.constant 0 : i32
    %c0_i32_0 = arith.constant 0 : i32
    return %arg0, %c0_i32 : i32, i32
  }
  func.func @transform_4(%arg0: i32) -> (i32, i32) {
    %c0_i32 = arith.constant 0 : i32
    %c0_i32_0 = arith.constant 0 : i32
    return %arg0, %c0_i32 : i32, i32
  }
}

module attributes {stable_mosaic.version = 11 : i64} {
  func.func @kern(%arg0: i32, %arg1: memref<128x144xbf16, #tpu.memory_space<vmem>>, %arg2: memref<144x16xbf16, #tpu.memory_space<vmem>>, %arg3: memref<1x16xf32, #tpu.memory_space<vmem>>, %arg4: memref<128x16xbf16, #tpu.memory_space<vmem>>) attributes {dimension_semantics = [#tpu.dimension_semantics<parallel>], iteration_bounds = array<i64: 1>, scalar_prefetch = 0 : i64, scratch_operands = 0 : i64, tpu.core_type = #tpu.core_type<tc>, window_params = [{transform_indices = @transform_0, window_bounds = array<i64: 128, 144>}, {pipeline_mode = #tpu.pipeline_mode<synchronous>, transform_indices = @transform_1, window_bounds = array<i64: 144, 16>}, {pipeline_mode = #tpu.pipeline_mode<synchronous>, transform_indices = @transform_2, window_bounds = array<i64: 1, 16>}, {transform_indices = @transform_3, window_bounds = array<i64: 128, 16>}]} {
    %c0 = arith.constant 0 : index
    %c0_0 = arith.constant 0 : index
    %0 = vector.load %arg1[%c0, %c0_0] : memref<128x144xbf16, #tpu.memory_space<vmem>>, vector<128x144xbf16>
    %c0_1 = arith.constant 0 : index
    %c0_2 = arith.constant 0 : index
    %1 = vector.load %arg2[%c0_1, %c0_2] : memref<144x16xbf16, #tpu.memory_space<vmem>>, vector<144x16xbf16>
    %cst = arith.constant dense<0.000000e+00> : vector<128x16xf32>
    %2 = tpu.matmul %0, %1, %cst {dimension_numbers = #tpu.dot_dimension_numbers<[1], [0], [0], [1], [0, 0, 1, 1], [], []>} : vector<128x144xbf16>, vector<144x16xbf16>, vector<128x16xf32> -> vector<128x16xf32>
    %c0_3 = arith.constant 0 : index
    %c0_4 = arith.constant 0 : index
    %3 = vector.load %arg3[%c0_3, %c0_4] : memref<1x16xf32, #tpu.memory_space<vmem>>, vector<1x16xf32>
    %4 = vector.broadcast %3 : vector<1x16xf32> to vector<128x16xf32>
    %5 = arith.addf %2, %4 : vector<128x16xf32>
    %6 = arith.truncf %5 : vector<128x16xf32> to vector<128x16xbf16>
    %c0_5 = arith.constant 0 : index
    %c0_6 = arith.constant 0 : index
    %7 = vector.load %arg4[%c0_5, %c0_6] : memref<128x16xbf16, #tpu.memory_space<vmem>>, vector<128x16xbf16>
    tpu.vector_store %arg4[%c0_5, %c0_6], %6 {strides = array<i32>} : memref<128x16xbf16, #tpu.memory_space<vmem>>, vector<128x16xbf16>,
    return
  }
  func.func @transform_0(%arg0: i32) -> (i32, i32) {
    %c0_i32 = arith.constant 0 : i32
    %c0_i32_0 = arith.constant 0 : i32
    return %arg0, %c0_i32 : i32, i32
  }
  func.func @transform_1(%arg0: i32) -> (i32, i32) {
    %c0_i32 = arith.constant 0 : i32
    %c0_i32_0 = arith.constant 0 : i32
    %c0_i32_1 = arith.constant 0 : i32
    return %c0_i32, %c0_i32_0 : i32, i32
  }
  func.func @transform_2(%arg0: i32) -> (i32, i32) {
    %c0_i32 = arith.constant 0 : i32
    %c0_i32_0 = arith.constant 0 : i32
    %c0_i32_1 = arith.constant 0 : i32
    return %c0_i32, %c0_i32_0 : i32, i32
  }
  func.func @transform_3(%arg0: i32) -> (i32, i32) {
    %c0_i32 = arith.constant 0 : i32
    %c0_i32_0 = arith.constant 0 : i32
    return %arg0, %c0_i32 : i32, i32
  }
}

module attributes {stable_mosaic.version = 11 : i64} {
  func.func @kern(%arg0: i32, %arg1: memref<128x72xbf16, #tpu.memory_space<vmem>>, %arg2: memref<72x8xbf16, #tpu.memory_space<vmem>>, %arg3: memref<1x8xf32, #tpu.memory_space<vmem>>, %arg4: memref<128x8xbf16, #tpu.memory_space<vmem>>, %arg5: memref<128x8xbf16, #tpu.memory_space<vmem>>) attributes {dimension_semantics = [#tpu.dimension_semantics<parallel>], iteration_bounds = array<i64: 1>, scalar_prefetch = 0 : i64, scratch_operands = 0 : i64, tpu.core_type = #tpu.core_type<tc>, window_params = [{transform_indices = @transform_0, window_bounds = array<i64: 128, 72>}, {pipeline_mode = #tpu.pipeline_mode<synchronous>, transform_indices = @transform_1, window_bounds = array<i64: 72, 8>}, {pipeline_mode = #tpu.pipeline_mode<synchronous>, transform_indices = @transform_2, window_bounds = array<i64: 1, 8>}, {transform_indices = @transform_3, window_bounds = array<i64: 128, 8>}, {transform_indices = @transform_4, window_bounds = array<i64: 128, 8>}]} {
    %c0 = arith.constant 0 : index
    %c0_0 = arith.constant 0 : index
    %0 = vector.load %arg1[%c0, %c0_0] : memref<128x72xbf16, #tpu.memory_space<vmem>>, vector<128x72xbf16>
    %c0_1 = arith.constant 0 : index
    %c0_2 = arith.constant 0 : index
    %1 = vector.load %arg2[%c0_1, %c0_2] : memref<72x8xbf16, #tpu.memory_space<vmem>>, vector<72x8xbf16>
    %cst = arith.constant dense<0.000000e+00> : vector<128x8xf32>
    %2 = tpu.matmul %0, %1, %cst {dimension_numbers = #tpu.dot_dimension_numbers<[1], [0], [0], [1], [0, 0, 1, 1], [], []>} : vector<128x72xbf16>, vector<72x8xbf16>, vector<128x8xf32> -> vector<128x8xf32>
    %c0_3 = arith.constant 0 : index
    %c0_4 = arith.constant 0 : index
    %3 = vector.load %arg3[%c0_3, %c0_4] : memref<1x8xf32, #tpu.memory_space<vmem>>, vector<1x8xf32>
    %4 = vector.broadcast %3 : vector<1x8xf32> to vector<128x8xf32>
    %5 = arith.addf %2, %4 : vector<128x8xf32>
    %c0_5 = arith.constant 0 : index
    %c0_6 = arith.constant 0 : index
    %6 = vector.load %arg4[%c0_5, %c0_6] : memref<128x8xbf16, #tpu.memory_space<vmem>>, vector<128x8xbf16>
    %7 = arith.extf %6 : vector<128x8xbf16> to vector<128x8xf32>
    %8 = arith.addf %5, %7 : vector<128x8xf32>
    %9 = arith.truncf %8 : vector<128x8xf32> to vector<128x8xbf16>
    %c0_7 = arith.constant 0 : index
    %c0_8 = arith.constant 0 : index
    %10 = vector.load %arg5[%c0_7, %c0_8] : memref<128x8xbf16, #tpu.memory_space<vmem>>, vector<128x8xbf16>
    tpu.vector_store %arg5[%c0_7, %c0_8], %9 {strides = array<i32>} : memref<128x8xbf16, #tpu.memory_space<vmem>>, vector<128x8xbf16>,
    return
  }
  func.func @transform_0(%arg0: i32) -> (i32, i32) {
    %c0_i32 = arith.constant 0 : i32
    %c0_i32_0 = arith.constant 0 : i32
    return %arg0, %c0_i32 : i32, i32
  }
  func.func @transform_1(%arg0: i32) -> (i32, i32) {
    %c0_i32 = arith.constant 0 : i32
    %c0_i32_0 = arith.constant 0 : i32
    %c0_i32_1 = arith.constant 0 : i32
    return %c0_i32, %c0_i32_0 : i32, i32
  }
  func.func @transform_2(%arg0: i32) -> (i32, i32) {
    %c0_i32 = arith.constant 0 : i32
    %c0_i32_0 = arith.constant 0 : i32
    %c0_i32_1 = arith.constant 0 : i32
    return %c0_i32, %c0_i32_0 : i32, i32
  }
  func.func @transform_3(%arg0: i32) -> (i32, i32) {
    %c0_i32 = arith.constant 0 : i32
    %c0_i32_0 = arith.constant 0 : i32
    return %arg0, %c0_i32 : i32, i32
  }
  func.func @transform_4(%arg0: i32) -> (i32, i32) {
    %c0_i32 = arith.constant 0 : i32
    %c0_i32_0 = arith.constant 0 : i32
    return %arg0, %c0_i32 : i32, i32
  }
}

module attributes {stable_mosaic.version = 11 : i64} {
  func.func @kern(%arg0: i32, %arg1: memref<128x8xbf16, #tpu.memory_space<vmem>>, %arg2: memref<8x24xbf16, #tpu.memory_space<vmem>>, %arg3: memref<1x24xf32, #tpu.memory_space<vmem>>, %arg4: memref<128x24xbf16, #tpu.memory_space<vmem>>) attributes {dimension_semantics = [#tpu.dimension_semantics<parallel>], iteration_bounds = array<i64: 1>, scalar_prefetch = 0 : i64, scratch_operands = 0 : i64, tpu.core_type = #tpu.core_type<tc>, window_params = [{transform_indices = @transform_0, window_bounds = array<i64: 128, 8>}, {pipeline_mode = #tpu.pipeline_mode<synchronous>, transform_indices = @transform_1, window_bounds = array<i64: 8, 24>}, {pipeline_mode = #tpu.pipeline_mode<synchronous>, transform_indices = @transform_2, window_bounds = array<i64: 1, 24>}, {transform_indices = @transform_3, window_bounds = array<i64: 128, 24>}]} {
    %c0 = arith.constant 0 : index
    %c0_0 = arith.constant 0 : index
    %0 = vector.load %arg1[%c0, %c0_0] : memref<128x8xbf16, #tpu.memory_space<vmem>>, vector<128x8xbf16>
    %c0_1 = arith.constant 0 : index
    %c0_2 = arith.constant 0 : index
    %1 = vector.load %arg2[%c0_1, %c0_2] : memref<8x24xbf16, #tpu.memory_space<vmem>>, vector<8x24xbf16>
    %cst = arith.constant dense<0.000000e+00> : vector<128x24xf32>
    %2 = tpu.matmul %0, %1, %cst {dimension_numbers = #tpu.dot_dimension_numbers<[1], [0], [0], [1], [0, 0, 1, 1], [], []>} : vector<128x8xbf16>, vector<8x24xbf16>, vector<128x24xf32> -> vector<128x24xf32>
    %c0_3 = arith.constant 0 : index
    %c0_4 = arith.constant 0 : index
    %3 = vector.load %arg3[%c0_3, %c0_4] : memref<1x24xf32, #tpu.memory_space<vmem>>, vector<1x24xf32>
    %4 = vector.broadcast %3 : vector<1x24xf32> to vector<128x24xf32>
    %5 = arith.addf %2, %4 : vector<128x24xf32>
    %6 = arith.truncf %5 : vector<128x24xf32> to vector<128x24xbf16>
    %c0_5 = arith.constant 0 : index
    %c0_6 = arith.constant 0 : index
    %7 = vector.load %arg4[%c0_5, %c0_6] : memref<128x24xbf16, #tpu.memory_space<vmem>>, vector<128x24xbf16>
    tpu.vector_store %arg4[%c0_5, %c0_6], %6 {strides = array<i32>} : memref<128x24xbf16, #tpu.memory_space<vmem>>, vector<128x24xbf16>,
    return
  }
  func.func @transform_0(%arg0: i32) -> (i32, i32) {
    %c0_i32 = arith.constant 0 : i32
    %c0_i32_0 = arith.constant 0 : i32
    return %arg0, %c0_i32 : i32, i32
  }
  func.func @transform_1(%arg0: i32) -> (i32, i32) {
    %c0_i32 = arith.constant 0 : i32
    %c0_i32_0 = arith.constant 0 : i32
    %c0_i32_1 = arith.constant 0 : i32
    return %c0_i32, %c0_i32_0 : i32, i32
  }
  func.func @transform_2(%arg0: i32) -> (i32, i32) {
    %c0_i32 = arith.constant 0 : i32
    %c0_i32_0 = arith.constant 0 : i32
    %c0_i32_1 = arith.constant 0 : i32
    return %c0_i32, %c0_i32_0 : i32, i32
  }
  func.func @transform_3(%arg0: i32) -> (i32, i32) {
    %c0_i32 = arith.constant 0 : i32
    %c0_i32_0 = arith.constant 0 : i32
    return %arg0, %c0_i32 : i32, i32
  }
}

module attributes {stable_mosaic.version = 11 : i64} {
  func.func @kern(%arg0: i32, %arg1: memref<128x72xbf16, #tpu.memory_space<vmem>>, %arg2: memref<72x8xbf16, #tpu.memory_space<vmem>>, %arg3: memref<1x8xf32, #tpu.memory_space<vmem>>, %arg4: memref<128x8xbf16, #tpu.memory_space<vmem>>) attributes {dimension_semantics = [#tpu.dimension_semantics<parallel>], iteration_bounds = array<i64: 1>, scalar_prefetch = 0 : i64, scratch_operands = 0 : i64, tpu.core_type = #tpu.core_type<tc>, window_params = [{transform_indices = @transform_0, window_bounds = array<i64: 128, 72>}, {pipeline_mode = #tpu.pipeline_mode<synchronous>, transform_indices = @transform_1, window_bounds = array<i64: 72, 8>}, {pipeline_mode = #tpu.pipeline_mode<synchronous>, transform_indices = @transform_2, window_bounds = array<i64: 1, 8>}, {transform_indices = @transform_3, window_bounds = array<i64: 128, 8>}]} {
    %c0 = arith.constant 0 : index
    %c0_0 = arith.constant 0 : index
    %0 = vector.load %arg1[%c0, %c0_0] : memref<128x72xbf16, #tpu.memory_space<vmem>>, vector<128x72xbf16>
    %c0_1 = arith.constant 0 : index
    %c0_2 = arith.constant 0 : index
    %1 = vector.load %arg2[%c0_1, %c0_2] : memref<72x8xbf16, #tpu.memory_space<vmem>>, vector<72x8xbf16>
    %cst = arith.constant dense<0.000000e+00> : vector<128x8xf32>
    %2 = tpu.matmul %0, %1, %cst {dimension_numbers = #tpu.dot_dimension_numbers<[1], [0], [0], [1], [0, 0, 1, 1], [], []>} : vector<128x72xbf16>, vector<72x8xbf16>, vector<128x8xf32> -> vector<128x8xf32>
    %c0_3 = arith.constant 0 : index
    %c0_4 = arith.constant 0 : index
    %3 = vector.load %arg3[%c0_3, %c0_4] : memref<1x8xf32, #tpu.memory_space<vmem>>, vector<1x8xf32>
    %4 = vector.broadcast %3 : vector<1x8xf32> to vector<128x8xf32>
    %5 = arith.addf %2, %4 : vector<128x8xf32>
    %cst_5 = arith.constant 0.000000e+00 : f32
    %6 = vector.broadcast %cst_5 : f32 to vector<128x8xf32>
    %7 = arith.maximumf %5, %6 : vector<128x8xf32>
    %8 = arith.truncf %7 : vector<128x8xf32> to vector<128x8xbf16>
    %c0_6 = arith.constant 0 : index
    %c0_7 = arith.constant 0 : index
    %9 = vector.load %arg4[%c0_6, %c0_7] : memref<128x8xbf16, #tpu.memory_space<vmem>>, vector<128x8xbf16>
    tpu.vector_store %arg4[%c0_6, %c0_7], %8 {strides = array<i32>} : memref<128x8xbf16, #tpu.memory_space<vmem>>, vector<128x8xbf16>,
    return
  }
  func.func @transform_0(%arg0: i32) -> (i32, i32) {
    %c0_i32 = arith.constant 0 : i32
    %c0_i32_0 = arith.constant 0 : i32
    return %arg0, %c0_i32 : i32, i32
  }
  func.func @transform_1(%arg0: i32) -> (i32, i32) {
    %c0_i32 = arith.constant 0 : i32
    %c0_i32_0 = arith.constant 0 : i32
    %c0_i32_1 = arith.constant 0 : i32
    return %c0_i32, %c0_i32_0 : i32, i32
  }
  func.func @transform_2(%arg0: i32) -> (i32, i32) {
    %c0_i32 = arith.constant 0 : i32
    %c0_i32_0 = arith.constant 0 : i32
    %c0_i32_1 = arith.constant 0 : i32
    return %c0_i32, %c0_i32_0 : i32, i32
  }
  func.func @transform_3(%arg0: i32) -> (i32, i32) {
    %c0_i32 = arith.constant 0 : i32
    %c0_i32_0 = arith.constant 0 : i32
    return %arg0, %c0_i32 : i32, i32
  }
}

module attributes {stable_mosaic.version = 11 : i64} {
  func.func @kern(%arg0: i32, %arg1: memref<128x8xbf16, #tpu.memory_space<vmem>>, %arg2: memref<8x16xbf16, #tpu.memory_space<vmem>>, %arg3: memref<1x16xf32, #tpu.memory_space<vmem>>, %arg4: memref<128x16xbf16, #tpu.memory_space<vmem>>, %arg5: memref<128x16xbf16, #tpu.memory_space<vmem>>) attributes {dimension_semantics = [#tpu.dimension_semantics<parallel>], iteration_bounds = array<i64: 1>, scalar_prefetch = 0 : i64, scratch_operands = 0 : i64, tpu.core_type = #tpu.core_type<tc>, window_params = [{transform_indices = @transform_0, window_bounds = array<i64: 128, 8>}, {pipeline_mode = #tpu.pipeline_mode<synchronous>, transform_indices = @transform_1, window_bounds = array<i64: 8, 16>}, {pipeline_mode = #tpu.pipeline_mode<synchronous>, transform_indices = @transform_2, window_bounds = array<i64: 1, 16>}, {transform_indices = @transform_3, window_bounds = array<i64: 128, 16>}, {transform_indices = @transform_4, window_bounds = array<i64: 128, 16>}]} {
    %c0 = arith.constant 0 : index
    %c0_0 = arith.constant 0 : index
    %0 = vector.load %arg1[%c0, %c0_0] : memref<128x8xbf16, #tpu.memory_space<vmem>>, vector<128x8xbf16>
    %c0_1 = arith.constant 0 : index
    %c0_2 = arith.constant 0 : index
    %1 = vector.load %arg2[%c0_1, %c0_2] : memref<8x16xbf16, #tpu.memory_space<vmem>>, vector<8x16xbf16>
    %cst = arith.constant dense<0.000000e+00> : vector<128x16xf32>
    %2 = tpu.matmul %0, %1, %cst {dimension_numbers = #tpu.dot_dimension_numbers<[1], [0], [0], [1], [0, 0, 1, 1], [], []>} : vector<128x8xbf16>, vector<8x16xbf16>, vector<128x16xf32> -> vector<128x16xf32>
    %c0_3 = arith.constant 0 : index
    %c0_4 = arith.constant 0 : index
    %3 = vector.load %arg3[%c0_3, %c0_4] : memref<1x16xf32, #tpu.memory_space<vmem>>, vector<1x16xf32>
    %4 = vector.broadcast %3 : vector<1x16xf32> to vector<128x16xf32>
    %5 = arith.addf %2, %4 : vector<128x16xf32>
    %c0_5 = arith.constant 0 : index
    %c0_6 = arith.constant 0 : index
    %6 = vector.load %arg4[%c0_5, %c0_6] : memref<128x16xbf16, #tpu.memory_space<vmem>>, vector<128x16xbf16>
    %7 = arith.extf %6 : vector<128x16xbf16> to vector<128x16xf32>
    %8 = arith.addf %5, %7 : vector<128x16xf32>
    %9 = arith.truncf %8 : vector<128x16xf32> to vector<128x16xbf16>
    %c0_7 = arith.constant 0 : index
    %c0_8 = arith.constant 0 : index
    %10 = vector.load %arg5[%c0_7, %c0_8] : memref<128x16xbf16, #tpu.memory_space<vmem>>, vector<128x16xbf16>
    tpu.vector_store %arg5[%c0_7, %c0_8], %9 {strides = array<i32>} : memref<128x16xbf16, #tpu.memory_space<vmem>>, vector<128x16xbf16>,
    return
  }
  func.func @transform_0(%arg0: i32) -> (i32, i32) {
    %c0_i32 = arith.constant 0 : i32
    %c0_i32_0 = arith.constant 0 : i32
    return %arg0, %c0_i32 : i32, i32
  }
  func.func @transform_1(%arg0: i32) -> (i32, i32) {
    %c0_i32 = arith.constant 0 : i32
    %c0_i32_0 = arith.constant 0 : i32
    %c0_i32_1 = arith.constant 0 : i32
    return %c0_i32, %c0_i32_0 : i32, i32
  }
  func.func @transform_2(%arg0: i32) -> (i32, i32) {
    %c0_i32 = arith.constant 0 : i32
    %c0_i32_0 = arith.constant 0 : i32
    %c0_i32_1 = arith.constant 0 : i32
    return %c0_i32, %c0_i32_0 : i32, i32
  }
  func.func @transform_3(%arg0: i32) -> (i32, i32) {
    %c0_i32 = arith.constant 0 : i32
    %c0_i32_0 = arith.constant 0 : i32
    return %arg0, %c0_i32 : i32, i32
  }
  func.func @transform_4(%arg0: i32) -> (i32, i32) {
    %c0_i32 = arith.constant 0 : i32
    %c0_i32_0 = arith.constant 0 : i32
    return %arg0, %c0_i32 : i32, i32
  }
}

module attributes {stable_mosaic.version = 11 : i64} {
  func.func @kern(%arg0: i32, %arg1: memref<128x16xbf16, #tpu.memory_space<vmem>>, %arg2: memref<16x48xbf16, #tpu.memory_space<vmem>>, %arg3: memref<1x48xf32, #tpu.memory_space<vmem>>, %arg4: memref<128x48xbf16, #tpu.memory_space<vmem>>) attributes {dimension_semantics = [#tpu.dimension_semantics<parallel>], iteration_bounds = array<i64: 1>, scalar_prefetch = 0 : i64, scratch_operands = 0 : i64, tpu.core_type = #tpu.core_type<tc>, window_params = [{transform_indices = @transform_0, window_bounds = array<i64: 128, 16>}, {pipeline_mode = #tpu.pipeline_mode<synchronous>, transform_indices = @transform_1, window_bounds = array<i64: 16, 48>}, {pipeline_mode = #tpu.pipeline_mode<synchronous>, transform_indices = @transform_2, window_bounds = array<i64: 1, 48>}, {transform_indices = @transform_3, window_bounds = array<i64: 128, 48>}]} {
    %c0 = arith.constant 0 : index
    %c0_0 = arith.constant 0 : index
    %0 = vector.load %arg1[%c0, %c0_0] : memref<128x16xbf16, #tpu.memory_space<vmem>>, vector<128x16xbf16>
    %c0_1 = arith.constant 0 : index
    %c0_2 = arith.constant 0 : index
    %1 = vector.load %arg2[%c0_1, %c0_2] : memref<16x48xbf16, #tpu.memory_space<vmem>>, vector<16x48xbf16>
    %cst = arith.constant dense<0.000000e+00> : vector<128x48xf32>
    %2 = tpu.matmul %0, %1, %cst {dimension_numbers = #tpu.dot_dimension_numbers<[1], [0], [0], [1], [0, 0, 1, 1], [], []>} : vector<128x16xbf16>, vector<16x48xbf16>, vector<128x48xf32> -> vector<128x48xf32>
    %c0_3 = arith.constant 0 : index
    %c0_4 = arith.constant 0 : index
    %3 = vector.load %arg3[%c0_3, %c0_4] : memref<1x48xf32, #tpu.memory_space<vmem>>, vector<1x48xf32>
    %4 = vector.broadcast %3 : vector<1x48xf32> to vector<128x48xf32>
    %5 = arith.addf %2, %4 : vector<128x48xf32>
    %6 = arith.truncf %5 : vector<128x48xf32> to vector<128x48xbf16>
    %c0_5 = arith.constant 0 : index
    %c0_6 = arith.constant 0 : index
    %7 = vector.load %arg4[%c0_5, %c0_6] : memref<128x48xbf16, #tpu.memory_space<vmem>>, vector<128x48xbf16>
    tpu.vector_store %arg4[%c0_5, %c0_6], %6 {strides = array<i32>} : memref<128x48xbf16, #tpu.memory_space<vmem>>, vector<128x48xbf16>,
    return
  }
  func.func @transform_0(%arg0: i32) -> (i32, i32) {
    %c0_i32 = arith.constant 0 : i32
    %c0_i32_0 = arith.constant 0 : i32
    return %arg0, %c0_i32 : i32, i32
  }
  func.func @transform_1(%arg0: i32) -> (i32, i32) {
    %c0_i32 = arith.constant 0 : i32
    %c0_i32_0 = arith.constant 0 : i32
    %c0_i32_1 = arith.constant 0 : i32
    return %c0_i32, %c0_i32_0 : i32, i32
  }
  func.func @transform_2(%arg0: i32) -> (i32, i32) {
    %c0_i32 = arith.constant 0 : i32
    %c0_i32_0 = arith.constant 0 : i32
    %c0_i32_1 = arith.constant 0 : i32
    return %c0_i32, %c0_i32_0 : i32, i32
  }
  func.func @transform_3(%arg0: i32) -> (i32, i32) {
    %c0_i32 = arith.constant 0 : i32
    %c0_i32_0 = arith.constant 0 : i32
    return %arg0, %c0_i32 : i32, i32
  }
}

module attributes {stable_mosaic.version = 11 : i64} {
  func.func @kern(%arg0: i32, %arg1: memref<128x16xbf16, #tpu.memory_space<vmem>>, %arg2: memref<16x32xbf16, #tpu.memory_space<vmem>>, %arg3: memref<1x32xf32, #tpu.memory_space<vmem>>, %arg4: memref<128x32xbf16, #tpu.memory_space<vmem>>, %arg5: memref<128x32xbf16, #tpu.memory_space<vmem>>) attributes {dimension_semantics = [#tpu.dimension_semantics<parallel>], iteration_bounds = array<i64: 1>, scalar_prefetch = 0 : i64, scratch_operands = 0 : i64, tpu.core_type = #tpu.core_type<tc>, window_params = [{transform_indices = @transform_0, window_bounds = array<i64: 128, 16>}, {pipeline_mode = #tpu.pipeline_mode<synchronous>, transform_indices = @transform_1, window_bounds = array<i64: 16, 32>}, {pipeline_mode = #tpu.pipeline_mode<synchronous>, transform_indices = @transform_2, window_bounds = array<i64: 1, 32>}, {transform_indices = @transform_3, window_bounds = array<i64: 128, 32>}, {transform_indices = @transform_4, window_bounds = array<i64: 128, 32>}]} {
    %c0 = arith.constant 0 : index
    %c0_0 = arith.constant 0 : index
    %0 = vector.load %arg1[%c0, %c0_0] : memref<128x16xbf16, #tpu.memory_space<vmem>>, vector<128x16xbf16>
    %c0_1 = arith.constant 0 : index
    %c0_2 = arith.constant 0 : index
    %1 = vector.load %arg2[%c0_1, %c0_2] : memref<16x32xbf16, #tpu.memory_space<vmem>>, vector<16x32xbf16>
    %cst = arith.constant dense<0.000000e+00> : vector<128x32xf32>
    %2 = tpu.matmul %0, %1, %cst {dimension_numbers = #tpu.dot_dimension_numbers<[1], [0], [0], [1], [0, 0, 1, 1], [], []>} : vector<128x16xbf16>, vector<16x32xbf16>, vector<128x32xf32> -> vector<128x32xf32>
    %c0_3 = arith.constant 0 : index
    %c0_4 = arith.constant 0 : index
    %3 = vector.load %arg3[%c0_3, %c0_4] : memref<1x32xf32, #tpu.memory_space<vmem>>, vector<1x32xf32>
    %4 = vector.broadcast %3 : vector<1x32xf32> to vector<128x32xf32>
    %5 = arith.addf %2, %4 : vector<128x32xf32>
    %c0_5 = arith.constant 0 : index
    %c0_6 = arith.constant 0 : index
    %6 = vector.load %arg4[%c0_5, %c0_6] : memref<128x32xbf16, #tpu.memory_space<vmem>>, vector<128x32xbf16>
    %7 = arith.extf %6 : vector<128x32xbf16> to vector<128x32xf32>
    %8 = arith.addf %5, %7 : vector<128x32xf32>
    %9 = arith.truncf %8 : vector<128x32xf32> to vector<128x32xbf16>
    %c0_7 = arith.constant 0 : index
    %c0_8 = arith.constant 0 : index
    %10 = vector.load %arg5[%c0_7, %c0_8] : memref<128x32xbf16, #tpu.memory_space<vmem>>, vector<128x32xbf16>
    tpu.vector_store %arg5[%c0_7, %c0_8], %9 {strides = array<i32>} : memref<128x32xbf16, #tpu.memory_space<vmem>>, vector<128x32xbf16>,
    return
  }
  func.func @transform_0(%arg0: i32) -> (i32, i32) {
    %c0_i32 = arith.constant 0 : i32
    %c0_i32_0 = arith.constant 0 : i32
    return %arg0, %c0_i32 : i32, i32
  }
  func.func @transform_1(%arg0: i32) -> (i32, i32) {
    %c0_i32 = arith.constant 0 : i32
    %c0_i32_0 = arith.constant 0 : i32
    %c0_i32_1 = arith.constant 0 : i32
    return %c0_i32, %c0_i32_0 : i32, i32
  }
  func.func @transform_2(%arg0: i32) -> (i32, i32) {
    %c0_i32 = arith.constant 0 : i32
    %c0_i32_0 = arith.constant 0 : i32
    %c0_i32_1 = arith.constant 0 : i32
    return %c0_i32, %c0_i32_0 : i32, i32
  }
  func.func @transform_3(%arg0: i32) -> (i32, i32) {
    %c0_i32 = arith.constant 0 : i32
    %c0_i32_0 = arith.constant 0 : i32
    return %arg0, %c0_i32 : i32, i32
  }
  func.func @transform_4(%arg0: i32) -> (i32, i32) {
    %c0_i32 = arith.constant 0 : i32
    %c0_i32_0 = arith.constant 0 : i32
    return %arg0, %c0_i32 : i32, i32
  }
}

module attributes {stable_mosaic.version = 11 : i64} {
  func.func @_pag_kernel(%arg0: i32, %arg1: memref<128x16xbf16, #tpu.memory_space<vmem>>, %arg2: memref<128x8xbf16, #tpu.memory_space<vmem>>, %arg3: memref<128x16xbf16, #tpu.memory_space<vmem>>, %arg4: memref<128x8xbf16, #tpu.memory_space<vmem>>, %arg5: memref<128x16xbf16, #tpu.memory_space<vmem>>) attributes {dimension_semantics = [#tpu.dimension_semantics<parallel>], iteration_bounds = array<i64: 1>, scalar_prefetch = 0 : i64, scratch_operands = 0 : i64, tpu.core_type = #tpu.core_type<tc>, window_params = [{transform_indices = @transform_0, window_bounds = array<i64: 128, 16>}, {transform_indices = @transform_1, window_bounds = array<i64: 128, 8>}, {transform_indices = @transform_2, window_bounds = array<i64: 128, 16>}, {transform_indices = @transform_3, window_bounds = array<i64: 128, 8>}, {transform_indices = @transform_4, window_bounds = array<i64: 128, 16>}]} {
    %c0 = arith.constant 0 : index
    %c0_0 = arith.constant 0 : index
    %0 = vector.load %arg2[%c0, %c0_0] : memref<128x8xbf16, #tpu.memory_space<vmem>>, vector<128x8xbf16>
    %1 = arith.extf %0 : vector<128x8xbf16> to vector<128x8xf32>
    %c0_1 = arith.constant 0 : index
    %c0_2 = arith.constant 0 : index
    %2 = vector.load %arg4[%c0_1, %c0_2] : memref<128x8xbf16, #tpu.memory_space<vmem>>, vector<128x8xbf16>
    %3 = arith.extf %2 : vector<128x8xbf16> to vector<128x8xf32>
    %4 = arith.mulf %1, %3 : vector<128x8xf32>
    %cst = arith.constant dense<0.000000e+00> : vector<128xf32>
    %5 = vector.multi_reduction <add>, %4, %cst [1] : vector<128x8xf32> to vector<128xf32>
    %6 = vector.shape_cast %5 : vector<128xf32> to vector<128x1xf32>
    %7 = arith.negf %6 : vector<128x1xf32>
    %8 = math.exp %7 : vector<128x1xf32>
    %cst_3 = arith.constant 1.000000e+00 : f32
    %9 = vector.broadcast %cst_3 : f32 to vector<128x1xf32>
    %10 = arith.addf %9, %8 : vector<128x1xf32>
    %11 = arith.divf %9, %10 : vector<128x1xf32>
    %c0_4 = arith.constant 0 : index
    %c0_5 = arith.constant 0 : index
    %12 = vector.load %arg1[%c0_4, %c0_5] : memref<128x16xbf16, #tpu.memory_space<vmem>>, vector<128x16xbf16>
    %13 = arith.extf %12 : vector<128x16xbf16> to vector<128x16xf32>
    %c0_6 = arith.constant 0 : index
    %c0_7 = arith.constant 0 : index
    %14 = vector.load %arg3[%c0_6, %c0_7] : memref<128x16xbf16, #tpu.memory_space<vmem>>, vector<128x16xbf16>
    %15 = arith.extf %14 : vector<128x16xbf16> to vector<128x16xf32>
    %cst_8 = arith.constant 1.000000e+00 : f32
    %16 = vector.broadcast %cst_8 : f32 to vector<128x1xf32>
    %17 = arith.subf %16, %11 : vector<128x1xf32>
    %18 = vector.broadcast %17 : vector<128x1xf32> to vector<128x16xf32>
    %19 = arith.mulf %18, %13 : vector<128x16xf32>
    %20 = vector.broadcast %11 : vector<128x1xf32> to vector<128x16xf32>
    %21 = arith.mulf %20, %15 : vector<128x16xf32>
    %22 = arith.addf %19, %21 : vector<128x16xf32>
    %23 = arith.truncf %22 : vector<128x16xf32> to vector<128x16xbf16>
    %c0_9 = arith.constant 0 : index
    %c0_10 = arith.constant 0 : index
    %24 = vector.load %arg5[%c0_9, %c0_10] : memref<128x16xbf16, #tpu.memory_space<vmem>>, vector<128x16xbf16>
    tpu.vector_store %arg5[%c0_9, %c0_10], %23 {strides = array<i32>} : memref<128x16xbf16, #tpu.memory_space<vmem>>, vector<128x16xbf16>,
    return
  }
  func.func @transform_0(%arg0: i32) -> (i32, i32) {
    %c0_i32 = arith.constant 0 : i32
    %c0_i32_0 = arith.constant 0 : i32
    return %arg0, %c0_i32 : i32, i32
  }
  func.func @transform_1(%arg0: i32) -> (i32, i32) {
    %c0_i32 = arith.constant 0 : i32
    %c0_i32_0 = arith.constant 0 : i32
    return %arg0, %c0_i32 : i32, i32
  }
  func.func @transform_2(%arg0: i32) -> (i32, i32) {
    %c0_i32 = arith.constant 0 : i32
    %c0_i32_0 = arith.constant 0 : i32
    return %arg0, %c0_i32 : i32, i32
  }
  func.func @transform_3(%arg0: i32) -> (i32, i32) {
    %c0_i32 = arith.constant 0 : i32
    %c0_i32_0 = arith.constant 0 : i32
    return %arg0, %c0_i32 : i32, i32
  }
  func.func @transform_4(%arg0: i32) -> (i32, i32) {
    %c0_i32 = arith.constant 0 : i32
    %c0_i32_0 = arith.constant 0 : i32
    return %arg0, %c0_i32 : i32, i32
  }
}

module attributes {stable_mosaic.version = 11 : i64} {
  func.func @kern(%arg0: i32, %arg1: memref<128x16xbf16, #tpu.memory_space<vmem>>, %arg2: memref<16x8xbf16, #tpu.memory_space<vmem>>, %arg3: memref<1x8xf32, #tpu.memory_space<vmem>>, %arg4: memref<128x8xbf16, #tpu.memory_space<vmem>>) attributes {dimension_semantics = [#tpu.dimension_semantics<parallel>], iteration_bounds = array<i64: 1>, scalar_prefetch = 0 : i64, scratch_operands = 0 : i64, tpu.core_type = #tpu.core_type<tc>, window_params = [{transform_indices = @transform_0, window_bounds = array<i64: 128, 16>}, {pipeline_mode = #tpu.pipeline_mode<synchronous>, transform_indices = @transform_1, window_bounds = array<i64: 16, 8>}, {pipeline_mode = #tpu.pipeline_mode<synchronous>, transform_indices = @transform_2, window_bounds = array<i64: 1, 8>}, {transform_indices = @transform_3, window_bounds = array<i64: 128, 8>}]} {
    %c0 = arith.constant 0 : index
    %c0_0 = arith.constant 0 : index
    %0 = vector.load %arg1[%c0, %c0_0] : memref<128x16xbf16, #tpu.memory_space<vmem>>, vector<128x16xbf16>
    %c0_1 = arith.constant 0 : index
    %c0_2 = arith.constant 0 : index
    %1 = vector.load %arg2[%c0_1, %c0_2] : memref<16x8xbf16, #tpu.memory_space<vmem>>, vector<16x8xbf16>
    %cst = arith.constant dense<0.000000e+00> : vector<128x8xf32>
    %2 = tpu.matmul %0, %1, %cst {dimension_numbers = #tpu.dot_dimension_numbers<[1], [0], [0], [1], [0, 0, 1, 1], [], []>} : vector<128x16xbf16>, vector<16x8xbf16>, vector<128x8xf32> -> vector<128x8xf32>
    %c0_3 = arith.constant 0 : index
    %c0_4 = arith.constant 0 : index
    %3 = vector.load %arg3[%c0_3, %c0_4] : memref<1x8xf32, #tpu.memory_space<vmem>>, vector<1x8xf32>
    %4 = vector.broadcast %3 : vector<1x8xf32> to vector<128x8xf32>
    %5 = arith.addf %2, %4 : vector<128x8xf32>
    %6 = arith.truncf %5 : vector<128x8xf32> to vector<128x8xbf16>
    %c0_5 = arith.constant 0 : index
    %c0_6 = arith.constant 0 : index
    %7 = vector.load %arg4[%c0_5, %c0_6] : memref<128x8xbf16, #tpu.memory_space<vmem>>, vector<128x8xbf16>
    tpu.vector_store %arg4[%c0_5, %c0_6], %6 {strides = array<i32>} : memref<128x8xbf16, #tpu.memory_space<vmem>>, vector<128x8xbf16>,
    return
  }
  func.func @transform_0(%arg0: i32) -> (i32, i32) {
    %c0_i32 = arith.constant 0 : i32
    %c0_i32_0 = arith.constant 0 : i32
    return %arg0, %c0_i32 : i32, i32
  }
  func.func @transform_1(%arg0: i32) -> (i32, i32) {
    %c0_i32 = arith.constant 0 : i32
    %c0_i32_0 = arith.constant 0 : i32
    %c0_i32_1 = arith.constant 0 : i32
    return %c0_i32, %c0_i32_0 : i32, i32
  }
  func.func @transform_2(%arg0: i32) -> (i32, i32) {
    %c0_i32 = arith.constant 0 : i32
    %c0_i32_0 = arith.constant 0 : i32
    %c0_i32_1 = arith.constant 0 : i32
    return %c0_i32, %c0_i32_0 : i32, i32
  }
  func.func @transform_3(%arg0: i32) -> (i32, i32) {
    %c0_i32 = arith.constant 0 : i32
    %c0_i32_0 = arith.constant 0 : i32
    return %arg0, %c0_i32 : i32, i32
  }
}

module attributes {stable_mosaic.version = 11 : i64} {
  func.func @kern(%arg0: i32, %arg1: memref<128x32xbf16, #tpu.memory_space<vmem>>, %arg2: memref<32x32xbf16, #tpu.memory_space<vmem>>, %arg3: memref<1x32xf32, #tpu.memory_space<vmem>>, %arg4: memref<128x32xbf16, #tpu.memory_space<vmem>>) attributes {dimension_semantics = [#tpu.dimension_semantics<parallel>], iteration_bounds = array<i64: 1>, scalar_prefetch = 0 : i64, scratch_operands = 0 : i64, tpu.core_type = #tpu.core_type<tc>, window_params = [{transform_indices = @transform_0, window_bounds = array<i64: 128, 32>}, {pipeline_mode = #tpu.pipeline_mode<synchronous>, transform_indices = @transform_1, window_bounds = array<i64: 32, 32>}, {pipeline_mode = #tpu.pipeline_mode<synchronous>, transform_indices = @transform_2, window_bounds = array<i64: 1, 32>}, {transform_indices = @transform_3, window_bounds = array<i64: 128, 32>}]} {
    %c0 = arith.constant 0 : index
    %c0_0 = arith.constant 0 : index
    %0 = vector.load %arg1[%c0, %c0_0] : memref<128x32xbf16, #tpu.memory_space<vmem>>, vector<128x32xbf16>
    %c0_1 = arith.constant 0 : index
    %c0_2 = arith.constant 0 : index
    %1 = vector.load %arg2[%c0_1, %c0_2] : memref<32x32xbf16, #tpu.memory_space<vmem>>, vector<32x32xbf16>
    %cst = arith.constant dense<0.000000e+00> : vector<128x32xf32>
    %2 = tpu.matmul %0, %1, %cst {dimension_numbers = #tpu.dot_dimension_numbers<[1], [0], [0], [1], [0, 0, 1, 1], [], []>} : vector<128x32xbf16>, vector<32x32xbf16>, vector<128x32xf32> -> vector<128x32xf32>
    %c0_3 = arith.constant 0 : index
    %c0_4 = arith.constant 0 : index
    %3 = vector.load %arg3[%c0_3, %c0_4] : memref<1x32xf32, #tpu.memory_space<vmem>>, vector<1x32xf32>
    %4 = vector.broadcast %3 : vector<1x32xf32> to vector<128x32xf32>
    %5 = arith.addf %2, %4 : vector<128x32xf32>
    %6 = arith.truncf %5 : vector<128x32xf32> to vector<128x32xbf16>
    %c0_5 = arith.constant 0 : index
    %c0_6 = arith.constant 0 : index
    %7 = vector.load %arg4[%c0_5, %c0_6] : memref<128x32xbf16, #tpu.memory_space<vmem>>, vector<128x32xbf16>
    tpu.vector_store %arg4[%c0_5, %c0_6], %6 {strides = array<i32>} : memref<128x32xbf16, #tpu.memory_space<vmem>>, vector<128x32xbf16>,
    return
  }
  func.func @transform_0(%arg0: i32) -> (i32, i32) {
    %c0_i32 = arith.constant 0 : i32
    %c0_i32_0 = arith.constant 0 : i32
    return %arg0, %c0_i32 : i32, i32
  }
  func.func @transform_1(%arg0: i32) -> (i32, i32) {
    %c0_i32 = arith.constant 0 : i32
    %c0_i32_0 = arith.constant 0 : i32
    %c0_i32_1 = arith.constant 0 : i32
    return %c0_i32, %c0_i32_0 : i32, i32
  }
  func.func @transform_2(%arg0: i32) -> (i32, i32) {
    %c0_i32 = arith.constant 0 : i32
    %c0_i32_0 = arith.constant 0 : i32
    %c0_i32_1 = arith.constant 0 : i32
    return %c0_i32, %c0_i32_0 : i32, i32
  }
  func.func @transform_3(%arg0: i32) -> (i32, i32) {
    %c0_i32 = arith.constant 0 : i32
    %c0_i32_0 = arith.constant 0 : i32
    return %arg0, %c0_i32 : i32, i32
  }
}

module attributes {stable_mosaic.version = 11 : i64} {
  func.func @kern(%arg0: i32, %arg1: memref<128x32xbf16, #tpu.memory_space<vmem>>, %arg2: memref<32x32xbf16, #tpu.memory_space<vmem>>, %arg3: memref<1x32xf32, #tpu.memory_space<vmem>>, %arg4: memref<128x32xbf16, #tpu.memory_space<vmem>>, %arg5: memref<128x32xbf16, #tpu.memory_space<vmem>>) attributes {dimension_semantics = [#tpu.dimension_semantics<parallel>], iteration_bounds = array<i64: 1>, scalar_prefetch = 0 : i64, scratch_operands = 0 : i64, tpu.core_type = #tpu.core_type<tc>, window_params = [{transform_indices = @transform_0, window_bounds = array<i64: 128, 32>}, {pipeline_mode = #tpu.pipeline_mode<synchronous>, transform_indices = @transform_1, window_bounds = array<i64: 32, 32>}, {pipeline_mode = #tpu.pipeline_mode<synchronous>, transform_indices = @transform_2, window_bounds = array<i64: 1, 32>}, {transform_indices = @transform_3, window_bounds = array<i64: 128, 32>}, {transform_indices = @transform_4, window_bounds = array<i64: 128, 32>}]} {
    %c0 = arith.constant 0 : index
    %c0_0 = arith.constant 0 : index
    %0 = vector.load %arg1[%c0, %c0_0] : memref<128x32xbf16, #tpu.memory_space<vmem>>, vector<128x32xbf16>
    %c0_1 = arith.constant 0 : index
    %c0_2 = arith.constant 0 : index
    %1 = vector.load %arg2[%c0_1, %c0_2] : memref<32x32xbf16, #tpu.memory_space<vmem>>, vector<32x32xbf16>
    %cst = arith.constant dense<0.000000e+00> : vector<128x32xf32>
    %2 = tpu.matmul %0, %1, %cst {dimension_numbers = #tpu.dot_dimension_numbers<[1], [0], [0], [1], [0, 0, 1, 1], [], []>} : vector<128x32xbf16>, vector<32x32xbf16>, vector<128x32xf32> -> vector<128x32xf32>
    %c0_3 = arith.constant 0 : index
    %c0_4 = arith.constant 0 : index
    %3 = vector.load %arg3[%c0_3, %c0_4] : memref<1x32xf32, #tpu.memory_space<vmem>>, vector<1x32xf32>
    %4 = vector.broadcast %3 : vector<1x32xf32> to vector<128x32xf32>
    %5 = arith.addf %2, %4 : vector<128x32xf32>
    %c0_5 = arith.constant 0 : index
    %c0_6 = arith.constant 0 : index
    %6 = vector.load %arg4[%c0_5, %c0_6] : memref<128x32xbf16, #tpu.memory_space<vmem>>, vector<128x32xbf16>
    %7 = arith.extf %6 : vector<128x32xbf16> to vector<128x32xf32>
    %8 = arith.addf %5, %7 : vector<128x32xf32>
    %9 = arith.truncf %8 : vector<128x32xf32> to vector<128x32xbf16>
    %c0_7 = arith.constant 0 : index
    %c0_8 = arith.constant 0 : index
    %10 = vector.load %arg5[%c0_7, %c0_8] : memref<128x32xbf16, #tpu.memory_space<vmem>>, vector<128x32xbf16>
    tpu.vector_store %arg5[%c0_7, %c0_8], %9 {strides = array<i32>} : memref<128x32xbf16, #tpu.memory_space<vmem>>, vector<128x32xbf16>,
    return
  }
  func.func @transform_0(%arg0: i32) -> (i32, i32) {
    %c0_i32 = arith.constant 0 : i32
    %c0_i32_0 = arith.constant 0 : i32
    return %arg0, %c0_i32 : i32, i32
  }
  func.func @transform_1(%arg0: i32) -> (i32, i32) {
    %c0_i32 = arith.constant 0 : i32
    %c0_i32_0 = arith.constant 0 : i32
    %c0_i32_1 = arith.constant 0 : i32
    return %c0_i32, %c0_i32_0 : i32, i32
  }
  func.func @transform_2(%arg0: i32) -> (i32, i32) {
    %c0_i32 = arith.constant 0 : i32
    %c0_i32_0 = arith.constant 0 : i32
    %c0_i32_1 = arith.constant 0 : i32
    return %c0_i32, %c0_i32_0 : i32, i32
  }
  func.func @transform_3(%arg0: i32) -> (i32, i32) {
    %c0_i32 = arith.constant 0 : i32
    %c0_i32_0 = arith.constant 0 : i32
    return %arg0, %c0_i32 : i32, i32
  }
  func.func @transform_4(%arg0: i32) -> (i32, i32) {
    %c0_i32 = arith.constant 0 : i32
    %c0_i32_0 = arith.constant 0 : i32
    return %arg0, %c0_i32 : i32, i32
  }
}

module attributes {stable_mosaic.version = 11 : i64} {
  func.func @kern(%arg0: i32, %arg1: memref<128x288xbf16, #tpu.memory_space<vmem>>, %arg2: memref<288x16xbf16, #tpu.memory_space<vmem>>, %arg3: memref<1x16xf32, #tpu.memory_space<vmem>>, %arg4: memref<128x16xbf16, #tpu.memory_space<vmem>>) attributes {dimension_semantics = [#tpu.dimension_semantics<parallel>], iteration_bounds = array<i64: 1>, scalar_prefetch = 0 : i64, scratch_operands = 0 : i64, tpu.core_type = #tpu.core_type<tc>, window_params = [{transform_indices = @transform_0, window_bounds = array<i64: 128, 288>}, {pipeline_mode = #tpu.pipeline_mode<synchronous>, transform_indices = @transform_1, window_bounds = array<i64: 288, 16>}, {pipeline_mode = #tpu.pipeline_mode<synchronous>, transform_indices = @transform_2, window_bounds = array<i64: 1, 16>}, {transform_indices = @transform_3, window_bounds = array<i64: 128, 16>}]} {
    %c0 = arith.constant 0 : index
    %c0_0 = arith.constant 0 : index
    %0 = vector.load %arg1[%c0, %c0_0] : memref<128x288xbf16, #tpu.memory_space<vmem>>, vector<128x288xbf16>
    %c0_1 = arith.constant 0 : index
    %c0_2 = arith.constant 0 : index
    %1 = vector.load %arg2[%c0_1, %c0_2] : memref<288x16xbf16, #tpu.memory_space<vmem>>, vector<288x16xbf16>
    %cst = arith.constant dense<0.000000e+00> : vector<128x16xf32>
    %2 = tpu.matmul %0, %1, %cst {dimension_numbers = #tpu.dot_dimension_numbers<[1], [0], [0], [1], [0, 0, 1, 1], [], []>} : vector<128x288xbf16>, vector<288x16xbf16>, vector<128x16xf32> -> vector<128x16xf32>
    %c0_3 = arith.constant 0 : index
    %c0_4 = arith.constant 0 : index
    %3 = vector.load %arg3[%c0_3, %c0_4] : memref<1x16xf32, #tpu.memory_space<vmem>>, vector<1x16xf32>
    %4 = vector.broadcast %3 : vector<1x16xf32> to vector<128x16xf32>
    %5 = arith.addf %2, %4 : vector<128x16xf32>
    %6 = arith.truncf %5 : vector<128x16xf32> to vector<128x16xbf16>
    %c0_5 = arith.constant 0 : index
    %c0_6 = arith.constant 0 : index
    %7 = vector.load %arg4[%c0_5, %c0_6] : memref<128x16xbf16, #tpu.memory_space<vmem>>, vector<128x16xbf16>
    tpu.vector_store %arg4[%c0_5, %c0_6], %6 {strides = array<i32>} : memref<128x16xbf16, #tpu.memory_space<vmem>>, vector<128x16xbf16>,
    return
  }
  func.func @transform_0(%arg0: i32) -> (i32, i32) {
    %c0_i32 = arith.constant 0 : i32
    %c0_i32_0 = arith.constant 0 : i32
    return %arg0, %c0_i32 : i32, i32
  }
  func.func @transform_1(%arg0: i32) -> (i32, i32) {
    %c0_i32 = arith.constant 0 : i32
    %c0_i32_0 = arith.constant 0 : i32
    %c0_i32_1 = arith.constant 0 : i32
    return %c0_i32, %c0_i32_0 : i32, i32
  }
  func.func @transform_2(%arg0: i32) -> (i32, i32) {
    %c0_i32 = arith.constant 0 : i32
    %c0_i32_0 = arith.constant 0 : i32
    %c0_i32_1 = arith.constant 0 : i32
    return %c0_i32, %c0_i32_0 : i32, i32
  }
  func.func @transform_3(%arg0: i32) -> (i32, i32) {
    %c0_i32 = arith.constant 0 : i32
    %c0_i32_0 = arith.constant 0 : i32
    return %arg0, %c0_i32 : i32, i32
  }
}

module attributes {stable_mosaic.version = 11 : i64} {
  func.func @kern(%arg0: i32, %arg1: memref<128x144xbf16, #tpu.memory_space<vmem>>, %arg2: memref<144x8xbf16, #tpu.memory_space<vmem>>, %arg3: memref<1x8xf32, #tpu.memory_space<vmem>>, %arg4: memref<128x8xbf16, #tpu.memory_space<vmem>>) attributes {dimension_semantics = [#tpu.dimension_semantics<parallel>], iteration_bounds = array<i64: 1>, scalar_prefetch = 0 : i64, scratch_operands = 0 : i64, tpu.core_type = #tpu.core_type<tc>, window_params = [{transform_indices = @transform_0, window_bounds = array<i64: 128, 144>}, {pipeline_mode = #tpu.pipeline_mode<synchronous>, transform_indices = @transform_1, window_bounds = array<i64: 144, 8>}, {pipeline_mode = #tpu.pipeline_mode<synchronous>, transform_indices = @transform_2, window_bounds = array<i64: 1, 8>}, {transform_indices = @transform_3, window_bounds = array<i64: 128, 8>}]} {
    %c0 = arith.constant 0 : index
    %c0_0 = arith.constant 0 : index
    %0 = vector.load %arg1[%c0, %c0_0] : memref<128x144xbf16, #tpu.memory_space<vmem>>, vector<128x144xbf16>
    %c0_1 = arith.constant 0 : index
    %c0_2 = arith.constant 0 : index
    %1 = vector.load %arg2[%c0_1, %c0_2] : memref<144x8xbf16, #tpu.memory_space<vmem>>, vector<144x8xbf16>
    %cst = arith.constant dense<0.000000e+00> : vector<128x8xf32>
    %2 = tpu.matmul %0, %1, %cst {dimension_numbers = #tpu.dot_dimension_numbers<[1], [0], [0], [1], [0, 0, 1, 1], [], []>} : vector<128x144xbf16>, vector<144x8xbf16>, vector<128x8xf32> -> vector<128x8xf32>
    %c0_3 = arith.constant 0 : index
    %c0_4 = arith.constant 0 : index
    %3 = vector.load %arg3[%c0_3, %c0_4] : memref<1x8xf32, #tpu.memory_space<vmem>>, vector<1x8xf32>
    %4 = vector.broadcast %3 : vector<1x8xf32> to vector<128x8xf32>
    %5 = arith.addf %2, %4 : vector<128x8xf32>
    %6 = arith.truncf %5 : vector<128x8xf32> to vector<128x8xbf16>
    %c0_5 = arith.constant 0 : index
    %c0_6 = arith.constant 0 : index
    %7 = vector.load %arg4[%c0_5, %c0_6] : memref<128x8xbf16, #tpu.memory_space<vmem>>, vector<128x8xbf16>
    tpu.vector_store %arg4[%c0_5, %c0_6], %6 {strides = array<i32>} : memref<128x8xbf16, #tpu.memory_space<vmem>>, vector<128x8xbf16>,
    return
  }
  func.func @transform_0(%arg0: i32) -> (i32, i32) {
    %c0_i32 = arith.constant 0 : i32
    %c0_i32_0 = arith.constant 0 : i32
    return %arg0, %c0_i32 : i32, i32
  }
  func.func @transform_1(%arg0: i32) -> (i32, i32) {
    %c0_i32 = arith.constant 0 : i32
    %c0_i32_0 = arith.constant 0 : i32
    %c0_i32_1 = arith.constant 0 : i32
    return %c0_i32, %c0_i32_0 : i32, i32
  }
  func.func @transform_2(%arg0: i32) -> (i32, i32) {
    %c0_i32 = arith.constant 0 : i32
    %c0_i32_0 = arith.constant 0 : i32
    %c0_i32_1 = arith.constant 0 : i32
    return %c0_i32, %c0_i32_0 : i32, i32
  }
  func.func @transform_3(%arg0: i32) -> (i32, i32) {
    %c0_i32 = arith.constant 0 : i32
    %c0_i32_0 = arith.constant 0 : i32
    return %arg0, %c0_i32 : i32, i32
  }
}

</mosaic_0001>

<llo_original>
// kernel: _lambda_.38
$region0: #{_lambda_.38}
  #allocation0 [shape = 'u32[]', space=smem, size = 0x4, offset = 0x4, fixed_abs, tag = 'smem constant byte address 0x4 - core index']
  #allocation1 [shape = 'u32[144,128]{1,0:T(1,128)}', space=vmem, size = 0x12000, scoped, tag = 'internal scratch']
  %s0 = inlined_call_operand.vmem [shape: bf16[2048,32], index: 0, kind: input, shape index: {}]
  %s1 = inlined_call_operand.vmem [shape: bf16[32,8], index: 1, kind: input, shape index: {}]
  %s2 = inlined_call_operand.vmem [shape: f32[1,8], index: 2, kind: input, shape index: {}]
  %s3 = inlined_call_operand.vmem [shape: bf16[2048,8], index: 3, kind: output, shape index: {}]
  %s4 = sld [smem:[#allocation0]]
  $region45: #{_lambda_.38} parent=0
    _
  %s6 = ssub.s32 1, %s4
  %s7 = scalar_select 0, %s6, %s4
  loop: start=0, step=1, limit=6
  $region2: #{_lambda_.38} parent=0 // loop_pre_header
    _
  $region3: #{_lambda_.38} parent=0 // loop_header
    %s9 = sphi 0, %s13
    %p10 = scmp.ge.s32.totalorder %s9, 6
    %s19 = sphi 0, %s21
    %s22 = sphi 0, %s19
    %s23 = sphi 0, %s22
    %s39 = sphi 0, %s23
    %s43 = sphi 0, %s43
    %s45 = sphi 0, %s43
    %s46 = sphi 0, %s45
    %s60 = sphi 0, %s46
    %s64 = sphi 0, %s64
    %s66 = sphi 0, %s64
    %s67 = sphi 0, %s66
    %s81 = sphi 0, %s67
    %s87 = sphi 0, %s89
    %s90 = sphi 0, %s87
    %s91 = sphi 0, %s90
    %s107 = sphi 0, %s91
  $region4: #{_lambda_.38} parent=0 // loop_header_branch
    %12 = sbr.rel (%p10) target = $region8
  $region5: #{_lambda_.38} parent=0 // loop_body
    %s14 = ssub.s32 %s9, 1
    %s15 = ssub.s32 %s9, 2
    %s16 = sadd.s32 %s9, 1
    %s17 = ssub.s32 %s9, %s16
    %p18 = scmp.eq.s32.totalorder %s17, 0
    %s20 = sadd.s32 %s19, 1
    %s21 = scalar_select %p18, %s19, %s20
    %p24 = pneg %p18
    %p25 = scmp.eq.s32.totalorder %s9, 3
    %p26 = por %p24, %p25
    %p27 = scmp.ne.s32.totalorder %s19, %s22
    %p28 = scmp.eq.s32.totalorder %s9, 0
    %p29 = por %p27, %p28
    %p30 = scmp.ne.s32.totalorder %s19, %s22
    %p31 = scmp.eq.s32.totalorder %s14, 3
    %p32 = por %p30, %p31
    %p33 = scmp.ne.s32.totalorder %s22, %s23
    %p34 = scmp.eq.s32.totalorder %s14, 0
    %p35 = por %p33, %p34
    %p36 = scmp.ne.s32.totalorder %s22, %s23
    %p37 = scmp.eq.s32.totalorder %s15, 3
    %p38 = por %p36, %p37
    %p40 = scmp.ne.s32.totalorder %s23, %s39
    %p41 = scmp.eq.s32.totalorder %s15, 0
    %p42 = por %p40, %p41
    %s44 = sadd.s32 %s43, 1
    %p47 = scmp.eq.s32.totalorder %s9, 3
    %p48 = scmp.ne.s32.totalorder %s43, %s45
    %p49 = scmp.eq.s32.totalorder %s9, 0
    %p50 = por %p48, %p49
    %p51 = scmp.ne.s32.totalorder %s43, %s45
    %p52 = scmp.eq.s32.totalorder %s14, 3
    %p53 = por %p51, %p52
    %p54 = scmp.ne.s32.totalorder %s45, %s46
    %p55 = scmp.eq.s32.totalorder %s14, 0
    %p56 = por %p54, %p55
    %p57 = scmp.ne.s32.totalorder %s45, %s46
    %p58 = scmp.eq.s32.totalorder %s15, 3
    %p59 = por %p57, %p58
    %p61 = scmp.ne.s32.totalorder %s46, %s60
    %p62 = scmp.eq.s32.totalorder %s15, 0
    %p63 = por %p61, %p62
    %s65 = sadd.s32 %s64, 1
    %p68 = scmp.eq.s32.totalorder %s9, 3
    %p69 = scmp.ne.s32.totalorder %s64, %s66
    %p70 = scmp.eq.s32.totalorder %s9, 0
    %p71 = por %p69, %p70
    %p72 = scmp.ne.s32.totalorder %s64, %s66
    %p73 = scmp.eq.s32.totalorder %s14, 3
    %p74 = por %p72, %p73
    %p75 = scmp.ne.s32.totalorder %s66, %s67
    %p76 = scmp.eq.s32.totalorder %s14, 0
    %p77 = por %p75, %p76
    %p78 = scmp.ne.s32.totalorder %s66, %s67
    %p79 = scmp.eq.s32.totalorder %s15, 3
    %p80 = por %p78, %p79
    %p82 = scmp.ne.s32.totalorder %s67, %s81
    %p83 = scmp.eq.s32.totalorder %s15, 0
    %p84 = por %p82, %p83
    %s85 = ssub.s32 %s9, %s16
    %p86 = scmp.eq.s32.totalorder %s85, 0
    %s88 = sadd.s32 %s87, 1
    %s89 = scalar_select %p86, %s87, %s88
    %p92 = pneg %p86
    %p93 = scmp.eq.s32.totalorder %s9, 3
    %p94 = por %p92, %p93
    %p95 = scmp.ne.s32.totalorder %s87, %s90
    %p96 = scmp.eq.s32.totalorder %s9, 0
    %p97 = por %p95, %p96
    %p98 = scmp.ne.s32.totalorder %s87, %s90
    %p99 = scmp.eq.s32.totalorder %s14, 3
    %p100 = por %p98, %p99
    %p101 = scmp.ne.s32.totalorder %s90, %s91
    %p102 = scmp.eq.s32.totalorder %s14, 0
    %p103 = por %p101, %p102
    %p104 = scmp.ne.s32.totalorder %s90, %s91
    %p105 = scmp.eq.s32.totalorder %s15, 3
    %p106 = por %p104, %p105
    %p108 = scmp.ne.s32.totalorder %s91, %s107
    %p109 = scmp.eq.s32.totalorder %s15, 0
    %p110 = por %p108, %p109
    %p111 = scmp.le.s32.totalorder 1, %s9
    %p112 = scmp.lt.s32.totalorder %s9, 5
    %p113 = pnand %p111, %p112
    %p114 = pneg %p113
    // Predicated region
    $region9: #{_lambda_.38} parent=5 // pred_check
      _
    $region10: #{_lambda_.38} parent=5 // pred_check_branch
      %116 = sbr.rel (%p113) target = $region12
    $region11: #{_lambda_.38} parent=5 // pred_region
      %s117 = ssub.s32 %s9, 1
      // Predicated region
      $region13: #{_lambda_.38} parent=11 // pred_check
        %p118 = pneg %p56
      $region14: #{_lambda_.38} parent=11 // pred_check_branch
        %120 = sbr.rel (%p118) target = $region16
      $region15: #{_lambda_.38} parent=11 // pred_region
        _
      $region16: #{_lambda_.38} parent=11 // pred_fallthru
        _
      // Predicated region
      $region17: #{_lambda_.38} parent=11 // pred_check
        %p121 = pneg %p77
      $region18: #{_lambda_.38} parent=11 // pred_check_branch
        %123 = sbr.rel (%p121) target = $region20
      $region19: #{_lambda_.38} parent=11 // pred_region
        _
      $region20: #{_lambda_.38} parent=11 // pred_fallthru
        _
    $region12: #{_lambda_.38} parent=5 // pred_fallthru
      _
    %p124 = scmp.lt.s32.totalorder %s9, 4
    // Predicated region
    $region21: #{_lambda_.38} parent=5 // pred_check
      %p125 = pneg %p124
    $region22: #{_lambda_.38} parent=5 // pred_check_branch
      %127 = sbr.rel (%p125) target = $region24
    $region23: #{_lambda_.38} parent=5 // pred_region
      // Predicated region
      $region25: #{_lambda_.38} parent=23 // pred_check
        %p128 = pneg %p29
      $region26: #{_lambda_.38} parent=23 // pred_check_branch
        %130 = sbr.rel (%p128) target = $region28
      $region27: #{_lambda_.38} parent=23 // pred_region
        %s131 = smul.u32 64, %s9
        %p132 = scmp.lt.s32.totalorder %s131, 255
        %s133 = scalar_select %p132, %s131, 255
        %s134 = smul.addr %s133, 4
        %s135 = scalar_lea.vmem %s0, %s134
        %s136 = smul.u32 64, %s9
      $region28: #{_lambda_.38} parent=23 // pred_fallthru
        _
    $region24: #{_lambda_.38} parent=5 // pred_fallthru
      _
    %p137 = scmp.le.s32.totalorder 1, %s9
    %p138 = scmp.lt.s32.totalorder %s9, 5
    %p139 = pnand %p137, %p138
    %p140 = pneg %p139
    // Predicated region
    $region29: #{_lambda_.38} parent=5 // pred_check
      _
    $region30: #{_lambda_.38} parent=5 // pred_check_branch
      %142 = sbr.rel (%p139) target = $region32
    $region31: #{_lambda_.38} parent=5 // pred_region
      %s143 = ssub.s32 %s9, 1
      %s144 = smul.u32 64, %s14
      %p145 = scmp.lt.s32.totalorder %s144, 255
      %s146 = scalar_select %p145, %s144, 255
      %s147 = smul.addr %s146, 4
      %s148 = scalar_lea.vmem %s0, %s147
      %p149 = pneg %p35
      %p150 = pneg %p32
      %p151 = pneg %p56
      %p152 = pneg %p53
      %p153 = pneg %p77
      %p154 = pneg %p74
      %p155 = pneg %p103
      %p156 = pneg %p100
      %s157 = smul.u32 64, %s14
      %p158 = scmp.lt.s32.totalorder %s157, 255
      %s159 = scalar_select %p158, %s157, 255
      %s160 = smul.addr %s159, 4
      %s161 = scalar_lea.vmem %s3, %s160
      %s162 = smul.u32 64, %s14
      %p163 = scmp.lt.s32.totalorder %s162, 255
      %s164 = scalar_select %p163, %s162, 255
      %s165 = smul.addr %s164, 4
      %s166 = scalar_lea.vmem %s0, %s165
      %s167 = smul.u32 64, %s14
      %s168 = smul.u32 64, %s14
      %p169 = scmp.lt.s32.totalorder %s168, 255
      %s170 = scalar_select %p169, %s168, 255
      %s171 = smul.addr %s170, 4
      %s172 = scalar_lea.vmem %s3, %s171
      %s173 = smul.u32 64, %s14
      %v175 = vld [vmem:[%s166] sm:$0xf]
      %v176 = vld [vmem:[%s166 + $0x4] sm:$0xf]
      %v177 = vld [vmem:[%s166 + $0x8] sm:$0xf]
      %v178 = vld [vmem:[%s166 + $0xc] sm:$0xf]
      %v179 = vld [vmem:[%s166 + $0x10] sm:$0xf]
      %v180 = vld [vmem:[%s166 + $0x14] sm:$0xf]
      %v181 = vld [vmem:[%s166 + $0x18] sm:$0xf]
      %v182 = vld [vmem:[%s166 + $0x1c] sm:$0xf]
      %v183 = vld [vmem:[%s166 + $0x20] sm:$0xf]
      %v184 = vld [vmem:[%s166 + $0x24] sm:$0xf]
      %v185 = vld [vmem:[%s166 + $0x28] sm:$0xf]
      %v186 = vld [vmem:[%s166 + $0x2c] sm:$0xf]
      %v187 = vld [vmem:[%s166 + $0x30] sm:$0xf]
      %v188 = vld [vmem:[%s166 + $0x34] sm:$0xf]
      %v189 = vld [vmem:[%s166 + $0x38] sm:$0xf]
      %v190 = vld [vmem:[%s166 + $0x3c] sm:$0xf]
      %v191 = vld [vmem:[%s166 + $0x40] sm:$0xf]
      %v192 = vld [vmem:[%s166 + $0x44] sm:$0xf]
      %v193 = vld [vmem:[%s166 + $0x48] sm:$0xf]
      %v194 = vld [vmem:[%s166 + $0x4c] sm:$0xf]
      %v195 = vld [vmem:[%s166 + $0x50] sm:$0xf]
      %v196 = vld [vmem:[%s166 + $0x54] sm:$0xf]
      %v197 = vld [vmem:[%s166 + $0x58] sm:$0xf]
      %v198 = vld [vmem:[%s166 + $0x5c] sm:$0xf]
      %v199 = vld [vmem:[%s166 + $0x60] sm:$0xf]
      %v200 = vld [vmem:[%s166 + $0x64] sm:$0xf]
      %v201 = vld [vmem:[%s166 + $0x68] sm:$0xf]
      %v202 = vld [vmem:[%s166 + $0x6c] sm:$0xf]
      %v203 = vld [vmem:[%s166 + $0x70] sm:$0xf]
      %v204 = vld [vmem:[%s166 + $0x74] sm:$0xf]
      %v205 = vld [vmem:[%s166 + $0x78] sm:$0xf]
      %v206 = vld [vmem:[%s166 + $0x7c] sm:$0xf]
      %v207 = vld [vmem:[%s166 + $0x80] sm:$0xf]
      %v208 = vld [vmem:[%s166 + $0x84] sm:$0xf]
      %v209 = vld [vmem:[%s166 + $0x88] sm:$0xf]
      %v210 = vld [vmem:[%s166 + $0x8c] sm:$0xf]
      %v211 = vld [vmem:[%s166 + $0x90] sm:$0xf]
      %v212 = vld [vmem:[%s166 + $0x94] sm:$0xf]
      %v213 = vld [vmem:[%s166 + $0x98] sm:$0xf]
      %v214 = vld [vmem:[%s166 + $0x9c] sm:$0xf]
      %v215 = vld [vmem:[%s166 + $0xa0] sm:$0xf]
      %v216 = vld [vmem:[%s166 + $0xa4] sm:$0xf]
      %v217 = vld [vmem:[%s166 + $0xa8] sm:$0xf]
      %v218 = vld [vmem:[%s166 + $0xac] sm:$0xf]
      %v219 = vld [vmem:[%s166 + $0xb0] sm:$0xf]
      %v220 = vld [vmem:[%s166 + $0xb4] sm:$0xf]
      %v221 = vld [vmem:[%s166 + $0xb8] sm:$0xf]
      %v222 = vld [vmem:[%s166 + $0xbc] sm:$0xf]
      %v223 = vld [vmem:[%s166 + $0xc0] sm:$0xf]
      %v224 = vld [vmem:[%s166 + $0xc4] sm:$0xf]
      %v225 = vld [vmem:[%s166 + $0xc8] sm:$0xf]
      %v226 = vld [vmem:[%s166 + $0xcc] sm:$0xf]
      %v227 = vld [vmem:[%s166 + $0xd0] sm:$0xf]
      %v228 = vld [vmem:[%s166 + $0xd4] sm:$0xf]
      %v229 = vld [vmem:[%s166 + $0xd8] sm:$0xf]
      %v230 = vld [vmem:[%s166 + $0xdc] sm:$0xf]
      %v231 = vld [vmem:[%s166 + $0xe0] sm:$0xf]
      %v232 = vld [vmem:[%s166 + $0xe4] sm:$0xf]
      %v233 = vld [vmem:[%s166 + $0xe8] sm:$0xf]
      %v234 = vld [vmem:[%s166 + $0xec] sm:$0xf]
      %v235 = vld [vmem:[%s166 + $0xf0] sm:$0xf]
      %v236 = vld [vmem:[%s166 + $0xf4] sm:$0xf]
      %v237 = vld [vmem:[%s166 + $0xf8] sm:$0xf]
      %v238 = vld [vmem:[%s166 + $0xfc] sm:$0xf]
      %v239 = vld [vmem:[%s1] sm:$0xf]
      %v240 = vld [vmem:[%s1 + $0x4] sm:$0xf]
      %v241 = vld [vmem:[%s1 + $0x8] sm:$0xf]
      %v242 = vld [vmem:[%s1 + $0xc] sm:$0xf]
      %v243 = vld [vmem:[%s2] sm:$0x1]
      %v245 = vlaneseq
      %v246 = vshrl.u32 %v245, 7
      %v247 = vsub.s32 0, %v246
      %v248 = vrot.slane %v243, %v247
      %v314 = vunpack.c.l.b16 %v175
      %v315 = vunpack.c.l.b16 %v176
      %v316 = vunpack.c.l.b16 %v177
      %v317 = vunpack.c.l.b16 %v178
      %v318 = vunpack.c.l.b16 %v179
      %v319 = vunpack.c.l.b16 %v180
      %v320 = vunpack.c.l.b16 %v181
      %v321 = vunpack.c.l.b16 %v182
      %v322 = vunpack.c.l.b16 %v183
      %v323 = vunpack.c.l.b16 %v184
      %v324 = vunpack.c.l.b16 %v185
      %v325 = vunpack.c.l.b16 %v186
      %v326 = vunpack.c.l.b16 %v187
      %v327 = vunpack.c.l.b16 %v188
      %v328 = vunpack.c.l.b16 %v189
      %v329 = vunpack.c.l.b16 %v190
      %v330 = vunpack.c.l.b16 %v191
      %v331 = vunpack.c.l.b16 %v192
      %v332 = vunpack.c.l.b16 %v193
      %v333 = vunpack.c.l.b16 %v194
      %v334 = vunpack.c.l.b16 %v195
      %v335 = vunpack.c.l.b16 %v196
      %v336 = vunpack.c.l.b16 %v197
      %v337 = vunpack.c.l.b16 %v198
      %v338 = vunpack.c.l.b16 %v199
      %v339 = vunpack.c.l.b16 %v200
      %v340 = vunpack.c.l.b16 %v201
      %v341 = vunpack.c.l.b16 %v202
      %v342 = vunpack.c.l.b16 %v203
      %v343 = vunpack.c.l.b16 %v204
      %v344 = vunpack.c.l.b16 %v205
      %v345 = vunpack.c.l.b16 %v206
      %v346 = vunpack.c.l.b16 %v207
      %v347 = vunpack.c.l.b16 %v208
      %v348 = vunpack.c.l.b16 %v209
      %v349 = vunpack.c.l.b16 %v210
      %v350 = vunpack.c.l.b16 %v211
      %v351 = vunpack.c.l.b16 %v212
      %v352 = vunpack.c.l.b16 %v213
      %v353 = vunpack.c.l.b16 %v214
      %v354 = vunpack.c.l.b16 %v215
      %v355 = vunpack.c.l.b16 %v216
      %v356 = vunpack.c.l.b16 %v217
      %v357 = vunpack.c.l.b16 %v218
      %v358 = vunpack.c.l.b16 %v219
      %v359 = vunpack.c.l.b16 %v220
      %v360 = vunpack.c.l.b16 %v221
      %v361 = vunpack.c.l.b16 %v222
      %v362 = vunpack.c.l.b16 %v223
      %v363 = vunpack.c.l.b16 %v224
      %v364 = vunpack.c.l.b16 %v225
      %v365 = vunpack.c.l.b16 %v226
      %v366 = vunpack.c.l.b16 %v227
      %v367 = vunpack.c.l.b16 %v228
      %v368 = vunpack.c.l.b16 %v229
      %v369 = vunpack.c.l.b16 %v230
      %v370 = vunpack.c.l.b16 %v231
      %v371 = vunpack.c.l.b16 %v232
      %v372 = vunpack.c.l.b16 %v233
      %v373 = vunpack.c.l.b16 %v234
      %v374 = vunpack.c.l.b16 %v235
      %v375 = vunpack.c.l.b16 %v236
      %v376 = vunpack.c.l.b16 %v237
      %v377 = vunpack.c.l.b16 %v238
      %v378 = vpack.c.b16 %v315, %v314
      %v379 = vpack.c.b16 %v317, %v316
      %v380 = vpack.c.b16 %v319, %v318
      %v381 = vpack.c.b16 %v321, %v320
      %v382 = vpack.c.b16 %v323, %v322
      %v383 = vpack.c.b16 %v325, %v324
      %v384 = vpack.c.b16 %v327, %v326
      %v385 = vpack.c.b16 %v329, %v328
      %v386 = vpack.c.b16 %v331, %v330
      %v387 = vpack.c.b16 %v333, %v332
      %v388 = vpack.c.b16 %v335, %v334
      %v389 = vpack.c.b16 %v337, %v336
      %v390 = vpack.c.b16 %v339, %v338
      %v391 = vpack.c.b16 %v341, %v340
      %v392 = vpack.c.b16 %v343, %v342
      %v393 = vpack.c.b16 %v345, %v344
      %v394 = vpack.c.b16 %v347, %v346
      %v395 = vpack.c.b16 %v349, %v348
      %v396 = vpack.c.b16 %v351, %v350
      %v397 = vpack.c.b16 %v353, %v352
      %v398 = vpack.c.b16 %v355, %v354
      %v399 = vpack.c.b16 %v357, %v356
      %v400 = vpack.c.b16 %v359, %v358
      %v401 = vpack.c.b16 %v361, %v360
      %v402 = vpack.c.b16 %v363, %v362
      %v403 = vpack.c.b16 %v365, %v364
      %v404 = vpack.c.b16 %v367, %v366
      %v405 = vpack.c.b16 %v369, %v368
      %v406 = vpack.c.b16 %v371, %v370
      %v407 = vpack.c.b16 %v373, %v372
      %v408 = vpack.c.b16 %v375, %v374
      %v409 = vpack.c.b16 %v377, %v376
      %v414 = vunpack.c.l.b16 %v239
      %v415 = vunpack.c.l.b16 %v240
      %v416 = vunpack.c.l.b16 %v241
      %v417 = vunpack.c.l.b16 %v242
      %v418 = vpack.c.b16 %v415, %v414
      %v419 = vpack.c.b16 %v417, %v416
      %vm422 = vcmask 261120
      %v424 = vsel %vm422, %v378, 0
      %v427 = vsel %vm422, %v379, 0
      %v430 = vsel %vm422, %v380, 0
      %v433 = vsel %vm422, %v381, 0
      %v436 = vsel %vm422, %v382, 0
      %v439 = vsel %vm422, %v383, 0
      %v442 = vsel %vm422, %v384, 0
      %v445 = vsel %vm422, %v385, 0
      %v448 = vsel %vm422, %v386, 0
      %v451 = vsel %vm422, %v387, 0
      %v454 = vsel %vm422, %v388, 0
      %v457 = vsel %vm422, %v389, 0
      %v460 = vsel %vm422, %v390, 0
      %v463 = vsel %vm422, %v391, 0
      %v466 = vsel %vm422, %v392, 0
      %v469 = vsel %vm422, %v393, 0
      %v472 = vsel %vm422, %v394, 0
      %v475 = vsel %vm422, %v395, 0
      %v478 = vsel %vm422, %v396, 0
      %v481 = vsel %vm422, %v397, 0
      %v484 = vsel %vm422, %v398, 0
      %v487 = vsel %vm422, %v399, 0
      %v490 = vsel %vm422, %v400, 0
      %v493 = vsel %vm422, %v401, 0
      %v496 = vsel %vm422, %v402, 0
      %v499 = vsel %vm422, %v403, 0
      %v502 = vsel %vm422, %v404, 0
      %v505 = vsel %vm422, %v405, 0
      %v508 = vsel %vm422, %v406, 0
      %v511 = vsel %vm422, %v407, 0
      %v514 = vsel %vm422, %v408, 0
      %v517 = vsel %vm422, %v409, 0
      %519 = vmatprep.subr.bf16.mxu0 0
      %520 = vmatpush1.bf16.msra.mxu0 0
      %521 = vmatprep.subr.bf16.mxu0 0
      %522 = vmatpush1.bf16.msra.mxu0 0
      %523 = vmatprep.subr.bf16.mxu0 0
      %524 = vmatpush1.bf16.msra.mxu0 0
      %525 = vmatprep.subr.bf16.mxu0 0
      %526 = vmatpush1.bf16.msra.mxu0 0
      %527 = vmatprep.subr.bf16.mxu0 0
      %528 = vmatpush1.bf16.msra.mxu0 0
      %529 = vmatprep.subr.bf16.mxu0 0
      %530 = vmatpush1.bf16.msra.mxu0 0
      %531 = vmatprep.subr.bf16.mxu0 0
      %532 = vmatpush1.bf16.msra.mxu0 %v419
      %533 = vmatprep.subr.bf16.mxu0 0
      %534 = vmatpush1.bf16.msra.mxu0 %v418
      %535 = vmatprep.subr.bf16.mxu0 0
      %536 = vmatpush2.bf16.msra.mxu0 0
      %537 = vmatprep.subr.bf16.mxu0 0
      %538 = vmatpush2.bf16.msra.mxu0 0
      %539 = vmatprep.subr.bf16.mxu0 0
      %540 = vmatpush2.bf16.msra.mxu0 0
      %541 = vmatprep.subr.bf16.mxu0 0
      %542 = vmatpush2.bf16.msra.mxu0 0
      %543 = vmatprep.subr.bf16.mxu0 0
      %544 = vmatpush2.bf16.msra.mxu0 0
      %545 = vmatprep.subr.bf16.mxu0 0
      %546 = vmatpush2.bf16.msra.mxu0 0
      %547 = vmatprep.subr.bf16.mxu0 0
      %548 = vmatpush2.bf16.msra.mxu0 0
      %549 = vmatprep.subr.bf16.mxu0 0
      %550 = vmatpush2.bf16.msra.mxu0 0
      %551 = vmatprep.mubr.bf16.mxu0 0
      %552 = vmatmul.mubr.bf16.gmra.mxu0 %v424
      %v553 = vpop.f32.mrf.mxu0
      %v554 = vadd.f32 %v248, %v553
      %v555 = vpop.f32.mrf.mxu0
      %v556 = vpop.f32.mrf.mxu0
      %v557 = vadd.f32 %v248, %v556
      %v558 = vpop.f32.mrf.mxu0
      %559 = vmatprep.mubr.bf16.mxu0 0
      %560 = vmatmul.mubr.bf16.gmra.mxu0 %v427
      %v561 = vpop.f32.mrf.mxu0
      %v562 = vadd.f32 %v248, %v561
      %v563 = vpop.f32.mrf.mxu0
      %v564 = vpop.f32.mrf.mxu0
      %v565 = vadd.f32 %v248, %v564
      %v566 = vpop.f32.mrf.mxu0
      %567 = vmatprep.mubr.bf16.mxu0 0
      %568 = vmatmul.mubr.bf16.gmra.mxu0 %v430
      %v569 = vpop.f32.mrf.mxu0
      %v570 = vadd.f32 %v248, %v569
      %v571 = vpop.f32.mrf.mxu0
      %v572 = vpop.f32.mrf.mxu0
      %v573 = vadd.f32 %v248, %v572
      %v574 = vpop.f32.mrf.mxu0
      %575 = vmatprep.mubr.bf16.mxu0 0
      %576 = vmatmul.mubr.bf16.gmra.mxu0 %v433
      %v577 = vpop.f32.mrf.mxu0
      %v578 = vadd.f32 %v248, %v577
      %v579 = vpop.f32.mrf.mxu0
      %v580 = vpop.f32.mrf.mxu0
      %v581 = vadd.f32 %v248, %v580
      %v582 = vpop.f32.mrf.mxu0
      %583 = vmatprep.mubr.bf16.mxu0 0
      %584 = vmatmul.mubr.bf16.gmra.mxu0 %v436
      %v585 = vpop.f32.mrf.mxu0
      %v586 = vadd.f32 %v248, %v585
      %v587 = vpop.f32.mrf.mxu0
      %v588 = vpop.f32.mrf.mxu0
      %v589 = vadd.f32 %v248, %v588
      %v590 = vpop.f32.mrf.mxu0
      %591 = vmatprep.mubr.bf16.mxu0 0
      %592 = vmatmul.mubr.bf16.gmra.mxu0 %v439
      %v593 = vpop.f32.mrf.mxu0
      %v594 = vadd.f32 %v248, %v593
      %v595 = vpop.f32.mrf.mxu0
      %v596 = vpop.f32.mrf.mxu0
      %v597 = vadd.f32 %v248, %v596
      %v598 = vpop.f32.mrf.mxu0
      %599 = vmatprep.mubr.bf16.mxu0 0
      %600 = vmatmul.mubr.bf16.gmra.mxu0 %v442
      %v601 = vpop.f32.mrf.mxu0
      %v602 = vadd.f32 %v248, %v601
      %v603 = vpop.f32.mrf.mxu0
      %v604 = vpop.f32.mrf.mxu0
      %v605 = vadd.f32 %v248, %v604
      %v606 = vpop.f32.mrf.mxu0
      %607 = vmatprep.mubr.bf16.mxu0 0
      %608 = vmatmul.mubr.bf16.gmra.mxu0 %v445
      %v609 = vpop.f32.mrf.mxu0
      %v610 = vadd.f32 %v248, %v609
      %v611 = vpop.f32.mrf.mxu0
      %v612 = vpop.f32.mrf.mxu0
      %v613 = vadd.f32 %v248, %v612
      %v614 = vpop.f32.mrf.mxu0
      %615 = vmatprep.mubr.bf16.mxu0 0
      %616 = vmatmul.mubr.bf16.gmra.mxu0 %v448
      %v617 = vpop.f32.mrf.mxu0
      %v618 = vadd.f32 %v248, %v617
      %v619 = vpop.f32.mrf.mxu0
      %v620 = vpop.f32.mrf.mxu0
      %v621 = vadd.f32 %v248, %v620
      %v622 = vpop.f32.mrf.mxu0
      %623 = vmatprep.mubr.bf16.mxu0 0
      %624 = vmatmul.mubr.bf16.gmra.mxu0 %v451
      %v625 = vpop.f32.mrf.mxu0
      %v626 = vadd.f32 %v248, %v625
      %v627 = vpop.f32.mrf.mxu0
      %v628 = vpop.f32.mrf.mxu0
      %v629 = vadd.f32 %v248, %v628
      %v630 = vpop.f32.mrf.mxu0
      %631 = vmatprep.mubr.bf16.mxu0 0
      %632 = vmatmul.mubr.bf16.gmra.mxu0 %v454
      %v633 = vpop.f32.mrf.mxu0
      %v634 = vadd.f32 %v248, %v633
      %v635 = vpop.f32.mrf.mxu0
      %v636 = vpop.f32.mrf.mxu0
      %v637 = vadd.f32 %v248, %v636
      %v638 = vpop.f32.mrf.mxu0
      %639 = vmatprep.mubr.bf16.mxu0 0
      %640 = vmatmul.mubr.bf16.gmra.mxu0 %v457
      %v641 = vpop.f32.mrf.mxu0
      %v642 = vadd.f32 %v248, %v641
      %v643 = vpop.f32.mrf.mxu0
      %v644 = vpop.f32.mrf.mxu0
      %v645 = vadd.f32 %v248, %v644
      %v646 = vpop.f32.mrf.mxu0
      %647 = vmatprep.mubr.bf16.mxu0 0
      %648 = vmatmul.mubr.bf16.gmra.mxu0 %v460
      %v649 = vpop.f32.mrf.mxu0
      %v650 = vadd.f32 %v248, %v649
      %v651 = vpop.f32.mrf.mxu0
      %v652 = vpop.f32.mrf.mxu0
      %v653 = vadd.f32 %v248, %v652
      %v654 = vpop.f32.mrf.mxu0
      %655 = vmatprep.mubr.bf16.mxu0 0
      %656 = vmatmul.mubr.bf16.gmra.mxu0 %v463
      %v657 = vpop.f32.mrf.mxu0
      %v658 = vadd.f32 %v248, %v657
      %v659 = vpop.f32.mrf.mxu0
      %v660 = vpop.f32.mrf.mxu0
      %v661 = vadd.f32 %v248, %v660
      %v662 = vpop.f32.mrf.mxu0
      %663 = vmatprep.mubr.bf16.mxu0 0
      %664 = vmatmul.mubr.bf16.gmra.mxu0 %v466
      %v665 = vpop.f32.mrf.mxu0
      %v666 = vadd.f32 %v248, %v665
      %v667 = vpop.f32.mrf.mxu0
      %v668 = vpop.f32.mrf.mxu0
      %v669 = vadd.f32 %v248, %v668
      %v670 = vpop.f32.mrf.mxu0
      %671 = vmatprep.mubr.bf16.mxu0 0
      %672 = vmatmul.mubr.bf16.gmra.mxu0 %v469
      %v673 = vpop.f32.mrf.mxu0
      %v674 = vadd.f32 %v248, %v673
      %v675 = vpop.f32.mrf.mxu0
      %v676 = vpop.f32.mrf.mxu0
      %v677 = vadd.f32 %v248, %v676
      %v678 = vpop.f32.mrf.mxu0
      %679 = vmatprep.mubr.bf16.mxu0 0
      %680 = vmatmul.mubr.bf16.gmra.mxu0 %v472
      %v681 = vpop.f32.mrf.mxu0
      %v682 = vadd.f32 %v248, %v681
      %v683 = vpop.f32.mrf.mxu0
      %v684 = vpop.f32.mrf.mxu0
      %v685 = vadd.f32 %v248, %v684
      %v686 = vpop.f32.mrf.mxu0
      %687 = vmatprep.mubr.bf16.mxu0 0
      %688 = vmatmul.mubr.bf16.gmra.mxu0 %v475
      %v689 = vpop.f32.mrf.mxu0
      %v690 = vadd.f32 %v248, %v689
      %v691 = vpop.f32.mrf.mxu0
      %v692 = vpop.f32.mrf.mxu0
      %v693 = vadd.f32 %v248, %v692
      %v694 = vpop.f32.mrf.mxu0
      %695 = vmatprep.mubr.bf16.mxu0 0
      %696 = vmatmul.mubr.bf16.gmra.mxu0 %v478
      %v697 = vpop.f32.mrf.mxu0
      %v698 = vadd.f32 %v248, %v697
      %v699 = vpop.f32.mrf.mxu0
      %v700 = vpop.f32.mrf.mxu0
      %v701 = vadd.f32 %v248, %v700
      %v702 = vpop.f32.mrf.mxu0
      %703 = vmatprep.mubr.bf16.mxu0 0
      %704 = vmatmul.mubr.bf16.gmra.mxu0 %v481
      %v705 = vpop.f32.mrf.mxu0
      %v706 = vadd.f32 %v248, %v705
      %v707 = vpop.f32.mrf.mxu0
      %v708 = vpop.f32.mrf.mxu0
      %v709 = vadd.f32 %v248, %v708
      %v710 = vpop.f32.mrf.mxu0
      %711 = vmatprep.mubr.bf16.mxu0 0
      %712 = vmatmul.mubr.bf16.gmra.mxu0 %v484
      %v713 = vpop.f32.mrf.mxu0
      %v714 = vadd.f32 %v248, %v713
      %v715 = vpop.f32.mrf.mxu0
      %v716 = vpop.f32.mrf.mxu0
      %v717 = vadd.f32 %v248, %v716
      %v718 = vpop.f32.mrf.mxu0
      %719 = vmatprep.mubr.bf16.mxu0 0
      %720 = vmatmul.mubr.bf16.gmra.mxu0 %v487
      %v721 = vpop.f32.mrf.mxu0
      %v722 = vadd.f32 %v248, %v721
      %v723 = vpop.f32.mrf.mxu0
      %v724 = vpop.f32.mrf.mxu0
      %v725 = vadd.f32 %v248, %v724
      %v726 = vpop.f32.mrf.mxu0
      %727 = vmatprep.mubr.bf16.mxu0 0
      %728 = vmatmul.mubr.bf16.gmra.mxu0 %v490
      %v729 = vpop.f32.mrf.mxu0
      %v730 = vadd.f32 %v248, %v729
      %v731 = vpop.f32.mrf.mxu0
      %v732 = vpop.f32.mrf.mxu0
      %v733 = vadd.f32 %v248, %v732
      %v734 = vpop.f32.mrf.mxu0
      %735 = vmatprep.mubr.bf16.mxu0 0
      %736 = vmatmul.mubr.bf16.gmra.mxu0 %v493
      %v737 = vpop.f32.mrf.mxu0
      %v738 = vadd.f32 %v248, %v737
      %v739 = vpop.f32.mrf.mxu0
      %v740 = vpop.f32.mrf.mxu0
      %v741 = vadd.f32 %v248, %v740
      %v742 = vpop.f32.mrf.mxu0
      %743 = vmatprep.mubr.bf16.mxu0 0
      %744 = vmatmul.mubr.bf16.gmra.mxu0 %v496
      %v745 = vpop.f32.mrf.mxu0
      %v746 = vadd.f32 %v248, %v745
      %v747 = vpop.f32.mrf.mxu0
      %v748 = vpop.f32.mrf.mxu0
      %v749 = vadd.f32 %v248, %v748
      %v750 = vpop.f32.mrf.mxu0
      %751 = vmatprep.mubr.bf16.mxu0 0
      %752 = vmatmul.mubr.bf16.gmra.mxu0 %v499
      %v753 = vpop.f32.mrf.mxu0
      %v754 = vadd.f32 %v248, %v753
      %v755 = vpop.f32.mrf.mxu0
      %v756 = vpop.f32.mrf.mxu0
      %v757 = vadd.f32 %v248, %v756
      %v758 = vpop.f32.mrf.mxu0
      %759 = vmatprep.mubr.bf16.mxu0 0
      %760 = vmatmul.mubr.bf16.gmra.mxu0 %v502
      %v761 = vpop.f32.mrf.mxu0
      %v762 = vadd.f32 %v248, %v761
      %v763 = vpop.f32.mrf.mxu0
      %v764 = vpop.f32.mrf.mxu0
      %v765 = vadd.f32 %v248, %v764
      %v766 = vpop.f32.mrf.mxu0
      %767 = vmatprep.mubr.bf16.mxu0 0
      %768 = vmatmul.mubr.bf16.gmra.mxu0 %v505
      %v769 = vpop.f32.mrf.mxu0
      %v770 = vadd.f32 %v248, %v769
      %v771 = vpop.f32.mrf.mxu0
      %v772 = vpop.f32.mrf.mxu0
      %v773 = vadd.f32 %v248, %v772
      %v774 = vpop.f32.mrf.mxu0
      %775 = vmatprep.mubr.bf16.mxu0 0
      %776 = vmatmul.mubr.bf16.gmra.mxu0 %v508
      %v777 = vpop.f32.mrf.mxu0
      %v778 = vadd.f32 %v248, %v777
      %v779 = vpop.f32.mrf.mxu0
      %v780 = vpop.f32.mrf.mxu0
      %v781 = vadd.f32 %v248, %v780
      %v782 = vpop.f32.mrf.mxu0
      %783 = vmatprep.mubr.bf16.mxu0 0
      %784 = vmatmul.mubr.bf16.gmra.mxu0 %v511
      %v785 = vpop.f32.mrf.mxu0
      %v786 = vadd.f32 %v248, %v785
      %v787 = vpop.f32.mrf.mxu0
      %v788 = vpop.f32.mrf.mxu0
      %v789 = vadd.f32 %v248, %v788
      %v790 = vpop.f32.mrf.mxu0
      %791 = vmatprep.mubr.bf16.mxu0 0
      %792 = vmatmul.mubr.bf16.gmra.mxu0 %v514
      %v793 = vpop.f32.mrf.mxu0
      %v794 = vadd.f32 %v248, %v793
      %v795 = vpop.f32.mrf.mxu0
      %v796 = vpop.f32.mrf.mxu0
      %v797 = vadd.f32 %v248, %v796
      %v798 = vpop.f32.mrf.mxu0
      %799 = vmatprep.mubr.bf16.mxu0 0
      %800 = vmatmul.mubr.bf16.gmra.mxu0 %v517
      %v801 = vpop.f32.mrf.mxu0
      %v802 = vadd.f32 %v248, %v801
      %v803 = vpop.f32.mrf.mxu0
      %v804 = vpop.f32.mrf.mxu0
      %v805 = vadd.f32 %v248, %v804
      %v806 = vpop.f32.mrf.mxu0
      %807 = vdwg.mxu0
      %v808 = vmax.f32 %v554, 0.0
      %v809 = vmax.f32 %v557, 0.0
      %v810 = vmax.f32 %v562, 0.0
      %v811 = vmax.f32 %v565, 0.0
      %v812 = vmax.f32 %v570, 0.0
      %v813 = vmax.f32 %v573, 0.0
      %v814 = vmax.f32 %v578, 0.0
      %v815 = vmax.f32 %v581, 0.0
      %v816 = vmax.f32 %v586, 0.0
      %v817 = vmax.f32 %v589, 0.0
      %v818 = vmax.f32 %v594, 0.0
      %v819 = vmax.f32 %v597, 0.0
      %v820 = vmax.f32 %v602, 0.0
      %v821 = vmax.f32 %v605, 0.0
      %v822 = vmax.f32 %v610, 0.0
      %v823 = vmax.f32 %v613, 0.0
      %v824 = vmax.f32 %v618, 0.0
      %v825 = vmax.f32 %v621, 0.0
      %v826 = vmax.f32 %v626, 0.0
      %v827 = vmax.f32 %v629, 0.0
      %v828 = vmax.f32 %v634, 0.0
      %v829 = vmax.f32 %v637, 0.0
      %v830 = vmax.f32 %v642, 0.0
      %v831 = vmax.f32 %v645, 0.0
      %v832 = vmax.f32 %v650, 0.0
      %v833 = vmax.f32 %v653, 0.0
      %v834 = vmax.f32 %v658, 0.0
      %v835 = vmax.f32 %v661, 0.0
      %v836 = vmax.f32 %v666, 0.0
      %v837 = vmax.f32 %v669, 0.0
      %v838 = vmax.f32 %v674, 0.0
      %v839 = vmax.f32 %v677, 0.0
      %v840 = vmax.f32 %v682, 0.0
      %v841 = vmax.f32 %v685, 0.0
      %v842 = vmax.f32 %v690, 0.0
      %v843 = vmax.f32 %v693, 0.0
      %v844 = vmax.f32 %v698, 0.0
      %v845 = vmax.f32 %v701, 0.0
      %v846 = vmax.f32 %v706, 0.0
      %v847 = vmax.f32 %v709, 0.0
      %v848 = vmax.f32 %v714, 0.0
      %v849 = vmax.f32 %v717, 0.0
      %v850 = vmax.f32 %v722, 0.0
      %v851 = vmax.f32 %v725, 0.0
      %v852 = vmax.f32 %v730, 0.0
      %v853 = vmax.f32 %v733, 0.0
      %v854 = vmax.f32 %v738, 0.0
      %v855 = vmax.f32 %v741, 0.0
      %v856 = vmax.f32 %v746, 0.0
      %v857 = vmax.f32 %v749, 0.0
      %v858 = vmax.f32 %v754, 0.0
      %v859 = vmax.f32 %v757, 0.0
      %v860 = vmax.f32 %v762, 0.0
      %v861 = vmax.f32 %v765, 0.0
      %v862 = vmax.f32 %v770, 0.0
      %v863 = vmax.f32 %v773, 0.0
      %v864 = vmax.f32 %v778, 0.0
      %v865 = vmax.f32 %v781, 0.0
      %v866 = vmax.f32 %v786, 0.0
      %v867 = vmax.f32 %v789, 0.0
      %v868 = vmax.f32 %v794, 0.0
      %v869 = vmax.f32 %v797, 0.0
      %v870 = vmax.f32 %v802, 0.0
      %v871 = vmax.f32 %v805, 0.0
      %v872 = vpack.c.bf16 %v809, %v808
      %v873 = vpack.c.bf16 %v811, %v810
      %v874 = vpack.c.bf16 %v813, %v812
      %v875 = vpack.c.bf16 %v815, %v814
      %v876 = vpack.c.bf16 %v817, %v816
      %v877 = vpack.c.bf16 %v819, %v818
      %v878 = vpack.c.bf16 %v821, %v820
      %v879 = vpack.c.bf16 %v823, %v822
      %v880 = vpack.c.bf16 %v825, %v824
      %v881 = vpack.c.bf16 %v827, %v826
      %v882 = vpack.c.bf16 %v829, %v828
      %v883 = vpack.c.bf16 %v831, %v830
      %v884 = vpack.c.bf16 %v833, %v832
      %v885 = vpack.c.bf16 %v835, %v834
      %v886 = vpack.c.bf16 %v837, %v836
      %v887 = vpack.c.bf16 %v839, %v838
      %v888 = vpack.c.bf16 %v841, %v840
      %v889 = vpack.c.bf16 %v843, %v842
      %v890 = vpack.c.bf16 %v845, %v844
      %v891 = vpack.c.bf16 %v847, %v846
      %v892 = vpack.c.bf16 %v849, %v848
      %v893 = vpack.c.bf16 %v851, %v850
      %v894 = vpack.c.bf16 %v853, %v852
      %v895 = vpack.c.bf16 %v855, %v854
      %v896 = vpack.c.bf16 %v857, %v856
      %v897 = vpack.c.bf16 %v859, %v858
      %v898 = vpack.c.bf16 %v861, %v860
      %v899 = vpack.c.bf16 %v863, %v862
      %v900 = vpack.c.bf16 %v865, %v864
      %v901 = vpack.c.bf16 %v867, %v866
      %v902 = vpack.c.bf16 %v869, %v868
      %v903 = vpack.c.bf16 %v871, %v870
      %v936 = vunpack.c.l.b16 %v872
      %v937 = vunpack.c.h.b16 %v872
      %v938 = vunpack.c.l.b16 %v873
      %v939 = vunpack.c.h.b16 %v873
      %v940 = vunpack.c.l.b16 %v874
      %v941 = vunpack.c.h.b16 %v874
      %v942 = vunpack.c.l.b16 %v875
      %v943 = vunpack.c.h.b16 %v875
      %v944 = vunpack.c.l.b16 %v876
      %v945 = vunpack.c.h.b16 %v876
      %v946 = vunpack.c.l.b16 %v877
      %v947 = vunpack.c.h.b16 %v877
      %v948 = vunpack.c.l.b16 %v878
      %v949 = vunpack.c.h.b16 %v878
      %v950 = vunpack.c.l.b16 %v879
      %v951 = vunpack.c.h.b16 %v879
      %v952 = vunpack.c.l.b16 %v880
      %v953 = vunpack.c.h.b16 %v880
      %v954 = vunpack.c.l.b16 %v881
      %v955 = vunpack.c.h.b16 %v881
      %v956 = vunpack.c.l.b16 %v882
      %v957 = vunpack.c.h.b16 %v882
      %v958 = vunpack.c.l.b16 %v883
      %v959 = vunpack.c.h.b16 %v883
      %v960 = vunpack.c.l.b16 %v884
      %v961 = vunpack.c.h.b16 %v884
      %v962 = vunpack.c.l.b16 %v885
      %v963 = vunpack.c.h.b16 %v885
      %v964 = vunpack.c.l.b16 %v886
      %v965 = vunpack.c.h.b16 %v886
      %v966 = vunpack.c.l.b16 %v887
      %v967 = vunpack.c.h.b16 %v887
      %v968 = vunpack.c.l.b16 %v888
      %v969 = vunpack.c.h.b16 %v888
      %v970 = vunpack.c.l.b16 %v889
      %v971 = vunpack.c.h.b16 %v889
      %v972 = vunpack.c.l.b16 %v890
      %v973 = vunpack.c.h.b16 %v890
      %v974 = vunpack.c.l.b16 %v891
      %v975 = vunpack.c.h.b16 %v891
      %v976 = vunpack.c.l.b16 %v892
      %v977 = vunpack.c.h.b16 %v892
      %v978 = vunpack.c.l.b16 %v893
      %v979 = vunpack.c.h.b16 %v893
      %v980 = vunpack.c.l.b16 %v894
      %v981 = vunpack.c.h.b16 %v894
      %v982 = vunpack.c.l.b16 %v895
      %v983 = vunpack.c.h.b16 %v895
      %v984 = vunpack.c.l.b16 %v896
      %v985 = vunpack.c.h.b16 %v896
      %v986 = vunpack.c.l.b16 %v897
      %v987 = vunpack.c.h.b16 %v897
      %v988 = vunpack.c.l.b16 %v898
      %v989 = vunpack.c.h.b16 %v898
      %v990 = vunpack.c.l.b16 %v899
      %v991 = vunpack.c.h.b16 %v899
      %v992 = vunpack.c.l.b16 %v900
      %v993 = vunpack.c.h.b16 %v900
      %v994 = vunpack.c.l.b16 %v901
      %v995 = vunpack.c.h.b16 %v901
      %v996 = vunpack.c.l.b16 %v902
      %v997 = vunpack.c.h.b16 %v902
      %v998 = vunpack.c.l.b16 %v903
      %v999 = vunpack.c.h.b16 %v903
      %v1000 = vpack.c.b16 %v936, %v936
      %v1001 = vpack.c.b16 %v937, %v937
      %v1002 = vpack.c.b16 %v938, %v938
      %v1003 = vpack.c.b16 %v939, %v939
      %v1004 = vpack.c.b16 %v940, %v940
      %v1005 = vpack.c.b16 %v941, %v941
      %v1006 = vpack.c.b16 %v942, %v942
      %v1007 = vpack.c.b16 %v943, %v943
      %v1008 = vpack.c.b16 %v944, %v944
      %v1009 = vpack.c.b16 %v945, %v945
      %v1010 = vpack.c.b16 %v946, %v946
      %v1011 = vpack.c.b16 %v947, %v947
      %v1012 = vpack.c.b16 %v948, %v948
      %v1013 = vpack.c.b16 %v949, %v949
      %v1014 = vpack.c.b16 %v950, %v950
      %v1015 = vpack.c.b16 %v951, %v951
      %v1016 = vpack.c.b16 %v952, %v952
      %v1017 = vpack.c.b16 %v953, %v953
      %v1018 = vpack.c.b16 %v954, %v954
      %v1019 = vpack.c.b16 %v955, %v955
      %v1020 = vpack.c.b16 %v956, %v956
      %v1021 = vpack.c.b16 %v957, %v957
      %v1022 = vpack.c.b16 %v958, %v958
      %v1023 = vpack.c.b16 %v959, %v959
      %v1024 = vpack.c.b16 %v960, %v960
      %v1025 = vpack.c.b16 %v961, %v961
      %v1026 = vpack.c.b16 %v962, %v962
      %v1027 = vpack.c.b16 %v963, %v963
      %v1028 = vpack.c.b16 %v964, %v964
      %v1029 = vpack.c.b16 %v965, %v965
      %v1030 = vpack.c.b16 %v966, %v966
      %v1031 = vpack.c.b16 %v967, %v967
      %v1032 = vpack.c.b16 %v968, %v968
      %v1033 = vpack.c.b16 %v969, %v969
      %v1034 = vpack.c.b16 %v970, %v970
      %v1035 = vpack.c.b16 %v971, %v971
      %v1036 = vpack.c.b16 %v972, %v972
      %v1037 = vpack.c.b16 %v973, %v973
      %v1038 = vpack.c.b16 %v974, %v974
      %v1039 = vpack.c.b16 %v975, %v975
      %v1040 = vpack.c.b16 %v976, %v976
      %v1041 = vpack.c.b16 %v977, %v977
      %v1042 = vpack.c.b16 %v978, %v978
      %v1043 = vpack.c.b16 %v979, %v979
      %v1044 = vpack.c.b16 %v980, %v980
      %v1045 = vpack.c.b16 %v981, %v981
      %v1046 = vpack.c.b16 %v982, %v982
      %v1047 = vpack.c.b16 %v983, %v983
      %v1048 = vpack.c.b16 %v984, %v984
      %v1049 = vpack.c.b16 %v985, %v985
      %v1050 = vpack.c.b16 %v986, %v986
      %v1051 = vpack.c.b16 %v987, %v987
      %v1052 = vpack.c.b16 %v988, %v988
      %v1053 = vpack.c.b16 %v989, %v989
      %v1054 = vpack.c.b16 %v990, %v990
      %v1055 = vpack.c.b16 %v991, %v991
      %v1056 = vpack.c.b16 %v992, %v992
      %v1057 = vpack.c.b16 %v993, %v993
      %v1058 = vpack.c.b16 %v994, %v994
      %v1059 = vpack.c.b16 %v995, %v995
      %v1060 = vpack.c.b16 %v996, %v996
      %v1061 = vpack.c.b16 %v997, %v997
      %v1062 = vpack.c.b16 %v998, %v998
      %v1063 = vpack.c.b16 %v999, %v999
      %vm1128 = vcmask 60416
      %1129 = vst.msk [vmem:[%s172] sm:$0xf] %vm1128, %v1000
      %1130 = vst.msk [vmem:[%s172 + $0x4] sm:$0xf] %vm1128, %v1001
      %1131 = vst.msk [vmem:[%s172 + $0x8] sm:$0xf] %vm1128, %v1002
      %1132 = vst.msk [vmem:[%s172 + $0xc] sm:$0xf] %vm1128, %v1003
      %1133 = vst.msk [vmem:[%s172 + $0x10] sm:$0xf] %vm1128, %v1004
      %1134 = vst.msk [vmem:[%s172 + $0x14] sm:$0xf] %vm1128, %v1005
      %1135 = vst.msk [vmem:[%s172 + $0x18] sm:$0xf] %vm1128, %v1006
      %1136 = vst.msk [vmem:[%s172 + $0x1c] sm:$0xf] %vm1128, %v1007
      %1137 = vst.msk [vmem:[%s172 + $0x20] sm:$0xf] %vm1128, %v1008
      %1138 = vst.msk [vmem:[%s172 + $0x24] sm:$0xf] %vm1128, %v1009
      %1139 = vst.msk [vmem:[%s172 + $0x28] sm:$0xf] %vm1128, %v1010
      %1140 = vst.msk [vmem:[%s172 + $0x2c] sm:$0xf] %vm1128, %v1011
      %1141 = vst.msk [vmem:[%s172 + $0x30] sm:$0xf] %vm1128, %v1012
      %1142 = vst.msk [vmem:[%s172 + $0x34] sm:$0xf] %vm1128, %v1013
      %1143 = vst.msk [vmem:[%s172 + $0x38] sm:$0xf] %vm1128, %v1014
      %1144 = vst.msk [vmem:[%s172 + $0x3c] sm:$0xf] %vm1128, %v1015
      %1145 = vst.msk [vmem:[%s172 + $0x40] sm:$0xf] %vm1128, %v1016
      %1146 = vst.msk [vmem:[%s172 + $0x44] sm:$0xf] %vm1128, %v1017
      %1147 = vst.msk [vmem:[%s172 + $0x48] sm:$0xf] %vm1128, %v1018
      %1148 = vst.msk [vmem:[%s172 + $0x4c] sm:$0xf] %vm1128, %v1019
      %1149 = vst.msk [vmem:[%s172 + $0x50] sm:$0xf] %vm1128, %v1020
      %1150 = vst.msk [vmem:[%s172 + $0x54] sm:$0xf] %vm1128, %v1021
      %1151 = vst.msk [vmem:[%s172 + $0x58] sm:$0xf] %vm1128, %v1022
      %1152 = vst.msk [vmem:[%s172 + $0x5c] sm:$0xf] %vm1128, %v1023
      %1153 = vst.msk [vmem:[%s172 + $0x60] sm:$0xf] %vm1128, %v1024
      %1154 = vst.msk [vmem:[%s172 + $0x64] sm:$0xf] %vm1128, %v1025
      %1155 = vst.msk [vmem:[%s172 + $0x68] sm:$0xf] %vm1128, %v1026
      %1156 = vst.msk [vmem:[%s172 + $0x6c] sm:$0xf] %vm1128, %v1027
      %1157 = vst.msk [vmem:[%s172 + $0x70] sm:$0xf] %vm1128, %v1028
      %1158 = vst.msk [vmem:[%s172 + $0x74] sm:$0xf] %vm1128, %v1029
      %1159 = vst.msk [vmem:[%s172 + $0x78] sm:$0xf] %vm1128, %v1030
      %1160 = vst.msk [vmem:[%s172 + $0x7c] sm:$0xf] %vm1128, %v1031
      %1161 = vst.msk [vmem:[%s172 + $0x80] sm:$0xf] %vm1128, %v1032
      %1162 = vst.msk [vmem:[%s172 + $0x84] sm:$0xf] %vm1128, %v1033
      %1163 = vst.msk [vmem:[%s172 + $0x88] sm:$0xf] %vm1128, %v1034
      %1164 = vst.msk [vmem:[%s172 + $0x8c] sm:$0xf] %vm1128, %v1035
      %1165 = vst.msk [vmem:[%s172 + $0x90] sm:$0xf] %vm1128, %v1036
      %1166 = vst.msk [vmem:[%s172 + $0x94] sm:$0xf] %vm1128, %v1037
      %1167 = vst.msk [vmem:[%s172 + $0x98] sm:$0xf] %vm1128, %v1038
      %1168 = vst.msk [vmem:[%s172 + $0x9c] sm:$0xf] %vm1128, %v1039
      %1169 = vst.msk [vmem:[%s172 + $0xa0] sm:$0xf] %vm1128, %v1040
      %1170 = vst.msk [vmem:[%s172 + $0xa4] sm:$0xf] %vm1128, %v1041
      %1171 = vst.msk [vmem:[%s172 + $0xa8] sm:$0xf] %vm1128, %v1042
      %1172 = vst.msk [vmem:[%s172 + $0xac] sm:$0xf] %vm1128, %v1043
      %1173 = vst.msk [vmem:[%s172 + $0xb0] sm:$0xf] %vm1128, %v1044
      %1174 = vst.msk [vmem:[%s172 + $0xb4] sm:$0xf] %vm1128, %v1045
      %1175 = vst.msk [vmem:[%s172 + $0xb8] sm:$0xf] %vm1128, %v1046
      %1176 = vst.msk [vmem:[%s172 + $0xbc] sm:$0xf] %vm1128, %v1047
      %1177 = vst.msk [vmem:[%s172 + $0xc0] sm:$0xf] %vm1128, %v1048
      %1178 = vst.msk [vmem:[%s172 + $0xc4] sm:$0xf] %vm1128, %v1049
      %1179 = vst.msk [vmem:[%s172 + $0xc8] sm:$0xf] %vm1128, %v1050
      %1180 = vst.msk [vmem:[%s172 + $0xcc] sm:$0xf] %vm1128, %v1051
      %1181 = vst.msk [vmem:[%s172 + $0xd0] sm:$0xf] %vm1128, %v1052
      %1182 = vst.msk [vmem:[%s172 + $0xd4] sm:$0xf] %vm1128, %v1053
      %1183 = vst.msk [vmem:[%s172 + $0xd8] sm:$0xf] %vm1128, %v1054
      %1184 = vst.msk [vmem:[%s172 + $0xdc] sm:$0xf] %vm1128, %v1055
      %1185 = vst.msk [vmem:[%s172 + $0xe0] sm:$0xf] %vm1128, %v1056
      %1186 = vst.msk [vmem:[%s172 + $0xe4] sm:$0xf] %vm1128, %v1057
      %1187 = vst.msk [vmem:[%s172 + $0xe8] sm:$0xf] %vm1128, %v1058
      %1188 = vst.msk [vmem:[%s172 + $0xec] sm:$0xf] %vm1128, %v1059
      %1189 = vst.msk [vmem:[%s172 + $0xf0] sm:$0xf] %vm1128, %v1060
      %1190 = vst.msk [vmem:[%s172 + $0xf4] sm:$0xf] %vm1128, %v1061
      %1191 = vst.msk [vmem:[%s172 + $0xf8] sm:$0xf] %vm1128, %v1062
      %1192 = vst.msk [vmem:[%s172 + $0xfc] sm:$0xf] %vm1128, %v1063
      %s1193 = smul.u32 64, %s14
      %p1194 = scmp.lt.s32.totalorder %s1193, 255
      %s1195 = scalar_select %p1194, %s1193, 255
      %s1196 = smul.addr %s1195, 4
      %s1197 = scalar_lea.vmem %s3, %s1196
      // Predicated region
      $region33: #{_lambda_.38} parent=31 // pred_check
        %p1198 = pneg %p100
      $region34: #{_lambda_.38} parent=31 // pred_check_branch
        %1200 = sbr.rel (%p1198) target = $region36
      $region35: #{_lambda_.38} parent=31 // pred_region
        %s1201 = smul.u32 64, %s14
      $region36: #{_lambda_.38} parent=31 // pred_fallthru
        _
    $region32: #{_lambda_.38} parent=5 // pred_fallthru
      _
    %p1202 = scmp.le.s32.totalorder 2, %s9
    // Predicated region
    $region37: #{_lambda_.38} parent=5 // pred_check
      %p1203 = pneg %p1202
    $region38: #{_lambda_.38} parent=5 // pred_check_branch
      %1205 = sbr.rel (%p1203) target = $region40
    $region39: #{_lambda_.38} parent=5 // pred_region
      %s1206 = ssub.s32 %s9, 2
      // Predicated region
      $region41: #{_lambda_.38} parent=39 // pred_check
        %p1207 = pneg %p106
      $region42: #{_lambda_.38} parent=39 // pred_check_branch
        %1209 = sbr.rel (%p1207) target = $region44
      $region43: #{_lambda_.38} parent=39 // pred_region
        %s1210 = smul.u32 64, %s15
        %p1211 = scmp.lt.s32.totalorder %s1210, 255
        %s1212 = scalar_select %p1211, %s1210, 255
        %s1213 = smul.addr %s1212, 4
        %s1214 = scalar_lea.vmem %s3, %s1213
      $region44: #{_lambda_.38} parent=39 // pred_fallthru
        _
    $region40: #{_lambda_.38} parent=5 // pred_fallthru
      _
  $region6: #{_lambda_.38} parent=0 // loop_footer
    %s13 = sadd.s32 1, %s9
  $region7: #{_lambda_.38} parent=0 // loop_footer_branch
    %8 = sbr.rel target = $region3
  $region8: #{_lambda_.38} parent=0 // loop_exit
    _

// kernel: _lambda_.39
$region0: #{_lambda_.39}
  #allocation0 [shape = 'u32[]', space=smem, size = 0x4, offset = 0x4, fixed_abs, tag = 'smem constant byte address 0x4 - core index']
  #allocation1 [shape = 'u32[144,128]{1,0:T(1,128)}', space=vmem, size = 0x12000, scoped, tag = 'internal scratch']
  %s0 = inlined_call_operand.vmem [shape: bf16[512,72], index: 0, kind: input, shape index: {}]
  %s1 = inlined_call_operand.vmem [shape: bf16[72,8], index: 1, kind: input, shape index: {}]
  %s2 = inlined_call_operand.vmem [shape: f32[1,8], index: 2, kind: input, shape index: {}]
  %s3 = inlined_call_operand.vmem [shape: bf16[512,8], index: 3, kind: output, shape index: {}]
  %s4 = sld [smem:[#allocation0]]
  $region45: #{_lambda_.39} parent=0
    _
  %s6 = ssub.s32 1, %s4
  %s7 = scalar_select 0, %s6, %s4
  loop: start=0, step=1, limit=4
  $region2: #{_lambda_.39} parent=0 // loop_pre_header
    _
  $region3: #{_lambda_.39} parent=0 // loop_header
    %s9 = sphi 0, %s13
    %p10 = scmp.ge.s32.totalorder %s9, 4
    %s19 = sphi 0, %s21
    %s22 = sphi 0, %s19
    %s23 = sphi 0, %s22
    %s39 = sphi 0, %s23
    %s43 = sphi 0, %s43
    %s45 = sphi 0, %s43
    %s46 = sphi 0, %s45
    %s60 = sphi 0, %s46
    %s64 = sphi 0, %s64
    %s66 = sphi 0, %s64
    %s67 = sphi 0, %s66
    %s81 = sphi 0, %s67
    %s87 = sphi 0, %s89
    %s90 = sphi 0, %s87
    %s91 = sphi 0, %s90
    %s107 = sphi 0, %s91
  $region4: #{_lambda_.39} parent=0 // loop_header_branch
    %12 = sbr.rel (%p10) target = $region8
  $region5: #{_lambda_.39} parent=0 // loop_body
    %s14 = ssub.s32 %s9, 1
    %s15 = ssub.s32 %s9, 2
    %s16 = sadd.s32 %s9, 1
    %s17 = ssub.s32 %s9, %s16
    %p18 = scmp.eq.s32.totalorder %s17, 0
    %s20 = sadd.s32 %s19, 1
    %s21 = scalar_select %p18, %s19, %s20
    %p24 = pneg %p18
    %p25 = scmp.eq.s32.totalorder %s9, 1
    %p26 = por %p24, %p25
    %p27 = scmp.ne.s32.totalorder %s19, %s22
    %p28 = scmp.eq.s32.totalorder %s9, 0
    %p29 = por %p27, %p28
    %p30 = scmp.ne.s32.totalorder %s19, %s22
    %p31 = scmp.eq.s32.totalorder %s14, 1
    %p32 = por %p30, %p31
    %p33 = scmp.ne.s32.totalorder %s22, %s23
    %p34 = scmp.eq.s32.totalorder %s14, 0
    %p35 = por %p33, %p34
    %p36 = scmp.ne.s32.totalorder %s22, %s23
    %p37 = scmp.eq.s32.totalorder %s15, 1
    %p38 = por %p36, %p37
    %p40 = scmp.ne.s32.totalorder %s23, %s39
    %p41 = scmp.eq.s32.totalorder %s15, 0
    %p42 = por %p40, %p41
    %s44 = sadd.s32 %s43, 1
    %p47 = scmp.eq.s32.totalorder %s9, 1
    %p48 = scmp.ne.s32.totalorder %s43, %s45
    %p49 = scmp.eq.s32.totalorder %s9, 0
    %p50 = por %p48, %p49
    %p51 = scmp.ne.s32.totalorder %s43, %s45
    %p52 = scmp.eq.s32.totalorder %s14, 1
    %p53 = por %p51, %p52
    %p54 = scmp.ne.s32.totalorder %s45, %s46
    %p55 = scmp.eq.s32.totalorder %s14, 0
    %p56 = por %p54, %p55
    %p57 = scmp.ne.s32.totalorder %s45, %s46
    %p58 = scmp.eq.s32.totalorder %s15, 1
    %p59 = por %p57, %p58
    %p61 = scmp.ne.s32.totalorder %s46, %s60
    %p62 = scmp.eq.s32.totalorder %s15, 0
    %p63 = por %p61, %p62
    %s65 = sadd.s32 %s64, 1
    %p68 = scmp.eq.s32.totalorder %s9, 1
    %p69 = scmp.ne.s32.totalorder %s64, %s66
    %p70 = scmp.eq.s32.totalorder %s9, 0
    %p71 = por %p69, %p70
    %p72 = scmp.ne.s32.totalorder %s64, %s66
    %p73 = scmp.eq.s32.totalorder %s14, 1
    %p74 = por %p72, %p73
    %p75 = scmp.ne.s32.totalorder %s66, %s67
    %p76 = scmp.eq.s32.totalorder %s14, 0
    %p77 = por %p75, %p76
    %p78 = scmp.ne.s32.totalorder %s66, %s67
    %p79 = scmp.eq.s32.totalorder %s15, 1
    %p80 = por %p78, %p79
    %p82 = scmp.ne.s32.totalorder %s67, %s81
    %p83 = scmp.eq.s32.totalorder %s15, 0
    %p84 = por %p82, %p83
    %s85 = ssub.s32 %s9, %s16
    %p86 = scmp.eq.s32.totalorder %s85, 0
    %s88 = sadd.s32 %s87, 1
    %s89 = scalar_select %p86, %s87, %s88
    %p92 = pneg %p86
    %p93 = scmp.eq.s32.totalorder %s9, 1
    %p94 = por %p92, %p93
    %p95 = scmp.ne.s32.totalorder %s87, %s90
    %p96 = scmp.eq.s32.totalorder %s9, 0
    %p97 = por %p95, %p96
    %p98 = scmp.ne.s32.totalorder %s87, %s90
    %p99 = scmp.eq.s32.totalorder %s14, 1
    %p100 = por %p98, %p99
    %p101 = scmp.ne.s32.totalorder %s90, %s91
    %p102 = scmp.eq.s32.totalorder %s14, 0
    %p103 = por %p101, %p102
    %p104 = scmp.ne.s32.totalorder %s90, %s91
    %p105 = scmp.eq.s32.totalorder %s15, 1
    %p106 = por %p104, %p105
    %p108 = scmp.ne.s32.totalorder %s91, %s107
    %p109 = scmp.eq.s32.totalorder %s15, 0
    %p110 = por %p108, %p109
    %p111 = scmp.le.s32.totalorder 1, %s9
    %p112 = scmp.lt.s32.totalorder %s9, 3
    %p113 = pnand %p111, %p112
    %p114 = pneg %p113
    // Predicated region
    $region9: #{_lambda_.39} parent=5 // pred_check
      _
    $region10: #{_lambda_.39} parent=5 // pred_check_branch
      %116 = sbr.rel (%p113) target = $region12
    $region11: #{_lambda_.39} parent=5 // pred_region
      %s117 = ssub.s32 %s9, 1
      // Predicated region
      $region13: #{_lambda_.39} parent=11 // pred_check
        %p118 = pneg %p56
      $region14: #{_lambda_.39} parent=11 // pred_check_branch
        %120 = sbr.rel (%p118) target = $region16
      $region15: #{_lambda_.39} parent=11 // pred_region
        _
      $region16: #{_lambda_.39} parent=11 // pred_fallthru
        _
      // Predicated region
      $region17: #{_lambda_.39} parent=11 // pred_check
        %p121 = pneg %p77
      $region18: #{_lambda_.39} parent=11 // pred_check_branch
        %123 = sbr.rel (%p121) target = $region20
      $region19: #{_lambda_.39} parent=11 // pred_region
        _
      $region20: #{_lambda_.39} parent=11 // pred_fallthru
        _
    $region12: #{_lambda_.39} parent=5 // pred_fallthru
      _
    %p124 = scmp.lt.s32.totalorder %s9, 2
    // Predicated region
    $region21: #{_lambda_.39} parent=5 // pred_check
      %p125 = pneg %p124
    $region22: #{_lambda_.39} parent=5 // pred_check_branch
      %127 = sbr.rel (%p125) target = $region24
    $region23: #{_lambda_.39} parent=5 // pred_region
      // Predicated region
      $region25: #{_lambda_.39} parent=23 // pred_check
        %p128 = pneg %p29
      $region26: #{_lambda_.39} parent=23 // pred_check_branch
        %130 = sbr.rel (%p128) target = $region28
      $region27: #{_lambda_.39} parent=23 // pred_region
        %s131 = smul.u32 32, %s9
        %p132 = scmp.lt.s32.totalorder %s131, 63
        %s133 = scalar_select %p132, %s131, 63
        %s134 = smul.addr %s133, 4
        %s135 = scalar_lea.vmem %s0, %s134
        %s136 = smul.u32 32, %s9
      $region28: #{_lambda_.39} parent=23 // pred_fallthru
        _
    $region24: #{_lambda_.39} parent=5 // pred_fallthru
      _
    %p137 = scmp.le.s32.totalorder 1, %s9
    %p138 = scmp.lt.s32.totalorder %s9, 3
    %p139 = pnand %p137, %p138
    %p140 = pneg %p139
    // Predicated region
    $region29: #{_lambda_.39} parent=5 // pred_check
      _
    $region30: #{_lambda_.39} parent=5 // pred_check_branch
      %142 = sbr.rel (%p139) target = $region32
    $region31: #{_lambda_.39} parent=5 // pred_region
      %s143 = ssub.s32 %s9, 1
      %s144 = smul.u32 32, %s14
      %p145 = scmp.lt.s32.totalorder %s144, 63
      %s146 = scalar_select %p145, %s144, 63
      %s147 = smul.addr %s146, 4
      %s148 = scalar_lea.vmem %s0, %s147
      %p149 = pneg %p35
      %p150 = pneg %p32
      %p151 = pneg %p56
      %p152 = pneg %p53
      %p153 = pneg %p77
      %p154 = pneg %p74
      %p155 = pneg %p103
      %p156 = pneg %p100
      %s157 = smul.u32 32, %s14
      %p158 = scmp.lt.s32.totalorder %s157, 63
      %s159 = scalar_select %p158, %s157, 63
      %s160 = smul.addr %s159, 4
      %s161 = scalar_lea.vmem %s3, %s160
      %s162 = smul.u32 32, %s14
      %p163 = scmp.lt.s32.totalorder %s162, 63
      %s164 = scalar_select %p163, %s162, 63
      %s165 = smul.addr %s164, 4
      %s166 = scalar_lea.vmem %s0, %s165
      %s167 = smul.u32 32, %s14
      %s168 = smul.u32 32, %s14
      %p169 = scmp.lt.s32.totalorder %s168, 63
      %s170 = scalar_select %p169, %s168, 63
      %s171 = smul.addr %s170, 4
      %s172 = scalar_lea.vmem %s3, %s171
      %s173 = smul.u32 32, %s14
      %v175 = vld [vmem:[%s166] sm:$0xf]
      %v176 = vld [vmem:[%s166 + $0x4] sm:$0xf]
      %v177 = vld [vmem:[%s166 + $0x8] sm:$0xf]
      %v178 = vld [vmem:[%s166 + $0xc] sm:$0xf]
      %v179 = vld [vmem:[%s166 + $0x10] sm:$0xf]
      %v180 = vld [vmem:[%s166 + $0x14] sm:$0xf]
      %v181 = vld [vmem:[%s166 + $0x18] sm:$0xf]
      %v182 = vld [vmem:[%s166 + $0x1c] sm:$0xf]
      %v183 = vld [vmem:[%s166 + $0x20] sm:$0xf]
      %v184 = vld [vmem:[%s166 + $0x24] sm:$0xf]
      %v185 = vld [vmem:[%s166 + $0x28] sm:$0xf]
      %v186 = vld [vmem:[%s166 + $0x2c] sm:$0xf]
      %v187 = vld [vmem:[%s166 + $0x30] sm:$0xf]
      %v188 = vld [vmem:[%s166 + $0x34] sm:$0xf]
      %v189 = vld [vmem:[%s166 + $0x38] sm:$0xf]
      %v190 = vld [vmem:[%s166 + $0x3c] sm:$0xf]
      %v191 = vld [vmem:[%s166 + $0x40] sm:$0xf]
      %v192 = vld [vmem:[%s166 + $0x44] sm:$0xf]
      %v193 = vld [vmem:[%s166 + $0x48] sm:$0xf]
      %v194 = vld [vmem:[%s166 + $0x4c] sm:$0xf]
      %v195 = vld [vmem:[%s166 + $0x50] sm:$0xf]
      %v196 = vld [vmem:[%s166 + $0x54] sm:$0xf]
      %v197 = vld [vmem:[%s166 + $0x58] sm:$0xf]
      %v198 = vld [vmem:[%s166 + $0x5c] sm:$0xf]
      %v199 = vld [vmem:[%s166 + $0x60] sm:$0xf]
      %v200 = vld [vmem:[%s166 + $0x64] sm:$0xf]
      %v201 = vld [vmem:[%s166 + $0x68] sm:$0xf]
      %v202 = vld [vmem:[%s166 + $0x6c] sm:$0xf]
      %v203 = vld [vmem:[%s166 + $0x70] sm:$0xf]
      %v204 = vld [vmem:[%s166 + $0x74] sm:$0xf]
      %v205 = vld [vmem:[%s166 + $0x78] sm:$0xf]
      %v206 = vld [vmem:[%s166 + $0x7c] sm:$0xf]
      %v207 = vld [vmem:[%s1] sm:$0xf]
      %v208 = vld [vmem:[%s1 + $0x4] sm:$0xf]
      %v209 = vld [vmem:[%s1 + $0x8] sm:$0xf]
      %v210 = vld [vmem:[%s1 + $0xc] sm:$0xf]
      %v211 = vld [vmem:[%s1 + $0x10] sm:$0xf]
      %v212 = vld [vmem:[%s1 + $0x14] sm:$0xf]
      %v213 = vld [vmem:[%s1 + $0x18] sm:$0xf]
      %v214 = vld [vmem:[%s1 + $0x1c] sm:$0xf]
      %v215 = vld [vmem:[%s1 + $0x20] sm:$0xf]
      %v216 = vld [vmem:[%s2] sm:$0x1]
      %v218 = vlaneseq
      %v219 = vshrl.u32 %v218, 7
      %v220 = vsub.s32 0, %v219
      %v221 = vrot.slane %v216, %v220
      %v255 = vunpack.c.l.b16 %v175
      %v256 = vunpack.c.l.b16 %v176
      %v257 = vunpack.c.l.b16 %v177
      %v258 = vunpack.c.l.b16 %v178
      %v259 = vunpack.c.l.b16 %v179
      %v260 = vunpack.c.l.b16 %v180
      %v261 = vunpack.c.l.b16 %v181
      %v262 = vunpack.c.l.b16 %v182
      %v263 = vunpack.c.l.b16 %v183
      %v264 = vunpack.c.l.b16 %v184
      %v265 = vunpack.c.l.b16 %v185
      %v266 = vunpack.c.l.b16 %v186
      %v267 = vunpack.c.l.b16 %v187
      %v268 = vunpack.c.l.b16 %v188
      %v269 = vunpack.c.l.b16 %v189
      %v270 = vunpack.c.l.b16 %v190
      %v271 = vunpack.c.l.b16 %v191
      %v272 = vunpack.c.l.b16 %v192
      %v273 = vunpack.c.l.b16 %v193
      %v274 = vunpack.c.l.b16 %v194
      %v275 = vunpack.c.l.b16 %v195
      %v276 = vunpack.c.l.b16 %v196
      %v277 = vunpack.c.l.b16 %v197
      %v278 = vunpack.c.l.b16 %v198
      %v279 = vunpack.c.l.b16 %v199
      %v280 = vunpack.c.l.b16 %v200
      %v281 = vunpack.c.l.b16 %v201
      %v282 = vunpack.c.l.b16 %v202
      %v283 = vunpack.c.l.b16 %v203
      %v284 = vunpack.c.l.b16 %v204
      %v285 = vunpack.c.l.b16 %v205
      %v286 = vunpack.c.l.b16 %v206
      %v287 = vpack.c.b16 %v256, %v255
      %v288 = vpack.c.b16 %v258, %v257
      %v289 = vpack.c.b16 %v260, %v259
      %v290 = vpack.c.b16 %v262, %v261
      %v291 = vpack.c.b16 %v264, %v263
      %v292 = vpack.c.b16 %v266, %v265
      %v293 = vpack.c.b16 %v268, %v267
      %v294 = vpack.c.b16 %v270, %v269
      %v295 = vpack.c.b16 %v272, %v271
      %v296 = vpack.c.b16 %v274, %v273
      %v297 = vpack.c.b16 %v276, %v275
      %v298 = vpack.c.b16 %v278, %v277
      %v299 = vpack.c.b16 %v280, %v279
      %v300 = vpack.c.b16 %v282, %v281
      %v301 = vpack.c.b16 %v284, %v283
      %v302 = vpack.c.b16 %v286, %v285
      %v312 = vunpack.c.l.b16 %v207
      %v313 = vunpack.c.l.b16 %v208
      %v314 = vunpack.c.l.b16 %v209
      %v315 = vunpack.c.l.b16 %v210
      %v316 = vunpack.c.l.b16 %v211
      %v317 = vunpack.c.l.b16 %v212
      %v318 = vunpack.c.l.b16 %v213
      %v319 = vunpack.c.l.b16 %v214
      %v320 = vunpack.c.l.b16 %v215
      %v321 = vpack.c.b16 %v313, %v312
      %v322 = vpack.c.b16 %v315, %v314
      %v323 = vpack.c.b16 %v317, %v316
      %v324 = vpack.c.b16 %v319, %v318
      %v325 = vpack.c.b16 %v320, %v320
      %vm330 = vcmask 588800
      %v332 = vsel %vm330, %v287, 0
      %v335 = vsel %vm330, %v288, 0
      %v338 = vsel %vm330, %v289, 0
      %v341 = vsel %vm330, %v290, 0
      %v344 = vsel %vm330, %v291, 0
      %v347 = vsel %vm330, %v292, 0
      %v350 = vsel %vm330, %v293, 0
      %v353 = vsel %vm330, %v294, 0
      %v356 = vsel %vm330, %v295, 0
      %v359 = vsel %vm330, %v296, 0
      %v362 = vsel %vm330, %v297, 0
      %v365 = vsel %vm330, %v298, 0
      %v368 = vsel %vm330, %v299, 0
      %v371 = vsel %vm330, %v300, 0
      %v374 = vsel %vm330, %v301, 0
      %v377 = vsel %vm330, %v302, 0
      %vm379 = vcmask 1043456
      %v381 = vsel %vm379, %v325, 0
      %383 = vmatprep.subr.bf16.mxu0 0
      %384 = vmatpush1.bf16.msra.mxu0 0
      %385 = vmatprep.subr.bf16.mxu0 0
      %386 = vmatpush1.bf16.msra.mxu0 0
      %387 = vmatprep.subr.bf16.mxu0 0
      %388 = vmatpush1.bf16.msra.mxu0 0
      %389 = vmatprep.subr.bf16.mxu0 0
      %390 = vmatpush1.bf16.msra.mxu0 %v381
      %391 = vmatprep.subr.bf16.mxu0 0
      %392 = vmatpush1.bf16.msra.mxu0 %v324
      %393 = vmatprep.subr.bf16.mxu0 0
      %394 = vmatpush1.bf16.msra.mxu0 %v323
      %395 = vmatprep.subr.bf16.mxu0 0
      %396 = vmatpush1.bf16.msra.mxu0 %v322
      %397 = vmatprep.subr.bf16.mxu0 0
      %398 = vmatpush1.bf16.msra.mxu0 %v321
      %399 = vmatprep.subr.bf16.mxu0 0
      %400 = vmatpush2.bf16.msra.mxu0 0
      %401 = vmatprep.subr.bf16.mxu0 0
      %402 = vmatpush2.bf16.msra.mxu0 0
      %403 = vmatprep.subr.bf16.mxu0 0
      %404 = vmatpush2.bf16.msra.mxu0 0
      %405 = vmatprep.subr.bf16.mxu0 0
      %406 = vmatpush2.bf16.msra.mxu0 0
      %407 = vmatprep.subr.bf16.mxu0 0
      %408 = vmatpush2.bf16.msra.mxu0 0
      %409 = vmatprep.subr.bf16.mxu0 0
      %410 = vmatpush2.bf16.msra.mxu0 0
      %411 = vmatprep.subr.bf16.mxu0 0
      %412 = vmatpush2.bf16.msra.mxu0 0
      %413 = vmatprep.subr.bf16.mxu0 0
      %414 = vmatpush2.bf16.msra.mxu0 0
      %415 = vmatprep.mubr.bf16.mxu0 0
      %416 = vmatmul.mubr.bf16.gmra.mxu0 %v332
      %v417 = vpop.f32.mrf.mxu0
      %v418 = vadd.f32 %v221, %v417
      %v419 = vpop.f32.mrf.mxu0
      %v420 = vpop.f32.mrf.mxu0
      %v421 = vadd.f32 %v221, %v420
      %v422 = vpop.f32.mrf.mxu0
      %423 = vmatprep.mubr.bf16.mxu0 0
      %424 = vmatmul.mubr.bf16.gmra.mxu0 %v335
      %v425 = vpop.f32.mrf.mxu0
      %v426 = vadd.f32 %v221, %v425
      %v427 = vpop.f32.mrf.mxu0
      %v428 = vpop.f32.mrf.mxu0
      %v429 = vadd.f32 %v221, %v428
      %v430 = vpop.f32.mrf.mxu0
      %431 = vmatprep.mubr.bf16.mxu0 0
      %432 = vmatmul.mubr.bf16.gmra.mxu0 %v338
      %v433 = vpop.f32.mrf.mxu0
      %v434 = vadd.f32 %v221, %v433
      %v435 = vpop.f32.mrf.mxu0
      %v436 = vpop.f32.mrf.mxu0
      %v437 = vadd.f32 %v221, %v436
      %v438 = vpop.f32.mrf.mxu0
      %439 = vmatprep.mubr.bf16.mxu0 0
      %440 = vmatmul.mubr.bf16.gmra.mxu0 %v341
      %v441 = vpop.f32.mrf.mxu0
      %v442 = vadd.f32 %v221, %v441
      %v443 = vpop.f32.mrf.mxu0
      %v444 = vpop.f32.mrf.mxu0
      %v445 = vadd.f32 %v221, %v444
      %v446 = vpop.f32.mrf.mxu0
      %447 = vmatprep.mubr.bf16.mxu0 0
      %448 = vmatmul.mubr.bf16.gmra.mxu0 %v344
      %v449 = vpop.f32.mrf.mxu0
      %v450 = vadd.f32 %v221, %v449
      %v451 = vpop.f32.mrf.mxu0
      %v452 = vpop.f32.mrf.mxu0
      %v453 = vadd.f32 %v221, %v452
      %v454 = vpop.f32.mrf.mxu0
      %455 = vmatprep.mubr.bf16.mxu0 0
      %456 = vmatmul.mubr.bf16.gmra.mxu0 %v347
      %v457 = vpop.f32.mrf.mxu0
      %v458 = vadd.f32 %v221, %v457
      %v459 = vpop.f32.mrf.mxu0
      %v460 = vpop.f32.mrf.mxu0
      %v461 = vadd.f32 %v221, %v460
      %v462 = vpop.f32.mrf.mxu0
      %463 = vmatprep.mubr.bf16.mxu0 0
      %464 = vmatmul.mubr.bf16.gmra.mxu0 %v350
      %v465 = vpop.f32.mrf.mxu0
      %v466 = vadd.f32 %v221, %v465
      %v467 = vpop.f32.mrf.mxu0
      %v468 = vpop.f32.mrf.mxu0
      %v469 = vadd.f32 %v221, %v468
      %v470 = vpop.f32.mrf.mxu0
      %471 = vmatprep.mubr.bf16.mxu0 0
      %472 = vmatmul.mubr.bf16.gmra.mxu0 %v353
      %v473 = vpop.f32.mrf.mxu0
      %v474 = vadd.f32 %v221, %v473
      %v475 = vpop.f32.mrf.mxu0
      %v476 = vpop.f32.mrf.mxu0
      %v477 = vadd.f32 %v221, %v476
      %v478 = vpop.f32.mrf.mxu0
      %479 = vmatprep.mubr.bf16.mxu0 0
      %480 = vmatmul.mubr.bf16.gmra.mxu0 %v356
      %v481 = vpop.f32.mrf.mxu0
      %v482 = vadd.f32 %v221, %v481
      %v483 = vpop.f32.mrf.mxu0
      %v484 = vpop.f32.mrf.mxu0
      %v485 = vadd.f32 %v221, %v484
      %v486 = vpop.f32.mrf.mxu0
      %487 = vmatprep.mubr.bf16.mxu0 0
      %488 = vmatmul.mubr.bf16.gmra.mxu0 %v359
      %v489 = vpop.f32.mrf.mxu0
      %v490 = vadd.f32 %v221, %v489
      %v491 = vpop.f32.mrf.mxu0
      %v492 = vpop.f32.mrf.mxu0
      %v493 = vadd.f32 %v221, %v492
      %v494 = vpop.f32.mrf.mxu0
      %495 = vmatprep.mubr.bf16.mxu0 0
      %496 = vmatmul.mubr.bf16.gmra.mxu0 %v362
      %v497 = vpop.f32.mrf.mxu0
      %v498 = vadd.f32 %v221, %v497
      %v499 = vpop.f32.mrf.mxu0
      %v500 = vpop.f32.mrf.mxu0
      %v501 = vadd.f32 %v221, %v500
      %v502 = vpop.f32.mrf.mxu0
      %503 = vmatprep.mubr.bf16.mxu0 0
      %504 = vmatmul.mubr.bf16.gmra.mxu0 %v365
      %v505 = vpop.f32.mrf.mxu0
      %v506 = vadd.f32 %v221, %v505
      %v507 = vpop.f32.mrf.mxu0
      %v508 = vpop.f32.mrf.mxu0
      %v509 = vadd.f32 %v221, %v508
      %v510 = vpop.f32.mrf.mxu0
      %511 = vmatprep.mubr.bf16.mxu0 0
      %512 = vmatmul.mubr.bf16.gmra.mxu0 %v368
      %v513 = vpop.f32.mrf.mxu0
      %v514 = vadd.f32 %v221, %v513
      %v515 = vpop.f32.mrf.mxu0
      %v516 = vpop.f32.mrf.mxu0
      %v517 = vadd.f32 %v221, %v516
      %v518 = vpop.f32.mrf.mxu0
      %519 = vmatprep.mubr.bf16.mxu0 0
      %520 = vmatmul.mubr.bf16.gmra.mxu0 %v371
      %v521 = vpop.f32.mrf.mxu0
      %v522 = vadd.f32 %v221, %v521
      %v523 = vpop.f32.mrf.mxu0
      %v524 = vpop.f32.mrf.mxu0
      %v525 = vadd.f32 %v221, %v524
      %v526 = vpop.f32.mrf.mxu0
      %527 = vmatprep.mubr.bf16.mxu0 0
      %528 = vmatmul.mubr.bf16.gmra.mxu0 %v374
      %v529 = vpop.f32.mrf.mxu0
      %v530 = vadd.f32 %v221, %v529
      %v531 = vpop.f32.mrf.mxu0
      %v532 = vpop.f32.mrf.mxu0
      %v533 = vadd.f32 %v221, %v532
      %v534 = vpop.f32.mrf.mxu0
      %535 = vmatprep.mubr.bf16.mxu0 0
      %536 = vmatmul.mubr.bf16.gmra.mxu0 %v377
      %v537 = vpop.f32.mrf.mxu0
      %v538 = vadd.f32 %v221, %v537
      %v539 = vpop.f32.mrf.mxu0
      %v540 = vpop.f32.mrf.mxu0
      %v541 = vadd.f32 %v221, %v540
      %v542 = vpop.f32.mrf.mxu0
      %543 = vdwg.mxu0
      %v544 = vmax.f32 %v418, 0.0
      %v545 = vmax.f32 %v421, 0.0
      %v546 = vmax.f32 %v426, 0.0
      %v547 = vmax.f32 %v429, 0.0
      %v548 = vmax.f32 %v434, 0.0
      %v549 = vmax.f32 %v437, 0.0
      %v550 = vmax.f32 %v442, 0.0
      %v551 = vmax.f32 %v445, 0.0
      %v552 = vmax.f32 %v450, 0.0
      %v553 = vmax.f32 %v453, 0.0
      %v554 = vmax.f32 %v458, 0.0
      %v555 = vmax.f32 %v461, 0.0
      %v556 = vmax.f32 %v466, 0.0
      %v557 = vmax.f32 %v469, 0.0
      %v558 = vmax.f32 %v474, 0.0
      %v559 = vmax.f32 %v477, 0.0
      %v560 = vmax.f32 %v482, 0.0
      %v561 = vmax.f32 %v485, 0.0
      %v562 = vmax.f32 %v490, 0.0
      %v563 = vmax.f32 %v493, 0.0
      %v564 = vmax.f32 %v498, 0.0
      %v565 = vmax.f32 %v501, 0.0
      %v566 = vmax.f32 %v506, 0.0
      %v567 = vmax.f32 %v509, 0.0
      %v568 = vmax.f32 %v514, 0.0
      %v569 = vmax.f32 %v517, 0.0
      %v570 = vmax.f32 %v522, 0.0
      %v571 = vmax.f32 %v525, 0.0
      %v572 = vmax.f32 %v530, 0.0
      %v573 = vmax.f32 %v533, 0.0
      %v574 = vmax.f32 %v538, 0.0
      %v575 = vmax.f32 %v541, 0.0
      %v576 = vpack.c.bf16 %v545, %v544
      %v577 = vpack.c.bf16 %v547, %v546
      %v578 = vpack.c.bf16 %v549, %v548
      %v579 = vpack.c.bf16 %v551, %v550
      %v580 = vpack.c.bf16 %v553, %v552
      %v581 = vpack.c.bf16 %v555, %v554
      %v582 = vpack.c.bf16 %v557, %v556
      %v583 = vpack.c.bf16 %v559, %v558
      %v584 = vpack.c.bf16 %v561, %v560
      %v585 = vpack.c.bf16 %v563, %v562
      %v586 = vpack.c.bf16 %v565, %v564
      %v587 = vpack.c.bf16 %v567, %v566
      %v588 = vpack.c.bf16 %v569, %v568
      %v589 = vpack.c.bf16 %v571, %v570
      %v590 = vpack.c.bf16 %v573, %v572
      %v591 = vpack.c.bf16 %v575, %v574
      %v608 = vunpack.c.l.b16 %v576
      %v609 = vunpack.c.h.b16 %v576
      %v610 = vunpack.c.l.b16 %v577
      %v611 = vunpack.c.h.b16 %v577
      %v612 = vunpack.c.l.b16 %v578
      %v613 = vunpack.c.h.b16 %v578
      %v614 = vunpack.c.l.b16 %v579
      %v615 = vunpack.c.h.b16 %v579
      %v616 = vunpack.c.l.b16 %v580
      %v617 = vunpack.c.h.b16 %v580
      %v618 = vunpack.c.l.b16 %v581
      %v619 = vunpack.c.h.b16 %v581
      %v620 = vunpack.c.l.b16 %v582
      %v621 = vunpack.c.h.b16 %v582
      %v622 = vunpack.c.l.b16 %v583
      %v623 = vunpack.c.h.b16 %v583
      %v624 = vunpack.c.l.b16 %v584
      %v625 = vunpack.c.h.b16 %v584
      %v626 = vunpack.c.l.b16 %v585
      %v627 = vunpack.c.h.b16 %v585
      %v628 = vunpack.c.l.b16 %v586
      %v629 = vunpack.c.h.b16 %v586
      %v630 = vunpack.c.l.b16 %v587
      %v631 = vunpack.c.h.b16 %v587
      %v632 = vunpack.c.l.b16 %v588
      %v633 = vunpack.c.h.b16 %v588
      %v634 = vunpack.c.l.b16 %v589
      %v635 = vunpack.c.h.b16 %v589
      %v636 = vunpack.c.l.b16 %v590
      %v637 = vunpack.c.h.b16 %v590
      %v638 = vunpack.c.l.b16 %v591
      %v639 = vunpack.c.h.b16 %v591
      %v640 = vpack.c.b16 %v608, %v608
      %v641 = vpack.c.b16 %v609, %v609
      %v642 = vpack.c.b16 %v610, %v610
      %v643 = vpack.c.b16 %v611, %v611
      %v644 = vpack.c.b16 %v612, %v612
      %v645 = vpack.c.b16 %v613, %v613
      %v646 = vpack.c.b16 %v614, %v614
      %v647 = vpack.c.b16 %v615, %v615
      %v648 = vpack.c.b16 %v616, %v616
      %v649 = vpack.c.b16 %v617, %v617
      %v650 = vpack.c.b16 %v618, %v618
      %v651 = vpack.c.b16 %v619, %v619
      %v652 = vpack.c.b16 %v620, %v620
      %v653 = vpack.c.b16 %v621, %v621
      %v654 = vpack.c.b16 %v622, %v622
      %v655 = vpack.c.b16 %v623, %v623
      %v656 = vpack.c.b16 %v624, %v624
      %v657 = vpack.c.b16 %v625, %v625
      %v658 = vpack.c.b16 %v626, %v626
      %v659 = vpack.c.b16 %v627, %v627
      %v660 = vpack.c.b16 %v628, %v628
      %v661 = vpack.c.b16 %v629, %v629
      %v662 = vpack.c.b16 %v630, %v630
      %v663 = vpack.c.b16 %v631, %v631
      %v664 = vpack.c.b16 %v632, %v632
      %v665 = vpack.c.b16 %v633, %v633
      %v666 = vpack.c.b16 %v634, %v634
      %v667 = vpack.c.b16 %v635, %v635
      %v668 = vpack.c.b16 %v636, %v636
      %v669 = vpack.c.b16 %v637, %v637
      %v670 = vpack.c.b16 %v638, %v638
      %v671 = vpack.c.b16 %v639, %v639
      %vm704 = vcmask 60416
      %705 = vst.msk [vmem:[%s172] sm:$0xf] %vm704, %v640
      %706 = vst.msk [vmem:[%s172 + $0x4] sm:$0xf] %vm704, %v641
      %707 = vst.msk [vmem:[%s172 + $0x8] sm:$0xf] %vm704, %v642
      %708 = vst.msk [vmem:[%s172 + $0xc] sm:$0xf] %vm704, %v643
      %709 = vst.msk [vmem:[%s172 + $0x10] sm:$0xf] %vm704, %v644
      %710 = vst.msk [vmem:[%s172 + $0x14] sm:$0xf] %vm704, %v645
      %711 = vst.msk [vmem:[%s172 + $0x18] sm:$0xf] %vm704, %v646
      %712 = vst.msk [vmem:[%s172 + $0x1c] sm:$0xf] %vm704, %v647
      %713 = vst.msk [vmem:[%s172 + $0x20] sm:$0xf] %vm704, %v648
      %714 = vst.msk [vmem:[%s172 + $0x24] sm:$0xf] %vm704, %v649
      %715 = vst.msk [vmem:[%s172 + $0x28] sm:$0xf] %vm704, %v650
      %716 = vst.msk [vmem:[%s172 + $0x2c] sm:$0xf] %vm704, %v651
      %717 = vst.msk [vmem:[%s172 + $0x30] sm:$0xf] %vm704, %v652
      %718 = vst.msk [vmem:[%s172 + $0x34] sm:$0xf] %vm704, %v653
      %719 = vst.msk [vmem:[%s172 + $0x38] sm:$0xf] %vm704, %v654
      %720 = vst.msk [vmem:[%s172 + $0x3c] sm:$0xf] %vm704, %v655
      %721 = vst.msk [vmem:[%s172 + $0x40] sm:$0xf] %vm704, %v656
      %722 = vst.msk [vmem:[%s172 + $0x44] sm:$0xf] %vm704, %v657
      %723 = vst.msk [vmem:[%s172 + $0x48] sm:$0xf] %vm704, %v658
      %724 = vst.msk [vmem:[%s172 + $0x4c] sm:$0xf] %vm704, %v659
      %725 = vst.msk [vmem:[%s172 + $0x50] sm:$0xf] %vm704, %v660
      %726 = vst.msk [vmem:[%s172 + $0x54] sm:$0xf] %vm704, %v661
      %727 = vst.msk [vmem:[%s172 + $0x58] sm:$0xf] %vm704, %v662
      %728 = vst.msk [vmem:[%s172 + $0x5c] sm:$0xf] %vm704, %v663
      %729 = vst.msk [vmem:[%s172 + $0x60] sm:$0xf] %vm704, %v664
      %730 = vst.msk [vmem:[%s172 + $0x64] sm:$0xf] %vm704, %v665
      %731 = vst.msk [vmem:[%s172 + $0x68] sm:$0xf] %vm704, %v666
      %732 = vst.msk [vmem:[%s172 + $0x6c] sm:$0xf] %vm704, %v667
      %733 = vst.msk [vmem:[%s172 + $0x70] sm:$0xf] %vm704, %v668
      %734 = vst.msk [vmem:[%s172 + $0x74] sm:$0xf] %vm704, %v669
      %735 = vst.msk [vmem:[%s172 + $0x78] sm:$0xf] %vm704, %v670
      %736 = vst.msk [vmem:[%s172 + $0x7c] sm:$0xf] %vm704, %v671
      %s737 = smul.u32 32, %s14
      %p738 = scmp.lt.s32.totalorder %s737, 63
      %s739 = scalar_select %p738, %s737, 63
      %s740 = smul.addr %s739, 4
      %s741 = scalar_lea.vmem %s3, %s740
      // Predicated region
      $region33: #{_lambda_.39} parent=31 // pred_check
        %p742 = pneg %p100
      $region34: #{_lambda_.39} parent=31 // pred_check_branch
        %744 = sbr.rel (%p742) target = $region36
      $region35: #{_lambda_.39} parent=31 // pred_region
        %s745 = smul.u32 32, %s14
      $region36: #{_lambda_.39} parent=31 // pred_fallthru
        _
    $region32: #{_lambda_.39} parent=5 // pred_fallthru
      _
    %p746 = scmp.le.s32.totalorder 2, %s9
    // Predicated region
    $region37: #{_lambda_.39} parent=5 // pred_check
      %p747 = pneg %p746
    $region38: #{_lambda_.39} parent=5 // pred_check_branch
      %749 = sbr.rel (%p747) target = $region40
    $region39: #{_lambda_.39} parent=5 // pred_region
      %s750 = ssub.s32 %s9, 2
      // Predicated region
      $region41: #{_lambda_.39} parent=39 // pred_check
        %p751 = pneg %p106
      $region42: #{_lambda_.39} parent=39 // pred_check_branch
        %753 = sbr.rel (%p751) target = $region44
      $region43: #{_lambda_.39} parent=39 // pred_region
        %s754 = smul.u32 32, %s15
        %p755 = scmp.lt.s32.totalorder %s754, 63
        %s756 = scalar_select %p755, %s754, 63
        %s757 = smul.addr %s756, 4
        %s758 = scalar_lea.vmem %s3, %s757
      $region44: #{_lambda_.39} parent=39 // pred_fallthru
        _
    $region40: #{_lambda_.39} parent=5 // pred_fallthru
      _
  $region6: #{_lambda_.39} parent=0 // loop_footer
    %s13 = sadd.s32 1, %s9
  $region7: #{_lambda_.39} parent=0 // loop_footer_branch
    %8 = sbr.rel target = $region3
  $region8: #{_lambda_.39} parent=0 // loop_exit
    _

// kernel: _lambda_.41
$region0: #{_lambda_.41}
  #allocation0 [shape = 'u32[]', space=smem, size = 0x4, offset = 0x4, fixed_abs, tag = 'smem constant byte address 0x4 - core index']
  #allocation1 [shape = 'u32[144,128]{1,0:T(1,128)}', space=vmem, size = 0x12000, scoped, tag = 'internal scratch']
  %s0 = inlined_call_operand.vmem [shape: bf16[512,72], index: 0, kind: input, shape index: {}]
  %s1 = inlined_call_operand.vmem [shape: bf16[72,8], index: 1, kind: input, shape index: {}]
  %s2 = inlined_call_operand.vmem [shape: f32[1,8], index: 2, kind: input, shape index: {}]
  %s3 = inlined_call_operand.vmem [shape: bf16[512,8], index: 3, kind: input, shape index: {}]
  %s4 = inlined_call_operand.vmem [shape: bf16[512,8], index: 4, kind: output, shape index: {}]
  %s5 = sld [smem:[#allocation0]]
  $region49: #{_lambda_.41} parent=0
    _
  %s7 = ssub.s32 1, %s5
  %s8 = scalar_select 0, %s7, %s5
  loop: start=0, step=1, limit=4
  $region2: #{_lambda_.41} parent=0 // loop_pre_header
    _
  $region3: #{_lambda_.41} parent=0 // loop_header
    %s10 = sphi 0, %s14
    %p11 = scmp.ge.s32.totalorder %s10, 4
    %s20 = sphi 0, %s22
    %s23 = sphi 0, %s20
    %s24 = sphi 0, %s23
    %s40 = sphi 0, %s24
    %s44 = sphi 0, %s44
    %s46 = sphi 0, %s44
    %s47 = sphi 0, %s46
    %s61 = sphi 0, %s47
    %s65 = sphi 0, %s65
    %s67 = sphi 0, %s65
    %s68 = sphi 0, %s67
    %s82 = sphi 0, %s68
    %s88 = sphi 0, %s90
    %s91 = sphi 0, %s88
    %s92 = sphi 0, %s91
    %s108 = sphi 0, %s92
    %s114 = sphi 0, %s116
    %s117 = sphi 0, %s114
    %s118 = sphi 0, %s117
    %s134 = sphi 0, %s118
  $region4: #{_lambda_.41} parent=0 // loop_header_branch
    %13 = sbr.rel (%p11) target = $region8
  $region5: #{_lambda_.41} parent=0 // loop_body
    %s15 = ssub.s32 %s10, 1
    %s16 = ssub.s32 %s10, 2
    %s17 = sadd.s32 %s10, 1
    %s18 = ssub.s32 %s10, %s17
    %p19 = scmp.eq.s32.totalorder %s18, 0
    %s21 = sadd.s32 %s20, 1
    %s22 = scalar_select %p19, %s20, %s21
    %p25 = pneg %p19
    %p26 = scmp.eq.s32.totalorder %s10, 1
    %p27 = por %p25, %p26
    %p28 = scmp.ne.s32.totalorder %s20, %s23
    %p29 = scmp.eq.s32.totalorder %s10, 0
    %p30 = por %p28, %p29
    %p31 = scmp.ne.s32.totalorder %s20, %s23
    %p32 = scmp.eq.s32.totalorder %s15, 1
    %p33 = por %p31, %p32
    %p34 = scmp.ne.s32.totalorder %s23, %s24
    %p35 = scmp.eq.s32.totalorder %s15, 0
    %p36 = por %p34, %p35
    %p37 = scmp.ne.s32.totalorder %s23, %s24
    %p38 = scmp.eq.s32.totalorder %s16, 1
    %p39 = por %p37, %p38
    %p41 = scmp.ne.s32.totalorder %s24, %s40
    %p42 = scmp.eq.s32.totalorder %s16, 0
    %p43 = por %p41, %p42
    %s45 = sadd.s32 %s44, 1
    %p48 = scmp.eq.s32.totalorder %s10, 1
    %p49 = scmp.ne.s32.totalorder %s44, %s46
    %p50 = scmp.eq.s32.totalorder %s10, 0
    %p51 = por %p49, %p50
    %p52 = scmp.ne.s32.totalorder %s44, %s46
    %p53 = scmp.eq.s32.totalorder %s15, 1
    %p54 = por %p52, %p53
    %p55 = scmp.ne.s32.totalorder %s46, %s47
    %p56 = scmp.eq.s32.totalorder %s15, 0
    %p57 = por %p55, %p56
    %p58 = scmp.ne.s32.totalorder %s46, %s47
    %p59 = scmp.eq.s32.totalorder %s16, 1
    %p60 = por %p58, %p59
    %p62 = scmp.ne.s32.totalorder %s47, %s61
    %p63 = scmp.eq.s32.totalorder %s16, 0
    %p64 = por %p62, %p63
    %s66 = sadd.s32 %s65, 1
    %p69 = scmp.eq.s32.totalorder %s10, 1
    %p70 = scmp.ne.s32.totalorder %s65, %s67
    %p71 = scmp.eq.s32.totalorder %s10, 0
    %p72 = por %p70, %p71
    %p73 = scmp.ne.s32.totalorder %s65, %s67
    %p74 = scmp.eq.s32.totalorder %s15, 1
    %p75 = por %p73, %p74
    %p76 = scmp.ne.s32.totalorder %s67, %s68
    %p77 = scmp.eq.s32.totalorder %s15, 0
    %p78 = por %p76, %p77
    %p79 = scmp.ne.s32.totalorder %s67, %s68
    %p80 = scmp.eq.s32.totalorder %s16, 1
    %p81 = por %p79, %p80
    %p83 = scmp.ne.s32.totalorder %s68, %s82
    %p84 = scmp.eq.s32.totalorder %s16, 0
    %p85 = por %p83, %p84
    %s86 = ssub.s32 %s10, %s17
    %p87 = scmp.eq.s32.totalorder %s86, 0
    %s89 = sadd.s32 %s88, 1
    %s90 = scalar_select %p87, %s88, %s89
    %p93 = pneg %p87
    %p94 = scmp.eq.s32.totalorder %s10, 1
    %p95 = por %p93, %p94
    %p96 = scmp.ne.s32.totalorder %s88, %s91
    %p97 = scmp.eq.s32.totalorder %s10, 0
    %p98 = por %p96, %p97
    %p99 = scmp.ne.s32.totalorder %s88, %s91
    %p100 = scmp.eq.s32.totalorder %s15, 1
    %p101 = por %p99, %p100
    %p102 = scmp.ne.s32.totalorder %s91, %s92
    %p103 = scmp.eq.s32.totalorder %s15, 0
    %p104 = por %p102, %p103
    %p105 = scmp.ne.s32.totalorder %s91, %s92
    %p106 = scmp.eq.s32.totalorder %s16, 1
    %p107 = por %p105, %p106
    %p109 = scmp.ne.s32.totalorder %s92, %s108
    %p110 = scmp.eq.s32.totalorder %s16, 0
    %p111 = por %p109, %p110
    %s112 = ssub.s32 %s10, %s17
    %p113 = scmp.eq.s32.totalorder %s112, 0
    %s115 = sadd.s32 %s114, 1
    %s116 = scalar_select %p113, %s114, %s115
    %p119 = pneg %p113
    %p120 = scmp.eq.s32.totalorder %s10, 1
    %p121 = por %p119, %p120
    %p122 = scmp.ne.s32.totalorder %s114, %s117
    %p123 = scmp.eq.s32.totalorder %s10, 0
    %p124 = por %p122, %p123
    %p125 = scmp.ne.s32.totalorder %s114, %s117
    %p126 = scmp.eq.s32.totalorder %s15, 1
    %p127 = por %p125, %p126
    %p128 = scmp.ne.s32.totalorder %s117, %s118
    %p129 = scmp.eq.s32.totalorder %s15, 0
    %p130 = por %p128, %p129
    %p131 = scmp.ne.s32.totalorder %s117, %s118
    %p132 = scmp.eq.s32.totalorder %s16, 1
    %p133 = por %p131, %p132
    %p135 = scmp.ne.s32.totalorder %s118, %s134
    %p136 = scmp.eq.s32.totalorder %s16, 0
    %p137 = por %p135, %p136
    %p138 = scmp.le.s32.totalorder 1, %s10
    %p139 = scmp.lt.s32.totalorder %s10, 3
    %p140 = pnand %p138, %p139
    %p141 = pneg %p140
    // Predicated region
    $region9: #{_lambda_.41} parent=5 // pred_check
      _
    $region10: #{_lambda_.41} parent=5 // pred_check_branch
      %143 = sbr.rel (%p140) target = $region12
    $region11: #{_lambda_.41} parent=5 // pred_region
      %s144 = ssub.s32 %s10, 1
      // Predicated region
      $region13: #{_lambda_.41} parent=11 // pred_check
        %p145 = pneg %p57
      $region14: #{_lambda_.41} parent=11 // pred_check_branch
        %147 = sbr.rel (%p145) target = $region16
      $region15: #{_lambda_.41} parent=11 // pred_region
        _
      $region16: #{_lambda_.41} parent=11 // pred_fallthru
        _
      // Predicated region
      $region17: #{_lambda_.41} parent=11 // pred_check
        %p148 = pneg %p78
      $region18: #{_lambda_.41} parent=11 // pred_check_branch
        %150 = sbr.rel (%p148) target = $region20
      $region19: #{_lambda_.41} parent=11 // pred_region
        _
      $region20: #{_lambda_.41} parent=11 // pred_fallthru
        _
    $region12: #{_lambda_.41} parent=5 // pred_fallthru
      _
    %p151 = scmp.lt.s32.totalorder %s10, 2
    // Predicated region
    $region21: #{_lambda_.41} parent=5 // pred_check
      %p152 = pneg %p151
    $region22: #{_lambda_.41} parent=5 // pred_check_branch
      %154 = sbr.rel (%p152) target = $region24
    $region23: #{_lambda_.41} parent=5 // pred_region
      // Predicated region
      $region25: #{_lambda_.41} parent=23 // pred_check
        %p155 = pneg %p30
      $region26: #{_lambda_.41} parent=23 // pred_check_branch
        %157 = sbr.rel (%p155) target = $region28
      $region27: #{_lambda_.41} parent=23 // pred_region
        %s158 = smul.u32 32, %s10
        %p159 = scmp.lt.s32.totalorder %s158, 63
        %s160 = scalar_select %p159, %s158, 63
        %s161 = smul.addr %s160, 4
        %s162 = scalar_lea.vmem %s0, %s161
        %s163 = smul.u32 32, %s10
      $region28: #{_lambda_.41} parent=23 // pred_fallthru
        _
      // Predicated region
      $region29: #{_lambda_.41} parent=23 // pred_check
        %p164 = pneg %p98
      $region30: #{_lambda_.41} parent=23 // pred_check_branch
        %166 = sbr.rel (%p164) target = $region32
      $region31: #{_lambda_.41} parent=23 // pred_region
        %s167 = smul.u32 32, %s10
        %p168 = scmp.lt.s32.totalorder %s167, 63
        %s169 = scalar_select %p168, %s167, 63
        %s170 = smul.addr %s169, 4
        %s171 = scalar_lea.vmem %s3, %s170
        %s172 = smul.u32 32, %s10
      $region32: #{_lambda_.41} parent=23 // pred_fallthru
        _
    $region24: #{_lambda_.41} parent=5 // pred_fallthru
      _
    %p173 = scmp.le.s32.totalorder 1, %s10
    %p174 = scmp.lt.s32.totalorder %s10, 3
    %p175 = pnand %p173, %p174
    %p176 = pneg %p175
    // Predicated region
    $region33: #{_lambda_.41} parent=5 // pred_check
      _
    $region34: #{_lambda_.41} parent=5 // pred_check_branch
      %178 = sbr.rel (%p175) target = $region36
    $region35: #{_lambda_.41} parent=5 // pred_region
      %s179 = ssub.s32 %s10, 1
      %s180 = smul.u32 32, %s15
      %p181 = scmp.lt.s32.totalorder %s180, 63
      %s182 = scalar_select %p181, %s180, 63
      %s183 = smul.addr %s182, 4
      %s184 = scalar_lea.vmem %s0, %s183
      %p185 = pneg %p36
      %p186 = pneg %p33
      %p187 = pneg %p57
      %p188 = pneg %p54
      %p189 = pneg %p78
      %p190 = pneg %p75
      %s191 = smul.u32 32, %s15
      %p192 = scmp.lt.s32.totalorder %s191, 63
      %s193 = scalar_select %p192, %s191, 63
      %s194 = smul.addr %s193, 4
      %s195 = scalar_lea.vmem %s3, %s194
      %p196 = pneg %p104
      %p197 = pneg %p101
      %p198 = pneg %p130
      %p199 = pneg %p127
      %s200 = smul.u32 32, %s15
      %p201 = scmp.lt.s32.totalorder %s200, 63
      %s202 = scalar_select %p201, %s200, 63
      %s203 = smul.addr %s202, 4
      %s204 = scalar_lea.vmem %s4, %s203
      %s205 = smul.u32 32, %s15
      %p206 = scmp.lt.s32.totalorder %s205, 63
      %s207 = scalar_select %p206, %s205, 63
      %s208 = smul.addr %s207, 4
      %s209 = scalar_lea.vmem %s0, %s208
      %s210 = smul.u32 32, %s15
      %s211 = smul.u32 32, %s15
      %p212 = scmp.lt.s32.totalorder %s211, 63
      %s213 = scalar_select %p212, %s211, 63
      %s214 = smul.addr %s213, 4
      %s215 = scalar_lea.vmem %s3, %s214
      %s216 = smul.u32 32, %s15
      %s217 = smul.u32 32, %s15
      %p218 = scmp.lt.s32.totalorder %s217, 63
      %s219 = scalar_select %p218, %s217, 63
      %s220 = smul.addr %s219, 4
      %s221 = scalar_lea.vmem %s4, %s220
      %s222 = smul.u32 32, %s15
      %v224 = vld [vmem:[%s209] sm:$0xf]
      %v225 = vld [vmem:[%s209 + $0x4] sm:$0xf]
      %v226 = vld [vmem:[%s209 + $0x8] sm:$0xf]
      %v227 = vld [vmem:[%s209 + $0xc] sm:$0xf]
      %v228 = vld [vmem:[%s209 + $0x10] sm:$0xf]
      %v229 = vld [vmem:[%s209 + $0x14] sm:$0xf]
      %v230 = vld [vmem:[%s209 + $0x18] sm:$0xf]
      %v231 = vld [vmem:[%s209 + $0x1c] sm:$0xf]
      %v232 = vld [vmem:[%s209 + $0x20] sm:$0xf]
      %v233 = vld [vmem:[%s209 + $0x24] sm:$0xf]
      %v234 = vld [vmem:[%s209 + $0x28] sm:$0xf]
      %v235 = vld [vmem:[%s209 + $0x2c] sm:$0xf]
      %v236 = vld [vmem:[%s209 + $0x30] sm:$0xf]
      %v237 = vld [vmem:[%s209 + $0x34] sm:$0xf]
      %v238 = vld [vmem:[%s209 + $0x38] sm:$0xf]
      %v239 = vld [vmem:[%s209 + $0x3c] sm:$0xf]
      %v240 = vld [vmem:[%s209 + $0x40] sm:$0xf]
      %v241 = vld [vmem:[%s209 + $0x44] sm:$0xf]
      %v242 = vld [vmem:[%s209 + $0x48] sm:$0xf]
      %v243 = vld [vmem:[%s209 + $0x4c] sm:$0xf]
      %v244 = vld [vmem:[%s209 + $0x50] sm:$0xf]
      %v245 = vld [vmem:[%s209 + $0x54] sm:$0xf]
      %v246 = vld [vmem:[%s209 + $0x58] sm:$0xf]
      %v247 = vld [vmem:[%s209 + $0x5c] sm:$0xf]
      %v248 = vld [vmem:[%s209 + $0x60] sm:$0xf]
      %v249 = vld [vmem:[%s209 + $0x64] sm:$0xf]
      %v250 = vld [vmem:[%s209 + $0x68] sm:$0xf]
      %v251 = vld [vmem:[%s209 + $0x6c] sm:$0xf]
      %v252 = vld [vmem:[%s209 + $0x70] sm:$0xf]
      %v253 = vld [vmem:[%s209 + $0x74] sm:$0xf]
      %v254 = vld [vmem:[%s209 + $0x78] sm:$0xf]
      %v255 = vld [vmem:[%s209 + $0x7c] sm:$0xf]
      %v256 = vld [vmem:[%s1] sm:$0xf]
      %v257 = vld [vmem:[%s1 + $0x4] sm:$0xf]
      %v258 = vld [vmem:[%s1 + $0x8] sm:$0xf]
      %v259 = vld [vmem:[%s1 + $0xc] sm:$0xf]
      %v260 = vld [vmem:[%s1 + $0x10] sm:$0xf]
      %v261 = vld [vmem:[%s1 + $0x14] sm:$0xf]
      %v262 = vld [vmem:[%s1 + $0x18] sm:$0xf]
      %v263 = vld [vmem:[%s1 + $0x1c] sm:$0xf]
      %v264 = vld [vmem:[%s1 + $0x20] sm:$0xf]
      %v265 = vld [vmem:[%s2] sm:$0x1]
      %v267 = vlaneseq
      %v268 = vshrl.u32 %v267, 7
      %v269 = vsub.s32 0, %v268
      %v270 = vrot.slane %v265, %v269
      %v304 = vunpack.c.l.b16 %v224
      %v305 = vunpack.c.l.b16 %v225
      %v306 = vunpack.c.l.b16 %v226
      %v307 = vunpack.c.l.b16 %v227
      %v308 = vunpack.c.l.b16 %v228
      %v309 = vunpack.c.l.b16 %v229
      %v310 = vunpack.c.l.b16 %v230
      %v311 = vunpack.c.l.b16 %v231
      %v312 = vunpack.c.l.b16 %v232
      %v313 = vunpack.c.l.b16 %v233
      %v314 = vunpack.c.l.b16 %v234
      %v315 = vunpack.c.l.b16 %v235
      %v316 = vunpack.c.l.b16 %v236
      %v317 = vunpack.c.l.b16 %v237
      %v318 = vunpack.c.l.b16 %v238
      %v319 = vunpack.c.l.b16 %v239
      %v320 = vunpack.c.l.b16 %v240
      %v321 = vunpack.c.l.b16 %v241
      %v322 = vunpack.c.l.b16 %v242
      %v323 = vunpack.c.l.b16 %v243
      %v324 = vunpack.c.l.b16 %v244
      %v325 = vunpack.c.l.b16 %v245
      %v326 = vunpack.c.l.b16 %v246
      %v327 = vunpack.c.l.b16 %v247
      %v328 = vunpack.c.l.b16 %v248
      %v329 = vunpack.c.l.b16 %v249
      %v330 = vunpack.c.l.b16 %v250
      %v331 = vunpack.c.l.b16 %v251
      %v332 = vunpack.c.l.b16 %v252
      %v333 = vunpack.c.l.b16 %v253
      %v334 = vunpack.c.l.b16 %v254
      %v335 = vunpack.c.l.b16 %v255
      %v336 = vpack.c.b16 %v305, %v304
      %v337 = vpack.c.b16 %v307, %v306
      %v338 = vpack.c.b16 %v309, %v308
      %v339 = vpack.c.b16 %v311, %v310
      %v340 = vpack.c.b16 %v313, %v312
      %v341 = vpack.c.b16 %v315, %v314
      %v342 = vpack.c.b16 %v317, %v316
      %v343 = vpack.c.b16 %v319, %v318
      %v344 = vpack.c.b16 %v321, %v320
      %v345 = vpack.c.b16 %v323, %v322
      %v346 = vpack.c.b16 %v325, %v324
      %v347 = vpack.c.b16 %v327, %v326
      %v348 = vpack.c.b16 %v329, %v328
      %v349 = vpack.c.b16 %v331, %v330
      %v350 = vpack.c.b16 %v333, %v332
      %v351 = vpack.c.b16 %v335, %v334
      %v361 = vunpack.c.l.b16 %v256
      %v362 = vunpack.c.l.b16 %v257
      %v363 = vunpack.c.l.b16 %v258
      %v364 = vunpack.c.l.b16 %v259
      %v365 = vunpack.c.l.b16 %v260
      %v366 = vunpack.c.l.b16 %v261
      %v367 = vunpack.c.l.b16 %v262
      %v368 = vunpack.c.l.b16 %v263
      %v369 = vunpack.c.l.b16 %v264
      %v370 = vpack.c.b16 %v362, %v361
      %v371 = vpack.c.b16 %v364, %v363
      %v372 = vpack.c.b16 %v366, %v365
      %v373 = vpack.c.b16 %v368, %v367
      %v374 = vpack.c.b16 %v369, %v369
      %vm379 = vcmask 588800
      %v381 = vsel %vm379, %v336, 0
      %v384 = vsel %vm379, %v337, 0
      %v387 = vsel %vm379, %v338, 0
      %v390 = vsel %vm379, %v339, 0
      %v393 = vsel %vm379, %v340, 0
      %v396 = vsel %vm379, %v341, 0
      %v399 = vsel %vm379, %v342, 0
      %v402 = vsel %vm379, %v343, 0
      %v405 = vsel %vm379, %v344, 0
      %v408 = vsel %vm379, %v345, 0
      %v411 = vsel %vm379, %v346, 0
      %v414 = vsel %vm379, %v347, 0
      %v417 = vsel %vm379, %v348, 0
      %v420 = vsel %vm379, %v349, 0
      %v423 = vsel %vm379, %v350, 0
      %v426 = vsel %vm379, %v351, 0
      %vm428 = vcmask 1043456
      %v430 = vsel %vm428, %v374, 0
      %432 = vmatprep.subr.bf16.mxu0 0
      %433 = vmatpush1.bf16.msra.mxu0 0
      %434 = vmatprep.subr.bf16.mxu0 0
      %435 = vmatpush1.bf16.msra.mxu0 0
      %436 = vmatprep.subr.bf16.mxu0 0
      %437 = vmatpush1.bf16.msra.mxu0 0
      %438 = vmatprep.subr.bf16.mxu0 0
      %439 = vmatpush1.bf16.msra.mxu0 %v430
      %440 = vmatprep.subr.bf16.mxu0 0
      %441 = vmatpush1.bf16.msra.mxu0 %v373
      %442 = vmatprep.subr.bf16.mxu0 0
      %443 = vmatpush1.bf16.msra.mxu0 %v372
      %444 = vmatprep.subr.bf16.mxu0 0
      %445 = vmatpush1.bf16.msra.mxu0 %v371
      %446 = vmatprep.subr.bf16.mxu0 0
      %447 = vmatpush1.bf16.msra.mxu0 %v370
      %448 = vmatprep.subr.bf16.mxu0 0
      %449 = vmatpush2.bf16.msra.mxu0 0
      %450 = vmatprep.subr.bf16.mxu0 0
      %451 = vmatpush2.bf16.msra.mxu0 0
      %452 = vmatprep.subr.bf16.mxu0 0
      %453 = vmatpush2.bf16.msra.mxu0 0
      %454 = vmatprep.subr.bf16.mxu0 0
      %455 = vmatpush2.bf16.msra.mxu0 0
      %456 = vmatprep.subr.bf16.mxu0 0
      %457 = vmatpush2.bf16.msra.mxu0 0
      %458 = vmatprep.subr.bf16.mxu0 0
      %459 = vmatpush2.bf16.msra.mxu0 0
      %460 = vmatprep.subr.bf16.mxu0 0
      %461 = vmatpush2.bf16.msra.mxu0 0
      %462 = vmatprep.subr.bf16.mxu0 0
      %463 = vmatpush2.bf16.msra.mxu0 0
      %464 = vmatprep.mubr.bf16.mxu0 0
      %465 = vmatmul.mubr.bf16.gmra.mxu0 %v381
      %v466 = vpop.f32.mrf.mxu0
      %v467 = vadd.f32 %v270, %v466
      %v468 = vpop.f32.mrf.mxu0
      %v469 = vpop.f32.mrf.mxu0
      %v470 = vadd.f32 %v270, %v469
      %v471 = vpop.f32.mrf.mxu0
      %472 = vmatprep.mubr.bf16.mxu0 0
      %473 = vmatmul.mubr.bf16.gmra.mxu0 %v384
      %v474 = vpop.f32.mrf.mxu0
      %v475 = vadd.f32 %v270, %v474
      %v476 = vpop.f32.mrf.mxu0
      %v477 = vpop.f32.mrf.mxu0
      %v478 = vadd.f32 %v270, %v477
      %v479 = vpop.f32.mrf.mxu0
      %480 = vmatprep.mubr.bf16.mxu0 0
      %481 = vmatmul.mubr.bf16.gmra.mxu0 %v387
      %v482 = vpop.f32.mrf.mxu0
      %v483 = vadd.f32 %v270, %v482
      %v484 = vpop.f32.mrf.mxu0
      %v485 = vpop.f32.mrf.mxu0
      %v486 = vadd.f32 %v270, %v485
      %v487 = vpop.f32.mrf.mxu0
      %488 = vmatprep.mubr.bf16.mxu0 0
      %489 = vmatmul.mubr.bf16.gmra.mxu0 %v390
      %v490 = vpop.f32.mrf.mxu0
      %v491 = vadd.f32 %v270, %v490
      %v492 = vpop.f32.mrf.mxu0
      %v493 = vpop.f32.mrf.mxu0
      %v494 = vadd.f32 %v270, %v493
      %v495 = vpop.f32.mrf.mxu0
      %496 = vmatprep.mubr.bf16.mxu0 0
      %497 = vmatmul.mubr.bf16.gmra.mxu0 %v393
      %v498 = vpop.f32.mrf.mxu0
      %v499 = vadd.f32 %v270, %v498
      %v500 = vpop.f32.mrf.mxu0
      %v501 = vpop.f32.mrf.mxu0
      %v502 = vadd.f32 %v270, %v501
      %v503 = vpop.f32.mrf.mxu0
      %504 = vmatprep.mubr.bf16.mxu0 0
      %505 = vmatmul.mubr.bf16.gmra.mxu0 %v396
      %v506 = vpop.f32.mrf.mxu0
      %v507 = vadd.f32 %v270, %v506
      %v508 = vpop.f32.mrf.mxu0
      %v509 = vpop.f32.mrf.mxu0
      %v510 = vadd.f32 %v270, %v509
      %v511 = vpop.f32.mrf.mxu0
      %512 = vmatprep.mubr.bf16.mxu0 0
      %513 = vmatmul.mubr.bf16.gmra.mxu0 %v399
      %v514 = vpop.f32.mrf.mxu0
      %v515 = vadd.f32 %v270, %v514
      %v516 = vpop.f32.mrf.mxu0
      %v517 = vpop.f32.mrf.mxu0
      %v518 = vadd.f32 %v270, %v517
      %v519 = vpop.f32.mrf.mxu0
      %520 = vmatprep.mubr.bf16.mxu0 0
      %521 = vmatmul.mubr.bf16.gmra.mxu0 %v402
      %v522 = vpop.f32.mrf.mxu0
      %v523 = vadd.f32 %v270, %v522
      %v524 = vpop.f32.mrf.mxu0
      %v525 = vpop.f32.mrf.mxu0
      %v526 = vadd.f32 %v270, %v525
      %v527 = vpop.f32.mrf.mxu0
      %528 = vmatprep.mubr.bf16.mxu0 0
      %529 = vmatmul.mubr.bf16.gmra.mxu0 %v405
      %v530 = vpop.f32.mrf.mxu0
      %v531 = vadd.f32 %v270, %v530
      %v532 = vpop.f32.mrf.mxu0
      %v533 = vpop.f32.mrf.mxu0
      %v534 = vadd.f32 %v270, %v533
      %v535 = vpop.f32.mrf.mxu0
      %536 = vmatprep.mubr.bf16.mxu0 0
      %537 = vmatmul.mubr.bf16.gmra.mxu0 %v408
      %v538 = vpop.f32.mrf.mxu0
      %v539 = vadd.f32 %v270, %v538
      %v540 = vpop.f32.mrf.mxu0
      %v541 = vpop.f32.mrf.mxu0
      %v542 = vadd.f32 %v270, %v541
      %v543 = vpop.f32.mrf.mxu0
      %544 = vmatprep.mubr.bf16.mxu0 0
      %545 = vmatmul.mubr.bf16.gmra.mxu0 %v411
      %v546 = vpop.f32.mrf.mxu0
      %v547 = vadd.f32 %v270, %v546
      %v548 = vpop.f32.mrf.mxu0
      %v549 = vpop.f32.mrf.mxu0
      %v550 = vadd.f32 %v270, %v549
      %v551 = vpop.f32.mrf.mxu0
      %552 = vmatprep.mubr.bf16.mxu0 0
      %553 = vmatmul.mubr.bf16.gmra.mxu0 %v414
      %v554 = vpop.f32.mrf.mxu0
      %v555 = vadd.f32 %v270, %v554
      %v556 = vpop.f32.mrf.mxu0
      %v557 = vpop.f32.mrf.mxu0
      %v558 = vadd.f32 %v270, %v557
      %v559 = vpop.f32.mrf.mxu0
      %560 = vmatprep.mubr.bf16.mxu0 0
      %561 = vmatmul.mubr.bf16.gmra.mxu0 %v417
      %v562 = vpop.f32.mrf.mxu0
      %v563 = vadd.f32 %v270, %v562
      %v564 = vpop.f32.mrf.mxu0
      %v565 = vpop.f32.mrf.mxu0
      %v566 = vadd.f32 %v270, %v565
      %v567 = vpop.f32.mrf.mxu0
      %568 = vmatprep.mubr.bf16.mxu0 0
      %569 = vmatmul.mubr.bf16.gmra.mxu0 %v420
      %v570 = vpop.f32.mrf.mxu0
      %v571 = vadd.f32 %v270, %v570
      %v572 = vpop.f32.mrf.mxu0
      %v573 = vpop.f32.mrf.mxu0
      %v574 = vadd.f32 %v270, %v573
      %v575 = vpop.f32.mrf.mxu0
      %576 = vmatprep.mubr.bf16.mxu0 0
      %577 = vmatmul.mubr.bf16.gmra.mxu0 %v423
      %v578 = vpop.f32.mrf.mxu0
      %v579 = vadd.f32 %v270, %v578
      %v580 = vpop.f32.mrf.mxu0
      %v581 = vpop.f32.mrf.mxu0
      %v582 = vadd.f32 %v270, %v581
      %v583 = vpop.f32.mrf.mxu0
      %584 = vmatprep.mubr.bf16.mxu0 0
      %585 = vmatmul.mubr.bf16.gmra.mxu0 %v426
      %v586 = vpop.f32.mrf.mxu0
      %v587 = vadd.f32 %v270, %v586
      %v588 = vpop.f32.mrf.mxu0
      %v589 = vpop.f32.mrf.mxu0
      %v590 = vadd.f32 %v270, %v589
      %v591 = vpop.f32.mrf.mxu0
      %592 = vdwg.mxu0
      %v593 = vld [vmem:[%s215] sm:$0xf]
      %v594 = vld [vmem:[%s215 + $0x4] sm:$0xf]
      %v595 = vld [vmem:[%s215 + $0x8] sm:$0xf]
      %v596 = vld [vmem:[%s215 + $0xc] sm:$0xf]
      %v597 = vld [vmem:[%s215 + $0x10] sm:$0xf]
      %v598 = vld [vmem:[%s215 + $0x14] sm:$0xf]
      %v599 = vld [vmem:[%s215 + $0x18] sm:$0xf]
      %v600 = vld [vmem:[%s215 + $0x1c] sm:$0xf]
      %v601 = vld [vmem:[%s215 + $0x20] sm:$0xf]
      %v602 = vld [vmem:[%s215 + $0x24] sm:$0xf]
      %v603 = vld [vmem:[%s215 + $0x28] sm:$0xf]
      %v604 = vld [vmem:[%s215 + $0x2c] sm:$0xf]
      %v605 = vld [vmem:[%s215 + $0x30] sm:$0xf]
      %v606 = vld [vmem:[%s215 + $0x34] sm:$0xf]
      %v607 = vld [vmem:[%s215 + $0x38] sm:$0xf]
      %v608 = vld [vmem:[%s215 + $0x3c] sm:$0xf]
      %v609 = vld [vmem:[%s215 + $0x40] sm:$0xf]
      %v610 = vld [vmem:[%s215 + $0x44] sm:$0xf]
      %v611 = vld [vmem:[%s215 + $0x48] sm:$0xf]
      %v612 = vld [vmem:[%s215 + $0x4c] sm:$0xf]
      %v613 = vld [vmem:[%s215 + $0x50] sm:$0xf]
      %v614 = vld [vmem:[%s215 + $0x54] sm:$0xf]
      %v615 = vld [vmem:[%s215 + $0x58] sm:$0xf]
      %v616 = vld [vmem:[%s215 + $0x5c] sm:$0xf]
      %v617 = vld [vmem:[%s215 + $0x60] sm:$0xf]
      %v618 = vld [vmem:[%s215 + $0x64] sm:$0xf]
      %v619 = vld [vmem:[%s215 + $0x68] sm:$0xf]
      %v620 = vld [vmem:[%s215 + $0x6c] sm:$0xf]
      %v621 = vld [vmem:[%s215 + $0x70] sm:$0xf]
      %v622 = vld [vmem:[%s215 + $0x74] sm:$0xf]
      %v623 = vld [vmem:[%s215 + $0x78] sm:$0xf]
      %v624 = vld [vmem:[%s215 + $0x7c] sm:$0xf]
      %v625 = vunpack.c.l.bf16 %v593
      %v626 = vunpack.c.l.bf16 %v594
      %v627 = vunpack.c.l.bf16 %v595
      %v628 = vunpack.c.l.bf16 %v596
      %v629 = vunpack.c.l.bf16 %v597
      %v630 = vunpack.c.l.bf16 %v598
      %v631 = vunpack.c.l.bf16 %v599
      %v632 = vunpack.c.l.bf16 %v600
      %v633 = vunpack.c.l.bf16 %v601
      %v634 = vunpack.c.l.bf16 %v602
      %v635 = vunpack.c.l.bf16 %v603
      %v636 = vunpack.c.l.bf16 %v604
      %v637 = vunpack.c.l.bf16 %v605
      %v638 = vunpack.c.l.bf16 %v606
      %v639 = vunpack.c.l.bf16 %v607
      %v640 = vunpack.c.l.bf16 %v608
      %v641 = vunpack.c.l.bf16 %v609
      %v642 = vunpack.c.l.bf16 %v610
      %v643 = vunpack.c.l.bf16 %v611
      %v644 = vunpack.c.l.bf16 %v612
      %v645 = vunpack.c.l.bf16 %v613
      %v646 = vunpack.c.l.bf16 %v614
      %v647 = vunpack.c.l.bf16 %v615
      %v648 = vunpack.c.l.bf16 %v616
      %v649 = vunpack.c.l.bf16 %v617
      %v650 = vunpack.c.l.bf16 %v618
      %v651 = vunpack.c.l.bf16 %v619
      %v652 = vunpack.c.l.bf16 %v620
      %v653 = vunpack.c.l.bf16 %v621
      %v654 = vunpack.c.l.bf16 %v622
      %v655 = vunpack.c.l.bf16 %v623
      %v656 = vunpack.c.l.bf16 %v624
      %v657 = vadd.f32 %v467, %v625
      %v658 = vadd.f32 %v470, %v626
      %v659 = vadd.f32 %v475, %v627
      %v660 = vadd.f32 %v478, %v628
      %v661 = vadd.f32 %v483, %v629
      %v662 = vadd.f32 %v486, %v630
      %v663 = vadd.f32 %v491, %v631
      %v664 = vadd.f32 %v494, %v632
      %v665 = vadd.f32 %v499, %v633
      %v666 = vadd.f32 %v502, %v634
      %v667 = vadd.f32 %v507, %v635
      %v668 = vadd.f32 %v510, %v636
      %v669 = vadd.f32 %v515, %v637
      %v670 = vadd.f32 %v518, %v638
      %v671 = vadd.f32 %v523, %v639
      %v672 = vadd.f32 %v526, %v640
      %v673 = vadd.f32 %v531, %v641
      %v674 = vadd.f32 %v534, %v642
      %v675 = vadd.f32 %v539, %v643
      %v676 = vadd.f32 %v542, %v644
      %v677 = vadd.f32 %v547, %v645
      %v678 = vadd.f32 %v550, %v646
      %v679 = vadd.f32 %v555, %v647
      %v680 = vadd.f32 %v558, %v648
      %v681 = vadd.f32 %v563, %v649
      %v682 = vadd.f32 %v566, %v650
      %v683 = vadd.f32 %v571, %v651
      %v684 = vadd.f32 %v574, %v652
      %v685 = vadd.f32 %v579, %v653
      %v686 = vadd.f32 %v582, %v654
      %v687 = vadd.f32 %v587, %v655
      %v688 = vadd.f32 %v590, %v656
      %v689 = vmax.f32 %v657, 0.0
      %v690 = vmax.f32 %v658, 0.0
      %v691 = vmax.f32 %v659, 0.0
      %v692 = vmax.f32 %v660, 0.0
      %v693 = vmax.f32 %v661, 0.0
      %v694 = vmax.f32 %v662, 0.0
      %v695 = vmax.f32 %v663, 0.0
      %v696 = vmax.f32 %v664, 0.0
      %v697 = vmax.f32 %v665, 0.0
      %v698 = vmax.f32 %v666, 0.0
      %v699 = vmax.f32 %v667, 0.0
      %v700 = vmax.f32 %v668, 0.0
      %v701 = vmax.f32 %v669, 0.0
      %v702 = vmax.f32 %v670, 0.0
      %v703 = vmax.f32 %v671, 0.0
      %v704 = vmax.f32 %v672, 0.0
      %v705 = vmax.f32 %v673, 0.0
      %v706 = vmax.f32 %v674, 0.0
      %v707 = vmax.f32 %v675, 0.0
      %v708 = vmax.f32 %v676, 0.0
      %v709 = vmax.f32 %v677, 0.0
      %v710 = vmax.f32 %v678, 0.0
      %v711 = vmax.f32 %v679, 0.0
      %v712 = vmax.f32 %v680, 0.0
      %v713 = vmax.f32 %v681, 0.0
      %v714 = vmax.f32 %v682, 0.0
      %v715 = vmax.f32 %v683, 0.0
      %v716 = vmax.f32 %v684, 0.0
      %v717 = vmax.f32 %v685, 0.0
      %v718 = vmax.f32 %v686, 0.0
      %v719 = vmax.f32 %v687, 0.0
      %v720 = vmax.f32 %v688, 0.0
      %v721 = vpack.c.bf16 %v690, %v689
      %v722 = vpack.c.bf16 %v692, %v691
      %v723 = vpack.c.bf16 %v694, %v693
      %v724 = vpack.c.bf16 %v696, %v695
      %v725 = vpack.c.bf16 %v698, %v697
      %v726 = vpack.c.bf16 %v700, %v699
      %v727 = vpack.c.bf16 %v702, %v701
      %v728 = vpack.c.bf16 %v704, %v703
      %v729 = vpack.c.bf16 %v706, %v705
      %v730 = vpack.c.bf16 %v708, %v707
      %v731 = vpack.c.bf16 %v710, %v709
      %v732 = vpack.c.bf16 %v712, %v711
      %v733 = vpack.c.bf16 %v714, %v713
      %v734 = vpack.c.bf16 %v716, %v715
      %v735 = vpack.c.bf16 %v718, %v717
      %v736 = vpack.c.bf16 %v720, %v719
      %v753 = vunpack.c.l.b16 %v721
      %v754 = vunpack.c.h.b16 %v721
      %v755 = vunpack.c.l.b16 %v722
      %v756 = vunpack.c.h.b16 %v722
      %v757 = vunpack.c.l.b16 %v723
      %v758 = vunpack.c.h.b16 %v723
      %v759 = vunpack.c.l.b16 %v724
      %v760 = vunpack.c.h.b16 %v724
      %v761 = vunpack.c.l.b16 %v725
      %v762 = vunpack.c.h.b16 %v725
      %v763 = vunpack.c.l.b16 %v726
      %v764 = vunpack.c.h.b16 %v726
      %v765 = vunpack.c.l.b16 %v727
      %v766 = vunpack.c.h.b16 %v727
      %v767 = vunpack.c.l.b16 %v728
      %v768 = vunpack.c.h.b16 %v728
      %v769 = vunpack.c.l.b16 %v729
      %v770 = vunpack.c.h.b16 %v729
      %v771 = vunpack.c.l.b16 %v730
      %v772 = vunpack.c.h.b16 %v730
      %v773 = vunpack.c.l.b16 %v731
      %v774 = vunpack.c.h.b16 %v731
      %v775 = vunpack.c.l.b16 %v732
      %v776 = vunpack.c.h.b16 %v732
      %v777 = vunpack.c.l.b16 %v733
      %v778 = vunpack.c.h.b16 %v733
      %v779 = vunpack.c.l.b16 %v734
      %v780 = vunpack.c.h.b16 %v734
      %v781 = vunpack.c.l.b16 %v735
      %v782 = vunpack.c.h.b16 %v735
      %v783 = vunpack.c.l.b16 %v736
      %v784 = vunpack.c.h.b16 %v736
      %v785 = vpack.c.b16 %v753, %v753
      %v786 = vpack.c.b16 %v754, %v754
      %v787 = vpack.c.b16 %v755, %v755
      %v788 = vpack.c.b16 %v756, %v756
      %v789 = vpack.c.b16 %v757, %v757
      %v790 = vpack.c.b16 %v758, %v758
      %v791 = vpack.c.b16 %v759, %v759
      %v792 = vpack.c.b16 %v760, %v760
      %v793 = vpack.c.b16 %v761, %v761
      %v794 = vpack.c.b16 %v762, %v762
      %v795 = vpack.c.b16 %v763, %v763
      %v796 = vpack.c.b16 %v764, %v764
      %v797 = vpack.c.b16 %v765, %v765
      %v798 = vpack.c.b16 %v766, %v766
      %v799 = vpack.c.b16 %v767, %v767
      %v800 = vpack.c.b16 %v768, %v768
      %v801 = vpack.c.b16 %v769, %v769
      %v802 = vpack.c.b16 %v770, %v770
      %v803 = vpack.c.b16 %v771, %v771
      %v804 = vpack.c.b16 %v772, %v772
      %v805 = vpack.c.b16 %v773, %v773
      %v806 = vpack.c.b16 %v774, %v774
      %v807 = vpack.c.b16 %v775, %v775
      %v808 = vpack.c.b16 %v776, %v776
      %v809 = vpack.c.b16 %v777, %v777
      %v810 = vpack.c.b16 %v778, %v778
      %v811 = vpack.c.b16 %v779, %v779
      %v812 = vpack.c.b16 %v780, %v780
      %v813 = vpack.c.b16 %v781, %v781
      %v814 = vpack.c.b16 %v782, %v782
      %v815 = vpack.c.b16 %v783, %v783
      %v816 = vpack.c.b16 %v784, %v784
      %vm849 = vcmask 60416
      %850 = vst.msk [vmem:[%s221] sm:$0xf] %vm849, %v785
      %851 = vst.msk [vmem:[%s221 + $0x4] sm:$0xf] %vm849, %v786
      %852 = vst.msk [vmem:[%s221 + $0x8] sm:$0xf] %vm849, %v787
      %853 = vst.msk [vmem:[%s221 + $0xc] sm:$0xf] %vm849, %v788
      %854 = vst.msk [vmem:[%s221 + $0x10] sm:$0xf] %vm849, %v789
      %855 = vst.msk [vmem:[%s221 + $0x14] sm:$0xf] %vm849, %v790
      %856 = vst.msk [vmem:[%s221 + $0x18] sm:$0xf] %vm849, %v791
      %857 = vst.msk [vmem:[%s221 + $0x1c] sm:$0xf] %vm849, %v792
      %858 = vst.msk [vmem:[%s221 + $0x20] sm:$0xf] %vm849, %v793
      %859 = vst.msk [vmem:[%s221 + $0x24] sm:$0xf] %vm849, %v794
      %860 = vst.msk [vmem:[%s221 + $0x28] sm:$0xf] %vm849, %v795
      %861 = vst.msk [vmem:[%s221 + $0x2c] sm:$0xf] %vm849, %v796
      %862 = vst.msk [vmem:[%s221 + $0x30] sm:$0xf] %vm849, %v797
      %863 = vst.msk [vmem:[%s221 + $0x34] sm:$0xf] %vm849, %v798
      %864 = vst.msk [vmem:[%s221 + $0x38] sm:$0xf] %vm849, %v799
      %865 = vst.msk [vmem:[%s221 + $0x3c] sm:$0xf] %vm849, %v800
      %866 = vst.msk [vmem:[%s221 + $0x40] sm:$0xf] %vm849, %v801
      %867 = vst.msk [vmem:[%s221 + $0x44] sm:$0xf] %vm849, %v802
      %868 = vst.msk [vmem:[%s221 + $0x48] sm:$0xf] %vm849, %v803
      %869 = vst.msk [vmem:[%s221 + $0x4c] sm:$0xf] %vm849, %v804
      %870 = vst.msk [vmem:[%s221 + $0x50] sm:$0xf] %vm849, %v805
      %871 = vst.msk [vmem:[%s221 + $0x54] sm:$0xf] %vm849, %v806
      %872 = vst.msk [vmem:[%s221 + $0x58] sm:$0xf] %vm849, %v807
      %873 = vst.msk [vmem:[%s221 + $0x5c] sm:$0xf] %vm849, %v808
      %874 = vst.msk [vmem:[%s221 + $0x60] sm:$0xf] %vm849, %v809
      %875 = vst.msk [vmem:[%s221 + $0x64] sm:$0xf] %vm849, %v810
      %876 = vst.msk [vmem:[%s221 + $0x68] sm:$0xf] %vm849, %v811
      %877 = vst.msk [vmem:[%s221 + $0x6c] sm:$0xf] %vm849, %v812
      %878 = vst.msk [vmem:[%s221 + $0x70] sm:$0xf] %vm849, %v813
      %879 = vst.msk [vmem:[%s221 + $0x74] sm:$0xf] %vm849, %v814
      %880 = vst.msk [vmem:[%s221 + $0x78] sm:$0xf] %vm849, %v815
      %881 = vst.msk [vmem:[%s221 + $0x7c] sm:$0xf] %vm849, %v816
      %s882 = smul.u32 32, %s15
      %p883 = scmp.lt.s32.totalorder %s882, 63
      %s884 = scalar_select %p883, %s882, 63
      %s885 = smul.addr %s884, 4
      %s886 = scalar_lea.vmem %s4, %s885
      // Predicated region
      $region37: #{_lambda_.41} parent=35 // pred_check
        %p887 = pneg %p127
      $region38: #{_lambda_.41} parent=35 // pred_check_branch
        %889 = sbr.rel (%p887) target = $region40
      $region39: #{_lambda_.41} parent=35 // pred_region
        %s890 = smul.u32 32, %s15
      $region40: #{_lambda_.41} parent=35 // pred_fallthru
        _
    $region36: #{_lambda_.41} parent=5 // pred_fallthru
      _
    %p891 = scmp.le.s32.totalorder 2, %s10
    // Predicated region
    $region41: #{_lambda_.41} parent=5 // pred_check
      %p892 = pneg %p891
    $region42: #{_lambda_.41} parent=5 // pred_check_branch
      %894 = sbr.rel (%p892) target = $region44
    $region43: #{_lambda_.41} parent=5 // pred_region
      %s895 = ssub.s32 %s10, 2
      // Predicated region
      $region45: #{_lambda_.41} parent=43 // pred_check
        %p896 = pneg %p133
      $region46: #{_lambda_.41} parent=43 // pred_check_branch
        %898 = sbr.rel (%p896) target = $region48
      $region47: #{_lambda_.41} parent=43 // pred_region
        %s899 = smul.u32 32, %s16
        %p900 = scmp.lt.s32.totalorder %s899, 63
        %s901 = scalar_select %p900, %s899, 63
        %s902 = smul.addr %s901, 4
        %s903 = scalar_lea.vmem %s4, %s902
      $region48: #{_lambda_.41} parent=43 // pred_fallthru
        _
    $region44: #{_lambda_.41} parent=5 // pred_fallthru
      _
  $region6: #{_lambda_.41} parent=0 // loop_footer
    %s14 = sadd.s32 1, %s10
  $region7: #{_lambda_.41} parent=0 // loop_footer_branch
    %9 = sbr.rel target = $region3
  $region8: #{_lambda_.41} parent=0 // loop_exit
    _

// kernel: _lambda_.43
$region0: #{_lambda_.43}
  #allocation0 [shape = 'u32[]', space=smem, size = 0x4, offset = 0x4, fixed_abs, tag = 'smem constant byte address 0x4 - core index']
  #allocation1 [shape = 'u32[144,128]{1,0:T(1,128)}', space=vmem, size = 0x12000, scoped, tag = 'internal scratch']
  %s0 = inlined_call_operand.vmem [shape: bf16[512,72], index: 0, kind: input, shape index: {}]
  %s1 = inlined_call_operand.vmem [shape: bf16[72,8], index: 1, kind: input, shape index: {}]
  %s2 = inlined_call_operand.vmem [shape: f32[1,8], index: 2, kind: input, shape index: {}]
  %s3 = inlined_call_operand.vmem [shape: bf16[512,8], index: 3, kind: input, shape index: {}]
  %s4 = inlined_call_operand.vmem [shape: bf16[512,8], index: 4, kind: output, shape index: {}]
  %s5 = sld [smem:[#allocation0]]
  $region49: #{_lambda_.43} parent=0
    _
  %s7 = ssub.s32 1, %s5
  %s8 = scalar_select 0, %s7, %s5
  loop: start=0, step=1, limit=4
  $region2: #{_lambda_.43} parent=0 // loop_pre_header
    _
  $region3: #{_lambda_.43} parent=0 // loop_header
    %s10 = sphi 0, %s14
    %p11 = scmp.ge.s32.totalorder %s10, 4
    %s20 = sphi 0, %s22
    %s23 = sphi 0, %s20
    %s24 = sphi 0, %s23
    %s40 = sphi 0, %s24
    %s44 = sphi 0, %s44
    %s46 = sphi 0, %s44
    %s47 = sphi 0, %s46
    %s61 = sphi 0, %s47
    %s65 = sphi 0, %s65
    %s67 = sphi 0, %s65
    %s68 = sphi 0, %s67
    %s82 = sphi 0, %s68
    %s88 = sphi 0, %s90
    %s91 = sphi 0, %s88
    %s92 = sphi 0, %s91
    %s108 = sphi 0, %s92
    %s114 = sphi 0, %s116
    %s117 = sphi 0, %s114
    %s118 = sphi 0, %s117
    %s134 = sphi 0, %s118
  $region4: #{_lambda_.43} parent=0 // loop_header_branch
    %13 = sbr.rel (%p11) target = $region8
  $region5: #{_lambda_.43} parent=0 // loop_body
    %s15 = ssub.s32 %s10, 1
    %s16 = ssub.s32 %s10, 2
    %s17 = sadd.s32 %s10, 1
    %s18 = ssub.s32 %s10, %s17
    %p19 = scmp.eq.s32.totalorder %s18, 0
    %s21 = sadd.s32 %s20, 1
    %s22 = scalar_select %p19, %s20, %s21
    %p25 = pneg %p19
    %p26 = scmp.eq.s32.totalorder %s10, 1
    %p27 = por %p25, %p26
    %p28 = scmp.ne.s32.totalorder %s20, %s23
    %p29 = scmp.eq.s32.totalorder %s10, 0
    %p30 = por %p28, %p29
    %p31 = scmp.ne.s32.totalorder %s20, %s23
    %p32 = scmp.eq.s32.totalorder %s15, 1
    %p33 = por %p31, %p32
    %p34 = scmp.ne.s32.totalorder %s23, %s24
    %p35 = scmp.eq.s32.totalorder %s15, 0
    %p36 = por %p34, %p35
    %p37 = scmp.ne.s32.totalorder %s23, %s24
    %p38 = scmp.eq.s32.totalorder %s16, 1
    %p39 = por %p37, %p38
    %p41 = scmp.ne.s32.totalorder %s24, %s40
    %p42 = scmp.eq.s32.totalorder %s16, 0
    %p43 = por %p41, %p42
    %s45 = sadd.s32 %s44, 1
    %p48 = scmp.eq.s32.totalorder %s10, 1
    %p49 = scmp.ne.s32.totalorder %s44, %s46
    %p50 = scmp.eq.s32.totalorder %s10, 0
    %p51 = por %p49, %p50
    %p52 = scmp.ne.s32.totalorder %s44, %s46
    %p53 = scmp.eq.s32.totalorder %s15, 1
    %p54 = por %p52, %p53
    %p55 = scmp.ne.s32.totalorder %s46, %s47
    %p56 = scmp.eq.s32.totalorder %s15, 0
    %p57 = por %p55, %p56
    %p58 = scmp.ne.s32.totalorder %s46, %s47
    %p59 = scmp.eq.s32.totalorder %s16, 1
    %p60 = por %p58, %p59
    %p62 = scmp.ne.s32.totalorder %s47, %s61
    %p63 = scmp.eq.s32.totalorder %s16, 0
    %p64 = por %p62, %p63
    %s66 = sadd.s32 %s65, 1
    %p69 = scmp.eq.s32.totalorder %s10, 1
    %p70 = scmp.ne.s32.totalorder %s65, %s67
    %p71 = scmp.eq.s32.totalorder %s10, 0
    %p72 = por %p70, %p71
    %p73 = scmp.ne.s32.totalorder %s65, %s67
    %p74 = scmp.eq.s32.totalorder %s15, 1
    %p75 = por %p73, %p74
    %p76 = scmp.ne.s32.totalorder %s67, %s68
    %p77 = scmp.eq.s32.totalorder %s15, 0
    %p78 = por %p76, %p77
    %p79 = scmp.ne.s32.totalorder %s67, %s68
    %p80 = scmp.eq.s32.totalorder %s16, 1
    %p81 = por %p79, %p80
    %p83 = scmp.ne.s32.totalorder %s68, %s82
    %p84 = scmp.eq.s32.totalorder %s16, 0
    %p85 = por %p83, %p84
    %s86 = ssub.s32 %s10, %s17
    %p87 = scmp.eq.s32.totalorder %s86, 0
    %s89 = sadd.s32 %s88, 1
    %s90 = scalar_select %p87, %s88, %s89
    %p93 = pneg %p87
    %p94 = scmp.eq.s32.totalorder %s10, 1
    %p95 = por %p93, %p94
    %p96 = scmp.ne.s32.totalorder %s88, %s91
    %p97 = scmp.eq.s32.totalorder %s10, 0
    %p98 = por %p96, %p97
    %p99 = scmp.ne.s32.totalorder %s88, %s91
    %p100 = scmp.eq.s32.totalorder %s15, 1
    %p101 = por %p99, %p100
    %p102 = scmp.ne.s32.totalorder %s91, %s92
    %p103 = scmp.eq.s32.totalorder %s15, 0
    %p104 = por %p102, %p103
    %p105 = scmp.ne.s32.totalorder %s91, %s92
    %p106 = scmp.eq.s32.totalorder %s16, 1
    %p107 = por %p105, %p106
    %p109 = scmp.ne.s32.totalorder %s92, %s108
    %p110 = scmp.eq.s32.totalorder %s16, 0
    %p111 = por %p109, %p110
    %s112 = ssub.s32 %s10, %s17
    %p113 = scmp.eq.s32.totalorder %s112, 0
    %s115 = sadd.s32 %s114, 1
    %s116 = scalar_select %p113, %s114, %s115
    %p119 = pneg %p113
    %p120 = scmp.eq.s32.totalorder %s10, 1
    %p121 = por %p119, %p120
    %p122 = scmp.ne.s32.totalorder %s114, %s117
    %p123 = scmp.eq.s32.totalorder %s10, 0
    %p124 = por %p122, %p123
    %p125 = scmp.ne.s32.totalorder %s114, %s117
    %p126 = scmp.eq.s32.totalorder %s15, 1
    %p127 = por %p125, %p126
    %p128 = scmp.ne.s32.totalorder %s117, %s118
    %p129 = scmp.eq.s32.totalorder %s15, 0
    %p130 = por %p128, %p129
    %p131 = scmp.ne.s32.totalorder %s117, %s118
    %p132 = scmp.eq.s32.totalorder %s16, 1
    %p133 = por %p131, %p132
    %p135 = scmp.ne.s32.totalorder %s118, %s134
    %p136 = scmp.eq.s32.totalorder %s16, 0
    %p137 = por %p135, %p136
    %p138 = scmp.le.s32.totalorder 1, %s10
    %p139 = scmp.lt.s32.totalorder %s10, 3
    %p140 = pnand %p138, %p139
    %p141 = pneg %p140
    // Predicated region
    $region9: #{_lambda_.43} parent=5 // pred_check
      _
    $region10: #{_lambda_.43} parent=5 // pred_check_branch
      %143 = sbr.rel (%p140) target = $region12
    $region11: #{_lambda_.43} parent=5 // pred_region
      %s144 = ssub.s32 %s10, 1
      // Predicated region
      $region13: #{_lambda_.43} parent=11 // pred_check
        %p145 = pneg %p57
      $region14: #{_lambda_.43} parent=11 // pred_check_branch
        %147 = sbr.rel (%p145) target = $region16
      $region15: #{_lambda_.43} parent=11 // pred_region
        _
      $region16: #{_lambda_.43} parent=11 // pred_fallthru
        _
      // Predicated region
      $region17: #{_lambda_.43} parent=11 // pred_check
        %p148 = pneg %p78
      $region18: #{_lambda_.43} parent=11 // pred_check_branch
        %150 = sbr.rel (%p148) target = $region20
      $region19: #{_lambda_.43} parent=11 // pred_region
        _
      $region20: #{_lambda_.43} parent=11 // pred_fallthru
        _
    $region12: #{_lambda_.43} parent=5 // pred_fallthru
      _
    %p151 = scmp.lt.s32.totalorder %s10, 2
    // Predicated region
    $region21: #{_lambda_.43} parent=5 // pred_check
      %p152 = pneg %p151
    $region22: #{_lambda_.43} parent=5 // pred_check_branch
      %154 = sbr.rel (%p152) target = $region24
    $region23: #{_lambda_.43} parent=5 // pred_region
      // Predicated region
      $region25: #{_lambda_.43} parent=23 // pred_check
        %p155 = pneg %p30
      $region26: #{_lambda_.43} parent=23 // pred_check_branch
        %157 = sbr.rel (%p155) target = $region28
      $region27: #{_lambda_.43} parent=23 // pred_region
        %s158 = smul.u32 32, %s10
        %p159 = scmp.lt.s32.totalorder %s158, 63
        %s160 = scalar_select %p159, %s158, 63
        %s161 = smul.addr %s160, 4
        %s162 = scalar_lea.vmem %s0, %s161
        %s163 = smul.u32 32, %s10
      $region28: #{_lambda_.43} parent=23 // pred_fallthru
        _
      // Predicated region
      $region29: #{_lambda_.43} parent=23 // pred_check
        %p164 = pneg %p98
      $region30: #{_lambda_.43} parent=23 // pred_check_branch
        %166 = sbr.rel (%p164) target = $region32
      $region31: #{_lambda_.43} parent=23 // pred_region
        %s167 = smul.u32 32, %s10
        %p168 = scmp.lt.s32.totalorder %s167, 63
        %s169 = scalar_select %p168, %s167, 63
        %s170 = smul.addr %s169, 4
        %s171 = scalar_lea.vmem %s3, %s170
        %s172 = smul.u32 32, %s10
      $region32: #{_lambda_.43} parent=23 // pred_fallthru
        _
    $region24: #{_lambda_.43} parent=5 // pred_fallthru
      _
    %p173 = scmp.le.s32.totalorder 1, %s10
    %p174 = scmp.lt.s32.totalorder %s10, 3
    %p175 = pnand %p173, %p174
    %p176 = pneg %p175
    // Predicated region
    $region33: #{_lambda_.43} parent=5 // pred_check
      _
    $region34: #{_lambda_.43} parent=5 // pred_check_branch
      %178 = sbr.rel (%p175) target = $region36
    $region35: #{_lambda_.43} parent=5 // pred_region
      %s179 = ssub.s32 %s10, 1
      %s180 = smul.u32 32, %s15
      %p181 = scmp.lt.s32.totalorder %s180, 63
      %s182 = scalar_select %p181, %s180, 63
      %s183 = smul.addr %s182, 4
      %s184 = scalar_lea.vmem %s0, %s183
      %p185 = pneg %p36
      %p186 = pneg %p33
      %p187 = pneg %p57
      %p188 = pneg %p54
      %p189 = pneg %p78
      %p190 = pneg %p75
      %s191 = smul.u32 32, %s15
      %p192 = scmp.lt.s32.totalorder %s191, 63
      %s193 = scalar_select %p192, %s191, 63
      %s194 = smul.addr %s193, 4
      %s195 = scalar_lea.vmem %s3, %s194
      %p196 = pneg %p104
      %p197 = pneg %p101
      %p198 = pneg %p130
      %p199 = pneg %p127
      %s200 = smul.u32 32, %s15
      %p201 = scmp.lt.s32.totalorder %s200, 63
      %s202 = scalar_select %p201, %s200, 63
      %s203 = smul.addr %s202, 4
      %s204 = scalar_lea.vmem %s4, %s203
      %s205 = smul.u32 32, %s15
      %p206 = scmp.lt.s32.totalorder %s205, 63
      %s207 = scalar_select %p206, %s205, 63
      %s208 = smul.addr %s207, 4
      %s209 = scalar_lea.vmem %s0, %s208
      %s210 = smul.u32 32, %s15
      %s211 = smul.u32 32, %s15
      %p212 = scmp.lt.s32.totalorder %s211, 63
      %s213 = scalar_select %p212, %s211, 63
      %s214 = smul.addr %s213, 4
      %s215 = scalar_lea.vmem %s3, %s214
      %s216 = smul.u32 32, %s15
      %s217 = smul.u32 32, %s15
      %p218 = scmp.lt.s32.totalorder %s217, 63
      %s219 = scalar_select %p218, %s217, 63
      %s220 = smul.addr %s219, 4
      %s221 = scalar_lea.vmem %s4, %s220
      %s222 = smul.u32 32, %s15
      %v224 = vld [vmem:[%s209] sm:$0xf]
      %v225 = vld [vmem:[%s209 + $0x4] sm:$0xf]
      %v226 = vld [vmem:[%s209 + $0x8] sm:$0xf]
      %v227 = vld [vmem:[%s209 + $0xc] sm:$0xf]
      %v228 = vld [vmem:[%s209 + $0x10] sm:$0xf]
      %v229 = vld [vmem:[%s209 + $0x14] sm:$0xf]
      %v230 = vld [vmem:[%s209 + $0x18] sm:$0xf]
      %v231 = vld [vmem:[%s209 + $0x1c] sm:$0xf]
      %v232 = vld [vmem:[%s209 + $0x20] sm:$0xf]
      %v233 = vld [vmem:[%s209 + $0x24] sm:$0xf]
      %v234 = vld [vmem:[%s209 + $0x28] sm:$0xf]
      %v235 = vld [vmem:[%s209 + $0x2c] sm:$0xf]
      %v236 = vld [vmem:[%s209 + $0x30] sm:$0xf]
      %v237 = vld [vmem:[%s209 + $0x34] sm:$0xf]
      %v238 = vld [vmem:[%s209 + $0x38] sm:$0xf]
      %v239 = vld [vmem:[%s209 + $0x3c] sm:$0xf]
      %v240 = vld [vmem:[%s209 + $0x40] sm:$0xf]
      %v241 = vld [vmem:[%s209 + $0x44] sm:$0xf]
      %v242 = vld [vmem:[%s209 + $0x48] sm:$0xf]
      %v243 = vld [vmem:[%s209 + $0x4c] sm:$0xf]
      %v244 = vld [vmem:[%s209 + $0x50] sm:$0xf]
      %v245 = vld [vmem:[%s209 + $0x54] sm:$0xf]
      %v246 = vld [vmem:[%s209 + $0x58] sm:$0xf]
      %v247 = vld [vmem:[%s209 + $0x5c] sm:$0xf]
      %v248 = vld [vmem:[%s209 + $0x60] sm:$0xf]
      %v249 = vld [vmem:[%s209 + $0x64] sm:$0xf]
      %v250 = vld [vmem:[%s209 + $0x68] sm:$0xf]
      %v251 = vld [vmem:[%s209 + $0x6c] sm:$0xf]
      %v252 = vld [vmem:[%s209 + $0x70] sm:$0xf]
      %v253 = vld [vmem:[%s209 + $0x74] sm:$0xf]
      %v254 = vld [vmem:[%s209 + $0x78] sm:$0xf]
      %v255 = vld [vmem:[%s209 + $0x7c] sm:$0xf]
      %v256 = vld [vmem:[%s1] sm:$0xf]
      %v257 = vld [vmem:[%s1 + $0x4] sm:$0xf]
      %v258 = vld [vmem:[%s1 + $0x8] sm:$0xf]
      %v259 = vld [vmem:[%s1 + $0xc] sm:$0xf]
      %v260 = vld [vmem:[%s1 + $0x10] sm:$0xf]
      %v261 = vld [vmem:[%s1 + $0x14] sm:$0xf]
      %v262 = vld [vmem:[%s1 + $0x18] sm:$0xf]
      %v263 = vld [vmem:[%s1 + $0x1c] sm:$0xf]
      %v264 = vld [vmem:[%s1 + $0x20] sm:$0xf]
      %v265 = vld [vmem:[%s2] sm:$0x1]
      %v267 = vlaneseq
      %v268 = vshrl.u32 %v267, 7
      %v269 = vsub.s32 0, %v268
      %v270 = vrot.slane %v265, %v269
      %v304 = vunpack.c.l.b16 %v224
      %v305 = vunpack.c.l.b16 %v225
      %v306 = vunpack.c.l.b16 %v226
      %v307 = vunpack.c.l.b16 %v227
      %v308 = vunpack.c.l.b16 %v228
      %v309 = vunpack.c.l.b16 %v229
      %v310 = vunpack.c.l.b16 %v230
      %v311 = vunpack.c.l.b16 %v231
      %v312 = vunpack.c.l.b16 %v232
      %v313 = vunpack.c.l.b16 %v233
      %v314 = vunpack.c.l.b16 %v234
      %v315 = vunpack.c.l.b16 %v235
      %v316 = vunpack.c.l.b16 %v236
      %v317 = vunpack.c.l.b16 %v237
      %v318 = vunpack.c.l.b16 %v238
      %v319 = vunpack.c.l.b16 %v239
      %v320 = vunpack.c.l.b16 %v240
      %v321 = vunpack.c.l.b16 %v241
      %v322 = vunpack.c.l.b16 %v242
      %v323 = vunpack.c.l.b16 %v243
      %v324 = vunpack.c.l.b16 %v244
      %v325 = vunpack.c.l.b16 %v245
      %v326 = vunpack.c.l.b16 %v246
      %v327 = vunpack.c.l.b16 %v247
      %v328 = vunpack.c.l.b16 %v248
      %v329 = vunpack.c.l.b16 %v249
      %v330 = vunpack.c.l.b16 %v250
      %v331 = vunpack.c.l.b16 %v251
      %v332 = vunpack.c.l.b16 %v252
      %v333 = vunpack.c.l.b16 %v253
      %v334 = vunpack.c.l.b16 %v254
      %v335 = vunpack.c.l.b16 %v255
      %v336 = vpack.c.b16 %v305, %v304
      %v337 = vpack.c.b16 %v307, %v306
      %v338 = vpack.c.b16 %v309, %v308
      %v339 = vpack.c.b16 %v311, %v310
      %v340 = vpack.c.b16 %v313, %v312
      %v341 = vpack.c.b16 %v315, %v314
      %v342 = vpack.c.b16 %v317, %v316
      %v343 = vpack.c.b16 %v319, %v318
      %v344 = vpack.c.b16 %v321, %v320
      %v345 = vpack.c.b16 %v323, %v322
      %v346 = vpack.c.b16 %v325, %v324
      %v347 = vpack.c.b16 %v327, %v326
      %v348 = vpack.c.b16 %v329, %v328
      %v349 = vpack.c.b16 %v331, %v330
      %v350 = vpack.c.b16 %v333, %v332
      %v351 = vpack.c.b16 %v335, %v334
      %v361 = vunpack.c.l.b16 %v256
      %v362 = vunpack.c.l.b16 %v257
      %v363 = vunpack.c.l.b16 %v258
      %v364 = vunpack.c.l.b16 %v259
      %v365 = vunpack.c.l.b16 %v260
      %v366 = vunpack.c.l.b16 %v261
      %v367 = vunpack.c.l.b16 %v262
      %v368 = vunpack.c.l.b16 %v263
      %v369 = vunpack.c.l.b16 %v264
      %v370 = vpack.c.b16 %v362, %v361
      %v371 = vpack.c.b16 %v364, %v363
      %v372 = vpack.c.b16 %v366, %v365
      %v373 = vpack.c.b16 %v368, %v367
      %v374 = vpack.c.b16 %v369, %v369
      %vm379 = vcmask 588800
      %v381 = vsel %vm379, %v336, 0
      %v384 = vsel %vm379, %v337, 0
      %v387 = vsel %vm379, %v338, 0
      %v390 = vsel %vm379, %v339, 0
      %v393 = vsel %vm379, %v340, 0
      %v396 = vsel %vm379, %v341, 0
      %v399 = vsel %vm379, %v342, 0
      %v402 = vsel %vm379, %v343, 0
      %v405 = vsel %vm379, %v344, 0
      %v408 = vsel %vm379, %v345, 0
      %v411 = vsel %vm379, %v346, 0
      %v414 = vsel %vm379, %v347, 0
      %v417 = vsel %vm379, %v348, 0
      %v420 = vsel %vm379, %v349, 0
      %v423 = vsel %vm379, %v350, 0
      %v426 = vsel %vm379, %v351, 0
      %vm428 = vcmask 1043456
      %v430 = vsel %vm428, %v374, 0
      %432 = vmatprep.subr.bf16.mxu0 0
      %433 = vmatpush1.bf16.msra.mxu0 0
      %434 = vmatprep.subr.bf16.mxu0 0
      %435 = vmatpush1.bf16.msra.mxu0 0
      %436 = vmatprep.subr.bf16.mxu0 0
      %437 = vmatpush1.bf16.msra.mxu0 0
      %438 = vmatprep.subr.bf16.mxu0 0
      %439 = vmatpush1.bf16.msra.mxu0 %v430
      %440 = vmatprep.subr.bf16.mxu0 0
      %441 = vmatpush1.bf16.msra.mxu0 %v373
      %442 = vmatprep.subr.bf16.mxu0 0
      %443 = vmatpush1.bf16.msra.mxu0 %v372
      %444 = vmatprep.subr.bf16.mxu0 0
      %445 = vmatpush1.bf16.msra.mxu0 %v371
      %446 = vmatprep.subr.bf16.mxu0 0
      %447 = vmatpush1.bf16.msra.mxu0 %v370
      %448 = vmatprep.subr.bf16.mxu0 0
      %449 = vmatpush2.bf16.msra.mxu0 0
      %450 = vmatprep.subr.bf16.mxu0 0
      %451 = vmatpush2.bf16.msra.mxu0 0
      %452 = vmatprep.subr.bf16.mxu0 0
      %453 = vmatpush2.bf16.msra.mxu0 0
      %454 = vmatprep.subr.bf16.mxu0 0
      %455 = vmatpush2.bf16.msra.mxu0 0
      %456 = vmatprep.subr.bf16.mxu0 0
      %457 = vmatpush2.bf16.msra.mxu0 0
      %458 = vmatprep.subr.bf16.mxu0 0
      %459 = vmatpush2.bf16.msra.mxu0 0
      %460 = vmatprep.subr.bf16.mxu0 0
      %461 = vmatpush2.bf16.msra.mxu0 0
      %462 = vmatprep.subr.bf16.mxu0 0
      %463 = vmatpush2.bf16.msra.mxu0 0
      %464 = vmatprep.mubr.bf16.mxu0 0
      %465 = vmatmul.mubr.bf16.gmra.mxu0 %v381
      %v466 = vpop.f32.mrf.mxu0
      %v467 = vadd.f32 %v270, %v466
      %v468 = vpop.f32.mrf.mxu0
      %v469 = vpop.f32.mrf.mxu0
      %v470 = vadd.f32 %v270, %v469
      %v471 = vpop.f32.mrf.mxu0
      %472 = vmatprep.mubr.bf16.mxu0 0
      %473 = vmatmul.mubr.bf16.gmra.mxu0 %v384
      %v474 = vpop.f32.mrf.mxu0
      %v475 = vadd.f32 %v270, %v474
      %v476 = vpop.f32.mrf.mxu0
      %v477 = vpop.f32.mrf.mxu0
      %v478 = vadd.f32 %v270, %v477
      %v479 = vpop.f32.mrf.mxu0
      %480 = vmatprep.mubr.bf16.mxu0 0
      %481 = vmatmul.mubr.bf16.gmra.mxu0 %v387
      %v482 = vpop.f32.mrf.mxu0
      %v483 = vadd.f32 %v270, %v482
      %v484 = vpop.f32.mrf.mxu0
      %v485 = vpop.f32.mrf.mxu0
      %v486 = vadd.f32 %v270, %v485
      %v487 = vpop.f32.mrf.mxu0
      %488 = vmatprep.mubr.bf16.mxu0 0
      %489 = vmatmul.mubr.bf16.gmra.mxu0 %v390
      %v490 = vpop.f32.mrf.mxu0
      %v491 = vadd.f32 %v270, %v490
      %v492 = vpop.f32.mrf.mxu0
      %v493 = vpop.f32.mrf.mxu0
      %v494 = vadd.f32 %v270, %v493
      %v495 = vpop.f32.mrf.mxu0
      %496 = vmatprep.mubr.bf16.mxu0 0
      %497 = vmatmul.mubr.bf16.gmra.mxu0 %v393
      %v498 = vpop.f32.mrf.mxu0
      %v499 = vadd.f32 %v270, %v498
      %v500 = vpop.f32.mrf.mxu0
      %v501 = vpop.f32.mrf.mxu0
      %v502 = vadd.f32 %v270, %v501
      %v503 = vpop.f32.mrf.mxu0
      %504 = vmatprep.mubr.bf16.mxu0 0
      %505 = vmatmul.mubr.bf16.gmra.mxu0 %v396
      %v506 = vpop.f32.mrf.mxu0
      %v507 = vadd.f32 %v270, %v506
      %v508 = vpop.f32.mrf.mxu0
      %v509 = vpop.f32.mrf.mxu0
      %v510 = vadd.f32 %v270, %v509
      %v511 = vpop.f32.mrf.mxu0
      %512 = vmatprep.mubr.bf16.mxu0 0
      %513 = vmatmul.mubr.bf16.gmra.mxu0 %v399
      %v514 = vpop.f32.mrf.mxu0
      %v515 = vadd.f32 %v270, %v514
      %v516 = vpop.f32.mrf.mxu0
      %v517 = vpop.f32.mrf.mxu0
      %v518 = vadd.f32 %v270, %v517
      %v519 = vpop.f32.mrf.mxu0
      %520 = vmatprep.mubr.bf16.mxu0 0
      %521 = vmatmul.mubr.bf16.gmra.mxu0 %v402
      %v522 = vpop.f32.mrf.mxu0
      %v523 = vadd.f32 %v270, %v522
      %v524 = vpop.f32.mrf.mxu0
      %v525 = vpop.f32.mrf.mxu0
      %v526 = vadd.f32 %v270, %v525
      %v527 = vpop.f32.mrf.mxu0
      %528 = vmatprep.mubr.bf16.mxu0 0
      %529 = vmatmul.mubr.bf16.gmra.mxu0 %v405
      %v530 = vpop.f32.mrf.mxu0
      %v531 = vadd.f32 %v270, %v530
      %v532 = vpop.f32.mrf.mxu0
      %v533 = vpop.f32.mrf.mxu0
      %v534 = vadd.f32 %v270, %v533
      %v535 = vpop.f32.mrf.mxu0
      %536 = vmatprep.mubr.bf16.mxu0 0
      %537 = vmatmul.mubr.bf16.gmra.mxu0 %v408
      %v538 = vpop.f32.mrf.mxu0
      %v539 = vadd.f32 %v270, %v538
      %v540 = vpop.f32.mrf.mxu0
      %v541 = vpop.f32.mrf.mxu0
      %v542 = vadd.f32 %v270, %v541
      %v543 = vpop.f32.mrf.mxu0
      %544 = vmatprep.mubr.bf16.mxu0 0
      %545 = vmatmul.mubr.bf16.gmra.mxu0 %v411
      %v546 = vpop.f32.mrf.mxu0
      %v547 = vadd.f32 %v270, %v546
      %v548 = vpop.f32.mrf.mxu0
      %v549 = vpop.f32.mrf.mxu0
      %v550 = vadd.f32 %v270, %v549
      %v551 = vpop.f32.mrf.mxu0
      %552 = vmatprep.mubr.bf16.mxu0 0
      %553 = vmatmul.mubr.bf16.gmra.mxu0 %v414
      %v554 = vpop.f32.mrf.mxu0
      %v555 = vadd.f32 %v270, %v554
      %v556 = vpop.f32.mrf.mxu0
      %v557 = vpop.f32.mrf.mxu0
      %v558 = vadd.f32 %v270, %v557
      %v559 = vpop.f32.mrf.mxu0
      %560 = vmatprep.mubr.bf16.mxu0 0
      %561 = vmatmul.mubr.bf16.gmra.mxu0 %v417
      %v562 = vpop.f32.mrf.mxu0
      %v563 = vadd.f32 %v270, %v562
      %v564 = vpop.f32.mrf.mxu0
      %v565 = vpop.f32.mrf.mxu0
      %v566 = vadd.f32 %v270, %v565
      %v567 = vpop.f32.mrf.mxu0
      %568 = vmatprep.mubr.bf16.mxu0 0
      %569 = vmatmul.mubr.bf16.gmra.mxu0 %v420
      %v570 = vpop.f32.mrf.mxu0
      %v571 = vadd.f32 %v270, %v570
      %v572 = vpop.f32.mrf.mxu0
      %v573 = vpop.f32.mrf.mxu0
      %v574 = vadd.f32 %v270, %v573
      %v575 = vpop.f32.mrf.mxu0
      %576 = vmatprep.mubr.bf16.mxu0 0
      %577 = vmatmul.mubr.bf16.gmra.mxu0 %v423
      %v578 = vpop.f32.mrf.mxu0
      %v579 = vadd.f32 %v270, %v578
      %v580 = vpop.f32.mrf.mxu0
      %v581 = vpop.f32.mrf.mxu0
      %v582 = vadd.f32 %v270, %v581
      %v583 = vpop.f32.mrf.mxu0
      %584 = vmatprep.mubr.bf16.mxu0 0
      %585 = vmatmul.mubr.bf16.gmra.mxu0 %v426
      %v586 = vpop.f32.mrf.mxu0
      %v587 = vadd.f32 %v270, %v586
      %v588 = vpop.f32.mrf.mxu0
      %v589 = vpop.f32.mrf.mxu0
      %v590 = vadd.f32 %v270, %v589
      %v591 = vpop.f32.mrf.mxu0
      %592 = vdwg.mxu0
      %v593 = vld [vmem:[%s215] sm:$0xf]
      %v594 = vld [vmem:[%s215 + $0x4] sm:$0xf]
      %v595 = vld [vmem:[%s215 + $0x8] sm:$0xf]
      %v596 = vld [vmem:[%s215 + $0xc] sm:$0xf]
      %v597 = vld [vmem:[%s215 + $0x10] sm:$0xf]
      %v598 = vld [vmem:[%s215 + $0x14] sm:$0xf]
      %v599 = vld [vmem:[%s215 + $0x18] sm:$0xf]
      %v600 = vld [vmem:[%s215 + $0x1c] sm:$0xf]
      %v601 = vld [vmem:[%s215 + $0x20] sm:$0xf]
      %v602 = vld [vmem:[%s215 + $0x24] sm:$0xf]
      %v603 = vld [vmem:[%s215 + $0x28] sm:$0xf]
      %v604 = vld [vmem:[%s215 + $0x2c] sm:$0xf]
      %v605 = vld [vmem:[%s215 + $0x30] sm:$0xf]
      %v606 = vld [vmem:[%s215 + $0x34] sm:$0xf]
      %v607 = vld [vmem:[%s215 + $0x38] sm:$0xf]
      %v608 = vld [vmem:[%s215 + $0x3c] sm:$0xf]
      %v609 = vld [vmem:[%s215 + $0x40] sm:$0xf]
      %v610 = vld [vmem:[%s215 + $0x44] sm:$0xf]
      %v611 = vld [vmem:[%s215 + $0x48] sm:$0xf]
      %v612 = vld [vmem:[%s215 + $0x4c] sm:$0xf]
      %v613 = vld [vmem:[%s215 + $0x50] sm:$0xf]
      %v614 = vld [vmem:[%s215 + $0x54] sm:$0xf]
      %v615 = vld [vmem:[%s215 + $0x58] sm:$0xf]
      %v616 = vld [vmem:[%s215 + $0x5c] sm:$0xf]
      %v617 = vld [vmem:[%s215 + $0x60] sm:$0xf]
      %v618 = vld [vmem:[%s215 + $0x64] sm:$0xf]
      %v619 = vld [vmem:[%s215 + $0x68] sm:$0xf]
      %v620 = vld [vmem:[%s215 + $0x6c] sm:$0xf]
      %v621 = vld [vmem:[%s215 + $0x70] sm:$0xf]
      %v622 = vld [vmem:[%s215 + $0x74] sm:$0xf]
      %v623 = vld [vmem:[%s215 + $0x78] sm:$0xf]
      %v624 = vld [vmem:[%s215 + $0x7c] sm:$0xf]
      %v625 = vunpack.c.l.bf16 %v593
      %v626 = vunpack.c.l.bf16 %v594
      %v627 = vunpack.c.l.bf16 %v595
      %v628 = vunpack.c.l.bf16 %v596
      %v629 = vunpack.c.l.bf16 %v597
      %v630 = vunpack.c.l.bf16 %v598
      %v631 = vunpack.c.l.bf16 %v599
      %v632 = vunpack.c.l.bf16 %v600
      %v633 = vunpack.c.l.bf16 %v601
      %v634 = vunpack.c.l.bf16 %v602
      %v635 = vunpack.c.l.bf16 %v603
      %v636 = vunpack.c.l.bf16 %v604
      %v637 = vunpack.c.l.bf16 %v605
      %v638 = vunpack.c.l.bf16 %v606
      %v639 = vunpack.c.l.bf16 %v607
      %v640 = vunpack.c.l.bf16 %v608
      %v641 = vunpack.c.l.bf16 %v609
      %v642 = vunpack.c.l.bf16 %v610
      %v643 = vunpack.c.l.bf16 %v611
      %v644 = vunpack.c.l.bf16 %v612
      %v645 = vunpack.c.l.bf16 %v613
      %v646 = vunpack.c.l.bf16 %v614
      %v647 = vunpack.c.l.bf16 %v615
      %v648 = vunpack.c.l.bf16 %v616
      %v649 = vunpack.c.l.bf16 %v617
      %v650 = vunpack.c.l.bf16 %v618
      %v651 = vunpack.c.l.bf16 %v619
      %v652 = vunpack.c.l.bf16 %v620
      %v653 = vunpack.c.l.bf16 %v621
      %v654 = vunpack.c.l.bf16 %v622
      %v655 = vunpack.c.l.bf16 %v623
      %v656 = vunpack.c.l.bf16 %v624
      %v657 = vadd.f32 %v467, %v625
      %v658 = vadd.f32 %v470, %v626
      %v659 = vadd.f32 %v475, %v627
      %v660 = vadd.f32 %v478, %v628
      %v661 = vadd.f32 %v483, %v629
      %v662 = vadd.f32 %v486, %v630
      %v663 = vadd.f32 %v491, %v631
      %v664 = vadd.f32 %v494, %v632
      %v665 = vadd.f32 %v499, %v633
      %v666 = vadd.f32 %v502, %v634
      %v667 = vadd.f32 %v507, %v635
      %v668 = vadd.f32 %v510, %v636
      %v669 = vadd.f32 %v515, %v637
      %v670 = vadd.f32 %v518, %v638
      %v671 = vadd.f32 %v523, %v639
      %v672 = vadd.f32 %v526, %v640
      %v673 = vadd.f32 %v531, %v641
      %v674 = vadd.f32 %v534, %v642
      %v675 = vadd.f32 %v539, %v643
      %v676 = vadd.f32 %v542, %v644
      %v677 = vadd.f32 %v547, %v645
      %v678 = vadd.f32 %v550, %v646
      %v679 = vadd.f32 %v555, %v647
      %v680 = vadd.f32 %v558, %v648
      %v681 = vadd.f32 %v563, %v649
      %v682 = vadd.f32 %v566, %v650
      %v683 = vadd.f32 %v571, %v651
      %v684 = vadd.f32 %v574, %v652
      %v685 = vadd.f32 %v579, %v653
      %v686 = vadd.f32 %v582, %v654
      %v687 = vadd.f32 %v587, %v655
      %v688 = vadd.f32 %v590, %v656
      %v689 = vpack.c.bf16 %v658, %v657
      %v690 = vpack.c.bf16 %v660, %v659
      %v691 = vpack.c.bf16 %v662, %v661
      %v692 = vpack.c.bf16 %v664, %v663
      %v693 = vpack.c.bf16 %v666, %v665
      %v694 = vpack.c.bf16 %v668, %v667
      %v695 = vpack.c.bf16 %v670, %v669
      %v696 = vpack.c.bf16 %v672, %v671
      %v697 = vpack.c.bf16 %v674, %v673
      %v698 = vpack.c.bf16 %v676, %v675
      %v699 = vpack.c.bf16 %v678, %v677
      %v700 = vpack.c.bf16 %v680, %v679
      %v701 = vpack.c.bf16 %v682, %v681
      %v702 = vpack.c.bf16 %v684, %v683
      %v703 = vpack.c.bf16 %v686, %v685
      %v704 = vpack.c.bf16 %v688, %v687
      %v721 = vunpack.c.l.b16 %v689
      %v722 = vunpack.c.h.b16 %v689
      %v723 = vunpack.c.l.b16 %v690
      %v724 = vunpack.c.h.b16 %v690
      %v725 = vunpack.c.l.b16 %v691
      %v726 = vunpack.c.h.b16 %v691
      %v727 = vunpack.c.l.b16 %v692
      %v728 = vunpack.c.h.b16 %v692
      %v729 = vunpack.c.l.b16 %v693
      %v730 = vunpack.c.h.b16 %v693
      %v731 = vunpack.c.l.b16 %v694
      %v732 = vunpack.c.h.b16 %v694
      %v733 = vunpack.c.l.b16 %v695
      %v734 = vunpack.c.h.b16 %v695
      %v735 = vunpack.c.l.b16 %v696
      %v736 = vunpack.c.h.b16 %v696
      %v737 = vunpack.c.l.b16 %v697
      %v738 = vunpack.c.h.b16 %v697
      %v739 = vunpack.c.l.b16 %v698
      %v740 = vunpack.c.h.b16 %v698
      %v741 = vunpack.c.l.b16 %v699
      %v742 = vunpack.c.h.b16 %v699
      %v743 = vunpack.c.l.b16 %v700
      %v744 = vunpack.c.h.b16 %v700
      %v745 = vunpack.c.l.b16 %v701
      %v746 = vunpack.c.h.b16 %v701
      %v747 = vunpack.c.l.b16 %v702
      %v748 = vunpack.c.h.b16 %v702
      %v749 = vunpack.c.l.b16 %v703
      %v750 = vunpack.c.h.b16 %v703
      %v751 = vunpack.c.l.b16 %v704
      %v752 = vunpack.c.h.b16 %v704
      %v753 = vpack.c.b16 %v721, %v721
      %v754 = vpack.c.b16 %v722, %v722
      %v755 = vpack.c.b16 %v723, %v723
      %v756 = vpack.c.b16 %v724, %v724
      %v757 = vpack.c.b16 %v725, %v725
      %v758 = vpack.c.b16 %v726, %v726
      %v759 = vpack.c.b16 %v727, %v727
      %v760 = vpack.c.b16 %v728, %v728
      %v761 = vpack.c.b16 %v729, %v729
      %v762 = vpack.c.b16 %v730, %v730
      %v763 = vpack.c.b16 %v731, %v731
      %v764 = vpack.c.b16 %v732, %v732
      %v765 = vpack.c.b16 %v733, %v733
      %v766 = vpack.c.b16 %v734, %v734
      %v767 = vpack.c.b16 %v735, %v735
      %v768 = vpack.c.b16 %v736, %v736
      %v769 = vpack.c.b16 %v737, %v737
      %v770 = vpack.c.b16 %v738, %v738
      %v771 = vpack.c.b16 %v739, %v739
      %v772 = vpack.c.b16 %v740, %v740
      %v773 = vpack.c.b16 %v741, %v741
      %v774 = vpack.c.b16 %v742, %v742
      %v775 = vpack.c.b16 %v743, %v743
      %v776 = vpack.c.b16 %v744, %v744
      %v777 = vpack.c.b16 %v745, %v745
      %v778 = vpack.c.b16 %v746, %v746
      %v779 = vpack.c.b16 %v747, %v747
      %v780 = vpack.c.b16 %v748, %v748
      %v781 = vpack.c.b16 %v749, %v749
      %v782 = vpack.c.b16 %v750, %v750
      %v783 = vpack.c.b16 %v751, %v751
      %v784 = vpack.c.b16 %v752, %v752
      %vm817 = vcmask 60416
      %818 = vst.msk [vmem:[%s221] sm:$0xf] %vm817, %v753
      %819 = vst.msk [vmem:[%s221 + $0x4] sm:$0xf] %vm817, %v754
      %820 = vst.msk [vmem:[%s221 + $0x8] sm:$0xf] %vm817, %v755
      %821 = vst.msk [vmem:[%s221 + $0xc] sm:$0xf] %vm817, %v756
      %822 = vst.msk [vmem:[%s221 + $0x10] sm:$0xf] %vm817, %v757
      %823 = vst.msk [vmem:[%s221 + $0x14] sm:$0xf] %vm817, %v758
      %824 = vst.msk [vmem:[%s221 + $0x18] sm:$0xf] %vm817, %v759
      %825 = vst.msk [vmem:[%s221 + $0x1c] sm:$0xf] %vm817, %v760
      %826 = vst.msk [vmem:[%s221 + $0x20] sm:$0xf] %vm817, %v761
      %827 = vst.msk [vmem:[%s221 + $0x24] sm:$0xf] %vm817, %v762
      %828 = vst.msk [vmem:[%s221 + $0x28] sm:$0xf] %vm817, %v763
      %829 = vst.msk [vmem:[%s221 + $0x2c] sm:$0xf] %vm817, %v764
      %830 = vst.msk [vmem:[%s221 + $0x30] sm:$0xf] %vm817, %v765
      %831 = vst.msk [vmem:[%s221 + $0x34] sm:$0xf] %vm817, %v766
      %832 = vst.msk [vmem:[%s221 + $0x38] sm:$0xf] %vm817, %v767
      %833 = vst.msk [vmem:[%s221 + $0x3c] sm:$0xf] %vm817, %v768
      %834 = vst.msk [vmem:[%s221 + $0x40] sm:$0xf] %vm817, %v769
      %835 = vst.msk [vmem:[%s221 + $0x44] sm:$0xf] %vm817, %v770
      %836 = vst.msk [vmem:[%s221 + $0x48] sm:$0xf] %vm817, %v771
      %837 = vst.msk [vmem:[%s221 + $0x4c] sm:$0xf] %vm817, %v772
      %838 = vst.msk [vmem:[%s221 + $0x50] sm:$0xf] %vm817, %v773
      %839 = vst.msk [vmem:[%s221 + $0x54] sm:$0xf] %vm817, %v774
      %840 = vst.msk [vmem:[%s221 + $0x58] sm:$0xf] %vm817, %v775
      %841 = vst.msk [vmem:[%s221 + $0x5c] sm:$0xf] %vm817, %v776
      %842 = vst.msk [vmem:[%s221 + $0x60] sm:$0xf] %vm817, %v777
      %843 = vst.msk [vmem:[%s221 + $0x64] sm:$0xf] %vm817, %v778
      %844 = vst.msk [vmem:[%s221 + $0x68] sm:$0xf] %vm817, %v779
      %845 = vst.msk [vmem:[%s221 + $0x6c] sm:$0xf] %vm817, %v780
      %846 = vst.msk [vmem:[%s221 + $0x70] sm:$0xf] %vm817, %v781
      %847 = vst.msk [vmem:[%s221 + $0x74] sm:$0xf] %vm817, %v782
      %848 = vst.msk [vmem:[%s221 + $0x78] sm:$0xf] %vm817, %v783
      %849 = vst.msk [vmem:[%s221 + $0x7c] sm:$0xf] %vm817, %v784
      %s850 = smul.u32 32, %s15
      %p851 = scmp.lt.s32.totalorder %s850, 63
      %s852 = scalar_select %p851, %s850, 63
      %s853 = smul.addr %s852, 4
      %s854 = scalar_lea.vmem %s4, %s853
      // Predicated region
      $region37: #{_lambda_.43} parent=35 // pred_check
        %p855 = pneg %p127
      $region38: #{_lambda_.43} parent=35 // pred_check_branch
        %857 = sbr.rel (%p855) target = $region40
      $region39: #{_lambda_.43} parent=35 // pred_region
        %s858 = smul.u32 32, %s15
      $region40: #{_lambda_.43} parent=35 // pred_fallthru
        _
    $region36: #{_lambda_.43} parent=5 // pred_fallthru
      _
    %p859 = scmp.le.s32.totalorder 2, %s10
    // Predicated region
    $region41: #{_lambda_.43} parent=5 // pred_check
      %p860 = pneg %p859
    $region42: #{_lambda_.43} parent=5 // pred_check_branch
      %862 = sbr.rel (%p860) target = $region44
    $region43: #{_lambda_.43} parent=5 // pred_region
      %s863 = ssub.s32 %s10, 2
      // Predicated region
      $region45: #{_lambda_.43} parent=43 // pred_check
        %p864 = pneg %p133
      $region46: #{_lambda_.43} parent=43 // pred_check_branch
        %866 = sbr.rel (%p864) target = $region48
      $region47: #{_lambda_.43} parent=43 // pred_region
        %s867 = smul.u32 32, %s16
        %p868 = scmp.lt.s32.totalorder %s867, 63
        %s869 = scalar_select %p868, %s867, 63
        %s870 = smul.addr %s869, 4
        %s871 = scalar_lea.vmem %s4, %s870
      $region48: #{_lambda_.43} parent=43 // pred_fallthru
        _
    $region44: #{_lambda_.43} parent=5 // pred_fallthru
      _
  $region6: #{_lambda_.43} parent=0 // loop_footer
    %s14 = sadd.s32 1, %s10
  $region7: #{_lambda_.43} parent=0 // loop_footer_branch
    %9 = sbr.rel target = $region3
  $region8: #{_lambda_.43} parent=0 // loop_exit
    _

// kernel: _lambda_.44
$region0: #{_lambda_.44}
  #allocation0 [shape = 'u32[]', space=smem, size = 0x4, offset = 0x4, fixed_abs, tag = 'smem constant byte address 0x4 - core index']
  #allocation1 [shape = 'u32[144,128]{1,0:T(1,128)}', space=vmem, size = 0x12000, scoped, tag = 'internal scratch']
  %s0 = inlined_call_operand.vmem [shape: bf16[128,72], index: 0, kind: input, shape index: {}]
  %s1 = inlined_call_operand.vmem [shape: bf16[72,32], index: 1, kind: input, shape index: {}]
  %s2 = inlined_call_operand.vmem [shape: f32[1,32], index: 2, kind: input, shape index: {}]
  %s3 = inlined_call_operand.vmem [shape: bf16[128,32], index: 3, kind: output, shape index: {}]
  %s4 = sld [smem:[#allocation0]]
  $region22: #{_lambda_.44} parent=0
    _
  %s6 = ssub.s32 1, %s4
  %s7 = scalar_select 0, %s6, %s4
  // Predicated region
  $region2: #{_lambda_.44} parent=0 // pred_check
    _
  $region3: #{_lambda_.44} parent=0 // pred_check_branch
    %9 = sbr.rel (0) target = $region5
  $region4: #{_lambda_.44} parent=0 // pred_region
    _
  $region5: #{_lambda_.44} parent=0 // pred_fallthru
    _
  // Predicated region
  $region6: #{_lambda_.44} parent=0 // pred_check
    _
  $region7: #{_lambda_.44} parent=0 // pred_check_branch
    %11 = sbr.rel (0) target = $region9
  $region8: #{_lambda_.44} parent=0 // pred_region
    _
  $region9: #{_lambda_.44} parent=0 // pred_fallthru
    _
  // Predicated region
  $region10: #{_lambda_.44} parent=0 // pred_check
    _
  $region11: #{_lambda_.44} parent=0 // pred_check_branch
    %13 = sbr.rel (0) target = $region13
  $region12: #{_lambda_.44} parent=0 // pred_region
    _
  $region13: #{_lambda_.44} parent=0 // pred_fallthru
    _
  %v15 = vld [vmem:[%s0] sm:$0xf]
  %v16 = vld [vmem:[%s0 + $0x4] sm:$0xf]
  %v17 = vld [vmem:[%s0 + $0x8] sm:$0xf]
  %v18 = vld [vmem:[%s0 + $0xc] sm:$0xf]
  %v19 = vld [vmem:[%s0 + $0x10] sm:$0xf]
  %v20 = vld [vmem:[%s0 + $0x14] sm:$0xf]
  %v21 = vld [vmem:[%s0 + $0x18] sm:$0xf]
  %v22 = vld [vmem:[%s0 + $0x1c] sm:$0xf]
  %v23 = vld [vmem:[%s0 + $0x20] sm:$0xf]
  %v24 = vld [vmem:[%s0 + $0x24] sm:$0xf]
  %v25 = vld [vmem:[%s0 + $0x28] sm:$0xf]
  %v26 = vld [vmem:[%s0 + $0x2c] sm:$0xf]
  %v27 = vld [vmem:[%s0 + $0x30] sm:$0xf]
  %v28 = vld [vmem:[%s0 + $0x34] sm:$0xf]
  %v29 = vld [vmem:[%s0 + $0x38] sm:$0xf]
  %v30 = vld [vmem:[%s0 + $0x3c] sm:$0xf]
  %v31 = vld [vmem:[%s1] sm:$0xf]
  %v32 = vld [vmem:[%s1 + $0x4] sm:$0xf]
  %v33 = vld [vmem:[%s1 + $0x8] sm:$0xf]
  %v34 = vld [vmem:[%s1 + $0xc] sm:$0xf]
  %v35 = vld [vmem:[%s1 + $0x10] sm:$0xf]
  %v36 = vld [vmem:[%s1 + $0x14] sm:$0xf]
  %v37 = vld [vmem:[%s1 + $0x18] sm:$0xf]
  %v38 = vld [vmem:[%s1 + $0x1c] sm:$0xf]
  %v39 = vld [vmem:[%s1 + $0x20] sm:$0xf]
  %v40 = vld [vmem:[%s2] sm:$0x1]
  %v42 = vlaneseq
  %v43 = vshrl.u32 %v42, 7
  %v44 = vsub.s32 0, %v43
  %v45 = vrot.slane %v40, %v44
  %v63 = vunpack.c.l.b16 %v15
  %v64 = vunpack.c.l.b16 %v16
  %v65 = vunpack.c.l.b16 %v17
  %v66 = vunpack.c.l.b16 %v18
  %v67 = vunpack.c.l.b16 %v19
  %v68 = vunpack.c.l.b16 %v20
  %v69 = vunpack.c.l.b16 %v21
  %v70 = vunpack.c.l.b16 %v22
  %v71 = vunpack.c.l.b16 %v23
  %v72 = vunpack.c.l.b16 %v24
  %v73 = vunpack.c.l.b16 %v25
  %v74 = vunpack.c.l.b16 %v26
  %v75 = vunpack.c.l.b16 %v27
  %v76 = vunpack.c.l.b16 %v28
  %v77 = vunpack.c.l.b16 %v29
  %v78 = vunpack.c.l.b16 %v30
  %v79 = vpack.c.b16 %v64, %v63
  %v80 = vpack.c.b16 %v66, %v65
  %v81 = vpack.c.b16 %v68, %v67
  %v82 = vpack.c.b16 %v70, %v69
  %v83 = vpack.c.b16 %v72, %v71
  %v84 = vpack.c.b16 %v74, %v73
  %v85 = vpack.c.b16 %v76, %v75
  %v86 = vpack.c.b16 %v78, %v77
  %v96 = vunpack.c.l.b16 %v31
  %v97 = vunpack.c.l.b16 %v32
  %v98 = vunpack.c.l.b16 %v33
  %v99 = vunpack.c.l.b16 %v34
  %v100 = vunpack.c.l.b16 %v35
  %v101 = vunpack.c.l.b16 %v36
  %v102 = vunpack.c.l.b16 %v37
  %v103 = vunpack.c.l.b16 %v38
  %v104 = vunpack.c.l.b16 %v39
  %v105 = vpack.c.b16 %v97, %v96
  %v106 = vpack.c.b16 %v99, %v98
  %v107 = vpack.c.b16 %v101, %v100
  %v108 = vpack.c.b16 %v103, %v102
  %v109 = vpack.c.b16 %v104, %v104
  %vm114 = vcmask 588800
  %v116 = vsel %vm114, %v79, 0
  %v119 = vsel %vm114, %v80, 0
  %v122 = vsel %vm114, %v81, 0
  %v125 = vsel %vm114, %v82, 0
  %v128 = vsel %vm114, %v83, 0
  %v131 = vsel %vm114, %v84, 0
  %v134 = vsel %vm114, %v85, 0
  %v137 = vsel %vm114, %v86, 0
  %vm139 = vcmask 1043456
  %v141 = vsel %vm139, %v109, 0
  %143 = vmatprep.subr.bf16.mxu0 0
  %144 = vmatpush1.bf16.msra.mxu0 0
  %145 = vmatprep.subr.bf16.mxu0 0
  %146 = vmatpush1.bf16.msra.mxu0 0
  %147 = vmatprep.subr.bf16.mxu0 0
  %148 = vmatpush1.bf16.msra.mxu0 0
  %149 = vmatprep.subr.bf16.mxu0 0
  %150 = vmatpush1.bf16.msra.mxu0 %v141
  %151 = vmatprep.subr.bf16.mxu0 0
  %152 = vmatpush1.bf16.msra.mxu0 %v108
  %153 = vmatprep.subr.bf16.mxu0 0
  %154 = vmatpush1.bf16.msra.mxu0 %v107
  %155 = vmatprep.subr.bf16.mxu0 0
  %156 = vmatpush1.bf16.msra.mxu0 %v106
  %157 = vmatprep.subr.bf16.mxu0 0
  %158 = vmatpush1.bf16.msra.mxu0 %v105
  %159 = vmatprep.subr.bf16.mxu0 0
  %160 = vmatpush2.bf16.msra.mxu0 0
  %161 = vmatprep.subr.bf16.mxu0 0
  %162 = vmatpush2.bf16.msra.mxu0 0
  %163 = vmatprep.subr.bf16.mxu0 0
  %164 = vmatpush2.bf16.msra.mxu0 0
  %165 = vmatprep.subr.bf16.mxu0 0
  %166 = vmatpush2.bf16.msra.mxu0 0
  %167 = vmatprep.subr.bf16.mxu0 0
  %168 = vmatpush2.bf16.msra.mxu0 0
  %169 = vmatprep.subr.bf16.mxu0 0
  %170 = vmatpush2.bf16.msra.mxu0 0
  %171 = vmatprep.subr.bf16.mxu0 0
  %172 = vmatpush2.bf16.msra.mxu0 0
  %173 = vmatprep.subr.bf16.mxu0 0
  %174 = vmatpush2.bf16.msra.mxu0 0
  %175 = vmatprep.mubr.bf16.mxu0 0
  %176 = vmatmul.mubr.bf16.gmra.mxu0 %v116
  %v177 = vpop.f32.mrf.mxu0
  %v178 = vadd.f32 %v45, %v177
  %v179 = vpop.f32.mrf.mxu0
  %v180 = vpop.f32.mrf.mxu0
  %v181 = vadd.f32 %v45, %v180
  %v182 = vpop.f32.mrf.mxu0
  %183 = vmatprep.mubr.bf16.mxu0 0
  %184 = vmatmul.mubr.bf16.gmra.mxu0 %v119
  %v185 = vpop.f32.mrf.mxu0
  %v186 = vadd.f32 %v45, %v185
  %v187 = vpop.f32.mrf.mxu0
  %v188 = vpop.f32.mrf.mxu0
  %v189 = vadd.f32 %v45, %v188
  %v190 = vpop.f32.mrf.mxu0
  %191 = vmatprep.mubr.bf16.mxu0 0
  %192 = vmatmul.mubr.bf16.gmra.mxu0 %v122
  %v193 = vpop.f32.mrf.mxu0
  %v194 = vadd.f32 %v45, %v193
  %v195 = vpop.f32.mrf.mxu0
  %v196 = vpop.f32.mrf.mxu0
  %v197 = vadd.f32 %v45, %v196
  %v198 = vpop.f32.mrf.mxu0
  %199 = vmatprep.mubr.bf16.mxu0 0
  %200 = vmatmul.mubr.bf16.gmra.mxu0 %v125
  %v201 = vpop.f32.mrf.mxu0
  %v202 = vadd.f32 %v45, %v201
  %v203 = vpop.f32.mrf.mxu0
  %v204 = vpop.f32.mrf.mxu0
  %v205 = vadd.f32 %v45, %v204
  %v206 = vpop.f32.mrf.mxu0
  %207 = vmatprep.mubr.bf16.mxu0 0
  %208 = vmatmul.mubr.bf16.gmra.mxu0 %v128
  %v209 = vpop.f32.mrf.mxu0
  %v210 = vadd.f32 %v45, %v209
  %v211 = vpop.f32.mrf.mxu0
  %v212 = vpop.f32.mrf.mxu0
  %v213 = vadd.f32 %v45, %v212
  %v214 = vpop.f32.mrf.mxu0
  %215 = vmatprep.mubr.bf16.mxu0 0
  %216 = vmatmul.mubr.bf16.gmra.mxu0 %v131
  %v217 = vpop.f32.mrf.mxu0
  %v218 = vadd.f32 %v45, %v217
  %v219 = vpop.f32.mrf.mxu0
  %v220 = vpop.f32.mrf.mxu0
  %v221 = vadd.f32 %v45, %v220
  %v222 = vpop.f32.mrf.mxu0
  %223 = vmatprep.mubr.bf16.mxu0 0
  %224 = vmatmul.mubr.bf16.gmra.mxu0 %v134
  %v225 = vpop.f32.mrf.mxu0
  %v226 = vadd.f32 %v45, %v225
  %v227 = vpop.f32.mrf.mxu0
  %v228 = vpop.f32.mrf.mxu0
  %v229 = vadd.f32 %v45, %v228
  %v230 = vpop.f32.mrf.mxu0
  %231 = vmatprep.mubr.bf16.mxu0 0
  %232 = vmatmul.mubr.bf16.gmra.mxu0 %v137
  %v233 = vpop.f32.mrf.mxu0
  %v234 = vadd.f32 %v45, %v233
  %v235 = vpop.f32.mrf.mxu0
  %v236 = vpop.f32.mrf.mxu0
  %v237 = vadd.f32 %v45, %v236
  %v238 = vpop.f32.mrf.mxu0
  %239 = vdwg.mxu0
  %v240 = vpack.c.bf16 %v181, %v178
  %v241 = vpack.c.bf16 %v189, %v186
  %v242 = vpack.c.bf16 %v197, %v194
  %v243 = vpack.c.bf16 %v205, %v202
  %v244 = vpack.c.bf16 %v213, %v210
  %v245 = vpack.c.bf16 %v221, %v218
  %v246 = vpack.c.bf16 %v229, %v226
  %v247 = vpack.c.bf16 %v237, %v234
  %v256 = vunpack.c.l.b16 %v240
  %v257 = vunpack.c.h.b16 %v240
  %v258 = vunpack.c.l.b16 %v241
  %v259 = vunpack.c.h.b16 %v241
  %v260 = vunpack.c.l.b16 %v242
  %v261 = vunpack.c.h.b16 %v242
  %v262 = vunpack.c.l.b16 %v243
  %v263 = vunpack.c.h.b16 %v243
  %v264 = vunpack.c.l.b16 %v244
  %v265 = vunpack.c.h.b16 %v244
  %v266 = vunpack.c.l.b16 %v245
  %v267 = vunpack.c.h.b16 %v245
  %v268 = vunpack.c.l.b16 %v246
  %v269 = vunpack.c.h.b16 %v246
  %v270 = vunpack.c.l.b16 %v247
  %v271 = vunpack.c.h.b16 %v247
  %v272 = vpack.c.b16 %v256, %v256
  %v273 = vpack.c.b16 %v257, %v257
  %v274 = vpack.c.b16 %v258, %v258
  %v275 = vpack.c.b16 %v259, %v259
  %v276 = vpack.c.b16 %v260, %v260
  %v277 = vpack.c.b16 %v261, %v261
  %v278 = vpack.c.b16 %v262, %v262
  %v279 = vpack.c.b16 %v263, %v263
  %v280 = vpack.c.b16 %v264, %v264
  %v281 = vpack.c.b16 %v265, %v265
  %v282 = vpack.c.b16 %v266, %v266
  %v283 = vpack.c.b16 %v267, %v267
  %v284 = vpack.c.b16 %v268, %v268
  %v285 = vpack.c.b16 %v269, %v269
  %v286 = vpack.c.b16 %v270, %v270
  %v287 = vpack.c.b16 %v271, %v271
  %vm304 = vcmask 257024
  %305 = vst.msk [vmem:[%s3] sm:$0xf] %vm304, %v272
  %306 = vst.msk [vmem:[%s3 + $0x4] sm:$0xf] %vm304, %v273
  %307 = vst.msk [vmem:[%s3 + $0x8] sm:$0xf] %vm304, %v274
  %308 = vst.msk [vmem:[%s3 + $0xc] sm:$0xf] %vm304, %v275
  %309 = vst.msk [vmem:[%s3 + $0x10] sm:$0xf] %vm304, %v276
  %310 = vst.msk [vmem:[%s3 + $0x14] sm:$0xf] %vm304, %v277
  %311 = vst.msk [vmem:[%s3 + $0x18] sm:$0xf] %vm304, %v278
  %312 = vst.msk [vmem:[%s3 + $0x1c] sm:$0xf] %vm304, %v279
  %313 = vst.msk [vmem:[%s3 + $0x20] sm:$0xf] %vm304, %v280
  %314 = vst.msk [vmem:[%s3 + $0x24] sm:$0xf] %vm304, %v281
  %315 = vst.msk [vmem:[%s3 + $0x28] sm:$0xf] %vm304, %v282
  %316 = vst.msk [vmem:[%s3 + $0x2c] sm:$0xf] %vm304, %v283
  %317 = vst.msk [vmem:[%s3 + $0x30] sm:$0xf] %vm304, %v284
  %318 = vst.msk [vmem:[%s3 + $0x34] sm:$0xf] %vm304, %v285
  %319 = vst.msk [vmem:[%s3 + $0x38] sm:$0xf] %vm304, %v286
  %320 = vst.msk [vmem:[%s3 + $0x3c] sm:$0xf] %vm304, %v287
  // Predicated region
  $region14: #{_lambda_.44} parent=0 // pred_check
    _
  $region15: #{_lambda_.44} parent=0 // pred_check_branch
    %322 = sbr.rel (0) target = $region17
  $region16: #{_lambda_.44} parent=0 // pred_region
    _
  $region17: #{_lambda_.44} parent=0 // pred_fallthru
    _
  // Predicated region
  $region18: #{_lambda_.44} parent=0 // pred_check
    _
  $region19: #{_lambda_.44} parent=0 // pred_check_branch
    %324 = sbr.rel (0) target = $region21
  $region20: #{_lambda_.44} parent=0 // pred_region
    _
  $region21: #{_lambda_.44} parent=0 // pred_fallthru
    _

// kernel: _lambda_.45
$region0: #{_lambda_.45}
  #allocation0 [shape = 'u32[]', space=smem, size = 0x4, offset = 0x4, fixed_abs, tag = 'smem constant byte address 0x4 - core index']
  #allocation1 [shape = 'u32[144,128]{1,0:T(1,128)}', space=vmem, size = 0x12000, scoped, tag = 'internal scratch']
  %s0 = inlined_call_operand.vmem [shape: bf16[128,144], index: 0, kind: input, shape index: {}]
  %s1 = inlined_call_operand.vmem [shape: bf16[144,16], index: 1, kind: input, shape index: {}]
  %s2 = inlined_call_operand.vmem [shape: f32[1,16], index: 2, kind: input, shape index: {}]
  %s3 = inlined_call_operand.vmem [shape: bf16[128,16], index: 3, kind: input, shape index: {}]
  %s4 = inlined_call_operand.vmem [shape: bf16[128,16], index: 4, kind: output, shape index: {}]
  %s5 = sld [smem:[#allocation0]]
  $region26: #{_lambda_.45} parent=0
    _
  %s7 = ssub.s32 1, %s5
  %s8 = scalar_select 0, %s7, %s5
  // Predicated region
  $region2: #{_lambda_.45} parent=0 // pred_check
    _
  $region3: #{_lambda_.45} parent=0 // pred_check_branch
    %10 = sbr.rel (0) target = $region5
  $region4: #{_lambda_.45} parent=0 // pred_region
    _
  $region5: #{_lambda_.45} parent=0 // pred_fallthru
    _
  // Predicated region
  $region6: #{_lambda_.45} parent=0 // pred_check
    _
  $region7: #{_lambda_.45} parent=0 // pred_check_branch
    %12 = sbr.rel (0) target = $region9
  $region8: #{_lambda_.45} parent=0 // pred_region
    _
  $region9: #{_lambda_.45} parent=0 // pred_fallthru
    _
  // Predicated region
  $region10: #{_lambda_.45} parent=0 // pred_check
    _
  $region11: #{_lambda_.45} parent=0 // pred_check_branch
    %14 = sbr.rel (0) target = $region13
  $region12: #{_lambda_.45} parent=0 // pred_region
    _
  $region13: #{_lambda_.45} parent=0 // pred_fallthru
    _
  // Predicated region
  $region14: #{_lambda_.45} parent=0 // pred_check
    _
  $region15: #{_lambda_.45} parent=0 // pred_check_branch
    %16 = sbr.rel (0) target = $region17
  $region16: #{_lambda_.45} parent=0 // pred_region
    _
  $region17: #{_lambda_.45} parent=0 // pred_fallthru
    _
  %v18 = vld [vmem:[%s0] sm:$0xff]
  %v19 = vld [vmem:[%s0 + $0x8] sm:$0xff]
  %v20 = vld [vmem:[%s0 + $0x10] sm:$0xff]
  %v21 = vld [vmem:[%s0 + $0x18] sm:$0xff]
  %v22 = vld [vmem:[%s0 + $0x20] sm:$0xff]
  %v23 = vld [vmem:[%s0 + $0x28] sm:$0xff]
  %v24 = vld [vmem:[%s0 + $0x30] sm:$0xff]
  %v25 = vld [vmem:[%s0 + $0x38] sm:$0xff]
  %v26 = vld [vmem:[%s0 + $0x40] sm:$0xff]
  %v27 = vld [vmem:[%s0 + $0x48] sm:$0xff]
  %v28 = vld [vmem:[%s0 + $0x50] sm:$0xff]
  %v29 = vld [vmem:[%s0 + $0x58] sm:$0xff]
  %v30 = vld [vmem:[%s0 + $0x60] sm:$0xff]
  %v31 = vld [vmem:[%s0 + $0x68] sm:$0xff]
  %v32 = vld [vmem:[%s0 + $0x70] sm:$0xff]
  %v33 = vld [vmem:[%s0 + $0x78] sm:$0xff]
  %v34 = vld [vmem:[%s1] sm:$0xf]
  %v35 = vld [vmem:[%s1 + $0x4] sm:$0xf]
  %v36 = vld [vmem:[%s1 + $0x8] sm:$0xf]
  %v37 = vld [vmem:[%s1 + $0xc] sm:$0xf]
  %v38 = vld [vmem:[%s1 + $0x10] sm:$0xf]
  %v39 = vld [vmem:[%s1 + $0x14] sm:$0xf]
  %v40 = vld [vmem:[%s1 + $0x18] sm:$0xf]
  %v41 = vld [vmem:[%s1 + $0x1c] sm:$0xf]
  %v42 = vld [vmem:[%s1 + $0x20] sm:$0xf]
  %v43 = vld [vmem:[%s1 + $0x24] sm:$0xf]
  %v44 = vld [vmem:[%s1 + $0x28] sm:$0xf]
  %v45 = vld [vmem:[%s1 + $0x2c] sm:$0xf]
  %v46 = vld [vmem:[%s1 + $0x30] sm:$0xf]
  %v47 = vld [vmem:[%s1 + $0x34] sm:$0xf]
  %v48 = vld [vmem:[%s1 + $0x38] sm:$0xf]
  %v49 = vld [vmem:[%s1 + $0x3c] sm:$0xf]
  %v50 = vld [vmem:[%s1 + $0x40] sm:$0xf]
  %v51 = vld [vmem:[%s1 + $0x44] sm:$0xf]
  %v52 = vld [vmem:[%s2] sm:$0x1]
  %v54 = vlaneseq
  %v55 = vshrl.u32 %v54, 7
  %v56 = vsub.s32 0, %v55
  %v57 = vrot.slane %v52, %v56
  %v75 = vunpack.c.l.b16 %v18
  %v76 = vunpack.c.h.b16 %v18
  %v77 = vunpack.c.l.b16 %v19
  %v78 = vunpack.c.h.b16 %v19
  %v79 = vunpack.c.l.b16 %v20
  %v80 = vunpack.c.h.b16 %v20
  %v81 = vunpack.c.l.b16 %v21
  %v82 = vunpack.c.h.b16 %v21
  %v83 = vunpack.c.l.b16 %v22
  %v84 = vunpack.c.h.b16 %v22
  %v85 = vunpack.c.l.b16 %v23
  %v86 = vunpack.c.h.b16 %v23
  %v87 = vunpack.c.l.b16 %v24
  %v88 = vunpack.c.h.b16 %v24
  %v89 = vunpack.c.l.b16 %v25
  %v90 = vunpack.c.h.b16 %v25
  %v91 = vunpack.c.l.b16 %v26
  %v92 = vunpack.c.h.b16 %v26
  %v93 = vunpack.c.l.b16 %v27
  %v94 = vunpack.c.h.b16 %v27
  %v95 = vunpack.c.l.b16 %v28
  %v96 = vunpack.c.h.b16 %v28
  %v97 = vunpack.c.l.b16 %v29
  %v98 = vunpack.c.h.b16 %v29
  %v99 = vunpack.c.l.b16 %v30
  %v100 = vunpack.c.h.b16 %v30
  %v101 = vunpack.c.l.b16 %v31
  %v102 = vunpack.c.h.b16 %v31
  %v103 = vunpack.c.l.b16 %v32
  %v104 = vunpack.c.h.b16 %v32
  %v105 = vunpack.c.l.b16 %v33
  %v106 = vunpack.c.h.b16 %v33
  %v107 = vpack.c.b16 %v77, %v75
  %v108 = vpack.c.b16 %v78, %v76
  %v109 = vpack.c.b16 %v81, %v79
  %v110 = vpack.c.b16 %v82, %v80
  %v111 = vpack.c.b16 %v85, %v83
  %v112 = vpack.c.b16 %v86, %v84
  %v113 = vpack.c.b16 %v89, %v87
  %v114 = vpack.c.b16 %v90, %v88
  %v115 = vpack.c.b16 %v93, %v91
  %v116 = vpack.c.b16 %v94, %v92
  %v117 = vpack.c.b16 %v97, %v95
  %v118 = vpack.c.b16 %v98, %v96
  %v119 = vpack.c.b16 %v101, %v99
  %v120 = vpack.c.b16 %v102, %v100
  %v121 = vpack.c.b16 %v105, %v103
  %v122 = vpack.c.b16 %v106, %v104
  %v149 = vunpack.c.l.b16 %v34
  %v150 = vunpack.c.l.b16 %v35
  %v151 = vunpack.c.l.b16 %v36
  %v152 = vunpack.c.l.b16 %v37
  %v153 = vunpack.c.l.b16 %v38
  %v154 = vunpack.c.l.b16 %v39
  %v155 = vunpack.c.l.b16 %v40
  %v156 = vunpack.c.l.b16 %v41
  %v157 = vunpack.c.l.b16 %v42
  %v158 = vunpack.c.l.b16 %v43
  %v159 = vunpack.c.l.b16 %v44
  %v160 = vunpack.c.l.b16 %v45
  %v161 = vunpack.c.l.b16 %v46
  %v162 = vunpack.c.l.b16 %v47
  %v163 = vunpack.c.l.b16 %v48
  %v164 = vunpack.c.l.b16 %v49
  %v165 = vunpack.c.l.b16 %v50
  %v166 = vunpack.c.l.b16 %v51
  %v167 = vpack.c.b16 %v150, %v149
  %v168 = vpack.c.b16 %v152, %v151
  %v169 = vpack.c.b16 %v154, %v153
  %v170 = vpack.c.b16 %v156, %v155
  %v171 = vpack.c.b16 %v158, %v157
  %v172 = vpack.c.b16 %v160, %v159
  %v173 = vpack.c.b16 %v162, %v161
  %v174 = vpack.c.b16 %v164, %v163
  %v175 = vpack.c.b16 %v166, %v165
  %vm185 = vcmask 130048
  %v187 = vsel %vm185, %v108, 0
  %v190 = vsel %vm185, %v110, 0
  %v193 = vsel %vm185, %v112, 0
  %v196 = vsel %vm185, %v114, 0
  %v199 = vsel %vm185, %v116, 0
  %v202 = vsel %vm185, %v118, 0
  %v205 = vsel %vm185, %v120, 0
  %v208 = vsel %vm185, %v122, 0
  %210 = vmatprep.subr.bf16.mxu0 0
  %211 = vmatpush1.bf16.msra.mxu0 %v174
  %212 = vmatprep.subr.bf16.mxu0 0
  %213 = vmatpush1.bf16.msra.mxu0 %v173
  %214 = vmatprep.subr.bf16.mxu0 0
  %215 = vmatpush1.bf16.msra.mxu0 %v172
  %216 = vmatprep.subr.bf16.mxu0 0
  %217 = vmatpush1.bf16.msra.mxu0 %v171
  %218 = vmatprep.subr.bf16.mxu0 0
  %219 = vmatpush1.bf16.msra.mxu0 %v170
  %220 = vmatprep.subr.bf16.mxu0 0
  %221 = vmatpush1.bf16.msra.mxu0 %v169
  %222 = vmatprep.subr.bf16.mxu0 0
  %223 = vmatpush1.bf16.msra.mxu0 %v168
  %224 = vmatprep.subr.bf16.mxu0 0
  %225 = vmatpush1.bf16.msra.mxu0 %v167
  %226 = vmatprep.subr.bf16.mxu0 0
  %227 = vmatpush2.bf16.msra.mxu0 0
  %228 = vmatprep.subr.bf16.mxu0 0
  %229 = vmatpush2.bf16.msra.mxu0 0
  %230 = vmatprep.subr.bf16.mxu0 0
  %231 = vmatpush2.bf16.msra.mxu0 0
  %232 = vmatprep.subr.bf16.mxu0 0
  %233 = vmatpush2.bf16.msra.mxu0 0
  %234 = vmatprep.subr.bf16.mxu0 0
  %235 = vmatpush2.bf16.msra.mxu0 0
  %236 = vmatprep.subr.bf16.mxu0 0
  %237 = vmatpush2.bf16.msra.mxu0 0
  %238 = vmatprep.subr.bf16.mxu0 0
  %239 = vmatpush2.bf16.msra.mxu0 0
  %240 = vmatprep.subr.bf16.mxu0 0
  %241 = vmatpush2.bf16.msra.mxu0 %v175
  %242 = vmatprep.mubr.bf16.mxu0 %v187
  %243 = vmatmul.mubr.bf16.gmra.mxu0 %v107
  %v244 = vpop.f32.mrf.mxu0
  %v245 = vadd.f32 %v57, %v244
  %v246 = vpop.f32.mrf.mxu0
  %v247 = vpop.f32.mrf.mxu0
  %v248 = vadd.f32 %v57, %v247
  %v249 = vpop.f32.mrf.mxu0
  %250 = vmatprep.mubr.bf16.mxu0 %v190
  %251 = vmatmul.mubr.bf16.gmra.mxu0 %v109
  %v252 = vpop.f32.mrf.mxu0
  %v253 = vadd.f32 %v57, %v252
  %v254 = vpop.f32.mrf.mxu0
  %v255 = vpop.f32.mrf.mxu0
  %v256 = vadd.f32 %v57, %v255
  %v257 = vpop.f32.mrf.mxu0
  %258 = vmatprep.mubr.bf16.mxu0 %v193
  %259 = vmatmul.mubr.bf16.gmra.mxu0 %v111
  %v260 = vpop.f32.mrf.mxu0
  %v261 = vadd.f32 %v57, %v260
  %v262 = vpop.f32.mrf.mxu0
  %v263 = vpop.f32.mrf.mxu0
  %v264 = vadd.f32 %v57, %v263
  %v265 = vpop.f32.mrf.mxu0
  %266 = vmatprep.mubr.bf16.mxu0 %v196
  %267 = vmatmul.mubr.bf16.gmra.mxu0 %v113
  %v268 = vpop.f32.mrf.mxu0
  %v269 = vadd.f32 %v57, %v268
  %v270 = vpop.f32.mrf.mxu0
  %v271 = vpop.f32.mrf.mxu0
  %v272 = vadd.f32 %v57, %v271
  %v273 = vpop.f32.mrf.mxu0
  %274 = vmatprep.mubr.bf16.mxu0 %v199
  %275 = vmatmul.mubr.bf16.gmra.mxu0 %v115
  %v276 = vpop.f32.mrf.mxu0
  %v277 = vadd.f32 %v57, %v276
  %v278 = vpop.f32.mrf.mxu0
  %v279 = vpop.f32.mrf.mxu0
  %v280 = vadd.f32 %v57, %v279
  %v281 = vpop.f32.mrf.mxu0
  %282 = vmatprep.mubr.bf16.mxu0 %v202
  %283 = vmatmul.mubr.bf16.gmra.mxu0 %v117
  %v284 = vpop.f32.mrf.mxu0
  %v285 = vadd.f32 %v57, %v284
  %v286 = vpop.f32.mrf.mxu0
  %v287 = vpop.f32.mrf.mxu0
  %v288 = vadd.f32 %v57, %v287
  %v289 = vpop.f32.mrf.mxu0
  %290 = vmatprep.mubr.bf16.mxu0 %v205
  %291 = vmatmul.mubr.bf16.gmra.mxu0 %v119
  %v292 = vpop.f32.mrf.mxu0
  %v293 = vadd.f32 %v57, %v292
  %v294 = vpop.f32.mrf.mxu0
  %v295 = vpop.f32.mrf.mxu0
  %v296 = vadd.f32 %v57, %v295
  %v297 = vpop.f32.mrf.mxu0
  %298 = vmatprep.mubr.bf16.mxu0 %v208
  %299 = vmatmul.mubr.bf16.gmra.mxu0 %v121
  %v300 = vpop.f32.mrf.mxu0
  %v301 = vadd.f32 %v57, %v300
  %v302 = vpop.f32.mrf.mxu0
  %v303 = vpop.f32.mrf.mxu0
  %v304 = vadd.f32 %v57, %v303
  %v305 = vpop.f32.mrf.mxu0
  %306 = vdwg.mxu0
  %v307 = vld [vmem:[%s3] sm:$0xf]
  %v308 = vld [vmem:[%s3 + $0x4] sm:$0xf]
  %v309 = vld [vmem:[%s3 + $0x8] sm:$0xf]
  %v310 = vld [vmem:[%s3 + $0xc] sm:$0xf]
  %v311 = vld [vmem:[%s3 + $0x10] sm:$0xf]
  %v312 = vld [vmem:[%s3 + $0x14] sm:$0xf]
  %v313 = vld [vmem:[%s3 + $0x18] sm:$0xf]
  %v314 = vld [vmem:[%s3 + $0x1c] sm:$0xf]
  %v315 = vld [vmem:[%s3 + $0x20] sm:$0xf]
  %v316 = vld [vmem:[%s3 + $0x24] sm:$0xf]
  %v317 = vld [vmem:[%s3 + $0x28] sm:$0xf]
  %v318 = vld [vmem:[%s3 + $0x2c] sm:$0xf]
  %v319 = vld [vmem:[%s3 + $0x30] sm:$0xf]
  %v320 = vld [vmem:[%s3 + $0x34] sm:$0xf]
  %v321 = vld [vmem:[%s3 + $0x38] sm:$0xf]
  %v322 = vld [vmem:[%s3 + $0x3c] sm:$0xf]
  %v323 = vunpack.c.l.bf16 %v307
  %v324 = vunpack.c.l.bf16 %v308
  %v325 = vunpack.c.l.bf16 %v309
  %v326 = vunpack.c.l.bf16 %v310
  %v327 = vunpack.c.l.bf16 %v311
  %v328 = vunpack.c.l.bf16 %v312
  %v329 = vunpack.c.l.bf16 %v313
  %v330 = vunpack.c.l.bf16 %v314
  %v331 = vunpack.c.l.bf16 %v315
  %v332 = vunpack.c.l.bf16 %v316
  %v333 = vunpack.c.l.bf16 %v317
  %v334 = vunpack.c.l.bf16 %v318
  %v335 = vunpack.c.l.bf16 %v319
  %v336 = vunpack.c.l.bf16 %v320
  %v337 = vunpack.c.l.bf16 %v321
  %v338 = vunpack.c.l.bf16 %v322
  %v339 = vadd.f32 %v245, %v323
  %v340 = vadd.f32 %v248, %v324
  %v341 = vadd.f32 %v253, %v325
  %v342 = vadd.f32 %v256, %v326
  %v343 = vadd.f32 %v261, %v327
  %v344 = vadd.f32 %v264, %v328
  %v345 = vadd.f32 %v269, %v329
  %v346 = vadd.f32 %v272, %v330
  %v347 = vadd.f32 %v277, %v331
  %v348 = vadd.f32 %v280, %v332
  %v349 = vadd.f32 %v285, %v333
  %v350 = vadd.f32 %v288, %v334
  %v351 = vadd.f32 %v293, %v335
  %v352 = vadd.f32 %v296, %v336
  %v353 = vadd.f32 %v301, %v337
  %v354 = vadd.f32 %v304, %v338
  %v355 = vmax.f32 %v339, 0.0
  %v356 = vmax.f32 %v340, 0.0
  %v357 = vmax.f32 %v341, 0.0
  %v358 = vmax.f32 %v342, 0.0
  %v359 = vmax.f32 %v343, 0.0
  %v360 = vmax.f32 %v344, 0.0
  %v361 = vmax.f32 %v345, 0.0
  %v362 = vmax.f32 %v346, 0.0
  %v363 = vmax.f32 %v347, 0.0
  %v364 = vmax.f32 %v348, 0.0
  %v365 = vmax.f32 %v349, 0.0
  %v366 = vmax.f32 %v350, 0.0
  %v367 = vmax.f32 %v351, 0.0
  %v368 = vmax.f32 %v352, 0.0
  %v369 = vmax.f32 %v353, 0.0
  %v370 = vmax.f32 %v354, 0.0
  %v371 = vpack.c.bf16 %v356, %v355
  %v372 = vpack.c.bf16 %v358, %v357
  %v373 = vpack.c.bf16 %v360, %v359
  %v374 = vpack.c.bf16 %v362, %v361
  %v375 = vpack.c.bf16 %v364, %v363
  %v376 = vpack.c.bf16 %v366, %v365
  %v377 = vpack.c.bf16 %v368, %v367
  %v378 = vpack.c.bf16 %v370, %v369
  %v387 = vunpack.c.l.b16 %v371
  %v388 = vunpack.c.h.b16 %v371
  %v389 = vunpack.c.l.b16 %v372
  %v390 = vunpack.c.h.b16 %v372
  %v391 = vunpack.c.l.b16 %v373
  %v392 = vunpack.c.h.b16 %v373
  %v393 = vunpack.c.l.b16 %v374
  %v394 = vunpack.c.h.b16 %v374
  %v395 = vunpack.c.l.b16 %v375
  %v396 = vunpack.c.h.b16 %v375
  %v397 = vunpack.c.l.b16 %v376
  %v398 = vunpack.c.h.b16 %v376
  %v399 = vunpack.c.l.b16 %v377
  %v400 = vunpack.c.h.b16 %v377
  %v401 = vunpack.c.l.b16 %v378
  %v402 = vunpack.c.h.b16 %v378
  %v403 = vpack.c.b16 %v387, %v387
  %v404 = vpack.c.b16 %v388, %v388
  %v405 = vpack.c.b16 %v389, %v389
  %v406 = vpack.c.b16 %v390, %v390
  %v407 = vpack.c.b16 %v391, %v391
  %v408 = vpack.c.b16 %v392, %v392
  %v409 = vpack.c.b16 %v393, %v393
  %v410 = vpack.c.b16 %v394, %v394
  %v411 = vpack.c.b16 %v395, %v395
  %v412 = vpack.c.b16 %v396, %v396
  %v413 = vpack.c.b16 %v397, %v397
  %v414 = vpack.c.b16 %v398, %v398
  %v415 = vpack.c.b16 %v399, %v399
  %v416 = vpack.c.b16 %v400, %v400
  %v417 = vpack.c.b16 %v401, %v401
  %v418 = vpack.c.b16 %v402, %v402
  %vm435 = vcmask 125952
  %436 = vst.msk [vmem:[%s4] sm:$0xf] %vm435, %v403
  %437 = vst.msk [vmem:[%s4 + $0x4] sm:$0xf] %vm435, %v404
  %438 = vst.msk [vmem:[%s4 + $0x8] sm:$0xf] %vm435, %v405
  %439 = vst.msk [vmem:[%s4 + $0xc] sm:$0xf] %vm435, %v406
  %440 = vst.msk [vmem:[%s4 + $0x10] sm:$0xf] %vm435, %v407
  %441 = vst.msk [vmem:[%s4 + $0x14] sm:$0xf] %vm435, %v408
  %442 = vst.msk [vmem:[%s4 + $0x18] sm:$0xf] %vm435, %v409
  %443 = vst.msk [vmem:[%s4 + $0x1c] sm:$0xf] %vm435, %v410
  %444 = vst.msk [vmem:[%s4 + $0x20] sm:$0xf] %vm435, %v411
  %445 = vst.msk [vmem:[%s4 + $0x24] sm:$0xf] %vm435, %v412
  %446 = vst.msk [vmem:[%s4 + $0x28] sm:$0xf] %vm435, %v413
  %447 = vst.msk [vmem:[%s4 + $0x2c] sm:$0xf] %vm435, %v414
  %448 = vst.msk [vmem:[%s4 + $0x30] sm:$0xf] %vm435, %v415
  %449 = vst.msk [vmem:[%s4 + $0x34] sm:$0xf] %vm435, %v416
  %450 = vst.msk [vmem:[%s4 + $0x38] sm:$0xf] %vm435, %v417
  %451 = vst.msk [vmem:[%s4 + $0x3c] sm:$0xf] %vm435, %v418
  // Predicated region
  $region18: #{_lambda_.45} parent=0 // pred_check
    _
  $region19: #{_lambda_.45} parent=0 // pred_check_branch
    %453 = sbr.rel (0) target = $region21
  $region20: #{_lambda_.45} parent=0 // pred_region
    _
  $region21: #{_lambda_.45} parent=0 // pred_fallthru
    _
  // Predicated region
  $region22: #{_lambda_.45} parent=0 // pred_check
    _
  $region23: #{_lambda_.45} parent=0 // pred_check_branch
    %455 = sbr.rel (0) target = $region25
  $region24: #{_lambda_.45} parent=0 // pred_region
    _
  $region25: #{_lambda_.45} parent=0 // pred_fallthru
    _

// kernel: _lambda_.46
$region0: #{_lambda_.46}
  #allocation0 [shape = 'u32[]', space=smem, size = 0x4, offset = 0x4, fixed_abs, tag = 'smem constant byte address 0x4 - core index']
  #allocation1 [shape = 'u32[144,128]{1,0:T(1,128)}', space=vmem, size = 0x12000, scoped, tag = 'internal scratch']
  %s0 = inlined_call_operand.vmem [shape: bf16[128,144], index: 0, kind: input, shape index: {}]
  %s1 = inlined_call_operand.vmem [shape: bf16[144,16], index: 1, kind: input, shape index: {}]
  %s2 = inlined_call_operand.vmem [shape: f32[1,16], index: 2, kind: input, shape index: {}]
  %s3 = inlined_call_operand.vmem [shape: bf16[128,16], index: 3, kind: output, shape index: {}]
  %s4 = sld [smem:[#allocation0]]
  $region22: #{_lambda_.46} parent=0
    _
  %s6 = ssub.s32 1, %s4
  %s7 = scalar_select 0, %s6, %s4
  // Predicated region
  $region2: #{_lambda_.46} parent=0 // pred_check
    _
  $region3: #{_lambda_.46} parent=0 // pred_check_branch
    %9 = sbr.rel (0) target = $region5
  $region4: #{_lambda_.46} parent=0 // pred_region
    _
  $region5: #{_lambda_.46} parent=0 // pred_fallthru
    _
  // Predicated region
  $region6: #{_lambda_.46} parent=0 // pred_check
    _
  $region7: #{_lambda_.46} parent=0 // pred_check_branch
    %11 = sbr.rel (0) target = $region9
  $region8: #{_lambda_.46} parent=0 // pred_region
    _
  $region9: #{_lambda_.46} parent=0 // pred_fallthru
    _
  // Predicated region
  $region10: #{_lambda_.46} parent=0 // pred_check
    _
  $region11: #{_lambda_.46} parent=0 // pred_check_branch
    %13 = sbr.rel (0) target = $region13
  $region12: #{_lambda_.46} parent=0 // pred_region
    _
  $region13: #{_lambda_.46} parent=0 // pred_fallthru
    _
  %v15 = vld [vmem:[%s0] sm:$0xff]
  %v16 = vld [vmem:[%s0 + $0x8] sm:$0xff]
  %v17 = vld [vmem:[%s0 + $0x10] sm:$0xff]
  %v18 = vld [vmem:[%s0 + $0x18] sm:$0xff]
  %v19 = vld [vmem:[%s0 + $0x20] sm:$0xff]
  %v20 = vld [vmem:[%s0 + $0x28] sm:$0xff]
  %v21 = vld [vmem:[%s0 + $0x30] sm:$0xff]
  %v22 = vld [vmem:[%s0 + $0x38] sm:$0xff]
  %v23 = vld [vmem:[%s0 + $0x40] sm:$0xff]
  %v24 = vld [vmem:[%s0 + $0x48] sm:$0xff]
  %v25 = vld [vmem:[%s0 + $0x50] sm:$0xff]
  %v26 = vld [vmem:[%s0 + $0x58] sm:$0xff]
  %v27 = vld [vmem:[%s0 + $0x60] sm:$0xff]
  %v28 = vld [vmem:[%s0 + $0x68] sm:$0xff]
  %v29 = vld [vmem:[%s0 + $0x70] sm:$0xff]
  %v30 = vld [vmem:[%s0 + $0x78] sm:$0xff]
  %v31 = vld [vmem:[%s1] sm:$0xf]
  %v32 = vld [vmem:[%s1 + $0x4] sm:$0xf]
  %v33 = vld [vmem:[%s1 + $0x8] sm:$0xf]
  %v34 = vld [vmem:[%s1 + $0xc] sm:$0xf]
  %v35 = vld [vmem:[%s1 + $0x10] sm:$0xf]
  %v36 = vld [vmem:[%s1 + $0x14] sm:$0xf]
  %v37 = vld [vmem:[%s1 + $0x18] sm:$0xf]
  %v38 = vld [vmem:[%s1 + $0x1c] sm:$0xf]
  %v39 = vld [vmem:[%s1 + $0x20] sm:$0xf]
  %v40 = vld [vmem:[%s1 + $0x24] sm:$0xf]
  %v41 = vld [vmem:[%s1 + $0x28] sm:$0xf]
  %v42 = vld [vmem:[%s1 + $0x2c] sm:$0xf]
  %v43 = vld [vmem:[%s1 + $0x30] sm:$0xf]
  %v44 = vld [vmem:[%s1 + $0x34] sm:$0xf]
  %v45 = vld [vmem:[%s1 + $0x38] sm:$0xf]
  %v46 = vld [vmem:[%s1 + $0x3c] sm:$0xf]
  %v47 = vld [vmem:[%s1 + $0x40] sm:$0xf]
  %v48 = vld [vmem:[%s1 + $0x44] sm:$0xf]
  %v49 = vld [vmem:[%s2] sm:$0x1]
  %v51 = vlaneseq
  %v52 = vshrl.u32 %v51, 7
  %v53 = vsub.s32 0, %v52
  %v54 = vrot.slane %v49, %v53
  %v72 = vunpack.c.l.b16 %v15
  %v73 = vunpack.c.h.b16 %v15
  %v74 = vunpack.c.l.b16 %v16
  %v75 = vunpack.c.h.b16 %v16
  %v76 = vunpack.c.l.b16 %v17
  %v77 = vunpack.c.h.b16 %v17
  %v78 = vunpack.c.l.b16 %v18
  %v79 = vunpack.c.h.b16 %v18
  %v80 = vunpack.c.l.b16 %v19
  %v81 = vunpack.c.h.b16 %v19
  %v82 = vunpack.c.l.b16 %v20
  %v83 = vunpack.c.h.b16 %v20
  %v84 = vunpack.c.l.b16 %v21
  %v85 = vunpack.c.h.b16 %v21
  %v86 = vunpack.c.l.b16 %v22
  %v87 = vunpack.c.h.b16 %v22
  %v88 = vunpack.c.l.b16 %v23
  %v89 = vunpack.c.h.b16 %v23
  %v90 = vunpack.c.l.b16 %v24
  %v91 = vunpack.c.h.b16 %v24
  %v92 = vunpack.c.l.b16 %v25
  %v93 = vunpack.c.h.b16 %v25
  %v94 = vunpack.c.l.b16 %v26
  %v95 = vunpack.c.h.b16 %v26
  %v96 = vunpack.c.l.b16 %v27
  %v97 = vunpack.c.h.b16 %v27
  %v98 = vunpack.c.l.b16 %v28
  %v99 = vunpack.c.h.b16 %v28
  %v100 = vunpack.c.l.b16 %v29
  %v101 = vunpack.c.h.b16 %v29
  %v102 = vunpack.c.l.b16 %v30
  %v103 = vunpack.c.h.b16 %v30
  %v104 = vpack.c.b16 %v74, %v72
  %v105 = vpack.c.b16 %v75, %v73
  %v106 = vpack.c.b16 %v78, %v76
  %v107 = vpack.c.b16 %v79, %v77
  %v108 = vpack.c.b16 %v82, %v80
  %v109 = vpack.c.b16 %v83, %v81
  %v110 = vpack.c.b16 %v86, %v84
  %v111 = vpack.c.b16 %v87, %v85
  %v112 = vpack.c.b16 %v90, %v88
  %v113 = vpack.c.b16 %v91, %v89
  %v114 = vpack.c.b16 %v94, %v92
  %v115 = vpack.c.b16 %v95, %v93
  %v116 = vpack.c.b16 %v98, %v96
  %v117 = vpack.c.b16 %v99, %v97
  %v118 = vpack.c.b16 %v102, %v100
  %v119 = vpack.c.b16 %v103, %v101
  %v146 = vunpack.c.l.b16 %v31
  %v147 = vunpack.c.l.b16 %v32
  %v148 = vunpack.c.l.b16 %v33
  %v149 = vunpack.c.l.b16 %v34
  %v150 = vunpack.c.l.b16 %v35
  %v151 = vunpack.c.l.b16 %v36
  %v152 = vunpack.c.l.b16 %v37
  %v153 = vunpack.c.l.b16 %v38
  %v154 = vunpack.c.l.b16 %v39
  %v155 = vunpack.c.l.b16 %v40
  %v156 = vunpack.c.l.b16 %v41
  %v157 = vunpack.c.l.b16 %v42
  %v158 = vunpack.c.l.b16 %v43
  %v159 = vunpack.c.l.b16 %v44
  %v160 = vunpack.c.l.b16 %v45
  %v161 = vunpack.c.l.b16 %v46
  %v162 = vunpack.c.l.b16 %v47
  %v163 = vunpack.c.l.b16 %v48
  %v164 = vpack.c.b16 %v147, %v146
  %v165 = vpack.c.b16 %v149, %v148
  %v166 = vpack.c.b16 %v151, %v150
  %v167 = vpack.c.b16 %v153, %v152
  %v168 = vpack.c.b16 %v155, %v154
  %v169 = vpack.c.b16 %v157, %v156
  %v170 = vpack.c.b16 %v159, %v158
  %v171 = vpack.c.b16 %v161, %v160
  %v172 = vpack.c.b16 %v163, %v162
  %vm182 = vcmask 130048
  %v184 = vsel %vm182, %v105, 0
  %v187 = vsel %vm182, %v107, 0
  %v190 = vsel %vm182, %v109, 0
  %v193 = vsel %vm182, %v111, 0
  %v196 = vsel %vm182, %v113, 0
  %v199 = vsel %vm182, %v115, 0
  %v202 = vsel %vm182, %v117, 0
  %v205 = vsel %vm182, %v119, 0
  %207 = vmatprep.subr.bf16.mxu0 0
  %208 = vmatpush1.bf16.msra.mxu0 %v171
  %209 = vmatprep.subr.bf16.mxu0 0
  %210 = vmatpush1.bf16.msra.mxu0 %v170
  %211 = vmatprep.subr.bf16.mxu0 0
  %212 = vmatpush1.bf16.msra.mxu0 %v169
  %213 = vmatprep.subr.bf16.mxu0 0
  %214 = vmatpush1.bf16.msra.mxu0 %v168
  %215 = vmatprep.subr.bf16.mxu0 0
  %216 = vmatpush1.bf16.msra.mxu0 %v167
  %217 = vmatprep.subr.bf16.mxu0 0
  %218 = vmatpush1.bf16.msra.mxu0 %v166
  %219 = vmatprep.subr.bf16.mxu0 0
  %220 = vmatpush1.bf16.msra.mxu0 %v165
  %221 = vmatprep.subr.bf16.mxu0 0
  %222 = vmatpush1.bf16.msra.mxu0 %v164
  %223 = vmatprep.subr.bf16.mxu0 0
  %224 = vmatpush2.bf16.msra.mxu0 0
  %225 = vmatprep.subr.bf16.mxu0 0
  %226 = vmatpush2.bf16.msra.mxu0 0
  %227 = vmatprep.subr.bf16.mxu0 0
  %228 = vmatpush2.bf16.msra.mxu0 0
  %229 = vmatprep.subr.bf16.mxu0 0
  %230 = vmatpush2.bf16.msra.mxu0 0
  %231 = vmatprep.subr.bf16.mxu0 0
  %232 = vmatpush2.bf16.msra.mxu0 0
  %233 = vmatprep.subr.bf16.mxu0 0
  %234 = vmatpush2.bf16.msra.mxu0 0
  %235 = vmatprep.subr.bf16.mxu0 0
  %236 = vmatpush2.bf16.msra.mxu0 0
  %237 = vmatprep.subr.bf16.mxu0 0
  %238 = vmatpush2.bf16.msra.mxu0 %v172
  %239 = vmatprep.mubr.bf16.mxu0 %v184
  %240 = vmatmul.mubr.bf16.gmra.mxu0 %v104
  %v241 = vpop.f32.mrf.mxu0
  %v242 = vadd.f32 %v54, %v241
  %v243 = vpop.f32.mrf.mxu0
  %v244 = vpop.f32.mrf.mxu0
  %v245 = vadd.f32 %v54, %v244
  %v246 = vpop.f32.mrf.mxu0
  %247 = vmatprep.mubr.bf16.mxu0 %v187
  %248 = vmatmul.mubr.bf16.gmra.mxu0 %v106
  %v249 = vpop.f32.mrf.mxu0
  %v250 = vadd.f32 %v54, %v249
  %v251 = vpop.f32.mrf.mxu0
  %v252 = vpop.f32.mrf.mxu0
  %v253 = vadd.f32 %v54, %v252
  %v254 = vpop.f32.mrf.mxu0
  %255 = vmatprep.mubr.bf16.mxu0 %v190
  %256 = vmatmul.mubr.bf16.gmra.mxu0 %v108
  %v257 = vpop.f32.mrf.mxu0
  %v258 = vadd.f32 %v54, %v257
  %v259 = vpop.f32.mrf.mxu0
  %v260 = vpop.f32.mrf.mxu0
  %v261 = vadd.f32 %v54, %v260
  %v262 = vpop.f32.mrf.mxu0
  %263 = vmatprep.mubr.bf16.mxu0 %v193
  %264 = vmatmul.mubr.bf16.gmra.mxu0 %v110
  %v265 = vpop.f32.mrf.mxu0
  %v266 = vadd.f32 %v54, %v265
  %v267 = vpop.f32.mrf.mxu0
  %v268 = vpop.f32.mrf.mxu0
  %v269 = vadd.f32 %v54, %v268
  %v270 = vpop.f32.mrf.mxu0
  %271 = vmatprep.mubr.bf16.mxu0 %v196
  %272 = vmatmul.mubr.bf16.gmra.mxu0 %v112
  %v273 = vpop.f32.mrf.mxu0
  %v274 = vadd.f32 %v54, %v273
  %v275 = vpop.f32.mrf.mxu0
  %v276 = vpop.f32.mrf.mxu0
  %v277 = vadd.f32 %v54, %v276
  %v278 = vpop.f32.mrf.mxu0
  %279 = vmatprep.mubr.bf16.mxu0 %v199
  %280 = vmatmul.mubr.bf16.gmra.mxu0 %v114
  %v281 = vpop.f32.mrf.mxu0
  %v282 = vadd.f32 %v54, %v281
  %v283 = vpop.f32.mrf.mxu0
  %v284 = vpop.f32.mrf.mxu0
  %v285 = vadd.f32 %v54, %v284
  %v286 = vpop.f32.mrf.mxu0
  %287 = vmatprep.mubr.bf16.mxu0 %v202
  %288 = vmatmul.mubr.bf16.gmra.mxu0 %v116
  %v289 = vpop.f32.mrf.mxu0
  %v290 = vadd.f32 %v54, %v289
  %v291 = vpop.f32.mrf.mxu0
  %v292 = vpop.f32.mrf.mxu0
  %v293 = vadd.f32 %v54, %v292
  %v294 = vpop.f32.mrf.mxu0
  %295 = vmatprep.mubr.bf16.mxu0 %v205
  %296 = vmatmul.mubr.bf16.gmra.mxu0 %v118
  %v297 = vpop.f32.mrf.mxu0
  %v298 = vadd.f32 %v54, %v297
  %v299 = vpop.f32.mrf.mxu0
  %v300 = vpop.f32.mrf.mxu0
  %v301 = vadd.f32 %v54, %v300
  %v302 = vpop.f32.mrf.mxu0
  %303 = vdwg.mxu0
  %v304 = vmax.f32 %v242, 0.0
  %v305 = vmax.f32 %v245, 0.0
  %v306 = vmax.f32 %v250, 0.0
  %v307 = vmax.f32 %v253, 0.0
  %v308 = vmax.f32 %v258, 0.0
  %v309 = vmax.f32 %v261, 0.0
  %v310 = vmax.f32 %v266, 0.0
  %v311 = vmax.f32 %v269, 0.0
  %v312 = vmax.f32 %v274, 0.0
  %v313 = vmax.f32 %v277, 0.0
  %v314 = vmax.f32 %v282, 0.0
  %v315 = vmax.f32 %v285, 0.0
  %v316 = vmax.f32 %v290, 0.0
  %v317 = vmax.f32 %v293, 0.0
  %v318 = vmax.f32 %v298, 0.0
  %v319 = vmax.f32 %v301, 0.0
  %v320 = vpack.c.bf16 %v305, %v304
  %v321 = vpack.c.bf16 %v307, %v306
  %v322 = vpack.c.bf16 %v309, %v308
  %v323 = vpack.c.bf16 %v311, %v310
  %v324 = vpack.c.bf16 %v313, %v312
  %v325 = vpack.c.bf16 %v315, %v314
  %v326 = vpack.c.bf16 %v317, %v316
  %v327 = vpack.c.bf16 %v319, %v318
  %v336 = vunpack.c.l.b16 %v320
  %v337 = vunpack.c.h.b16 %v320
  %v338 = vunpack.c.l.b16 %v321
  %v339 = vunpack.c.h.b16 %v321
  %v340 = vunpack.c.l.b16 %v322
  %v341 = vunpack.c.h.b16 %v322
  %v342 = vunpack.c.l.b16 %v323
  %v343 = vunpack.c.h.b16 %v323
  %v344 = vunpack.c.l.b16 %v324
  %v345 = vunpack.c.h.b16 %v324
  %v346 = vunpack.c.l.b16 %v325
  %v347 = vunpack.c.h.b16 %v325
  %v348 = vunpack.c.l.b16 %v326
  %v349 = vunpack.c.h.b16 %v326
  %v350 = vunpack.c.l.b16 %v327
  %v351 = vunpack.c.h.b16 %v327
  %v352 = vpack.c.b16 %v336, %v336
  %v353 = vpack.c.b16 %v337, %v337
  %v354 = vpack.c.b16 %v338, %v338
  %v355 = vpack.c.b16 %v339, %v339
  %v356 = vpack.c.b16 %v340, %v340
  %v357 = vpack.c.b16 %v341, %v341
  %v358 = vpack.c.b16 %v342, %v342
  %v359 = vpack.c.b16 %v343, %v343
  %v360 = vpack.c.b16 %v344, %v344
  %v361 = vpack.c.b16 %v345, %v345
  %v362 = vpack.c.b16 %v346, %v346
  %v363 = vpack.c.b16 %v347, %v347
  %v364 = vpack.c.b16 %v348, %v348
  %v365 = vpack.c.b16 %v349, %v349
  %v366 = vpack.c.b16 %v350, %v350
  %v367 = vpack.c.b16 %v351, %v351
  %vm384 = vcmask 125952
  %385 = vst.msk [vmem:[%s3] sm:$0xf] %vm384, %v352
  %386 = vst.msk [vmem:[%s3 + $0x4] sm:$0xf] %vm384, %v353
  %387 = vst.msk [vmem:[%s3 + $0x8] sm:$0xf] %vm384, %v354
  %388 = vst.msk [vmem:[%s3 + $0xc] sm:$0xf] %vm384, %v355
  %389 = vst.msk [vmem:[%s3 + $0x10] sm:$0xf] %vm384, %v356
  %390 = vst.msk [vmem:[%s3 + $0x14] sm:$0xf] %vm384, %v357
  %391 = vst.msk [vmem:[%s3 + $0x18] sm:$0xf] %vm384, %v358
  %392 = vst.msk [vmem:[%s3 + $0x1c] sm:$0xf] %vm384, %v359
  %393 = vst.msk [vmem:[%s3 + $0x20] sm:$0xf] %vm384, %v360
  %394 = vst.msk [vmem:[%s3 + $0x24] sm:$0xf] %vm384, %v361
  %395 = vst.msk [vmem:[%s3 + $0x28] sm:$0xf] %vm384, %v362
  %396 = vst.msk [vmem:[%s3 + $0x2c] sm:$0xf] %vm384, %v363
  %397 = vst.msk [vmem:[%s3 + $0x30] sm:$0xf] %vm384, %v364
  %398 = vst.msk [vmem:[%s3 + $0x34] sm:$0xf] %vm384, %v365
  %399 = vst.msk [vmem:[%s3 + $0x38] sm:$0xf] %vm384, %v366
  %400 = vst.msk [vmem:[%s3 + $0x3c] sm:$0xf] %vm384, %v367
  // Predicated region
  $region14: #{_lambda_.46} parent=0 // pred_check
    _
  $region15: #{_lambda_.46} parent=0 // pred_check_branch
    %402 = sbr.rel (0) target = $region17
  $region16: #{_lambda_.46} parent=0 // pred_region
    _
  $region17: #{_lambda_.46} parent=0 // pred_fallthru
    _
  // Predicated region
  $region18: #{_lambda_.46} parent=0 // pred_check
    _
  $region19: #{_lambda_.46} parent=0 // pred_check_branch
    %404 = sbr.rel (0) target = $region21
  $region20: #{_lambda_.46} parent=0 // pred_region
    _
  $region21: #{_lambda_.46} parent=0 // pred_fallthru
    _

// kernel: _lambda_.47
$region0: #{_lambda_.47}
  #allocation0 [shape = 'u32[]', space=smem, size = 0x4, offset = 0x4, fixed_abs, tag = 'smem constant byte address 0x4 - core index']
  #allocation1 [shape = 'u32[144,128]{1,0:T(1,128)}', space=vmem, size = 0x12000, scoped, tag = 'internal scratch']
  %s0 = inlined_call_operand.vmem [shape: bf16[128,144], index: 0, kind: input, shape index: {}]
  %s1 = inlined_call_operand.vmem [shape: bf16[144,16], index: 1, kind: input, shape index: {}]
  %s2 = inlined_call_operand.vmem [shape: f32[1,16], index: 2, kind: input, shape index: {}]
  %s3 = inlined_call_operand.vmem [shape: bf16[128,16], index: 3, kind: input, shape index: {}]
  %s4 = inlined_call_operand.vmem [shape: bf16[128,16], index: 4, kind: output, shape index: {}]
  %s5 = sld [smem:[#allocation0]]
  $region26: #{_lambda_.47} parent=0
    _
  %s7 = ssub.s32 1, %s5
  %s8 = scalar_select 0, %s7, %s5
  // Predicated region
  $region2: #{_lambda_.47} parent=0 // pred_check
    _
  $region3: #{_lambda_.47} parent=0 // pred_check_branch
    %10 = sbr.rel (0) target = $region5
  $region4: #{_lambda_.47} parent=0 // pred_region
    _
  $region5: #{_lambda_.47} parent=0 // pred_fallthru
    _
  // Predicated region
  $region6: #{_lambda_.47} parent=0 // pred_check
    _
  $region7: #{_lambda_.47} parent=0 // pred_check_branch
    %12 = sbr.rel (0) target = $region9
  $region8: #{_lambda_.47} parent=0 // pred_region
    _
  $region9: #{_lambda_.47} parent=0 // pred_fallthru
    _
  // Predicated region
  $region10: #{_lambda_.47} parent=0 // pred_check
    _
  $region11: #{_lambda_.47} parent=0 // pred_check_branch
    %14 = sbr.rel (0) target = $region13
  $region12: #{_lambda_.47} parent=0 // pred_region
    _
  $region13: #{_lambda_.47} parent=0 // pred_fallthru
    _
  // Predicated region
  $region14: #{_lambda_.47} parent=0 // pred_check
    _
  $region15: #{_lambda_.47} parent=0 // pred_check_branch
    %16 = sbr.rel (0) target = $region17
  $region16: #{_lambda_.47} parent=0 // pred_region
    _
  $region17: #{_lambda_.47} parent=0 // pred_fallthru
    _
  %v18 = vld [vmem:[%s0] sm:$0xff]
  %v19 = vld [vmem:[%s0 + $0x8] sm:$0xff]
  %v20 = vld [vmem:[%s0 + $0x10] sm:$0xff]
  %v21 = vld [vmem:[%s0 + $0x18] sm:$0xff]
  %v22 = vld [vmem:[%s0 + $0x20] sm:$0xff]
  %v23 = vld [vmem:[%s0 + $0x28] sm:$0xff]
  %v24 = vld [vmem:[%s0 + $0x30] sm:$0xff]
  %v25 = vld [vmem:[%s0 + $0x38] sm:$0xff]
  %v26 = vld [vmem:[%s0 + $0x40] sm:$0xff]
  %v27 = vld [vmem:[%s0 + $0x48] sm:$0xff]
  %v28 = vld [vmem:[%s0 + $0x50] sm:$0xff]
  %v29 = vld [vmem:[%s0 + $0x58] sm:$0xff]
  %v30 = vld [vmem:[%s0 + $0x60] sm:$0xff]
  %v31 = vld [vmem:[%s0 + $0x68] sm:$0xff]
  %v32 = vld [vmem:[%s0 + $0x70] sm:$0xff]
  %v33 = vld [vmem:[%s0 + $0x78] sm:$0xff]
  %v34 = vld [vmem:[%s1] sm:$0xf]
  %v35 = vld [vmem:[%s1 + $0x4] sm:$0xf]
  %v36 = vld [vmem:[%s1 + $0x8] sm:$0xf]
  %v37 = vld [vmem:[%s1 + $0xc] sm:$0xf]
  %v38 = vld [vmem:[%s1 + $0x10] sm:$0xf]
  %v39 = vld [vmem:[%s1 + $0x14] sm:$0xf]
  %v40 = vld [vmem:[%s1 + $0x18] sm:$0xf]
  %v41 = vld [vmem:[%s1 + $0x1c] sm:$0xf]
  %v42 = vld [vmem:[%s1 + $0x20] sm:$0xf]
  %v43 = vld [vmem:[%s1 + $0x24] sm:$0xf]
  %v44 = vld [vmem:[%s1 + $0x28] sm:$0xf]
  %v45 = vld [vmem:[%s1 + $0x2c] sm:$0xf]
  %v46 = vld [vmem:[%s1 + $0x30] sm:$0xf]
  %v47 = vld [vmem:[%s1 + $0x34] sm:$0xf]
  %v48 = vld [vmem:[%s1 + $0x38] sm:$0xf]
  %v49 = vld [vmem:[%s1 + $0x3c] sm:$0xf]
  %v50 = vld [vmem:[%s1 + $0x40] sm:$0xf]
  %v51 = vld [vmem:[%s1 + $0x44] sm:$0xf]
  %v52 = vld [vmem:[%s2] sm:$0x1]
  %v54 = vlaneseq
  %v55 = vshrl.u32 %v54, 7
  %v56 = vsub.s32 0, %v55
  %v57 = vrot.slane %v52, %v56
  %v75 = vunpack.c.l.b16 %v18
  %v76 = vunpack.c.h.b16 %v18
  %v77 = vunpack.c.l.b16 %v19
  %v78 = vunpack.c.h.b16 %v19
  %v79 = vunpack.c.l.b16 %v20
  %v80 = vunpack.c.h.b16 %v20
  %v81 = vunpack.c.l.b16 %v21
  %v82 = vunpack.c.h.b16 %v21
  %v83 = vunpack.c.l.b16 %v22
  %v84 = vunpack.c.h.b16 %v22
  %v85 = vunpack.c.l.b16 %v23
  %v86 = vunpack.c.h.b16 %v23
  %v87 = vunpack.c.l.b16 %v24
  %v88 = vunpack.c.h.b16 %v24
  %v89 = vunpack.c.l.b16 %v25
  %v90 = vunpack.c.h.b16 %v25
  %v91 = vunpack.c.l.b16 %v26
  %v92 = vunpack.c.h.b16 %v26
  %v93 = vunpack.c.l.b16 %v27
  %v94 = vunpack.c.h.b16 %v27
  %v95 = vunpack.c.l.b16 %v28
  %v96 = vunpack.c.h.b16 %v28
  %v97 = vunpack.c.l.b16 %v29
  %v98 = vunpack.c.h.b16 %v29
  %v99 = vunpack.c.l.b16 %v30
  %v100 = vunpack.c.h.b16 %v30
  %v101 = vunpack.c.l.b16 %v31
  %v102 = vunpack.c.h.b16 %v31
  %v103 = vunpack.c.l.b16 %v32
  %v104 = vunpack.c.h.b16 %v32
  %v105 = vunpack.c.l.b16 %v33
  %v106 = vunpack.c.h.b16 %v33
  %v107 = vpack.c.b16 %v77, %v75
  %v108 = vpack.c.b16 %v78, %v76
  %v109 = vpack.c.b16 %v81, %v79
  %v110 = vpack.c.b16 %v82, %v80
  %v111 = vpack.c.b16 %v85, %v83
  %v112 = vpack.c.b16 %v86, %v84
  %v113 = vpack.c.b16 %v89, %v87
  %v114 = vpack.c.b16 %v90, %v88
  %v115 = vpack.c.b16 %v93, %v91
  %v116 = vpack.c.b16 %v94, %v92
  %v117 = vpack.c.b16 %v97, %v95
  %v118 = vpack.c.b16 %v98, %v96
  %v119 = vpack.c.b16 %v101, %v99
  %v120 = vpack.c.b16 %v102, %v100
  %v121 = vpack.c.b16 %v105, %v103
  %v122 = vpack.c.b16 %v106, %v104
  %v149 = vunpack.c.l.b16 %v34
  %v150 = vunpack.c.l.b16 %v35
  %v151 = vunpack.c.l.b16 %v36
  %v152 = vunpack.c.l.b16 %v37
  %v153 = vunpack.c.l.b16 %v38
  %v154 = vunpack.c.l.b16 %v39
  %v155 = vunpack.c.l.b16 %v40
  %v156 = vunpack.c.l.b16 %v41
  %v157 = vunpack.c.l.b16 %v42
  %v158 = vunpack.c.l.b16 %v43
  %v159 = vunpack.c.l.b16 %v44
  %v160 = vunpack.c.l.b16 %v45
  %v161 = vunpack.c.l.b16 %v46
  %v162 = vunpack.c.l.b16 %v47
  %v163 = vunpack.c.l.b16 %v48
  %v164 = vunpack.c.l.b16 %v49
  %v165 = vunpack.c.l.b16 %v50
  %v166 = vunpack.c.l.b16 %v51
  %v167 = vpack.c.b16 %v150, %v149
  %v168 = vpack.c.b16 %v152, %v151
  %v169 = vpack.c.b16 %v154, %v153
  %v170 = vpack.c.b16 %v156, %v155
  %v171 = vpack.c.b16 %v158, %v157
  %v172 = vpack.c.b16 %v160, %v159
  %v173 = vpack.c.b16 %v162, %v161
  %v174 = vpack.c.b16 %v164, %v163
  %v175 = vpack.c.b16 %v166, %v165
  %vm185 = vcmask 130048
  %v187 = vsel %vm185, %v108, 0
  %v190 = vsel %vm185, %v110, 0
  %v193 = vsel %vm185, %v112, 0
  %v196 = vsel %vm185, %v114, 0
  %v199 = vsel %vm185, %v116, 0
  %v202 = vsel %vm185, %v118, 0
  %v205 = vsel %vm185, %v120, 0
  %v208 = vsel %vm185, %v122, 0
  %210 = vmatprep.subr.bf16.mxu0 0
  %211 = vmatpush1.bf16.msra.mxu0 %v174
  %212 = vmatprep.subr.bf16.mxu0 0
  %213 = vmatpush1.bf16.msra.mxu0 %v173
  %214 = vmatprep.subr.bf16.mxu0 0
  %215 = vmatpush1.bf16.msra.mxu0 %v172
  %216 = vmatprep.subr.bf16.mxu0 0
  %217 = vmatpush1.bf16.msra.mxu0 %v171
  %218 = vmatprep.subr.bf16.mxu0 0
  %219 = vmatpush1.bf16.msra.mxu0 %v170
  %220 = vmatprep.subr.bf16.mxu0 0
  %221 = vmatpush1.bf16.msra.mxu0 %v169
  %222 = vmatprep.subr.bf16.mxu0 0
  %223 = vmatpush1.bf16.msra.mxu0 %v168
  %224 = vmatprep.subr.bf16.mxu0 0
  %225 = vmatpush1.bf16.msra.mxu0 %v167
  %226 = vmatprep.subr.bf16.mxu0 0
  %227 = vmatpush2.bf16.msra.mxu0 0
  %228 = vmatprep.subr.bf16.mxu0 0
  %229 = vmatpush2.bf16.msra.mxu0 0
  %230 = vmatprep.subr.bf16.mxu0 0
  %231 = vmatpush2.bf16.msra.mxu0 0
  %232 = vmatprep.subr.bf16.mxu0 0
  %233 = vmatpush2.bf16.msra.mxu0 0
  %234 = vmatprep.subr.bf16.mxu0 0
  %235 = vmatpush2.bf16.msra.mxu0 0
  %236 = vmatprep.subr.bf16.mxu0 0
  %237 = vmatpush2.bf16.msra.mxu0 0
  %238 = vmatprep.subr.bf16.mxu0 0
  %239 = vmatpush2.bf16.msra.mxu0 0
  %240 = vmatprep.subr.bf16.mxu0 0
  %241 = vmatpush2.bf16.msra.mxu0 %v175
  %242 = vmatprep.mubr.bf16.mxu0 %v187
  %243 = vmatmul.mubr.bf16.gmra.mxu0 %v107
  %v244 = vpop.f32.mrf.mxu0
  %v245 = vadd.f32 %v57, %v244
  %v246 = vpop.f32.mrf.mxu0
  %v247 = vpop.f32.mrf.mxu0
  %v248 = vadd.f32 %v57, %v247
  %v249 = vpop.f32.mrf.mxu0
  %250 = vmatprep.mubr.bf16.mxu0 %v190
  %251 = vmatmul.mubr.bf16.gmra.mxu0 %v109
  %v252 = vpop.f32.mrf.mxu0
  %v253 = vadd.f32 %v57, %v252
  %v254 = vpop.f32.mrf.mxu0
  %v255 = vpop.f32.mrf.mxu0
  %v256 = vadd.f32 %v57, %v255
  %v257 = vpop.f32.mrf.mxu0
  %258 = vmatprep.mubr.bf16.mxu0 %v193
  %259 = vmatmul.mubr.bf16.gmra.mxu0 %v111
  %v260 = vpop.f32.mrf.mxu0
  %v261 = vadd.f32 %v57, %v260
  %v262 = vpop.f32.mrf.mxu0
  %v263 = vpop.f32.mrf.mxu0
  %v264 = vadd.f32 %v57, %v263
  %v265 = vpop.f32.mrf.mxu0
  %266 = vmatprep.mubr.bf16.mxu0 %v196
  %267 = vmatmul.mubr.bf16.gmra.mxu0 %v113
  %v268 = vpop.f32.mrf.mxu0
  %v269 = vadd.f32 %v57, %v268
  %v270 = vpop.f32.mrf.mxu0
  %v271 = vpop.f32.mrf.mxu0
  %v272 = vadd.f32 %v57, %v271
  %v273 = vpop.f32.mrf.mxu0
  %274 = vmatprep.mubr.bf16.mxu0 %v199
  %275 = vmatmul.mubr.bf16.gmra.mxu0 %v115
  %v276 = vpop.f32.mrf.mxu0
  %v277 = vadd.f32 %v57, %v276
  %v278 = vpop.f32.mrf.mxu0
  %v279 = vpop.f32.mrf.mxu0
  %v280 = vadd.f32 %v57, %v279
  %v281 = vpop.f32.mrf.mxu0
  %282 = vmatprep.mubr.bf16.mxu0 %v202
  %283 = vmatmul.mubr.bf16.gmra.mxu0 %v117
  %v284 = vpop.f32.mrf.mxu0
  %v285 = vadd.f32 %v57, %v284
  %v286 = vpop.f32.mrf.mxu0
  %v287 = vpop.f32.mrf.mxu0
  %v288 = vadd.f32 %v57, %v287
  %v289 = vpop.f32.mrf.mxu0
  %290 = vmatprep.mubr.bf16.mxu0 %v205
  %291 = vmatmul.mubr.bf16.gmra.mxu0 %v119
  %v292 = vpop.f32.mrf.mxu0
  %v293 = vadd.f32 %v57, %v292
  %v294 = vpop.f32.mrf.mxu0
  %v295 = vpop.f32.mrf.mxu0
  %v296 = vadd.f32 %v57, %v295
  %v297 = vpop.f32.mrf.mxu0
  %298 = vmatprep.mubr.bf16.mxu0 %v208
  %299 = vmatmul.mubr.bf16.gmra.mxu0 %v121
  %v300 = vpop.f32.mrf.mxu0
  %v301 = vadd.f32 %v57, %v300
  %v302 = vpop.f32.mrf.mxu0
  %v303 = vpop.f32.mrf.mxu0
  %v304 = vadd.f32 %v57, %v303
  %v305 = vpop.f32.mrf.mxu0
  %306 = vdwg.mxu0
  %v307 = vld [vmem:[%s3] sm:$0xf]
  %v308 = vld [vmem:[%s3 + $0x4] sm:$0xf]
  %v309 = vld [vmem:[%s3 + $0x8] sm:$0xf]
  %v310 = vld [vmem:[%s3 + $0xc] sm:$0xf]
  %v311 = vld [vmem:[%s3 + $0x10] sm:$0xf]
  %v312 = vld [vmem:[%s3 + $0x14] sm:$0xf]
  %v313 = vld [vmem:[%s3 + $0x18] sm:$0xf]
  %v314 = vld [vmem:[%s3 + $0x1c] sm:$0xf]
  %v315 = vld [vmem:[%s3 + $0x20] sm:$0xf]
  %v316 = vld [vmem:[%s3 + $0x24] sm:$0xf]
  %v317 = vld [vmem:[%s3 + $0x28] sm:$0xf]
  %v318 = vld [vmem:[%s3 + $0x2c] sm:$0xf]
  %v319 = vld [vmem:[%s3 + $0x30] sm:$0xf]
  %v320 = vld [vmem:[%s3 + $0x34] sm:$0xf]
  %v321 = vld [vmem:[%s3 + $0x38] sm:$0xf]
  %v322 = vld [vmem:[%s3 + $0x3c] sm:$0xf]
  %v323 = vunpack.c.l.bf16 %v307
  %v324 = vunpack.c.l.bf16 %v308
  %v325 = vunpack.c.l.bf16 %v309
  %v326 = vunpack.c.l.bf16 %v310
  %v327 = vunpack.c.l.bf16 %v311
  %v328 = vunpack.c.l.bf16 %v312
  %v329 = vunpack.c.l.bf16 %v313
  %v330 = vunpack.c.l.bf16 %v314
  %v331 = vunpack.c.l.bf16 %v315
  %v332 = vunpack.c.l.bf16 %v316
  %v333 = vunpack.c.l.bf16 %v317
  %v334 = vunpack.c.l.bf16 %v318
  %v335 = vunpack.c.l.bf16 %v319
  %v336 = vunpack.c.l.bf16 %v320
  %v337 = vunpack.c.l.bf16 %v321
  %v338 = vunpack.c.l.bf16 %v322
  %v339 = vadd.f32 %v245, %v323
  %v340 = vadd.f32 %v248, %v324
  %v341 = vadd.f32 %v253, %v325
  %v342 = vadd.f32 %v256, %v326
  %v343 = vadd.f32 %v261, %v327
  %v344 = vadd.f32 %v264, %v328
  %v345 = vadd.f32 %v269, %v329
  %v346 = vadd.f32 %v272, %v330
  %v347 = vadd.f32 %v277, %v331
  %v348 = vadd.f32 %v280, %v332
  %v349 = vadd.f32 %v285, %v333
  %v350 = vadd.f32 %v288, %v334
  %v351 = vadd.f32 %v293, %v335
  %v352 = vadd.f32 %v296, %v336
  %v353 = vadd.f32 %v301, %v337
  %v354 = vadd.f32 %v304, %v338
  %v355 = vpack.c.bf16 %v340, %v339
  %v356 = vpack.c.bf16 %v342, %v341
  %v357 = vpack.c.bf16 %v344, %v343
  %v358 = vpack.c.bf16 %v346, %v345
  %v359 = vpack.c.bf16 %v348, %v347
  %v360 = vpack.c.bf16 %v350, %v349
  %v361 = vpack.c.bf16 %v352, %v351
  %v362 = vpack.c.bf16 %v354, %v353
  %v371 = vunpack.c.l.b16 %v355
  %v372 = vunpack.c.h.b16 %v355
  %v373 = vunpack.c.l.b16 %v356
  %v374 = vunpack.c.h.b16 %v356
  %v375 = vunpack.c.l.b16 %v357
  %v376 = vunpack.c.h.b16 %v357
  %v377 = vunpack.c.l.b16 %v358
  %v378 = vunpack.c.h.b16 %v358
  %v379 = vunpack.c.l.b16 %v359
  %v380 = vunpack.c.h.b16 %v359
  %v381 = vunpack.c.l.b16 %v360
  %v382 = vunpack.c.h.b16 %v360
  %v383 = vunpack.c.l.b16 %v361
  %v384 = vunpack.c.h.b16 %v361
  %v385 = vunpack.c.l.b16 %v362
  %v386 = vunpack.c.h.b16 %v362
  %v387 = vpack.c.b16 %v371, %v371
  %v388 = vpack.c.b16 %v372, %v372
  %v389 = vpack.c.b16 %v373, %v373
  %v390 = vpack.c.b16 %v374, %v374
  %v391 = vpack.c.b16 %v375, %v375
  %v392 = vpack.c.b16 %v376, %v376
  %v393 = vpack.c.b16 %v377, %v377
  %v394 = vpack.c.b16 %v378, %v378
  %v395 = vpack.c.b16 %v379, %v379
  %v396 = vpack.c.b16 %v380, %v380
  %v397 = vpack.c.b16 %v381, %v381
  %v398 = vpack.c.b16 %v382, %v382
  %v399 = vpack.c.b16 %v383, %v383
  %v400 = vpack.c.b16 %v384, %v384
  %v401 = vpack.c.b16 %v385, %v385
  %v402 = vpack.c.b16 %v386, %v386
  %vm419 = vcmask 125952
  %420 = vst.msk [vmem:[%s4] sm:$0xf] %vm419, %v387
  %421 = vst.msk [vmem:[%s4 + $0x4] sm:$0xf] %vm419, %v388
  %422 = vst.msk [vmem:[%s4 + $0x8] sm:$0xf] %vm419, %v389
  %423 = vst.msk [vmem:[%s4 + $0xc] sm:$0xf] %vm419, %v390
  %424 = vst.msk [vmem:[%s4 + $0x10] sm:$0xf] %vm419, %v391
  %425 = vst.msk [vmem:[%s4 + $0x14] sm:$0xf] %vm419, %v392
  %426 = vst.msk [vmem:[%s4 + $0x18] sm:$0xf] %vm419, %v393
  %427 = vst.msk [vmem:[%s4 + $0x1c] sm:$0xf] %vm419, %v394
  %428 = vst.msk [vmem:[%s4 + $0x20] sm:$0xf] %vm419, %v395
  %429 = vst.msk [vmem:[%s4 + $0x24] sm:$0xf] %vm419, %v396
  %430 = vst.msk [vmem:[%s4 + $0x28] sm:$0xf] %vm419, %v397
  %431 = vst.msk [vmem:[%s4 + $0x2c] sm:$0xf] %vm419, %v398
  %432 = vst.msk [vmem:[%s4 + $0x30] sm:$0xf] %vm419, %v399
  %433 = vst.msk [vmem:[%s4 + $0x34] sm:$0xf] %vm419, %v400
  %434 = vst.msk [vmem:[%s4 + $0x38] sm:$0xf] %vm419, %v401
  %435 = vst.msk [vmem:[%s4 + $0x3c] sm:$0xf] %vm419, %v402
  // Predicated region
  $region18: #{_lambda_.47} parent=0 // pred_check
    _
  $region19: #{_lambda_.47} parent=0 // pred_check_branch
    %437 = sbr.rel (0) target = $region21
  $region20: #{_lambda_.47} parent=0 // pred_region
    _
  $region21: #{_lambda_.47} parent=0 // pred_fallthru
    _
  // Predicated region
  $region22: #{_lambda_.47} parent=0 // pred_check
    _
  $region23: #{_lambda_.47} parent=0 // pred_check_branch
    %439 = sbr.rel (0) target = $region25
  $region24: #{_lambda_.47} parent=0 // pred_region
    _
  $region25: #{_lambda_.47} parent=0 // pred_fallthru
    _

// kernel: _lambda_.52
$region0: #{_lambda_.52}
  #allocation0 [shape = 'u32[]', space=smem, size = 0x4, offset = 0x4, fixed_abs, tag = 'smem constant byte address 0x4 - core index']
  #allocation1 [shape = 'u32[144,128]{1,0:T(1,128)}', space=vmem, size = 0x12000, scoped, tag = 'internal scratch']
  %s0 = inlined_call_operand.vmem [shape: bf16[128,144], index: 0, kind: input, shape index: {}]
  %s1 = inlined_call_operand.vmem [shape: bf16[144,16], index: 1, kind: input, shape index: {}]
  %s2 = inlined_call_operand.vmem [shape: f32[1,16], index: 2, kind: input, shape index: {}]
  %s3 = inlined_call_operand.vmem [shape: bf16[128,16], index: 3, kind: output, shape index: {}]
  %s4 = sld [smem:[#allocation0]]
  $region22: #{_lambda_.52} parent=0
    _
  %s6 = ssub.s32 1, %s4
  %s7 = scalar_select 0, %s6, %s4
  // Predicated region
  $region2: #{_lambda_.52} parent=0 // pred_check
    _
  $region3: #{_lambda_.52} parent=0 // pred_check_branch
    %9 = sbr.rel (0) target = $region5
  $region4: #{_lambda_.52} parent=0 // pred_region
    _
  $region5: #{_lambda_.52} parent=0 // pred_fallthru
    _
  // Predicated region
  $region6: #{_lambda_.52} parent=0 // pred_check
    _
  $region7: #{_lambda_.52} parent=0 // pred_check_branch
    %11 = sbr.rel (0) target = $region9
  $region8: #{_lambda_.52} parent=0 // pred_region
    _
  $region9: #{_lambda_.52} parent=0 // pred_fallthru
    _
  // Predicated region
  $region10: #{_lambda_.52} parent=0 // pred_check
    _
  $region11: #{_lambda_.52} parent=0 // pred_check_branch
    %13 = sbr.rel (0) target = $region13
  $region12: #{_lambda_.52} parent=0 // pred_region
    _
  $region13: #{_lambda_.52} parent=0 // pred_fallthru
    _
  %v15 = vld [vmem:[%s0] sm:$0xff]
  %v16 = vld [vmem:[%s0 + $0x8] sm:$0xff]
  %v17 = vld [vmem:[%s0 + $0x10] sm:$0xff]
  %v18 = vld [vmem:[%s0 + $0x18] sm:$0xff]
  %v19 = vld [vmem:[%s0 + $0x20] sm:$0xff]
  %v20 = vld [vmem:[%s0 + $0x28] sm:$0xff]
  %v21 = vld [vmem:[%s0 + $0x30] sm:$0xff]
  %v22 = vld [vmem:[%s0 + $0x38] sm:$0xff]
  %v23 = vld [vmem:[%s0 + $0x40] sm:$0xff]
  %v24 = vld [vmem:[%s0 + $0x48] sm:$0xff]
  %v25 = vld [vmem:[%s0 + $0x50] sm:$0xff]
  %v26 = vld [vmem:[%s0 + $0x58] sm:$0xff]
  %v27 = vld [vmem:[%s0 + $0x60] sm:$0xff]
  %v28 = vld [vmem:[%s0 + $0x68] sm:$0xff]
  %v29 = vld [vmem:[%s0 + $0x70] sm:$0xff]
  %v30 = vld [vmem:[%s0 + $0x78] sm:$0xff]
  %v31 = vld [vmem:[%s1] sm:$0xf]
  %v32 = vld [vmem:[%s1 + $0x4] sm:$0xf]
  %v33 = vld [vmem:[%s1 + $0x8] sm:$0xf]
  %v34 = vld [vmem:[%s1 + $0xc] sm:$0xf]
  %v35 = vld [vmem:[%s1 + $0x10] sm:$0xf]
  %v36 = vld [vmem:[%s1 + $0x14] sm:$0xf]
  %v37 = vld [vmem:[%s1 + $0x18] sm:$0xf]
  %v38 = vld [vmem:[%s1 + $0x1c] sm:$0xf]
  %v39 = vld [vmem:[%s1 + $0x20] sm:$0xf]
  %v40 = vld [vmem:[%s1 + $0x24] sm:$0xf]
  %v41 = vld [vmem:[%s1 + $0x28] sm:$0xf]
  %v42 = vld [vmem:[%s1 + $0x2c] sm:$0xf]
  %v43 = vld [vmem:[%s1 + $0x30] sm:$0xf]
  %v44 = vld [vmem:[%s1 + $0x34] sm:$0xf]
  %v45 = vld [vmem:[%s1 + $0x38] sm:$0xf]
  %v46 = vld [vmem:[%s1 + $0x3c] sm:$0xf]
  %v47 = vld [vmem:[%s1 + $0x40] sm:$0xf]
  %v48 = vld [vmem:[%s1 + $0x44] sm:$0xf]
  %v49 = vld [vmem:[%s2] sm:$0x1]
  %v51 = vlaneseq
  %v52 = vshrl.u32 %v51, 7
  %v53 = vsub.s32 0, %v52
  %v54 = vrot.slane %v49, %v53
  %v72 = vunpack.c.l.b16 %v15
  %v73 = vunpack.c.h.b16 %v15
  %v74 = vunpack.c.l.b16 %v16
  %v75 = vunpack.c.h.b16 %v16
  %v76 = vunpack.c.l.b16 %v17
  %v77 = vunpack.c.h.b16 %v17
  %v78 = vunpack.c.l.b16 %v18
  %v79 = vunpack.c.h.b16 %v18
  %v80 = vunpack.c.l.b16 %v19
  %v81 = vunpack.c.h.b16 %v19
  %v82 = vunpack.c.l.b16 %v20
  %v83 = vunpack.c.h.b16 %v20
  %v84 = vunpack.c.l.b16 %v21
  %v85 = vunpack.c.h.b16 %v21
  %v86 = vunpack.c.l.b16 %v22
  %v87 = vunpack.c.h.b16 %v22
  %v88 = vunpack.c.l.b16 %v23
  %v89 = vunpack.c.h.b16 %v23
  %v90 = vunpack.c.l.b16 %v24
  %v91 = vunpack.c.h.b16 %v24
  %v92 = vunpack.c.l.b16 %v25
  %v93 = vunpack.c.h.b16 %v25
  %v94 = vunpack.c.l.b16 %v26
  %v95 = vunpack.c.h.b16 %v26
  %v96 = vunpack.c.l.b16 %v27
  %v97 = vunpack.c.h.b16 %v27
  %v98 = vunpack.c.l.b16 %v28
  %v99 = vunpack.c.h.b16 %v28
  %v100 = vunpack.c.l.b16 %v29
  %v101 = vunpack.c.h.b16 %v29
  %v102 = vunpack.c.l.b16 %v30
  %v103 = vunpack.c.h.b16 %v30
  %v104 = vpack.c.b16 %v74, %v72
  %v105 = vpack.c.b16 %v75, %v73
  %v106 = vpack.c.b16 %v78, %v76
  %v107 = vpack.c.b16 %v79, %v77
  %v108 = vpack.c.b16 %v82, %v80
  %v109 = vpack.c.b16 %v83, %v81
  %v110 = vpack.c.b16 %v86, %v84
  %v111 = vpack.c.b16 %v87, %v85
  %v112 = vpack.c.b16 %v90, %v88
  %v113 = vpack.c.b16 %v91, %v89
  %v114 = vpack.c.b16 %v94, %v92
  %v115 = vpack.c.b16 %v95, %v93
  %v116 = vpack.c.b16 %v98, %v96
  %v117 = vpack.c.b16 %v99, %v97
  %v118 = vpack.c.b16 %v102, %v100
  %v119 = vpack.c.b16 %v103, %v101
  %v146 = vunpack.c.l.b16 %v31
  %v147 = vunpack.c.l.b16 %v32
  %v148 = vunpack.c.l.b16 %v33
  %v149 = vunpack.c.l.b16 %v34
  %v150 = vunpack.c.l.b16 %v35
  %v151 = vunpack.c.l.b16 %v36
  %v152 = vunpack.c.l.b16 %v37
  %v153 = vunpack.c.l.b16 %v38
  %v154 = vunpack.c.l.b16 %v39
  %v155 = vunpack.c.l.b16 %v40
  %v156 = vunpack.c.l.b16 %v41
  %v157 = vunpack.c.l.b16 %v42
  %v158 = vunpack.c.l.b16 %v43
  %v159 = vunpack.c.l.b16 %v44
  %v160 = vunpack.c.l.b16 %v45
  %v161 = vunpack.c.l.b16 %v46
  %v162 = vunpack.c.l.b16 %v47
  %v163 = vunpack.c.l.b16 %v48
  %v164 = vpack.c.b16 %v147, %v146
  %v165 = vpack.c.b16 %v149, %v148
  %v166 = vpack.c.b16 %v151, %v150
  %v167 = vpack.c.b16 %v153, %v152
  %v168 = vpack.c.b16 %v155, %v154
  %v169 = vpack.c.b16 %v157, %v156
  %v170 = vpack.c.b16 %v159, %v158
  %v171 = vpack.c.b16 %v161, %v160
  %v172 = vpack.c.b16 %v163, %v162
  %vm182 = vcmask 130048
  %v184 = vsel %vm182, %v105, 0
  %v187 = vsel %vm182, %v107, 0
  %v190 = vsel %vm182, %v109, 0
  %v193 = vsel %vm182, %v111, 0
  %v196 = vsel %vm182, %v113, 0
  %v199 = vsel %vm182, %v115, 0
  %v202 = vsel %vm182, %v117, 0
  %v205 = vsel %vm182, %v119, 0
  %207 = vmatprep.subr.bf16.mxu0 0
  %208 = vmatpush1.bf16.msra.mxu0 %v171
  %209 = vmatprep.subr.bf16.mxu0 0
  %210 = vmatpush1.bf16.msra.mxu0 %v170
  %211 = vmatprep.subr.bf16.mxu0 0
  %212 = vmatpush1.bf16.msra.mxu0 %v169
  %213 = vmatprep.subr.bf16.mxu0 0
  %214 = vmatpush1.bf16.msra.mxu0 %v168
  %215 = vmatprep.subr.bf16.mxu0 0
  %216 = vmatpush1.bf16.msra.mxu0 %v167
  %217 = vmatprep.subr.bf16.mxu0 0
  %218 = vmatpush1.bf16.msra.mxu0 %v166
  %219 = vmatprep.subr.bf16.mxu0 0
  %220 = vmatpush1.bf16.msra.mxu0 %v165
  %221 = vmatprep.subr.bf16.mxu0 0
  %222 = vmatpush1.bf16.msra.mxu0 %v164
  %223 = vmatprep.subr.bf16.mxu0 0
  %224 = vmatpush2.bf16.msra.mxu0 0
  %225 = vmatprep.subr.bf16.mxu0 0
  %226 = vmatpush2.bf16.msra.mxu0 0
  %227 = vmatprep.subr.bf16.mxu0 0
  %228 = vmatpush2.bf16.msra.mxu0 0
  %229 = vmatprep.subr.bf16.mxu0 0
  %230 = vmatpush2.bf16.msra.mxu0 0
  %231 = vmatprep.subr.bf16.mxu0 0
  %232 = vmatpush2.bf16.msra.mxu0 0
  %233 = vmatprep.subr.bf16.mxu0 0
  %234 = vmatpush2.bf16.msra.mxu0 0
  %235 = vmatprep.subr.bf16.mxu0 0
  %236 = vmatpush2.bf16.msra.mxu0 0
  %237 = vmatprep.subr.bf16.mxu0 0
  %238 = vmatpush2.bf16.msra.mxu0 %v172
  %239 = vmatprep.mubr.bf16.mxu0 %v184
  %240 = vmatmul.mubr.bf16.gmra.mxu0 %v104
  %v241 = vpop.f32.mrf.mxu0
  %v242 = vadd.f32 %v54, %v241
  %v243 = vpop.f32.mrf.mxu0
  %v244 = vpop.f32.mrf.mxu0
  %v245 = vadd.f32 %v54, %v244
  %v246 = vpop.f32.mrf.mxu0
  %247 = vmatprep.mubr.bf16.mxu0 %v187
  %248 = vmatmul.mubr.bf16.gmra.mxu0 %v106
  %v249 = vpop.f32.mrf.mxu0
  %v250 = vadd.f32 %v54, %v249
  %v251 = vpop.f32.mrf.mxu0
  %v252 = vpop.f32.mrf.mxu0
  %v253 = vadd.f32 %v54, %v252
  %v254 = vpop.f32.mrf.mxu0
  %255 = vmatprep.mubr.bf16.mxu0 %v190
  %256 = vmatmul.mubr.bf16.gmra.mxu0 %v108
  %v257 = vpop.f32.mrf.mxu0
  %v258 = vadd.f32 %v54, %v257
  %v259 = vpop.f32.mrf.mxu0
  %v260 = vpop.f32.mrf.mxu0
  %v261 = vadd.f32 %v54, %v260
  %v262 = vpop.f32.mrf.mxu0
  %263 = vmatprep.mubr.bf16.mxu0 %v193
  %264 = vmatmul.mubr.bf16.gmra.mxu0 %v110
  %v265 = vpop.f32.mrf.mxu0
  %v266 = vadd.f32 %v54, %v265
  %v267 = vpop.f32.mrf.mxu0
  %v268 = vpop.f32.mrf.mxu0
  %v269 = vadd.f32 %v54, %v268
  %v270 = vpop.f32.mrf.mxu0
  %271 = vmatprep.mubr.bf16.mxu0 %v196
  %272 = vmatmul.mubr.bf16.gmra.mxu0 %v112
  %v273 = vpop.f32.mrf.mxu0
  %v274 = vadd.f32 %v54, %v273
  %v275 = vpop.f32.mrf.mxu0
  %v276 = vpop.f32.mrf.mxu0
  %v277 = vadd.f32 %v54, %v276
  %v278 = vpop.f32.mrf.mxu0
  %279 = vmatprep.mubr.bf16.mxu0 %v199
  %280 = vmatmul.mubr.bf16.gmra.mxu0 %v114
  %v281 = vpop.f32.mrf.mxu0
  %v282 = vadd.f32 %v54, %v281
  %v283 = vpop.f32.mrf.mxu0
  %v284 = vpop.f32.mrf.mxu0
  %v285 = vadd.f32 %v54, %v284
  %v286 = vpop.f32.mrf.mxu0
  %287 = vmatprep.mubr.bf16.mxu0 %v202
  %288 = vmatmul.mubr.bf16.gmra.mxu0 %v116
  %v289 = vpop.f32.mrf.mxu0
  %v290 = vadd.f32 %v54, %v289
  %v291 = vpop.f32.mrf.mxu0
  %v292 = vpop.f32.mrf.mxu0
  %v293 = vadd.f32 %v54, %v292
  %v294 = vpop.f32.mrf.mxu0
  %295 = vmatprep.mubr.bf16.mxu0 %v205
  %296 = vmatmul.mubr.bf16.gmra.mxu0 %v118
  %v297 = vpop.f32.mrf.mxu0
  %v298 = vadd.f32 %v54, %v297
  %v299 = vpop.f32.mrf.mxu0
  %v300 = vpop.f32.mrf.mxu0
  %v301 = vadd.f32 %v54, %v300
  %v302 = vpop.f32.mrf.mxu0
  %303 = vdwg.mxu0
  %v304 = vpack.c.bf16 %v245, %v242
  %v305 = vpack.c.bf16 %v253, %v250
  %v306 = vpack.c.bf16 %v261, %v258
  %v307 = vpack.c.bf16 %v269, %v266
  %v308 = vpack.c.bf16 %v277, %v274
  %v309 = vpack.c.bf16 %v285, %v282
  %v310 = vpack.c.bf16 %v293, %v290
  %v311 = vpack.c.bf16 %v301, %v298
  %v320 = vunpack.c.l.b16 %v304
  %v321 = vunpack.c.h.b16 %v304
  %v322 = vunpack.c.l.b16 %v305
  %v323 = vunpack.c.h.b16 %v305
  %v324 = vunpack.c.l.b16 %v306
  %v325 = vunpack.c.h.b16 %v306
  %v326 = vunpack.c.l.b16 %v307
  %v327 = vunpack.c.h.b16 %v307
  %v328 = vunpack.c.l.b16 %v308
  %v329 = vunpack.c.h.b16 %v308
  %v330 = vunpack.c.l.b16 %v309
  %v331 = vunpack.c.h.b16 %v309
  %v332 = vunpack.c.l.b16 %v310
  %v333 = vunpack.c.h.b16 %v310
  %v334 = vunpack.c.l.b16 %v311
  %v335 = vunpack.c.h.b16 %v311
  %v336 = vpack.c.b16 %v320, %v320
  %v337 = vpack.c.b16 %v321, %v321
  %v338 = vpack.c.b16 %v322, %v322
  %v339 = vpack.c.b16 %v323, %v323
  %v340 = vpack.c.b16 %v324, %v324
  %v341 = vpack.c.b16 %v325, %v325
  %v342 = vpack.c.b16 %v326, %v326
  %v343 = vpack.c.b16 %v327, %v327
  %v344 = vpack.c.b16 %v328, %v328
  %v345 = vpack.c.b16 %v329, %v329
  %v346 = vpack.c.b16 %v330, %v330
  %v347 = vpack.c.b16 %v331, %v331
  %v348 = vpack.c.b16 %v332, %v332
  %v349 = vpack.c.b16 %v333, %v333
  %v350 = vpack.c.b16 %v334, %v334
  %v351 = vpack.c.b16 %v335, %v335
  %vm368 = vcmask 125952
  %369 = vst.msk [vmem:[%s3] sm:$0xf] %vm368, %v336
  %370 = vst.msk [vmem:[%s3 + $0x4] sm:$0xf] %vm368, %v337
  %371 = vst.msk [vmem:[%s3 + $0x8] sm:$0xf] %vm368, %v338
  %372 = vst.msk [vmem:[%s3 + $0xc] sm:$0xf] %vm368, %v339
  %373 = vst.msk [vmem:[%s3 + $0x10] sm:$0xf] %vm368, %v340
  %374 = vst.msk [vmem:[%s3 + $0x14] sm:$0xf] %vm368, %v341
  %375 = vst.msk [vmem:[%s3 + $0x18] sm:$0xf] %vm368, %v342
  %376 = vst.msk [vmem:[%s3 + $0x1c] sm:$0xf] %vm368, %v343
  %377 = vst.msk [vmem:[%s3 + $0x20] sm:$0xf] %vm368, %v344
  %378 = vst.msk [vmem:[%s3 + $0x24] sm:$0xf] %vm368, %v345
  %379 = vst.msk [vmem:[%s3 + $0x28] sm:$0xf] %vm368, %v346
  %380 = vst.msk [vmem:[%s3 + $0x2c] sm:$0xf] %vm368, %v347
  %381 = vst.msk [vmem:[%s3 + $0x30] sm:$0xf] %vm368, %v348
  %382 = vst.msk [vmem:[%s3 + $0x34] sm:$0xf] %vm368, %v349
  %383 = vst.msk [vmem:[%s3 + $0x38] sm:$0xf] %vm368, %v350
  %384 = vst.msk [vmem:[%s3 + $0x3c] sm:$0xf] %vm368, %v351
  // Predicated region
  $region14: #{_lambda_.52} parent=0 // pred_check
    _
  $region15: #{_lambda_.52} parent=0 // pred_check_branch
    %386 = sbr.rel (0) target = $region17
  $region16: #{_lambda_.52} parent=0 // pred_region
    _
  $region17: #{_lambda_.52} parent=0 // pred_fallthru
    _
  // Predicated region
  $region18: #{_lambda_.52} parent=0 // pred_check
    _
  $region19: #{_lambda_.52} parent=0 // pred_check_branch
    %388 = sbr.rel (0) target = $region21
  $region20: #{_lambda_.52} parent=0 // pred_region
    _
  $region21: #{_lambda_.52} parent=0 // pred_fallthru
    _

// kernel: _lambda_.53
$region0: #{_lambda_.53}
  #allocation0 [shape = 'u32[]', space=smem, size = 0x4, offset = 0x4, fixed_abs, tag = 'smem constant byte address 0x4 - core index']
  #allocation1 [shape = 'u32[144,128]{1,0:T(1,128)}', space=vmem, size = 0x12000, scoped, tag = 'internal scratch']
  %s0 = inlined_call_operand.vmem [shape: bf16[128,72], index: 0, kind: input, shape index: {}]
  %s1 = inlined_call_operand.vmem [shape: bf16[72,8], index: 1, kind: input, shape index: {}]
  %s2 = inlined_call_operand.vmem [shape: f32[1,8], index: 2, kind: input, shape index: {}]
  %s3 = inlined_call_operand.vmem [shape: bf16[128,8], index: 3, kind: input, shape index: {}]
  %s4 = inlined_call_operand.vmem [shape: bf16[128,8], index: 4, kind: output, shape index: {}]
  %s5 = sld [smem:[#allocation0]]
  $region26: #{_lambda_.53} parent=0
    _
  %s7 = ssub.s32 1, %s5
  %s8 = scalar_select 0, %s7, %s5
  // Predicated region
  $region2: #{_lambda_.53} parent=0 // pred_check
    _
  $region3: #{_lambda_.53} parent=0 // pred_check_branch
    %10 = sbr.rel (0) target = $region5
  $region4: #{_lambda_.53} parent=0 // pred_region
    _
  $region5: #{_lambda_.53} parent=0 // pred_fallthru
    _
  // Predicated region
  $region6: #{_lambda_.53} parent=0 // pred_check
    _
  $region7: #{_lambda_.53} parent=0 // pred_check_branch
    %12 = sbr.rel (0) target = $region9
  $region8: #{_lambda_.53} parent=0 // pred_region
    _
  $region9: #{_lambda_.53} parent=0 // pred_fallthru
    _
  // Predicated region
  $region10: #{_lambda_.53} parent=0 // pred_check
    _
  $region11: #{_lambda_.53} parent=0 // pred_check_branch
    %14 = sbr.rel (0) target = $region13
  $region12: #{_lambda_.53} parent=0 // pred_region
    _
  $region13: #{_lambda_.53} parent=0 // pred_fallthru
    _
  // Predicated region
  $region14: #{_lambda_.53} parent=0 // pred_check
    _
  $region15: #{_lambda_.53} parent=0 // pred_check_branch
    %16 = sbr.rel (0) target = $region17
  $region16: #{_lambda_.53} parent=0 // pred_region
    _
  $region17: #{_lambda_.53} parent=0 // pred_fallthru
    _
  %v18 = vld [vmem:[%s0] sm:$0xf]
  %v19 = vld [vmem:[%s0 + $0x4] sm:$0xf]
  %v20 = vld [vmem:[%s0 + $0x8] sm:$0xf]
  %v21 = vld [vmem:[%s0 + $0xc] sm:$0xf]
  %v22 = vld [vmem:[%s0 + $0x10] sm:$0xf]
  %v23 = vld [vmem:[%s0 + $0x14] sm:$0xf]
  %v24 = vld [vmem:[%s0 + $0x18] sm:$0xf]
  %v25 = vld [vmem:[%s0 + $0x1c] sm:$0xf]
  %v26 = vld [vmem:[%s0 + $0x20] sm:$0xf]
  %v27 = vld [vmem:[%s0 + $0x24] sm:$0xf]
  %v28 = vld [vmem:[%s0 + $0x28] sm:$0xf]
  %v29 = vld [vmem:[%s0 + $0x2c] sm:$0xf]
  %v30 = vld [vmem:[%s0 + $0x30] sm:$0xf]
  %v31 = vld [vmem:[%s0 + $0x34] sm:$0xf]
  %v32 = vld [vmem:[%s0 + $0x38] sm:$0xf]
  %v33 = vld [vmem:[%s0 + $0x3c] sm:$0xf]
  %v34 = vld [vmem:[%s1] sm:$0xf]
  %v35 = vld [vmem:[%s1 + $0x4] sm:$0xf]
  %v36 = vld [vmem:[%s1 + $0x8] sm:$0xf]
  %v37 = vld [vmem:[%s1 + $0xc] sm:$0xf]
  %v38 = vld [vmem:[%s1 + $0x10] sm:$0xf]
  %v39 = vld [vmem:[%s1 + $0x14] sm:$0xf]
  %v40 = vld [vmem:[%s1 + $0x18] sm:$0xf]
  %v41 = vld [vmem:[%s1 + $0x1c] sm:$0xf]
  %v42 = vld [vmem:[%s1 + $0x20] sm:$0xf]
  %v43 = vld [vmem:[%s2] sm:$0x1]
  %v45 = vlaneseq
  %v46 = vshrl.u32 %v45, 7
  %v47 = vsub.s32 0, %v46
  %v48 = vrot.slane %v43, %v47
  %v66 = vunpack.c.l.b16 %v18
  %v67 = vunpack.c.l.b16 %v19
  %v68 = vunpack.c.l.b16 %v20
  %v69 = vunpack.c.l.b16 %v21
  %v70 = vunpack.c.l.b16 %v22
  %v71 = vunpack.c.l.b16 %v23
  %v72 = vunpack.c.l.b16 %v24
  %v73 = vunpack.c.l.b16 %v25
  %v74 = vunpack.c.l.b16 %v26
  %v75 = vunpack.c.l.b16 %v27
  %v76 = vunpack.c.l.b16 %v28
  %v77 = vunpack.c.l.b16 %v29
  %v78 = vunpack.c.l.b16 %v30
  %v79 = vunpack.c.l.b16 %v31
  %v80 = vunpack.c.l.b16 %v32
  %v81 = vunpack.c.l.b16 %v33
  %v82 = vpack.c.b16 %v67, %v66
  %v83 = vpack.c.b16 %v69, %v68
  %v84 = vpack.c.b16 %v71, %v70
  %v85 = vpack.c.b16 %v73, %v72
  %v86 = vpack.c.b16 %v75, %v74
  %v87 = vpack.c.b16 %v77, %v76
  %v88 = vpack.c.b16 %v79, %v78
  %v89 = vpack.c.b16 %v81, %v80
  %v99 = vunpack.c.l.b16 %v34
  %v100 = vunpack.c.l.b16 %v35
  %v101 = vunpack.c.l.b16 %v36
  %v102 = vunpack.c.l.b16 %v37
  %v103 = vunpack.c.l.b16 %v38
  %v104 = vunpack.c.l.b16 %v39
  %v105 = vunpack.c.l.b16 %v40
  %v106 = vunpack.c.l.b16 %v41
  %v107 = vunpack.c.l.b16 %v42
  %v108 = vpack.c.b16 %v100, %v99
  %v109 = vpack.c.b16 %v102, %v101
  %v110 = vpack.c.b16 %v104, %v103
  %v111 = vpack.c.b16 %v106, %v105
  %v112 = vpack.c.b16 %v107, %v107
  %vm117 = vcmask 588800
  %v119 = vsel %vm117, %v82, 0
  %v122 = vsel %vm117, %v83, 0
  %v125 = vsel %vm117, %v84, 0
  %v128 = vsel %vm117, %v85, 0
  %v131 = vsel %vm117, %v86, 0
  %v134 = vsel %vm117, %v87, 0
  %v137 = vsel %vm117, %v88, 0
  %v140 = vsel %vm117, %v89, 0
  %vm142 = vcmask 1043456
  %v144 = vsel %vm142, %v112, 0
  %146 = vmatprep.subr.bf16.mxu0 0
  %147 = vmatpush1.bf16.msra.mxu0 0
  %148 = vmatprep.subr.bf16.mxu0 0
  %149 = vmatpush1.bf16.msra.mxu0 0
  %150 = vmatprep.subr.bf16.mxu0 0
  %151 = vmatpush1.bf16.msra.mxu0 0
  %152 = vmatprep.subr.bf16.mxu0 0
  %153 = vmatpush1.bf16.msra.mxu0 %v144
  %154 = vmatprep.subr.bf16.mxu0 0
  %155 = vmatpush1.bf16.msra.mxu0 %v111
  %156 = vmatprep.subr.bf16.mxu0 0
  %157 = vmatpush1.bf16.msra.mxu0 %v110
  %158 = vmatprep.subr.bf16.mxu0 0
  %159 = vmatpush1.bf16.msra.mxu0 %v109
  %160 = vmatprep.subr.bf16.mxu0 0
  %161 = vmatpush1.bf16.msra.mxu0 %v108
  %162 = vmatprep.subr.bf16.mxu0 0
  %163 = vmatpush2.bf16.msra.mxu0 0
  %164 = vmatprep.subr.bf16.mxu0 0
  %165 = vmatpush2.bf16.msra.mxu0 0
  %166 = vmatprep.subr.bf16.mxu0 0
  %167 = vmatpush2.bf16.msra.mxu0 0
  %168 = vmatprep.subr.bf16.mxu0 0
  %169 = vmatpush2.bf16.msra.mxu0 0
  %170 = vmatprep.subr.bf16.mxu0 0
  %171 = vmatpush2.bf16.msra.mxu0 0
  %172 = vmatprep.subr.bf16.mxu0 0
  %173 = vmatpush2.bf16.msra.mxu0 0
  %174 = vmatprep.subr.bf16.mxu0 0
  %175 = vmatpush2.bf16.msra.mxu0 0
  %176 = vmatprep.subr.bf16.mxu0 0
  %177 = vmatpush2.bf16.msra.mxu0 0
  %178 = vmatprep.mubr.bf16.mxu0 0
  %179 = vmatmul.mubr.bf16.gmra.mxu0 %v119
  %v180 = vpop.f32.mrf.mxu0
  %v181 = vadd.f32 %v48, %v180
  %v182 = vpop.f32.mrf.mxu0
  %v183 = vpop.f32.mrf.mxu0
  %v184 = vadd.f32 %v48, %v183
  %v185 = vpop.f32.mrf.mxu0
  %186 = vmatprep.mubr.bf16.mxu0 0
  %187 = vmatmul.mubr.bf16.gmra.mxu0 %v122
  %v188 = vpop.f32.mrf.mxu0
  %v189 = vadd.f32 %v48, %v188
  %v190 = vpop.f32.mrf.mxu0
  %v191 = vpop.f32.mrf.mxu0
  %v192 = vadd.f32 %v48, %v191
  %v193 = vpop.f32.mrf.mxu0
  %194 = vmatprep.mubr.bf16.mxu0 0
  %195 = vmatmul.mubr.bf16.gmra.mxu0 %v125
  %v196 = vpop.f32.mrf.mxu0
  %v197 = vadd.f32 %v48, %v196
  %v198 = vpop.f32.mrf.mxu0
  %v199 = vpop.f32.mrf.mxu0
  %v200 = vadd.f32 %v48, %v199
  %v201 = vpop.f32.mrf.mxu0
  %202 = vmatprep.mubr.bf16.mxu0 0
  %203 = vmatmul.mubr.bf16.gmra.mxu0 %v128
  %v204 = vpop.f32.mrf.mxu0
  %v205 = vadd.f32 %v48, %v204
  %v206 = vpop.f32.mrf.mxu0
  %v207 = vpop.f32.mrf.mxu0
  %v208 = vadd.f32 %v48, %v207
  %v209 = vpop.f32.mrf.mxu0
  %210 = vmatprep.mubr.bf16.mxu0 0
  %211 = vmatmul.mubr.bf16.gmra.mxu0 %v131
  %v212 = vpop.f32.mrf.mxu0
  %v213 = vadd.f32 %v48, %v212
  %v214 = vpop.f32.mrf.mxu0
  %v215 = vpop.f32.mrf.mxu0
  %v216 = vadd.f32 %v48, %v215
  %v217 = vpop.f32.mrf.mxu0
  %218 = vmatprep.mubr.bf16.mxu0 0
  %219 = vmatmul.mubr.bf16.gmra.mxu0 %v134
  %v220 = vpop.f32.mrf.mxu0
  %v221 = vadd.f32 %v48, %v220
  %v222 = vpop.f32.mrf.mxu0
  %v223 = vpop.f32.mrf.mxu0
  %v224 = vadd.f32 %v48, %v223
  %v225 = vpop.f32.mrf.mxu0
  %226 = vmatprep.mubr.bf16.mxu0 0
  %227 = vmatmul.mubr.bf16.gmra.mxu0 %v137
  %v228 = vpop.f32.mrf.mxu0
  %v229 = vadd.f32 %v48, %v228
  %v230 = vpop.f32.mrf.mxu0
  %v231 = vpop.f32.mrf.mxu0
  %v232 = vadd.f32 %v48, %v231
  %v233 = vpop.f32.mrf.mxu0
  %234 = vmatprep.mubr.bf16.mxu0 0
  %235 = vmatmul.mubr.bf16.gmra.mxu0 %v140
  %v236 = vpop.f32.mrf.mxu0
  %v237 = vadd.f32 %v48, %v236
  %v238 = vpop.f32.mrf.mxu0
  %v239 = vpop.f32.mrf.mxu0
  %v240 = vadd.f32 %v48, %v239
  %v241 = vpop.f32.mrf.mxu0
  %242 = vdwg.mxu0
  %v243 = vld [vmem:[%s3] sm:$0xf]
  %v244 = vld [vmem:[%s3 + $0x4] sm:$0xf]
  %v245 = vld [vmem:[%s3 + $0x8] sm:$0xf]
  %v246 = vld [vmem:[%s3 + $0xc] sm:$0xf]
  %v247 = vld [vmem:[%s3 + $0x10] sm:$0xf]
  %v248 = vld [vmem:[%s3 + $0x14] sm:$0xf]
  %v249 = vld [vmem:[%s3 + $0x18] sm:$0xf]
  %v250 = vld [vmem:[%s3 + $0x1c] sm:$0xf]
  %v251 = vld [vmem:[%s3 + $0x20] sm:$0xf]
  %v252 = vld [vmem:[%s3 + $0x24] sm:$0xf]
  %v253 = vld [vmem:[%s3 + $0x28] sm:$0xf]
  %v254 = vld [vmem:[%s3 + $0x2c] sm:$0xf]
  %v255 = vld [vmem:[%s3 + $0x30] sm:$0xf]
  %v256 = vld [vmem:[%s3 + $0x34] sm:$0xf]
  %v257 = vld [vmem:[%s3 + $0x38] sm:$0xf]
  %v258 = vld [vmem:[%s3 + $0x3c] sm:$0xf]
  %v259 = vunpack.c.l.bf16 %v243
  %v260 = vunpack.c.l.bf16 %v244
  %v261 = vunpack.c.l.bf16 %v245
  %v262 = vunpack.c.l.bf16 %v246
  %v263 = vunpack.c.l.bf16 %v247
  %v264 = vunpack.c.l.bf16 %v248
  %v265 = vunpack.c.l.bf16 %v249
  %v266 = vunpack.c.l.bf16 %v250
  %v267 = vunpack.c.l.bf16 %v251
  %v268 = vunpack.c.l.bf16 %v252
  %v269 = vunpack.c.l.bf16 %v253
  %v270 = vunpack.c.l.bf16 %v254
  %v271 = vunpack.c.l.bf16 %v255
  %v272 = vunpack.c.l.bf16 %v256
  %v273 = vunpack.c.l.bf16 %v257
  %v274 = vunpack.c.l.bf16 %v258
  %v275 = vadd.f32 %v181, %v259
  %v276 = vadd.f32 %v184, %v260
  %v277 = vadd.f32 %v189, %v261
  %v278 = vadd.f32 %v192, %v262
  %v279 = vadd.f32 %v197, %v263
  %v280 = vadd.f32 %v200, %v264
  %v281 = vadd.f32 %v205, %v265
  %v282 = vadd.f32 %v208, %v266
  %v283 = vadd.f32 %v213, %v267
  %v284 = vadd.f32 %v216, %v268
  %v285 = vadd.f32 %v221, %v269
  %v286 = vadd.f32 %v224, %v270
  %v287 = vadd.f32 %v229, %v271
  %v288 = vadd.f32 %v232, %v272
  %v289 = vadd.f32 %v237, %v273
  %v290 = vadd.f32 %v240, %v274
  %v291 = vpack.c.bf16 %v276, %v275
  %v292 = vpack.c.bf16 %v278, %v277
  %v293 = vpack.c.bf16 %v280, %v279
  %v294 = vpack.c.bf16 %v282, %v281
  %v295 = vpack.c.bf16 %v284, %v283
  %v296 = vpack.c.bf16 %v286, %v285
  %v297 = vpack.c.bf16 %v288, %v287
  %v298 = vpack.c.bf16 %v290, %v289
  %v307 = vunpack.c.l.b16 %v291
  %v308 = vunpack.c.h.b16 %v291
  %v309 = vunpack.c.l.b16 %v292
  %v310 = vunpack.c.h.b16 %v292
  %v311 = vunpack.c.l.b16 %v293
  %v312 = vunpack.c.h.b16 %v293
  %v313 = vunpack.c.l.b16 %v294
  %v314 = vunpack.c.h.b16 %v294
  %v315 = vunpack.c.l.b16 %v295
  %v316 = vunpack.c.h.b16 %v295
  %v317 = vunpack.c.l.b16 %v296
  %v318 = vunpack.c.h.b16 %v296
  %v319 = vunpack.c.l.b16 %v297
  %v320 = vunpack.c.h.b16 %v297
  %v321 = vunpack.c.l.b16 %v298
  %v322 = vunpack.c.h.b16 %v298
  %v323 = vpack.c.b16 %v307, %v307
  %v324 = vpack.c.b16 %v308, %v308
  %v325 = vpack.c.b16 %v309, %v309
  %v326 = vpack.c.b16 %v310, %v310
  %v327 = vpack.c.b16 %v311, %v311
  %v328 = vpack.c.b16 %v312, %v312
  %v329 = vpack.c.b16 %v313, %v313
  %v330 = vpack.c.b16 %v314, %v314
  %v331 = vpack.c.b16 %v315, %v315
  %v332 = vpack.c.b16 %v316, %v316
  %v333 = vpack.c.b16 %v317, %v317
  %v334 = vpack.c.b16 %v318, %v318
  %v335 = vpack.c.b16 %v319, %v319
  %v336 = vpack.c.b16 %v320, %v320
  %v337 = vpack.c.b16 %v321, %v321
  %v338 = vpack.c.b16 %v322, %v322
  %vm355 = vcmask 60416
  %356 = vst.msk [vmem:[%s4] sm:$0xf] %vm355, %v323
  %357 = vst.msk [vmem:[%s4 + $0x4] sm:$0xf] %vm355, %v324
  %358 = vst.msk [vmem:[%s4 + $0x8] sm:$0xf] %vm355, %v325
  %359 = vst.msk [vmem:[%s4 + $0xc] sm:$0xf] %vm355, %v326
  %360 = vst.msk [vmem:[%s4 + $0x10] sm:$0xf] %vm355, %v327
  %361 = vst.msk [vmem:[%s4 + $0x14] sm:$0xf] %vm355, %v328
  %362 = vst.msk [vmem:[%s4 + $0x18] sm:$0xf] %vm355, %v329
  %363 = vst.msk [vmem:[%s4 + $0x1c] sm:$0xf] %vm355, %v330
  %364 = vst.msk [vmem:[%s4 + $0x20] sm:$0xf] %vm355, %v331
  %365 = vst.msk [vmem:[%s4 + $0x24] sm:$0xf] %vm355, %v332
  %366 = vst.msk [vmem:[%s4 + $0x28] sm:$0xf] %vm355, %v333
  %367 = vst.msk [vmem:[%s4 + $0x2c] sm:$0xf] %vm355, %v334
  %368 = vst.msk [vmem:[%s4 + $0x30] sm:$0xf] %vm355, %v335
  %369 = vst.msk [vmem:[%s4 + $0x34] sm:$0xf] %vm355, %v336
  %370 = vst.msk [vmem:[%s4 + $0x38] sm:$0xf] %vm355, %v337
  %371 = vst.msk [vmem:[%s4 + $0x3c] sm:$0xf] %vm355, %v338
  // Predicated region
  $region18: #{_lambda_.53} parent=0 // pred_check
    _
  $region19: #{_lambda_.53} parent=0 // pred_check_branch
    %373 = sbr.rel (0) target = $region21
  $region20: #{_lambda_.53} parent=0 // pred_region
    _
  $region21: #{_lambda_.53} parent=0 // pred_fallthru
    _
  // Predicated region
  $region22: #{_lambda_.53} parent=0 // pred_check
    _
  $region23: #{_lambda_.53} parent=0 // pred_check_branch
    %375 = sbr.rel (0) target = $region25
  $region24: #{_lambda_.53} parent=0 // pred_region
    _
  $region25: #{_lambda_.53} parent=0 // pred_fallthru
    _

// kernel: _lambda_.60
$region0: #{_lambda_.60}
  #allocation0 [shape = 'u32[]', space=smem, size = 0x4, offset = 0x4, fixed_abs, tag = 'smem constant byte address 0x4 - core index']
  #allocation1 [shape = 'u32[144,128]{1,0:T(1,128)}', space=vmem, size = 0x12000, scoped, tag = 'internal scratch']
  %s0 = inlined_call_operand.vmem [shape: bf16[128,8], index: 0, kind: input, shape index: {}]
  %s1 = inlined_call_operand.vmem [shape: bf16[8,24], index: 1, kind: input, shape index: {}]
  %s2 = inlined_call_operand.vmem [shape: f32[1,24], index: 2, kind: input, shape index: {}]
  %s3 = inlined_call_operand.vmem [shape: bf16[128,24], index: 3, kind: output, shape index: {}]
  %s4 = sld [smem:[#allocation0]]
  $region22: #{_lambda_.60} parent=0
    _
  %s6 = ssub.s32 1, %s4
  %s7 = scalar_select 0, %s6, %s4
  // Predicated region
  $region2: #{_lambda_.60} parent=0 // pred_check
    _
  $region3: #{_lambda_.60} parent=0 // pred_check_branch
    %9 = sbr.rel (0) target = $region5
  $region4: #{_lambda_.60} parent=0 // pred_region
    _
  $region5: #{_lambda_.60} parent=0 // pred_fallthru
    _
  // Predicated region
  $region6: #{_lambda_.60} parent=0 // pred_check
    _
  $region7: #{_lambda_.60} parent=0 // pred_check_branch
    %11 = sbr.rel (0) target = $region9
  $region8: #{_lambda_.60} parent=0 // pred_region
    _
  $region9: #{_lambda_.60} parent=0 // pred_fallthru
    _
  // Predicated region
  $region10: #{_lambda_.60} parent=0 // pred_check
    _
  $region11: #{_lambda_.60} parent=0 // pred_check_branch
    %13 = sbr.rel (0) target = $region13
  $region12: #{_lambda_.60} parent=0 // pred_region
    _
  $region13: #{_lambda_.60} parent=0 // pred_fallthru
    _
  %v15 = vld [vmem:[%s0] sm:$0xf]
  %v16 = vld [vmem:[%s0 + $0x4] sm:$0xf]
  %v17 = vld [vmem:[%s0 + $0x8] sm:$0xf]
  %v18 = vld [vmem:[%s0 + $0xc] sm:$0xf]
  %v19 = vld [vmem:[%s0 + $0x10] sm:$0xf]
  %v20 = vld [vmem:[%s0 + $0x14] sm:$0xf]
  %v21 = vld [vmem:[%s0 + $0x18] sm:$0xf]
  %v22 = vld [vmem:[%s0 + $0x1c] sm:$0xf]
  %v23 = vld [vmem:[%s0 + $0x20] sm:$0xf]
  %v24 = vld [vmem:[%s0 + $0x24] sm:$0xf]
  %v25 = vld [vmem:[%s0 + $0x28] sm:$0xf]
  %v26 = vld [vmem:[%s0 + $0x2c] sm:$0xf]
  %v27 = vld [vmem:[%s0 + $0x30] sm:$0xf]
  %v28 = vld [vmem:[%s0 + $0x34] sm:$0xf]
  %v29 = vld [vmem:[%s0 + $0x38] sm:$0xf]
  %v30 = vld [vmem:[%s0 + $0x3c] sm:$0xf]
  %v31 = vld [vmem:[%s1] sm:$0xf]
  %v32 = vld [vmem:[%s2] sm:$0x1]
  %v34 = vlaneseq
  %v35 = vshrl.u32 %v34, 7
  %v36 = vsub.s32 0, %v35
  %v37 = vrot.slane %v32, %v36
  %v55 = vunpack.c.l.b16 %v15
  %v56 = vunpack.c.l.b16 %v16
  %v57 = vunpack.c.l.b16 %v17
  %v58 = vunpack.c.l.b16 %v18
  %v59 = vunpack.c.l.b16 %v19
  %v60 = vunpack.c.l.b16 %v20
  %v61 = vunpack.c.l.b16 %v21
  %v62 = vunpack.c.l.b16 %v22
  %v63 = vunpack.c.l.b16 %v23
  %v64 = vunpack.c.l.b16 %v24
  %v65 = vunpack.c.l.b16 %v25
  %v66 = vunpack.c.l.b16 %v26
  %v67 = vunpack.c.l.b16 %v27
  %v68 = vunpack.c.l.b16 %v28
  %v69 = vunpack.c.l.b16 %v29
  %v70 = vunpack.c.l.b16 %v30
  %v71 = vpack.c.b16 %v56, %v55
  %v72 = vpack.c.b16 %v58, %v57
  %v73 = vpack.c.b16 %v60, %v59
  %v74 = vpack.c.b16 %v62, %v61
  %v75 = vpack.c.b16 %v64, %v63
  %v76 = vpack.c.b16 %v66, %v65
  %v77 = vpack.c.b16 %v68, %v67
  %v78 = vpack.c.b16 %v70, %v69
  %vm79 = vcmask 64512
  %v81 = vsel %vm79, %v71, 0
  %v84 = vsel %vm79, %v72, 0
  %v87 = vsel %vm79, %v73, 0
  %v90 = vsel %vm79, %v74, 0
  %v93 = vsel %vm79, %v75, 0
  %v96 = vsel %vm79, %v76, 0
  %v99 = vsel %vm79, %v77, 0
  %v102 = vsel %vm79, %v78, 0
  %vm104 = vcmask 1043456
  %v106 = vsel %vm104, %v31, 0
  %108 = vmatprep.subr.bf16.mxu0 0
  %109 = vmatpush1.bf16.msra.mxu0 0
  %110 = vmatprep.subr.bf16.mxu0 0
  %111 = vmatpush1.bf16.msra.mxu0 0
  %112 = vmatprep.subr.bf16.mxu0 0
  %113 = vmatpush1.bf16.msra.mxu0 0
  %114 = vmatprep.subr.bf16.mxu0 0
  %115 = vmatpush1.bf16.msra.mxu0 0
  %116 = vmatprep.subr.bf16.mxu0 0
  %117 = vmatpush1.bf16.msra.mxu0 0
  %118 = vmatprep.subr.bf16.mxu0 0
  %119 = vmatpush1.bf16.msra.mxu0 0
  %120 = vmatprep.subr.bf16.mxu0 0
  %121 = vmatpush1.bf16.msra.mxu0 0
  %122 = vmatprep.subr.bf16.mxu0 0
  %123 = vmatpush1.bf16.msra.mxu0 %v106
  %124 = vmatprep.subr.bf16.mxu0 0
  %125 = vmatpush2.bf16.msra.mxu0 0
  %126 = vmatprep.subr.bf16.mxu0 0
  %127 = vmatpush2.bf16.msra.mxu0 0
  %128 = vmatprep.subr.bf16.mxu0 0
  %129 = vmatpush2.bf16.msra.mxu0 0
  %130 = vmatprep.subr.bf16.mxu0 0
  %131 = vmatpush2.bf16.msra.mxu0 0
  %132 = vmatprep.subr.bf16.mxu0 0
  %133 = vmatpush2.bf16.msra.mxu0 0
  %134 = vmatprep.subr.bf16.mxu0 0
  %135 = vmatpush2.bf16.msra.mxu0 0
  %136 = vmatprep.subr.bf16.mxu0 0
  %137 = vmatpush2.bf16.msra.mxu0 0
  %138 = vmatprep.subr.bf16.mxu0 0
  %139 = vmatpush2.bf16.msra.mxu0 0
  %140 = vmatprep.mubr.bf16.mxu0 0
  %141 = vmatmul.mubr.bf16.gmra.mxu0 %v81
  %v142 = vpop.f32.mrf.mxu0
  %v143 = vadd.f32 %v37, %v142
  %v144 = vpop.f32.mrf.mxu0
  %v145 = vpop.f32.mrf.mxu0
  %v146 = vadd.f32 %v37, %v145
  %v147 = vpop.f32.mrf.mxu0
  %148 = vmatprep.mubr.bf16.mxu0 0
  %149 = vmatmul.mubr.bf16.gmra.mxu0 %v84
  %v150 = vpop.f32.mrf.mxu0
  %v151 = vadd.f32 %v37, %v150
  %v152 = vpop.f32.mrf.mxu0
  %v153 = vpop.f32.mrf.mxu0
  %v154 = vadd.f32 %v37, %v153
  %v155 = vpop.f32.mrf.mxu0
  %156 = vmatprep.mubr.bf16.mxu0 0
  %157 = vmatmul.mubr.bf16.gmra.mxu0 %v87
  %v158 = vpop.f32.mrf.mxu0
  %v159 = vadd.f32 %v37, %v158
  %v160 = vpop.f32.mrf.mxu0
  %v161 = vpop.f32.mrf.mxu0
  %v162 = vadd.f32 %v37, %v161
  %v163 = vpop.f32.mrf.mxu0
  %164 = vmatprep.mubr.bf16.mxu0 0
  %165 = vmatmul.mubr.bf16.gmra.mxu0 %v90
  %v166 = vpop.f32.mrf.mxu0
  %v167 = vadd.f32 %v37, %v166
  %v168 = vpop.f32.mrf.mxu0
  %v169 = vpop.f32.mrf.mxu0
  %v170 = vadd.f32 %v37, %v169
  %v171 = vpop.f32.mrf.mxu0
  %172 = vmatprep.mubr.bf16.mxu0 0
  %173 = vmatmul.mubr.bf16.gmra.mxu0 %v93
  %v174 = vpop.f32.mrf.mxu0
  %v175 = vadd.f32 %v37, %v174
  %v176 = vpop.f32.mrf.mxu0
  %v177 = vpop.f32.mrf.mxu0
  %v178 = vadd.f32 %v37, %v177
  %v179 = vpop.f32.mrf.mxu0
  %180 = vmatprep.mubr.bf16.mxu0 0
  %181 = vmatmul.mubr.bf16.gmra.mxu0 %v96
  %v182 = vpop.f32.mrf.mxu0
  %v183 = vadd.f32 %v37, %v182
  %v184 = vpop.f32.mrf.mxu0
  %v185 = vpop.f32.mrf.mxu0
  %v186 = vadd.f32 %v37, %v185
  %v187 = vpop.f32.mrf.mxu0
  %188 = vmatprep.mubr.bf16.mxu0 0
  %189 = vmatmul.mubr.bf16.gmra.mxu0 %v99
  %v190 = vpop.f32.mrf.mxu0
  %v191 = vadd.f32 %v37, %v190
  %v192 = vpop.f32.mrf.mxu0
  %v193 = vpop.f32.mrf.mxu0
  %v194 = vadd.f32 %v37, %v193
  %v195 = vpop.f32.mrf.mxu0
  %196 = vmatprep.mubr.bf16.mxu0 0
  %197 = vmatmul.mubr.bf16.gmra.mxu0 %v102
  %v198 = vpop.f32.mrf.mxu0
  %v199 = vadd.f32 %v37, %v198
  %v200 = vpop.f32.mrf.mxu0
  %v201 = vpop.f32.mrf.mxu0
  %v202 = vadd.f32 %v37, %v201
  %v203 = vpop.f32.mrf.mxu0
  %204 = vdwg.mxu0
  %v205 = vpack.c.bf16 %v146, %v143
  %v206 = vpack.c.bf16 %v154, %v151
  %v207 = vpack.c.bf16 %v162, %v159
  %v208 = vpack.c.bf16 %v170, %v167
  %v209 = vpack.c.bf16 %v178, %v175
  %v210 = vpack.c.bf16 %v186, %v183
  %v211 = vpack.c.bf16 %v194, %v191
  %v212 = vpack.c.bf16 %v202, %v199
  %v221 = vunpack.c.l.b16 %v205
  %v222 = vunpack.c.h.b16 %v205
  %v223 = vunpack.c.l.b16 %v206
  %v224 = vunpack.c.h.b16 %v206
  %v225 = vunpack.c.l.b16 %v207
  %v226 = vunpack.c.h.b16 %v207
  %v227 = vunpack.c.l.b16 %v208
  %v228 = vunpack.c.h.b16 %v208
  %v229 = vunpack.c.l.b16 %v209
  %v230 = vunpack.c.h.b16 %v209
  %v231 = vunpack.c.l.b16 %v210
  %v232 = vunpack.c.h.b16 %v210
  %v233 = vunpack.c.l.b16 %v211
  %v234 = vunpack.c.h.b16 %v211
  %v235 = vunpack.c.l.b16 %v212
  %v236 = vunpack.c.h.b16 %v212
  %v237 = vpack.c.b16 %v221, %v221
  %v238 = vpack.c.b16 %v222, %v222
  %v239 = vpack.c.b16 %v223, %v223
  %v240 = vpack.c.b16 %v224, %v224
  %v241 = vpack.c.b16 %v225, %v225
  %v242 = vpack.c.b16 %v226, %v226
  %v243 = vpack.c.b16 %v227, %v227
  %v244 = vpack.c.b16 %v228, %v228
  %v245 = vpack.c.b16 %v229, %v229
  %v246 = vpack.c.b16 %v230, %v230
  %v247 = vpack.c.b16 %v231, %v231
  %v248 = vpack.c.b16 %v232, %v232
  %v249 = vpack.c.b16 %v233, %v233
  %v250 = vpack.c.b16 %v234, %v234
  %v251 = vpack.c.b16 %v235, %v235
  %v252 = vpack.c.b16 %v236, %v236
  %vm269 = vcmask 191488
  %270 = vst.msk [vmem:[%s3] sm:$0xf] %vm269, %v237
  %271 = vst.msk [vmem:[%s3 + $0x4] sm:$0xf] %vm269, %v238
  %272 = vst.msk [vmem:[%s3 + $0x8] sm:$0xf] %vm269, %v239
  %273 = vst.msk [vmem:[%s3 + $0xc] sm:$0xf] %vm269, %v240
  %274 = vst.msk [vmem:[%s3 + $0x10] sm:$0xf] %vm269, %v241
  %275 = vst.msk [vmem:[%s3 + $0x14] sm:$0xf] %vm269, %v242
  %276 = vst.msk [vmem:[%s3 + $0x18] sm:$0xf] %vm269, %v243
  %277 = vst.msk [vmem:[%s3 + $0x1c] sm:$0xf] %vm269, %v244
  %278 = vst.msk [vmem:[%s3 + $0x20] sm:$0xf] %vm269, %v245
  %279 = vst.msk [vmem:[%s3 + $0x24] sm:$0xf] %vm269, %v246
  %280 = vst.msk [vmem:[%s3 + $0x28] sm:$0xf] %vm269, %v247
  %281 = vst.msk [vmem:[%s3 + $0x2c] sm:$0xf] %vm269, %v248
  %282 = vst.msk [vmem:[%s3 + $0x30] sm:$0xf] %vm269, %v249
  %283 = vst.msk [vmem:[%s3 + $0x34] sm:$0xf] %vm269, %v250
  %284 = vst.msk [vmem:[%s3 + $0x38] sm:$0xf] %vm269, %v251
  %285 = vst.msk [vmem:[%s3 + $0x3c] sm:$0xf] %vm269, %v252
  // Predicated region
  $region14: #{_lambda_.60} parent=0 // pred_check
    _
  $region15: #{_lambda_.60} parent=0 // pred_check_branch
    %287 = sbr.rel (0) target = $region17
  $region16: #{_lambda_.60} parent=0 // pred_region
    _
  $region17: #{_lambda_.60} parent=0 // pred_fallthru
    _
  // Predicated region
  $region18: #{_lambda_.60} parent=0 // pred_check
    _
  $region19: #{_lambda_.60} parent=0 // pred_check_branch
    %289 = sbr.rel (0) target = $region21
  $region20: #{_lambda_.60} parent=0 // pred_region
    _
  $region21: #{_lambda_.60} parent=0 // pred_fallthru
    _

// kernel: _lambda_.61
$region0: #{_lambda_.61}
  #allocation0 [shape = 'u32[]', space=smem, size = 0x4, offset = 0x4, fixed_abs, tag = 'smem constant byte address 0x4 - core index']
  #allocation1 [shape = 'u32[144,128]{1,0:T(1,128)}', space=vmem, size = 0x12000, scoped, tag = 'internal scratch']
  %s0 = inlined_call_operand.vmem [shape: bf16[128,72], index: 0, kind: input, shape index: {}]
  %s1 = inlined_call_operand.vmem [shape: bf16[72,8], index: 1, kind: input, shape index: {}]
  %s2 = inlined_call_operand.vmem [shape: f32[1,8], index: 2, kind: input, shape index: {}]
  %s3 = inlined_call_operand.vmem [shape: bf16[128,8], index: 3, kind: output, shape index: {}]
  %s4 = sld [smem:[#allocation0]]
  $region22: #{_lambda_.61} parent=0
    _
  %s6 = ssub.s32 1, %s4
  %s7 = scalar_select 0, %s6, %s4
  // Predicated region
  $region2: #{_lambda_.61} parent=0 // pred_check
    _
  $region3: #{_lambda_.61} parent=0 // pred_check_branch
    %9 = sbr.rel (0) target = $region5
  $region4: #{_lambda_.61} parent=0 // pred_region
    _
  $region5: #{_lambda_.61} parent=0 // pred_fallthru
    _
  // Predicated region
  $region6: #{_lambda_.61} parent=0 // pred_check
    _
  $region7: #{_lambda_.61} parent=0 // pred_check_branch
    %11 = sbr.rel (0) target = $region9
  $region8: #{_lambda_.61} parent=0 // pred_region
    _
  $region9: #{_lambda_.61} parent=0 // pred_fallthru
    _
  // Predicated region
  $region10: #{_lambda_.61} parent=0 // pred_check
    _
  $region11: #{_lambda_.61} parent=0 // pred_check_branch
    %13 = sbr.rel (0) target = $region13
  $region12: #{_lambda_.61} parent=0 // pred_region
    _
  $region13: #{_lambda_.61} parent=0 // pred_fallthru
    _
  %v15 = vld [vmem:[%s0] sm:$0xf]
  %v16 = vld [vmem:[%s0 + $0x4] sm:$0xf]
  %v17 = vld [vmem:[%s0 + $0x8] sm:$0xf]
  %v18 = vld [vmem:[%s0 + $0xc] sm:$0xf]
  %v19 = vld [vmem:[%s0 + $0x10] sm:$0xf]
  %v20 = vld [vmem:[%s0 + $0x14] sm:$0xf]
  %v21 = vld [vmem:[%s0 + $0x18] sm:$0xf]
  %v22 = vld [vmem:[%s0 + $0x1c] sm:$0xf]
  %v23 = vld [vmem:[%s0 + $0x20] sm:$0xf]
  %v24 = vld [vmem:[%s0 + $0x24] sm:$0xf]
  %v25 = vld [vmem:[%s0 + $0x28] sm:$0xf]
  %v26 = vld [vmem:[%s0 + $0x2c] sm:$0xf]
  %v27 = vld [vmem:[%s0 + $0x30] sm:$0xf]
  %v28 = vld [vmem:[%s0 + $0x34] sm:$0xf]
  %v29 = vld [vmem:[%s0 + $0x38] sm:$0xf]
  %v30 = vld [vmem:[%s0 + $0x3c] sm:$0xf]
  %v31 = vld [vmem:[%s1] sm:$0xf]
  %v32 = vld [vmem:[%s1 + $0x4] sm:$0xf]
  %v33 = vld [vmem:[%s1 + $0x8] sm:$0xf]
  %v34 = vld [vmem:[%s1 + $0xc] sm:$0xf]
  %v35 = vld [vmem:[%s1 + $0x10] sm:$0xf]
  %v36 = vld [vmem:[%s1 + $0x14] sm:$0xf]
  %v37 = vld [vmem:[%s1 + $0x18] sm:$0xf]
  %v38 = vld [vmem:[%s1 + $0x1c] sm:$0xf]
  %v39 = vld [vmem:[%s1 + $0x20] sm:$0xf]
  %v40 = vld [vmem:[%s2] sm:$0x1]
  %v42 = vlaneseq
  %v43 = vshrl.u32 %v42, 7
  %v44 = vsub.s32 0, %v43
  %v45 = vrot.slane %v40, %v44
  %v63 = vunpack.c.l.b16 %v15
  %v64 = vunpack.c.l.b16 %v16
  %v65 = vunpack.c.l.b16 %v17
  %v66 = vunpack.c.l.b16 %v18
  %v67 = vunpack.c.l.b16 %v19
  %v68 = vunpack.c.l.b16 %v20
  %v69 = vunpack.c.l.b16 %v21
  %v70 = vunpack.c.l.b16 %v22
  %v71 = vunpack.c.l.b16 %v23
  %v72 = vunpack.c.l.b16 %v24
  %v73 = vunpack.c.l.b16 %v25
  %v74 = vunpack.c.l.b16 %v26
  %v75 = vunpack.c.l.b16 %v27
  %v76 = vunpack.c.l.b16 %v28
  %v77 = vunpack.c.l.b16 %v29
  %v78 = vunpack.c.l.b16 %v30
  %v79 = vpack.c.b16 %v64, %v63
  %v80 = vpack.c.b16 %v66, %v65
  %v81 = vpack.c.b16 %v68, %v67
  %v82 = vpack.c.b16 %v70, %v69
  %v83 = vpack.c.b16 %v72, %v71
  %v84 = vpack.c.b16 %v74, %v73
  %v85 = vpack.c.b16 %v76, %v75
  %v86 = vpack.c.b16 %v78, %v77
  %v96 = vunpack.c.l.b16 %v31
  %v97 = vunpack.c.l.b16 %v32
  %v98 = vunpack.c.l.b16 %v33
  %v99 = vunpack.c.l.b16 %v34
  %v100 = vunpack.c.l.b16 %v35
  %v101 = vunpack.c.l.b16 %v36
  %v102 = vunpack.c.l.b16 %v37
  %v103 = vunpack.c.l.b16 %v38
  %v104 = vunpack.c.l.b16 %v39
  %v105 = vpack.c.b16 %v97, %v96
  %v106 = vpack.c.b16 %v99, %v98
  %v107 = vpack.c.b16 %v101, %v100
  %v108 = vpack.c.b16 %v103, %v102
  %v109 = vpack.c.b16 %v104, %v104
  %vm114 = vcmask 588800
  %v116 = vsel %vm114, %v79, 0
  %v119 = vsel %vm114, %v80, 0
  %v122 = vsel %vm114, %v81, 0
  %v125 = vsel %vm114, %v82, 0
  %v128 = vsel %vm114, %v83, 0
  %v131 = vsel %vm114, %v84, 0
  %v134 = vsel %vm114, %v85, 0
  %v137 = vsel %vm114, %v86, 0
  %vm139 = vcmask 1043456
  %v141 = vsel %vm139, %v109, 0
  %143 = vmatprep.subr.bf16.mxu0 0
  %144 = vmatpush1.bf16.msra.mxu0 0
  %145 = vmatprep.subr.bf16.mxu0 0
  %146 = vmatpush1.bf16.msra.mxu0 0
  %147 = vmatprep.subr.bf16.mxu0 0
  %148 = vmatpush1.bf16.msra.mxu0 0
  %149 = vmatprep.subr.bf16.mxu0 0
  %150 = vmatpush1.bf16.msra.mxu0 %v141
  %151 = vmatprep.subr.bf16.mxu0 0
  %152 = vmatpush1.bf16.msra.mxu0 %v108
  %153 = vmatprep.subr.bf16.mxu0 0
  %154 = vmatpush1.bf16.msra.mxu0 %v107
  %155 = vmatprep.subr.bf16.mxu0 0
  %156 = vmatpush1.bf16.msra.mxu0 %v106
  %157 = vmatprep.subr.bf16.mxu0 0
  %158 = vmatpush1.bf16.msra.mxu0 %v105
  %159 = vmatprep.subr.bf16.mxu0 0
  %160 = vmatpush2.bf16.msra.mxu0 0
  %161 = vmatprep.subr.bf16.mxu0 0
  %162 = vmatpush2.bf16.msra.mxu0 0
  %163 = vmatprep.subr.bf16.mxu0 0
  %164 = vmatpush2.bf16.msra.mxu0 0
  %165 = vmatprep.subr.bf16.mxu0 0
  %166 = vmatpush2.bf16.msra.mxu0 0
  %167 = vmatprep.subr.bf16.mxu0 0
  %168 = vmatpush2.bf16.msra.mxu0 0
  %169 = vmatprep.subr.bf16.mxu0 0
  %170 = vmatpush2.bf16.msra.mxu0 0
  %171 = vmatprep.subr.bf16.mxu0 0
  %172 = vmatpush2.bf16.msra.mxu0 0
  %173 = vmatprep.subr.bf16.mxu0 0
  %174 = vmatpush2.bf16.msra.mxu0 0
  %175 = vmatprep.mubr.bf16.mxu0 0
  %176 = vmatmul.mubr.bf16.gmra.mxu0 %v116
  %v177 = vpop.f32.mrf.mxu0
  %v178 = vadd.f32 %v45, %v177
  %v179 = vpop.f32.mrf.mxu0
  %v180 = vpop.f32.mrf.mxu0
  %v181 = vadd.f32 %v45, %v180
  %v182 = vpop.f32.mrf.mxu0
  %183 = vmatprep.mubr.bf16.mxu0 0
  %184 = vmatmul.mubr.bf16.gmra.mxu0 %v119
  %v185 = vpop.f32.mrf.mxu0
  %v186 = vadd.f32 %v45, %v185
  %v187 = vpop.f32.mrf.mxu0
  %v188 = vpop.f32.mrf.mxu0
  %v189 = vadd.f32 %v45, %v188
  %v190 = vpop.f32.mrf.mxu0
  %191 = vmatprep.mubr.bf16.mxu0 0
  %192 = vmatmul.mubr.bf16.gmra.mxu0 %v122
  %v193 = vpop.f32.mrf.mxu0
  %v194 = vadd.f32 %v45, %v193
  %v195 = vpop.f32.mrf.mxu0
  %v196 = vpop.f32.mrf.mxu0
  %v197 = vadd.f32 %v45, %v196
  %v198 = vpop.f32.mrf.mxu0
  %199 = vmatprep.mubr.bf16.mxu0 0
  %200 = vmatmul.mubr.bf16.gmra.mxu0 %v125
  %v201 = vpop.f32.mrf.mxu0
  %v202 = vadd.f32 %v45, %v201
  %v203 = vpop.f32.mrf.mxu0
  %v204 = vpop.f32.mrf.mxu0
  %v205 = vadd.f32 %v45, %v204
  %v206 = vpop.f32.mrf.mxu0
  %207 = vmatprep.mubr.bf16.mxu0 0
  %208 = vmatmul.mubr.bf16.gmra.mxu0 %v128
  %v209 = vpop.f32.mrf.mxu0
  %v210 = vadd.f32 %v45, %v209
  %v211 = vpop.f32.mrf.mxu0
  %v212 = vpop.f32.mrf.mxu0
  %v213 = vadd.f32 %v45, %v212
  %v214 = vpop.f32.mrf.mxu0
  %215 = vmatprep.mubr.bf16.mxu0 0
  %216 = vmatmul.mubr.bf16.gmra.mxu0 %v131
  %v217 = vpop.f32.mrf.mxu0
  %v218 = vadd.f32 %v45, %v217
  %v219 = vpop.f32.mrf.mxu0
  %v220 = vpop.f32.mrf.mxu0
  %v221 = vadd.f32 %v45, %v220
  %v222 = vpop.f32.mrf.mxu0
  %223 = vmatprep.mubr.bf16.mxu0 0
  %224 = vmatmul.mubr.bf16.gmra.mxu0 %v134
  %v225 = vpop.f32.mrf.mxu0
  %v226 = vadd.f32 %v45, %v225
  %v227 = vpop.f32.mrf.mxu0
  %v228 = vpop.f32.mrf.mxu0
  %v229 = vadd.f32 %v45, %v228
  %v230 = vpop.f32.mrf.mxu0
  %231 = vmatprep.mubr.bf16.mxu0 0
  %232 = vmatmul.mubr.bf16.gmra.mxu0 %v137
  %v233 = vpop.f32.mrf.mxu0
  %v234 = vadd.f32 %v45, %v233
  %v235 = vpop.f32.mrf.mxu0
  %v236 = vpop.f32.mrf.mxu0
  %v237 = vadd.f32 %v45, %v236
  %v238 = vpop.f32.mrf.mxu0
  %239 = vdwg.mxu0
  %v240 = vmax.f32 %v178, 0.0
  %v241 = vmax.f32 %v181, 0.0
  %v242 = vmax.f32 %v186, 0.0
  %v243 = vmax.f32 %v189, 0.0
  %v244 = vmax.f32 %v194, 0.0
  %v245 = vmax.f32 %v197, 0.0
  %v246 = vmax.f32 %v202, 0.0
  %v247 = vmax.f32 %v205, 0.0
  %v248 = vmax.f32 %v210, 0.0
  %v249 = vmax.f32 %v213, 0.0
  %v250 = vmax.f32 %v218, 0.0
  %v251 = vmax.f32 %v221, 0.0
  %v252 = vmax.f32 %v226, 0.0
  %v253 = vmax.f32 %v229, 0.0
  %v254 = vmax.f32 %v234, 0.0
  %v255 = vmax.f32 %v237, 0.0
  %v256 = vpack.c.bf16 %v241, %v240
  %v257 = vpack.c.bf16 %v243, %v242
  %v258 = vpack.c.bf16 %v245, %v244
  %v259 = vpack.c.bf16 %v247, %v246
  %v260 = vpack.c.bf16 %v249, %v248
  %v261 = vpack.c.bf16 %v251, %v250
  %v262 = vpack.c.bf16 %v253, %v252
  %v263 = vpack.c.bf16 %v255, %v254
  %v272 = vunpack.c.l.b16 %v256
  %v273 = vunpack.c.h.b16 %v256
  %v274 = vunpack.c.l.b16 %v257
  %v275 = vunpack.c.h.b16 %v257
  %v276 = vunpack.c.l.b16 %v258
  %v277 = vunpack.c.h.b16 %v258
  %v278 = vunpack.c.l.b16 %v259
  %v279 = vunpack.c.h.b16 %v259
  %v280 = vunpack.c.l.b16 %v260
  %v281 = vunpack.c.h.b16 %v260
  %v282 = vunpack.c.l.b16 %v261
  %v283 = vunpack.c.h.b16 %v261
  %v284 = vunpack.c.l.b16 %v262
  %v285 = vunpack.c.h.b16 %v262
  %v286 = vunpack.c.l.b16 %v263
  %v287 = vunpack.c.h.b16 %v263
  %v288 = vpack.c.b16 %v272, %v272
  %v289 = vpack.c.b16 %v273, %v273
  %v290 = vpack.c.b16 %v274, %v274
  %v291 = vpack.c.b16 %v275, %v275
  %v292 = vpack.c.b16 %v276, %v276
  %v293 = vpack.c.b16 %v277, %v277
  %v294 = vpack.c.b16 %v278, %v278
  %v295 = vpack.c.b16 %v279, %v279
  %v296 = vpack.c.b16 %v280, %v280
  %v297 = vpack.c.b16 %v281, %v281
  %v298 = vpack.c.b16 %v282, %v282
  %v299 = vpack.c.b16 %v283, %v283
  %v300 = vpack.c.b16 %v284, %v284
  %v301 = vpack.c.b16 %v285, %v285
  %v302 = vpack.c.b16 %v286, %v286
  %v303 = vpack.c.b16 %v287, %v287
  %vm320 = vcmask 60416
  %321 = vst.msk [vmem:[%s3] sm:$0xf] %vm320, %v288
  %322 = vst.msk [vmem:[%s3 + $0x4] sm:$0xf] %vm320, %v289
  %323 = vst.msk [vmem:[%s3 + $0x8] sm:$0xf] %vm320, %v290
  %324 = vst.msk [vmem:[%s3 + $0xc] sm:$0xf] %vm320, %v291
  %325 = vst.msk [vmem:[%s3 + $0x10] sm:$0xf] %vm320, %v292
  %326 = vst.msk [vmem:[%s3 + $0x14] sm:$0xf] %vm320, %v293
  %327 = vst.msk [vmem:[%s3 + $0x18] sm:$0xf] %vm320, %v294
  %328 = vst.msk [vmem:[%s3 + $0x1c] sm:$0xf] %vm320, %v295
  %329 = vst.msk [vmem:[%s3 + $0x20] sm:$0xf] %vm320, %v296
  %330 = vst.msk [vmem:[%s3 + $0x24] sm:$0xf] %vm320, %v297
  %331 = vst.msk [vmem:[%s3 + $0x28] sm:$0xf] %vm320, %v298
  %332 = vst.msk [vmem:[%s3 + $0x2c] sm:$0xf] %vm320, %v299
  %333 = vst.msk [vmem:[%s3 + $0x30] sm:$0xf] %vm320, %v300
  %334 = vst.msk [vmem:[%s3 + $0x34] sm:$0xf] %vm320, %v301
  %335 = vst.msk [vmem:[%s3 + $0x38] sm:$0xf] %vm320, %v302
  %336 = vst.msk [vmem:[%s3 + $0x3c] sm:$0xf] %vm320, %v303
  // Predicated region
  $region14: #{_lambda_.61} parent=0 // pred_check
    _
  $region15: #{_lambda_.61} parent=0 // pred_check_branch
    %338 = sbr.rel (0) target = $region17
  $region16: #{_lambda_.61} parent=0 // pred_region
    _
  $region17: #{_lambda_.61} parent=0 // pred_fallthru
    _
  // Predicated region
  $region18: #{_lambda_.61} parent=0 // pred_check
    _
  $region19: #{_lambda_.61} parent=0 // pred_check_branch
    %340 = sbr.rel (0) target = $region21
  $region20: #{_lambda_.61} parent=0 // pred_region
    _
  $region21: #{_lambda_.61} parent=0 // pred_fallthru
    _

// kernel: _lambda_.62
$region0: #{_lambda_.62}
  #allocation0 [shape = 'u32[]', space=smem, size = 0x4, offset = 0x4, fixed_abs, tag = 'smem constant byte address 0x4 - core index']
  #allocation1 [shape = 'u32[144,128]{1,0:T(1,128)}', space=vmem, size = 0x12000, scoped, tag = 'internal scratch']
  %s0 = inlined_call_operand.vmem [shape: bf16[128,8], index: 0, kind: input, shape index: {}]
  %s1 = inlined_call_operand.vmem [shape: bf16[8,16], index: 1, kind: input, shape index: {}]
  %s2 = inlined_call_operand.vmem [shape: f32[1,16], index: 2, kind: input, shape index: {}]
  %s3 = inlined_call_operand.vmem [shape: bf16[128,16], index: 3, kind: input, shape index: {}]
  %s4 = inlined_call_operand.vmem [shape: bf16[128,16], index: 4, kind: output, shape index: {}]
  %s5 = sld [smem:[#allocation0]]
  $region26: #{_lambda_.62} parent=0
    _
  %s7 = ssub.s32 1, %s5
  %s8 = scalar_select 0, %s7, %s5
  // Predicated region
  $region2: #{_lambda_.62} parent=0 // pred_check
    _
  $region3: #{_lambda_.62} parent=0 // pred_check_branch
    %10 = sbr.rel (0) target = $region5
  $region4: #{_lambda_.62} parent=0 // pred_region
    _
  $region5: #{_lambda_.62} parent=0 // pred_fallthru
    _
  // Predicated region
  $region6: #{_lambda_.62} parent=0 // pred_check
    _
  $region7: #{_lambda_.62} parent=0 // pred_check_branch
    %12 = sbr.rel (0) target = $region9
  $region8: #{_lambda_.62} parent=0 // pred_region
    _
  $region9: #{_lambda_.62} parent=0 // pred_fallthru
    _
  // Predicated region
  $region10: #{_lambda_.62} parent=0 // pred_check
    _
  $region11: #{_lambda_.62} parent=0 // pred_check_branch
    %14 = sbr.rel (0) target = $region13
  $region12: #{_lambda_.62} parent=0 // pred_region
    _
  $region13: #{_lambda_.62} parent=0 // pred_fallthru
    _
  // Predicated region
  $region14: #{_lambda_.62} parent=0 // pred_check
    _
  $region15: #{_lambda_.62} parent=0 // pred_check_branch
    %16 = sbr.rel (0) target = $region17
  $region16: #{_lambda_.62} parent=0 // pred_region
    _
  $region17: #{_lambda_.62} parent=0 // pred_fallthru
    _
  %v18 = vld [vmem:[%s0] sm:$0xf]
  %v19 = vld [vmem:[%s0 + $0x4] sm:$0xf]
  %v20 = vld [vmem:[%s0 + $0x8] sm:$0xf]
  %v21 = vld [vmem:[%s0 + $0xc] sm:$0xf]
  %v22 = vld [vmem:[%s0 + $0x10] sm:$0xf]
  %v23 = vld [vmem:[%s0 + $0x14] sm:$0xf]
  %v24 = vld [vmem:[%s0 + $0x18] sm:$0xf]
  %v25 = vld [vmem:[%s0 + $0x1c] sm:$0xf]
  %v26 = vld [vmem:[%s0 + $0x20] sm:$0xf]
  %v27 = vld [vmem:[%s0 + $0x24] sm:$0xf]
  %v28 = vld [vmem:[%s0 + $0x28] sm:$0xf]
  %v29 = vld [vmem:[%s0 + $0x2c] sm:$0xf]
  %v30 = vld [vmem:[%s0 + $0x30] sm:$0xf]
  %v31 = vld [vmem:[%s0 + $0x34] sm:$0xf]
  %v32 = vld [vmem:[%s0 + $0x38] sm:$0xf]
  %v33 = vld [vmem:[%s0 + $0x3c] sm:$0xf]
  %v34 = vld [vmem:[%s1] sm:$0xf]
  %v35 = vld [vmem:[%s2] sm:$0x1]
  %v37 = vlaneseq
  %v38 = vshrl.u32 %v37, 7
  %v39 = vsub.s32 0, %v38
  %v40 = vrot.slane %v35, %v39
  %v58 = vunpack.c.l.b16 %v18
  %v59 = vunpack.c.l.b16 %v19
  %v60 = vunpack.c.l.b16 %v20
  %v61 = vunpack.c.l.b16 %v21
  %v62 = vunpack.c.l.b16 %v22
  %v63 = vunpack.c.l.b16 %v23
  %v64 = vunpack.c.l.b16 %v24
  %v65 = vunpack.c.l.b16 %v25
  %v66 = vunpack.c.l.b16 %v26
  %v67 = vunpack.c.l.b16 %v27
  %v68 = vunpack.c.l.b16 %v28
  %v69 = vunpack.c.l.b16 %v29
  %v70 = vunpack.c.l.b16 %v30
  %v71 = vunpack.c.l.b16 %v31
  %v72 = vunpack.c.l.b16 %v32
  %v73 = vunpack.c.l.b16 %v33
  %v74 = vpack.c.b16 %v59, %v58
  %v75 = vpack.c.b16 %v61, %v60
  %v76 = vpack.c.b16 %v63, %v62
  %v77 = vpack.c.b16 %v65, %v64
  %v78 = vpack.c.b16 %v67, %v66
  %v79 = vpack.c.b16 %v69, %v68
  %v80 = vpack.c.b16 %v71, %v70
  %v81 = vpack.c.b16 %v73, %v72
  %vm82 = vcmask 64512
  %v84 = vsel %vm82, %v74, 0
  %v87 = vsel %vm82, %v75, 0
  %v90 = vsel %vm82, %v76, 0
  %v93 = vsel %vm82, %v77, 0
  %v96 = vsel %vm82, %v78, 0
  %v99 = vsel %vm82, %v79, 0
  %v102 = vsel %vm82, %v80, 0
  %v105 = vsel %vm82, %v81, 0
  %vm107 = vcmask 1043456
  %v109 = vsel %vm107, %v34, 0
  %111 = vmatprep.subr.bf16.mxu0 0
  %112 = vmatpush1.bf16.msra.mxu0 0
  %113 = vmatprep.subr.bf16.mxu0 0
  %114 = vmatpush1.bf16.msra.mxu0 0
  %115 = vmatprep.subr.bf16.mxu0 0
  %116 = vmatpush1.bf16.msra.mxu0 0
  %117 = vmatprep.subr.bf16.mxu0 0
  %118 = vmatpush1.bf16.msra.mxu0 0
  %119 = vmatprep.subr.bf16.mxu0 0
  %120 = vmatpush1.bf16.msra.mxu0 0
  %121 = vmatprep.subr.bf16.mxu0 0
  %122 = vmatpush1.bf16.msra.mxu0 0
  %123 = vmatprep.subr.bf16.mxu0 0
  %124 = vmatpush1.bf16.msra.mxu0 0
  %125 = vmatprep.subr.bf16.mxu0 0
  %126 = vmatpush1.bf16.msra.mxu0 %v109
  %127 = vmatprep.subr.bf16.mxu0 0
  %128 = vmatpush2.bf16.msra.mxu0 0
  %129 = vmatprep.subr.bf16.mxu0 0
  %130 = vmatpush2.bf16.msra.mxu0 0
  %131 = vmatprep.subr.bf16.mxu0 0
  %132 = vmatpush2.bf16.msra.mxu0 0
  %133 = vmatprep.subr.bf16.mxu0 0
  %134 = vmatpush2.bf16.msra.mxu0 0
  %135 = vmatprep.subr.bf16.mxu0 0
  %136 = vmatpush2.bf16.msra.mxu0 0
  %137 = vmatprep.subr.bf16.mxu0 0
  %138 = vmatpush2.bf16.msra.mxu0 0
  %139 = vmatprep.subr.bf16.mxu0 0
  %140 = vmatpush2.bf16.msra.mxu0 0
  %141 = vmatprep.subr.bf16.mxu0 0
  %142 = vmatpush2.bf16.msra.mxu0 0
  %143 = vmatprep.mubr.bf16.mxu0 0
  %144 = vmatmul.mubr.bf16.gmra.mxu0 %v84
  %v145 = vpop.f32.mrf.mxu0
  %v146 = vadd.f32 %v40, %v145
  %v147 = vpop.f32.mrf.mxu0
  %v148 = vpop.f32.mrf.mxu0
  %v149 = vadd.f32 %v40, %v148
  %v150 = vpop.f32.mrf.mxu0
  %151 = vmatprep.mubr.bf16.mxu0 0
  %152 = vmatmul.mubr.bf16.gmra.mxu0 %v87
  %v153 = vpop.f32.mrf.mxu0
  %v154 = vadd.f32 %v40, %v153
  %v155 = vpop.f32.mrf.mxu0
  %v156 = vpop.f32.mrf.mxu0
  %v157 = vadd.f32 %v40, %v156
  %v158 = vpop.f32.mrf.mxu0
  %159 = vmatprep.mubr.bf16.mxu0 0
  %160 = vmatmul.mubr.bf16.gmra.mxu0 %v90
  %v161 = vpop.f32.mrf.mxu0
  %v162 = vadd.f32 %v40, %v161
  %v163 = vpop.f32.mrf.mxu0
  %v164 = vpop.f32.mrf.mxu0
  %v165 = vadd.f32 %v40, %v164
  %v166 = vpop.f32.mrf.mxu0
  %167 = vmatprep.mubr.bf16.mxu0 0
  %168 = vmatmul.mubr.bf16.gmra.mxu0 %v93
  %v169 = vpop.f32.mrf.mxu0
  %v170 = vadd.f32 %v40, %v169
  %v171 = vpop.f32.mrf.mxu0
  %v172 = vpop.f32.mrf.mxu0
  %v173 = vadd.f32 %v40, %v172
  %v174 = vpop.f32.mrf.mxu0
  %175 = vmatprep.mubr.bf16.mxu0 0
  %176 = vmatmul.mubr.bf16.gmra.mxu0 %v96
  %v177 = vpop.f32.mrf.mxu0
  %v178 = vadd.f32 %v40, %v177
  %v179 = vpop.f32.mrf.mxu0
  %v180 = vpop.f32.mrf.mxu0
  %v181 = vadd.f32 %v40, %v180
  %v182 = vpop.f32.mrf.mxu0
  %183 = vmatprep.mubr.bf16.mxu0 0
  %184 = vmatmul.mubr.bf16.gmra.mxu0 %v99
  %v185 = vpop.f32.mrf.mxu0
  %v186 = vadd.f32 %v40, %v185
  %v187 = vpop.f32.mrf.mxu0
  %v188 = vpop.f32.mrf.mxu0
  %v189 = vadd.f32 %v40, %v188
  %v190 = vpop.f32.mrf.mxu0
  %191 = vmatprep.mubr.bf16.mxu0 0
  %192 = vmatmul.mubr.bf16.gmra.mxu0 %v102
  %v193 = vpop.f32.mrf.mxu0
  %v194 = vadd.f32 %v40, %v193
  %v195 = vpop.f32.mrf.mxu0
  %v196 = vpop.f32.mrf.mxu0
  %v197 = vadd.f32 %v40, %v196
  %v198 = vpop.f32.mrf.mxu0
  %199 = vmatprep.mubr.bf16.mxu0 0
  %200 = vmatmul.mubr.bf16.gmra.mxu0 %v105
  %v201 = vpop.f32.mrf.mxu0
  %v202 = vadd.f32 %v40, %v201
  %v203 = vpop.f32.mrf.mxu0
  %v204 = vpop.f32.mrf.mxu0
  %v205 = vadd.f32 %v40, %v204
  %v206 = vpop.f32.mrf.mxu0
  %207 = vdwg.mxu0
  %v208 = vld [vmem:[%s3] sm:$0xf]
  %v209 = vld [vmem:[%s3 + $0x4] sm:$0xf]
  %v210 = vld [vmem:[%s3 + $0x8] sm:$0xf]
  %v211 = vld [vmem:[%s3 + $0xc] sm:$0xf]
  %v212 = vld [vmem:[%s3 + $0x10] sm:$0xf]
  %v213 = vld [vmem:[%s3 + $0x14] sm:$0xf]
  %v214 = vld [vmem:[%s3 + $0x18] sm:$0xf]
  %v215 = vld [vmem:[%s3 + $0x1c] sm:$0xf]
  %v216 = vld [vmem:[%s3 + $0x20] sm:$0xf]
  %v217 = vld [vmem:[%s3 + $0x24] sm:$0xf]
  %v218 = vld [vmem:[%s3 + $0x28] sm:$0xf]
  %v219 = vld [vmem:[%s3 + $0x2c] sm:$0xf]
  %v220 = vld [vmem:[%s3 + $0x30] sm:$0xf]
  %v221 = vld [vmem:[%s3 + $0x34] sm:$0xf]
  %v222 = vld [vmem:[%s3 + $0x38] sm:$0xf]
  %v223 = vld [vmem:[%s3 + $0x3c] sm:$0xf]
  %v224 = vunpack.c.l.bf16 %v208
  %v225 = vunpack.c.l.bf16 %v209
  %v226 = vunpack.c.l.bf16 %v210
  %v227 = vunpack.c.l.bf16 %v211
  %v228 = vunpack.c.l.bf16 %v212
  %v229 = vunpack.c.l.bf16 %v213
  %v230 = vunpack.c.l.bf16 %v214
  %v231 = vunpack.c.l.bf16 %v215
  %v232 = vunpack.c.l.bf16 %v216
  %v233 = vunpack.c.l.bf16 %v217
  %v234 = vunpack.c.l.bf16 %v218
  %v235 = vunpack.c.l.bf16 %v219
  %v236 = vunpack.c.l.bf16 %v220
  %v237 = vunpack.c.l.bf16 %v221
  %v238 = vunpack.c.l.bf16 %v222
  %v239 = vunpack.c.l.bf16 %v223
  %v240 = vadd.f32 %v146, %v224
  %v241 = vadd.f32 %v149, %v225
  %v242 = vadd.f32 %v154, %v226
  %v243 = vadd.f32 %v157, %v227
  %v244 = vadd.f32 %v162, %v228
  %v245 = vadd.f32 %v165, %v229
  %v246 = vadd.f32 %v170, %v230
  %v247 = vadd.f32 %v173, %v231
  %v248 = vadd.f32 %v178, %v232
  %v249 = vadd.f32 %v181, %v233
  %v250 = vadd.f32 %v186, %v234
  %v251 = vadd.f32 %v189, %v235
  %v252 = vadd.f32 %v194, %v236
  %v253 = vadd.f32 %v197, %v237
  %v254 = vadd.f32 %v202, %v238
  %v255 = vadd.f32 %v205, %v239
  %v256 = vpack.c.bf16 %v241, %v240
  %v257 = vpack.c.bf16 %v243, %v242
  %v258 = vpack.c.bf16 %v245, %v244
  %v259 = vpack.c.bf16 %v247, %v246
  %v260 = vpack.c.bf16 %v249, %v248
  %v261 = vpack.c.bf16 %v251, %v250
  %v262 = vpack.c.bf16 %v253, %v252
  %v263 = vpack.c.bf16 %v255, %v254
  %v272 = vunpack.c.l.b16 %v256
  %v273 = vunpack.c.h.b16 %v256
  %v274 = vunpack.c.l.b16 %v257
  %v275 = vunpack.c.h.b16 %v257
  %v276 = vunpack.c.l.b16 %v258
  %v277 = vunpack.c.h.b16 %v258
  %v278 = vunpack.c.l.b16 %v259
  %v279 = vunpack.c.h.b16 %v259
  %v280 = vunpack.c.l.b16 %v260
  %v281 = vunpack.c.h.b16 %v260
  %v282 = vunpack.c.l.b16 %v261
  %v283 = vunpack.c.h.b16 %v261
  %v284 = vunpack.c.l.b16 %v262
  %v285 = vunpack.c.h.b16 %v262
  %v286 = vunpack.c.l.b16 %v263
  %v287 = vunpack.c.h.b16 %v263
  %v288 = vpack.c.b16 %v272, %v272
  %v289 = vpack.c.b16 %v273, %v273
  %v290 = vpack.c.b16 %v274, %v274
  %v291 = vpack.c.b16 %v275, %v275
  %v292 = vpack.c.b16 %v276, %v276
  %v293 = vpack.c.b16 %v277, %v277
  %v294 = vpack.c.b16 %v278, %v278
  %v295 = vpack.c.b16 %v279, %v279
  %v296 = vpack.c.b16 %v280, %v280
  %v297 = vpack.c.b16 %v281, %v281
  %v298 = vpack.c.b16 %v282, %v282
  %v299 = vpack.c.b16 %v283, %v283
  %v300 = vpack.c.b16 %v284, %v284
  %v301 = vpack.c.b16 %v285, %v285
  %v302 = vpack.c.b16 %v286, %v286
  %v303 = vpack.c.b16 %v287, %v287
  %vm320 = vcmask 125952
  %321 = vst.msk [vmem:[%s4] sm:$0xf] %vm320, %v288
  %322 = vst.msk [vmem:[%s4 + $0x4] sm:$0xf] %vm320, %v289
  %323 = vst.msk [vmem:[%s4 + $0x8] sm:$0xf] %vm320, %v290
  %324 = vst.msk [vmem:[%s4 + $0xc] sm:$0xf] %vm320, %v291
  %325 = vst.msk [vmem:[%s4 + $0x10] sm:$0xf] %vm320, %v292
  %326 = vst.msk [vmem:[%s4 + $0x14] sm:$0xf] %vm320, %v293
  %327 = vst.msk [vmem:[%s4 + $0x18] sm:$0xf] %vm320, %v294
  %328 = vst.msk [vmem:[%s4 + $0x1c] sm:$0xf] %vm320, %v295
  %329 = vst.msk [vmem:[%s4 + $0x20] sm:$0xf] %vm320, %v296
  %330 = vst.msk [vmem:[%s4 + $0x24] sm:$0xf] %vm320, %v297
  %331 = vst.msk [vmem:[%s4 + $0x28] sm:$0xf] %vm320, %v298
  %332 = vst.msk [vmem:[%s4 + $0x2c] sm:$0xf] %vm320, %v299
  %333 = vst.msk [vmem:[%s4 + $0x30] sm:$0xf] %vm320, %v300
  %334 = vst.msk [vmem:[%s4 + $0x34] sm:$0xf] %vm320, %v301
  %335 = vst.msk [vmem:[%s4 + $0x38] sm:$0xf] %vm320, %v302
  %336 = vst.msk [vmem:[%s4 + $0x3c] sm:$0xf] %vm320, %v303
  // Predicated region
  $region18: #{_lambda_.62} parent=0 // pred_check
    _
  $region19: #{_lambda_.62} parent=0 // pred_check_branch
    %338 = sbr.rel (0) target = $region21
  $region20: #{_lambda_.62} parent=0 // pred_region
    _
  $region21: #{_lambda_.62} parent=0 // pred_fallthru
    _
  // Predicated region
  $region22: #{_lambda_.62} parent=0 // pred_check
    _
  $region23: #{_lambda_.62} parent=0 // pred_check_branch
    %340 = sbr.rel (0) target = $region25
  $region24: #{_lambda_.62} parent=0 // pred_region
    _
  $region25: #{_lambda_.62} parent=0 // pred_fallthru
    _

// kernel: _lambda_.68
$region0: #{_lambda_.68}
  #allocation0 [shape = 'u32[]', space=smem, size = 0x4, offset = 0x4, fixed_abs, tag = 'smem constant byte address 0x4 - core index']
  #allocation1 [shape = 'u32[144,128]{1,0:T(1,128)}', space=vmem, size = 0x12000, scoped, tag = 'internal scratch']
  %s0 = inlined_call_operand.vmem [shape: bf16[128,16], index: 0, kind: input, shape index: {}]
  %s1 = inlined_call_operand.vmem [shape: bf16[16,48], index: 1, kind: input, shape index: {}]
  %s2 = inlined_call_operand.vmem [shape: f32[1,48], index: 2, kind: input, shape index: {}]
  %s3 = inlined_call_operand.vmem [shape: bf16[128,48], index: 3, kind: output, shape index: {}]
  %s4 = sld [smem:[#allocation0]]
  $region22: #{_lambda_.68} parent=0
    _
  %s6 = ssub.s32 1, %s4
  %s7 = scalar_select 0, %s6, %s4
  // Predicated region
  $region2: #{_lambda_.68} parent=0 // pred_check
    _
  $region3: #{_lambda_.68} parent=0 // pred_check_branch
    %9 = sbr.rel (0) target = $region5
  $region4: #{_lambda_.68} parent=0 // pred_region
    _
  $region5: #{_lambda_.68} parent=0 // pred_fallthru
    _
  // Predicated region
  $region6: #{_lambda_.68} parent=0 // pred_check
    _
  $region7: #{_lambda_.68} parent=0 // pred_check_branch
    %11 = sbr.rel (0) target = $region9
  $region8: #{_lambda_.68} parent=0 // pred_region
    _
  $region9: #{_lambda_.68} parent=0 // pred_fallthru
    _
  // Predicated region
  $region10: #{_lambda_.68} parent=0 // pred_check
    _
  $region11: #{_lambda_.68} parent=0 // pred_check_branch
    %13 = sbr.rel (0) target = $region13
  $region12: #{_lambda_.68} parent=0 // pred_region
    _
  $region13: #{_lambda_.68} parent=0 // pred_fallthru
    _
  %v15 = vld [vmem:[%s0] sm:$0xf]
  %v16 = vld [vmem:[%s0 + $0x4] sm:$0xf]
  %v17 = vld [vmem:[%s0 + $0x8] sm:$0xf]
  %v18 = vld [vmem:[%s0 + $0xc] sm:$0xf]
  %v19 = vld [vmem:[%s0 + $0x10] sm:$0xf]
  %v20 = vld [vmem:[%s0 + $0x14] sm:$0xf]
  %v21 = vld [vmem:[%s0 + $0x18] sm:$0xf]
  %v22 = vld [vmem:[%s0 + $0x1c] sm:$0xf]
  %v23 = vld [vmem:[%s0 + $0x20] sm:$0xf]
  %v24 = vld [vmem:[%s0 + $0x24] sm:$0xf]
  %v25 = vld [vmem:[%s0 + $0x28] sm:$0xf]
  %v26 = vld [vmem:[%s0 + $0x2c] sm:$0xf]
  %v27 = vld [vmem:[%s0 + $0x30] sm:$0xf]
  %v28 = vld [vmem:[%s0 + $0x34] sm:$0xf]
  %v29 = vld [vmem:[%s0 + $0x38] sm:$0xf]
  %v30 = vld [vmem:[%s0 + $0x3c] sm:$0xf]
  %v31 = vld [vmem:[%s1] sm:$0xf]
  %v32 = vld [vmem:[%s1 + $0x4] sm:$0xf]
  %v33 = vld [vmem:[%s2] sm:$0x1]
  %v35 = vlaneseq
  %v36 = vshrl.u32 %v35, 7
  %v37 = vsub.s32 0, %v36
  %v38 = vrot.slane %v33, %v37
  %v56 = vunpack.c.l.b16 %v15
  %v57 = vunpack.c.l.b16 %v16
  %v58 = vunpack.c.l.b16 %v17
  %v59 = vunpack.c.l.b16 %v18
  %v60 = vunpack.c.l.b16 %v19
  %v61 = vunpack.c.l.b16 %v20
  %v62 = vunpack.c.l.b16 %v21
  %v63 = vunpack.c.l.b16 %v22
  %v64 = vunpack.c.l.b16 %v23
  %v65 = vunpack.c.l.b16 %v24
  %v66 = vunpack.c.l.b16 %v25
  %v67 = vunpack.c.l.b16 %v26
  %v68 = vunpack.c.l.b16 %v27
  %v69 = vunpack.c.l.b16 %v28
  %v70 = vunpack.c.l.b16 %v29
  %v71 = vunpack.c.l.b16 %v30
  %v72 = vpack.c.b16 %v57, %v56
  %v73 = vpack.c.b16 %v59, %v58
  %v74 = vpack.c.b16 %v61, %v60
  %v75 = vpack.c.b16 %v63, %v62
  %v76 = vpack.c.b16 %v65, %v64
  %v77 = vpack.c.b16 %v67, %v66
  %v78 = vpack.c.b16 %v69, %v68
  %v79 = vpack.c.b16 %v71, %v70
  %v82 = vunpack.c.l.b16 %v31
  %v83 = vunpack.c.l.b16 %v32
  %v84 = vpack.c.b16 %v83, %v82
  %vm86 = vcmask 130048
  %v88 = vsel %vm86, %v72, 0
  %v91 = vsel %vm86, %v73, 0
  %v94 = vsel %vm86, %v74, 0
  %v97 = vsel %vm86, %v75, 0
  %v100 = vsel %vm86, %v76, 0
  %v103 = vsel %vm86, %v77, 0
  %v106 = vsel %vm86, %v78, 0
  %v109 = vsel %vm86, %v79, 0
  %111 = vmatprep.subr.bf16.mxu0 0
  %112 = vmatpush1.bf16.msra.mxu0 0
  %113 = vmatprep.subr.bf16.mxu0 0
  %114 = vmatpush1.bf16.msra.mxu0 0
  %115 = vmatprep.subr.bf16.mxu0 0
  %116 = vmatpush1.bf16.msra.mxu0 0
  %117 = vmatprep.subr.bf16.mxu0 0
  %118 = vmatpush1.bf16.msra.mxu0 0
  %119 = vmatprep.subr.bf16.mxu0 0
  %120 = vmatpush1.bf16.msra.mxu0 0
  %121 = vmatprep.subr.bf16.mxu0 0
  %122 = vmatpush1.bf16.msra.mxu0 0
  %123 = vmatprep.subr.bf16.mxu0 0
  %124 = vmatpush1.bf16.msra.mxu0 0
  %125 = vmatprep.subr.bf16.mxu0 0
  %126 = vmatpush1.bf16.msra.mxu0 %v84
  %127 = vmatprep.subr.bf16.mxu0 0
  %128 = vmatpush2.bf16.msra.mxu0 0
  %129 = vmatprep.subr.bf16.mxu0 0
  %130 = vmatpush2.bf16.msra.mxu0 0
  %131 = vmatprep.subr.bf16.mxu0 0
  %132 = vmatpush2.bf16.msra.mxu0 0
  %133 = vmatprep.subr.bf16.mxu0 0
  %134 = vmatpush2.bf16.msra.mxu0 0
  %135 = vmatprep.subr.bf16.mxu0 0
  %136 = vmatpush2.bf16.msra.mxu0 0
  %137 = vmatprep.subr.bf16.mxu0 0
  %138 = vmatpush2.bf16.msra.mxu0 0
  %139 = vmatprep.subr.bf16.mxu0 0
  %140 = vmatpush2.bf16.msra.mxu0 0
  %141 = vmatprep.subr.bf16.mxu0 0
  %142 = vmatpush2.bf16.msra.mxu0 0
  %143 = vmatprep.mubr.bf16.mxu0 0
  %144 = vmatmul.mubr.bf16.gmra.mxu0 %v88
  %v145 = vpop.f32.mrf.mxu0
  %v146 = vadd.f32 %v38, %v145
  %v147 = vpop.f32.mrf.mxu0
  %v148 = vpop.f32.mrf.mxu0
  %v149 = vadd.f32 %v38, %v148
  %v150 = vpop.f32.mrf.mxu0
  %151 = vmatprep.mubr.bf16.mxu0 0
  %152 = vmatmul.mubr.bf16.gmra.mxu0 %v91
  %v153 = vpop.f32.mrf.mxu0
  %v154 = vadd.f32 %v38, %v153
  %v155 = vpop.f32.mrf.mxu0
  %v156 = vpop.f32.mrf.mxu0
  %v157 = vadd.f32 %v38, %v156
  %v158 = vpop.f32.mrf.mxu0
  %159 = vmatprep.mubr.bf16.mxu0 0
  %160 = vmatmul.mubr.bf16.gmra.mxu0 %v94
  %v161 = vpop.f32.mrf.mxu0
  %v162 = vadd.f32 %v38, %v161
  %v163 = vpop.f32.mrf.mxu0
  %v164 = vpop.f32.mrf.mxu0
  %v165 = vadd.f32 %v38, %v164
  %v166 = vpop.f32.mrf.mxu0
  %167 = vmatprep.mubr.bf16.mxu0 0
  %168 = vmatmul.mubr.bf16.gmra.mxu0 %v97
  %v169 = vpop.f32.mrf.mxu0
  %v170 = vadd.f32 %v38, %v169
  %v171 = vpop.f32.mrf.mxu0
  %v172 = vpop.f32.mrf.mxu0
  %v173 = vadd.f32 %v38, %v172
  %v174 = vpop.f32.mrf.mxu0
  %175 = vmatprep.mubr.bf16.mxu0 0
  %176 = vmatmul.mubr.bf16.gmra.mxu0 %v100
  %v177 = vpop.f32.mrf.mxu0
  %v178 = vadd.f32 %v38, %v177
  %v179 = vpop.f32.mrf.mxu0
  %v180 = vpop.f32.mrf.mxu0
  %v181 = vadd.f32 %v38, %v180
  %v182 = vpop.f32.mrf.mxu0
  %183 = vmatprep.mubr.bf16.mxu0 0
  %184 = vmatmul.mubr.bf16.gmra.mxu0 %v103
  %v185 = vpop.f32.mrf.mxu0
  %v186 = vadd.f32 %v38, %v185
  %v187 = vpop.f32.mrf.mxu0
  %v188 = vpop.f32.mrf.mxu0
  %v189 = vadd.f32 %v38, %v188
  %v190 = vpop.f32.mrf.mxu0
  %191 = vmatprep.mubr.bf16.mxu0 0
  %192 = vmatmul.mubr.bf16.gmra.mxu0 %v106
  %v193 = vpop.f32.mrf.mxu0
  %v194 = vadd.f32 %v38, %v193
  %v195 = vpop.f32.mrf.mxu0
  %v196 = vpop.f32.mrf.mxu0
  %v197 = vadd.f32 %v38, %v196
  %v198 = vpop.f32.mrf.mxu0
  %199 = vmatprep.mubr.bf16.mxu0 0
  %200 = vmatmul.mubr.bf16.gmra.mxu0 %v109
  %v201 = vpop.f32.mrf.mxu0
  %v202 = vadd.f32 %v38, %v201
  %v203 = vpop.f32.mrf.mxu0
  %v204 = vpop.f32.mrf.mxu0
  %v205 = vadd.f32 %v38, %v204
  %v206 = vpop.f32.mrf.mxu0
  %207 = vdwg.mxu0
  %v208 = vpack.c.bf16 %v149, %v146
  %v209 = vpack.c.bf16 %v157, %v154
  %v210 = vpack.c.bf16 %v165, %v162
  %v211 = vpack.c.bf16 %v173, %v170
  %v212 = vpack.c.bf16 %v181, %v178
  %v213 = vpack.c.bf16 %v189, %v186
  %v214 = vpack.c.bf16 %v197, %v194
  %v215 = vpack.c.bf16 %v205, %v202
  %v224 = vunpack.c.l.b16 %v208
  %v225 = vunpack.c.h.b16 %v208
  %v226 = vunpack.c.l.b16 %v209
  %v227 = vunpack.c.h.b16 %v209
  %v228 = vunpack.c.l.b16 %v210
  %v229 = vunpack.c.h.b16 %v210
  %v230 = vunpack.c.l.b16 %v211
  %v231 = vunpack.c.h.b16 %v211
  %v232 = vunpack.c.l.b16 %v212
  %v233 = vunpack.c.h.b16 %v212
  %v234 = vunpack.c.l.b16 %v213
  %v235 = vunpack.c.h.b16 %v213
  %v236 = vunpack.c.l.b16 %v214
  %v237 = vunpack.c.h.b16 %v214
  %v238 = vunpack.c.l.b16 %v215
  %v239 = vunpack.c.h.b16 %v215
  %v240 = vpack.c.b16 %v224, %v224
  %v241 = vpack.c.b16 %v225, %v225
  %v242 = vpack.c.b16 %v226, %v226
  %v243 = vpack.c.b16 %v227, %v227
  %v244 = vpack.c.b16 %v228, %v228
  %v245 = vpack.c.b16 %v229, %v229
  %v246 = vpack.c.b16 %v230, %v230
  %v247 = vpack.c.b16 %v231, %v231
  %v248 = vpack.c.b16 %v232, %v232
  %v249 = vpack.c.b16 %v233, %v233
  %v250 = vpack.c.b16 %v234, %v234
  %v251 = vpack.c.b16 %v235, %v235
  %v252 = vpack.c.b16 %v236, %v236
  %v253 = vpack.c.b16 %v237, %v237
  %v254 = vpack.c.b16 %v238, %v238
  %v255 = vpack.c.b16 %v239, %v239
  %vm272 = vcmask 388096
  %273 = vst.msk [vmem:[%s3] sm:$0xf] %vm272, %v240
  %274 = vst.msk [vmem:[%s3 + $0x4] sm:$0xf] %vm272, %v241
  %275 = vst.msk [vmem:[%s3 + $0x8] sm:$0xf] %vm272, %v242
  %276 = vst.msk [vmem:[%s3 + $0xc] sm:$0xf] %vm272, %v243
  %277 = vst.msk [vmem:[%s3 + $0x10] sm:$0xf] %vm272, %v244
  %278 = vst.msk [vmem:[%s3 + $0x14] sm:$0xf] %vm272, %v245
  %279 = vst.msk [vmem:[%s3 + $0x18] sm:$0xf] %vm272, %v246
  %280 = vst.msk [vmem:[%s3 + $0x1c] sm:$0xf] %vm272, %v247
  %281 = vst.msk [vmem:[%s3 + $0x20] sm:$0xf] %vm272, %v248
  %282 = vst.msk [vmem:[%s3 + $0x24] sm:$0xf] %vm272, %v249
  %283 = vst.msk [vmem:[%s3 + $0x28] sm:$0xf] %vm272, %v250
  %284 = vst.msk [vmem:[%s3 + $0x2c] sm:$0xf] %vm272, %v251
  %285 = vst.msk [vmem:[%s3 + $0x30] sm:$0xf] %vm272, %v252
  %286 = vst.msk [vmem:[%s3 + $0x34] sm:$0xf] %vm272, %v253
  %287 = vst.msk [vmem:[%s3 + $0x38] sm:$0xf] %vm272, %v254
  %288 = vst.msk [vmem:[%s3 + $0x3c] sm:$0xf] %vm272, %v255
  // Predicated region
  $region14: #{_lambda_.68} parent=0 // pred_check
    _
  $region15: #{_lambda_.68} parent=0 // pred_check_branch
    %290 = sbr.rel (0) target = $region17
  $region16: #{_lambda_.68} parent=0 // pred_region
    _
  $region17: #{_lambda_.68} parent=0 // pred_fallthru
    _
  // Predicated region
  $region18: #{_lambda_.68} parent=0 // pred_check
    _
  $region19: #{_lambda_.68} parent=0 // pred_check_branch
    %292 = sbr.rel (0) target = $region21
  $region20: #{_lambda_.68} parent=0 // pred_region
    _
  $region21: #{_lambda_.68} parent=0 // pred_fallthru
    _

// kernel: _lambda_.70
$region0: #{_lambda_.70}
  #allocation0 [shape = 'u32[]', space=smem, size = 0x4, offset = 0x4, fixed_abs, tag = 'smem constant byte address 0x4 - core index']
  #allocation1 [shape = 'u32[144,128]{1,0:T(1,128)}', space=vmem, size = 0x12000, scoped, tag = 'internal scratch']
  %s0 = inlined_call_operand.vmem [shape: bf16[128,16], index: 0, kind: input, shape index: {}]
  %s1 = inlined_call_operand.vmem [shape: bf16[16,32], index: 1, kind: input, shape index: {}]
  %s2 = inlined_call_operand.vmem [shape: f32[1,32], index: 2, kind: input, shape index: {}]
  %s3 = inlined_call_operand.vmem [shape: bf16[128,32], index: 3, kind: input, shape index: {}]
  %s4 = inlined_call_operand.vmem [shape: bf16[128,32], index: 4, kind: output, shape index: {}]
  %s5 = sld [smem:[#allocation0]]
  $region26: #{_lambda_.70} parent=0
    _
  %s7 = ssub.s32 1, %s5
  %s8 = scalar_select 0, %s7, %s5
  // Predicated region
  $region2: #{_lambda_.70} parent=0 // pred_check
    _
  $region3: #{_lambda_.70} parent=0 // pred_check_branch
    %10 = sbr.rel (0) target = $region5
  $region4: #{_lambda_.70} parent=0 // pred_region
    _
  $region5: #{_lambda_.70} parent=0 // pred_fallthru
    _
  // Predicated region
  $region6: #{_lambda_.70} parent=0 // pred_check
    _
  $region7: #{_lambda_.70} parent=0 // pred_check_branch
    %12 = sbr.rel (0) target = $region9
  $region8: #{_lambda_.70} parent=0 // pred_region
    _
  $region9: #{_lambda_.70} parent=0 // pred_fallthru
    _
  // Predicated region
  $region10: #{_lambda_.70} parent=0 // pred_check
    _
  $region11: #{_lambda_.70} parent=0 // pred_check_branch
    %14 = sbr.rel (0) target = $region13
  $region12: #{_lambda_.70} parent=0 // pred_region
    _
  $region13: #{_lambda_.70} parent=0 // pred_fallthru
    _
  // Predicated region
  $region14: #{_lambda_.70} parent=0 // pred_check
    _
  $region15: #{_lambda_.70} parent=0 // pred_check_branch
    %16 = sbr.rel (0) target = $region17
  $region16: #{_lambda_.70} parent=0 // pred_region
    _
  $region17: #{_lambda_.70} parent=0 // pred_fallthru
    _
  %v18 = vld [vmem:[%s0] sm:$0xf]
  %v19 = vld [vmem:[%s0 + $0x4] sm:$0xf]
  %v20 = vld [vmem:[%s0 + $0x8] sm:$0xf]
  %v21 = vld [vmem:[%s0 + $0xc] sm:$0xf]
  %v22 = vld [vmem:[%s0 + $0x10] sm:$0xf]
  %v23 = vld [vmem:[%s0 + $0x14] sm:$0xf]
  %v24 = vld [vmem:[%s0 + $0x18] sm:$0xf]
  %v25 = vld [vmem:[%s0 + $0x1c] sm:$0xf]
  %v26 = vld [vmem:[%s0 + $0x20] sm:$0xf]
  %v27 = vld [vmem:[%s0 + $0x24] sm:$0xf]
  %v28 = vld [vmem:[%s0 + $0x28] sm:$0xf]
  %v29 = vld [vmem:[%s0 + $0x2c] sm:$0xf]
  %v30 = vld [vmem:[%s0 + $0x30] sm:$0xf]
  %v31 = vld [vmem:[%s0 + $0x34] sm:$0xf]
  %v32 = vld [vmem:[%s0 + $0x38] sm:$0xf]
  %v33 = vld [vmem:[%s0 + $0x3c] sm:$0xf]
  %v34 = vld [vmem:[%s1] sm:$0xf]
  %v35 = vld [vmem:[%s1 + $0x4] sm:$0xf]
  %v36 = vld [vmem:[%s2] sm:$0x1]
  %v38 = vlaneseq
  %v39 = vshrl.u32 %v38, 7
  %v40 = vsub.s32 0, %v39
  %v41 = vrot.slane %v36, %v40
  %v59 = vunpack.c.l.b16 %v18
  %v60 = vunpack.c.l.b16 %v19
  %v61 = vunpack.c.l.b16 %v20
  %v62 = vunpack.c.l.b16 %v21
  %v63 = vunpack.c.l.b16 %v22
  %v64 = vunpack.c.l.b16 %v23
  %v65 = vunpack.c.l.b16 %v24
  %v66 = vunpack.c.l.b16 %v25
  %v67 = vunpack.c.l.b16 %v26
  %v68 = vunpack.c.l.b16 %v27
  %v69 = vunpack.c.l.b16 %v28
  %v70 = vunpack.c.l.b16 %v29
  %v71 = vunpack.c.l.b16 %v30
  %v72 = vunpack.c.l.b16 %v31
  %v73 = vunpack.c.l.b16 %v32
  %v74 = vunpack.c.l.b16 %v33
  %v75 = vpack.c.b16 %v60, %v59
  %v76 = vpack.c.b16 %v62, %v61
  %v77 = vpack.c.b16 %v64, %v63
  %v78 = vpack.c.b16 %v66, %v65
  %v79 = vpack.c.b16 %v68, %v67
  %v80 = vpack.c.b16 %v70, %v69
  %v81 = vpack.c.b16 %v72, %v71
  %v82 = vpack.c.b16 %v74, %v73
  %v85 = vunpack.c.l.b16 %v34
  %v86 = vunpack.c.l.b16 %v35
  %v87 = vpack.c.b16 %v86, %v85
  %vm89 = vcmask 130048
  %v91 = vsel %vm89, %v75, 0
  %v94 = vsel %vm89, %v76, 0
  %v97 = vsel %vm89, %v77, 0
  %v100 = vsel %vm89, %v78, 0
  %v103 = vsel %vm89, %v79, 0
  %v106 = vsel %vm89, %v80, 0
  %v109 = vsel %vm89, %v81, 0
  %v112 = vsel %vm89, %v82, 0
  %114 = vmatprep.subr.bf16.mxu0 0
  %115 = vmatpush1.bf16.msra.mxu0 0
  %116 = vmatprep.subr.bf16.mxu0 0
  %117 = vmatpush1.bf16.msra.mxu0 0
  %118 = vmatprep.subr.bf16.mxu0 0
  %119 = vmatpush1.bf16.msra.mxu0 0
  %120 = vmatprep.subr.bf16.mxu0 0
  %121 = vmatpush1.bf16.msra.mxu0 0
  %122 = vmatprep.subr.bf16.mxu0 0
  %123 = vmatpush1.bf16.msra.mxu0 0
  %124 = vmatprep.subr.bf16.mxu0 0
  %125 = vmatpush1.bf16.msra.mxu0 0
  %126 = vmatprep.subr.bf16.mxu0 0
  %127 = vmatpush1.bf16.msra.mxu0 0
  %128 = vmatprep.subr.bf16.mxu0 0
  %129 = vmatpush1.bf16.msra.mxu0 %v87
  %130 = vmatprep.subr.bf16.mxu0 0
  %131 = vmatpush2.bf16.msra.mxu0 0
  %132 = vmatprep.subr.bf16.mxu0 0
  %133 = vmatpush2.bf16.msra.mxu0 0
  %134 = vmatprep.subr.bf16.mxu0 0
  %135 = vmatpush2.bf16.msra.mxu0 0
  %136 = vmatprep.subr.bf16.mxu0 0
  %137 = vmatpush2.bf16.msra.mxu0 0
  %138 = vmatprep.subr.bf16.mxu0 0
  %139 = vmatpush2.bf16.msra.mxu0 0
  %140 = vmatprep.subr.bf16.mxu0 0
  %141 = vmatpush2.bf16.msra.mxu0 0
  %142 = vmatprep.subr.bf16.mxu0 0
  %143 = vmatpush2.bf16.msra.mxu0 0
  %144 = vmatprep.subr.bf16.mxu0 0
  %145 = vmatpush2.bf16.msra.mxu0 0
  %146 = vmatprep.mubr.bf16.mxu0 0
  %147 = vmatmul.mubr.bf16.gmra.mxu0 %v91
  %v148 = vpop.f32.mrf.mxu0
  %v149 = vadd.f32 %v41, %v148
  %v150 = vpop.f32.mrf.mxu0
  %v151 = vpop.f32.mrf.mxu0
  %v152 = vadd.f32 %v41, %v151
  %v153 = vpop.f32.mrf.mxu0
  %154 = vmatprep.mubr.bf16.mxu0 0
  %155 = vmatmul.mubr.bf16.gmra.mxu0 %v94
  %v156 = vpop.f32.mrf.mxu0
  %v157 = vadd.f32 %v41, %v156
  %v158 = vpop.f32.mrf.mxu0
  %v159 = vpop.f32.mrf.mxu0
  %v160 = vadd.f32 %v41, %v159
  %v161 = vpop.f32.mrf.mxu0
  %162 = vmatprep.mubr.bf16.mxu0 0
  %163 = vmatmul.mubr.bf16.gmra.mxu0 %v97
  %v164 = vpop.f32.mrf.mxu0
  %v165 = vadd.f32 %v41, %v164
  %v166 = vpop.f32.mrf.mxu0
  %v167 = vpop.f32.mrf.mxu0
  %v168 = vadd.f32 %v41, %v167
  %v169 = vpop.f32.mrf.mxu0
  %170 = vmatprep.mubr.bf16.mxu0 0
  %171 = vmatmul.mubr.bf16.gmra.mxu0 %v100
  %v172 = vpop.f32.mrf.mxu0
  %v173 = vadd.f32 %v41, %v172
  %v174 = vpop.f32.mrf.mxu0
  %v175 = vpop.f32.mrf.mxu0
  %v176 = vadd.f32 %v41, %v175
  %v177 = vpop.f32.mrf.mxu0
  %178 = vmatprep.mubr.bf16.mxu0 0
  %179 = vmatmul.mubr.bf16.gmra.mxu0 %v103
  %v180 = vpop.f32.mrf.mxu0
  %v181 = vadd.f32 %v41, %v180
  %v182 = vpop.f32.mrf.mxu0
  %v183 = vpop.f32.mrf.mxu0
  %v184 = vadd.f32 %v41, %v183
  %v185 = vpop.f32.mrf.mxu0
  %186 = vmatprep.mubr.bf16.mxu0 0
  %187 = vmatmul.mubr.bf16.gmra.mxu0 %v106
  %v188 = vpop.f32.mrf.mxu0
  %v189 = vadd.f32 %v41, %v188
  %v190 = vpop.f32.mrf.mxu0
  %v191 = vpop.f32.mrf.mxu0
  %v192 = vadd.f32 %v41, %v191
  %v193 = vpop.f32.mrf.mxu0
  %194 = vmatprep.mubr.bf16.mxu0 0
  %195 = vmatmul.mubr.bf16.gmra.mxu0 %v109
  %v196 = vpop.f32.mrf.mxu0
  %v197 = vadd.f32 %v41, %v196
  %v198 = vpop.f32.mrf.mxu0
  %v199 = vpop.f32.mrf.mxu0
  %v200 = vadd.f32 %v41, %v199
  %v201 = vpop.f32.mrf.mxu0
  %202 = vmatprep.mubr.bf16.mxu0 0
  %203 = vmatmul.mubr.bf16.gmra.mxu0 %v112
  %v204 = vpop.f32.mrf.mxu0
  %v205 = vadd.f32 %v41, %v204
  %v206 = vpop.f32.mrf.mxu0
  %v207 = vpop.f32.mrf.mxu0
  %v208 = vadd.f32 %v41, %v207
  %v209 = vpop.f32.mrf.mxu0
  %210 = vdwg.mxu0
  %v211 = vld [vmem:[%s3] sm:$0xf]
  %v212 = vld [vmem:[%s3 + $0x4] sm:$0xf]
  %v213 = vld [vmem:[%s3 + $0x8] sm:$0xf]
  %v214 = vld [vmem:[%s3 + $0xc] sm:$0xf]
  %v215 = vld [vmem:[%s3 + $0x10] sm:$0xf]
  %v216 = vld [vmem:[%s3 + $0x14] sm:$0xf]
  %v217 = vld [vmem:[%s3 + $0x18] sm:$0xf]
  %v218 = vld [vmem:[%s3 + $0x1c] sm:$0xf]
  %v219 = vld [vmem:[%s3 + $0x20] sm:$0xf]
  %v220 = vld [vmem:[%s3 + $0x24] sm:$0xf]
  %v221 = vld [vmem:[%s3 + $0x28] sm:$0xf]
  %v222 = vld [vmem:[%s3 + $0x2c] sm:$0xf]
  %v223 = vld [vmem:[%s3 + $0x30] sm:$0xf]
  %v224 = vld [vmem:[%s3 + $0x34] sm:$0xf]
  %v225 = vld [vmem:[%s3 + $0x38] sm:$0xf]
  %v226 = vld [vmem:[%s3 + $0x3c] sm:$0xf]
  %v227 = vunpack.c.l.bf16 %v211
  %v228 = vunpack.c.l.bf16 %v212
  %v229 = vunpack.c.l.bf16 %v213
  %v230 = vunpack.c.l.bf16 %v214
  %v231 = vunpack.c.l.bf16 %v215
  %v232 = vunpack.c.l.bf16 %v216
  %v233 = vunpack.c.l.bf16 %v217
  %v234 = vunpack.c.l.bf16 %v218
  %v235 = vunpack.c.l.bf16 %v219
  %v236 = vunpack.c.l.bf16 %v220
  %v237 = vunpack.c.l.bf16 %v221
  %v238 = vunpack.c.l.bf16 %v222
  %v239 = vunpack.c.l.bf16 %v223
  %v240 = vunpack.c.l.bf16 %v224
  %v241 = vunpack.c.l.bf16 %v225
  %v242 = vunpack.c.l.bf16 %v226
  %v243 = vadd.f32 %v149, %v227
  %v244 = vadd.f32 %v152, %v228
  %v245 = vadd.f32 %v157, %v229
  %v246 = vadd.f32 %v160, %v230
  %v247 = vadd.f32 %v165, %v231
  %v248 = vadd.f32 %v168, %v232
  %v249 = vadd.f32 %v173, %v233
  %v250 = vadd.f32 %v176, %v234
  %v251 = vadd.f32 %v181, %v235
  %v252 = vadd.f32 %v184, %v236
  %v253 = vadd.f32 %v189, %v237
  %v254 = vadd.f32 %v192, %v238
  %v255 = vadd.f32 %v197, %v239
  %v256 = vadd.f32 %v200, %v240
  %v257 = vadd.f32 %v205, %v241
  %v258 = vadd.f32 %v208, %v242
  %v259 = vpack.c.bf16 %v244, %v243
  %v260 = vpack.c.bf16 %v246, %v245
  %v261 = vpack.c.bf16 %v248, %v247
  %v262 = vpack.c.bf16 %v250, %v249
  %v263 = vpack.c.bf16 %v252, %v251
  %v264 = vpack.c.bf16 %v254, %v253
  %v265 = vpack.c.bf16 %v256, %v255
  %v266 = vpack.c.bf16 %v258, %v257
  %v275 = vunpack.c.l.b16 %v259
  %v276 = vunpack.c.h.b16 %v259
  %v277 = vunpack.c.l.b16 %v260
  %v278 = vunpack.c.h.b16 %v260
  %v279 = vunpack.c.l.b16 %v261
  %v280 = vunpack.c.h.b16 %v261
  %v281 = vunpack.c.l.b16 %v262
  %v282 = vunpack.c.h.b16 %v262
  %v283 = vunpack.c.l.b16 %v263
  %v284 = vunpack.c.h.b16 %v263
  %v285 = vunpack.c.l.b16 %v264
  %v286 = vunpack.c.h.b16 %v264
  %v287 = vunpack.c.l.b16 %v265
  %v288 = vunpack.c.h.b16 %v265
  %v289 = vunpack.c.l.b16 %v266
  %v290 = vunpack.c.h.b16 %v266
  %v291 = vpack.c.b16 %v275, %v275
  %v292 = vpack.c.b16 %v276, %v276
  %v293 = vpack.c.b16 %v277, %v277
  %v294 = vpack.c.b16 %v278, %v278
  %v295 = vpack.c.b16 %v279, %v279
  %v296 = vpack.c.b16 %v280, %v280
  %v297 = vpack.c.b16 %v281, %v281
  %v298 = vpack.c.b16 %v282, %v282
  %v299 = vpack.c.b16 %v283, %v283
  %v300 = vpack.c.b16 %v284, %v284
  %v301 = vpack.c.b16 %v285, %v285
  %v302 = vpack.c.b16 %v286, %v286
  %v303 = vpack.c.b16 %v287, %v287
  %v304 = vpack.c.b16 %v288, %v288
  %v305 = vpack.c.b16 %v289, %v289
  %v306 = vpack.c.b16 %v290, %v290
  %vm323 = vcmask 257024
  %324 = vst.msk [vmem:[%s4] sm:$0xf] %vm323, %v291
  %325 = vst.msk [vmem:[%s4 + $0x4] sm:$0xf] %vm323, %v292
  %326 = vst.msk [vmem:[%s4 + $0x8] sm:$0xf] %vm323, %v293
  %327 = vst.msk [vmem:[%s4 + $0xc] sm:$0xf] %vm323, %v294
  %328 = vst.msk [vmem:[%s4 + $0x10] sm:$0xf] %vm323, %v295
  %329 = vst.msk [vmem:[%s4 + $0x14] sm:$0xf] %vm323, %v296
  %330 = vst.msk [vmem:[%s4 + $0x18] sm:$0xf] %vm323, %v297
  %331 = vst.msk [vmem:[%s4 + $0x1c] sm:$0xf] %vm323, %v298
  %332 = vst.msk [vmem:[%s4 + $0x20] sm:$0xf] %vm323, %v299
  %333 = vst.msk [vmem:[%s4 + $0x24] sm:$0xf] %vm323, %v300
  %334 = vst.msk [vmem:[%s4 + $0x28] sm:$0xf] %vm323, %v301
  %335 = vst.msk [vmem:[%s4 + $0x2c] sm:$0xf] %vm323, %v302
  %336 = vst.msk [vmem:[%s4 + $0x30] sm:$0xf] %vm323, %v303
  %337 = vst.msk [vmem:[%s4 + $0x34] sm:$0xf] %vm323, %v304
  %338 = vst.msk [vmem:[%s4 + $0x38] sm:$0xf] %vm323, %v305
  %339 = vst.msk [vmem:[%s4 + $0x3c] sm:$0xf] %vm323, %v306
  // Predicated region
  $region18: #{_lambda_.70} parent=0 // pred_check
    _
  $region19: #{_lambda_.70} parent=0 // pred_check_branch
    %341 = sbr.rel (0) target = $region21
  $region20: #{_lambda_.70} parent=0 // pred_region
    _
  $region21: #{_lambda_.70} parent=0 // pred_fallthru
    _
  // Predicated region
  $region22: #{_lambda_.70} parent=0 // pred_check
    _
  $region23: #{_lambda_.70} parent=0 // pred_check_branch
    %343 = sbr.rel (0) target = $region25
  $region24: #{_lambda_.70} parent=0 // pred_region
    _
  $region25: #{_lambda_.70} parent=0 // pred_fallthru
    _

// kernel: _lambda_.71
$region0: #{_lambda_.71}
  #allocation0 [shape = 'u32[]', space=smem, size = 0x4, offset = 0x4, fixed_abs, tag = 'smem constant byte address 0x4 - core index']
  #allocation1 [shape = 'u32[144,128]{1,0:T(1,128)}', space=vmem, size = 0x12000, scoped, tag = 'internal scratch']
  %s0 = inlined_call_operand.vmem [shape: bf16[128,32], index: 0, kind: input, shape index: {}]
  %s1 = inlined_call_operand.vmem [shape: bf16[32,32], index: 1, kind: input, shape index: {}]
  %s2 = inlined_call_operand.vmem [shape: f32[1,32], index: 2, kind: input, shape index: {}]
  %s3 = inlined_call_operand.vmem [shape: bf16[128,32], index: 3, kind: output, shape index: {}]
  %s4 = sld [smem:[#allocation0]]
  $region22: #{_lambda_.71} parent=0
    _
  %s6 = ssub.s32 1, %s4
  %s7 = scalar_select 0, %s6, %s4
  // Predicated region
  $region2: #{_lambda_.71} parent=0 // pred_check
    _
  $region3: #{_lambda_.71} parent=0 // pred_check_branch
    %9 = sbr.rel (0) target = $region5
  $region4: #{_lambda_.71} parent=0 // pred_region
    _
  $region5: #{_lambda_.71} parent=0 // pred_fallthru
    _
  // Predicated region
  $region6: #{_lambda_.71} parent=0 // pred_check
    _
  $region7: #{_lambda_.71} parent=0 // pred_check_branch
    %11 = sbr.rel (0) target = $region9
  $region8: #{_lambda_.71} parent=0 // pred_region
    _
  $region9: #{_lambda_.71} parent=0 // pred_fallthru
    _
  // Predicated region
  $region10: #{_lambda_.71} parent=0 // pred_check
    _
  $region11: #{_lambda_.71} parent=0 // pred_check_branch
    %13 = sbr.rel (0) target = $region13
  $region12: #{_lambda_.71} parent=0 // pred_region
    _
  $region13: #{_lambda_.71} parent=0 // pred_fallthru
    _
  %v15 = vld [vmem:[%s0] sm:$0xf]
  %v16 = vld [vmem:[%s0 + $0x4] sm:$0xf]
  %v17 = vld [vmem:[%s0 + $0x8] sm:$0xf]
  %v18 = vld [vmem:[%s0 + $0xc] sm:$0xf]
  %v19 = vld [vmem:[%s0 + $0x10] sm:$0xf]
  %v20 = vld [vmem:[%s0 + $0x14] sm:$0xf]
  %v21 = vld [vmem:[%s0 + $0x18] sm:$0xf]
  %v22 = vld [vmem:[%s0 + $0x1c] sm:$0xf]
  %v23 = vld [vmem:[%s0 + $0x20] sm:$0xf]
  %v24 = vld [vmem:[%s0 + $0x24] sm:$0xf]
  %v25 = vld [vmem:[%s0 + $0x28] sm:$0xf]
  %v26 = vld [vmem:[%s0 + $0x2c] sm:$0xf]
  %v27 = vld [vmem:[%s0 + $0x30] sm:$0xf]
  %v28 = vld [vmem:[%s0 + $0x34] sm:$0xf]
  %v29 = vld [vmem:[%s0 + $0x38] sm:$0xf]
  %v30 = vld [vmem:[%s0 + $0x3c] sm:$0xf]
  %v31 = vld [vmem:[%s1] sm:$0xf]
  %v32 = vld [vmem:[%s1 + $0x4] sm:$0xf]
  %v33 = vld [vmem:[%s1 + $0x8] sm:$0xf]
  %v34 = vld [vmem:[%s1 + $0xc] sm:$0xf]
  %v35 = vld [vmem:[%s2] sm:$0x1]
  %v37 = vlaneseq
  %v38 = vshrl.u32 %v37, 7
  %v39 = vsub.s32 0, %v38
  %v40 = vrot.slane %v35, %v39
  %v58 = vunpack.c.l.b16 %v15
  %v59 = vunpack.c.l.b16 %v16
  %v60 = vunpack.c.l.b16 %v17
  %v61 = vunpack.c.l.b16 %v18
  %v62 = vunpack.c.l.b16 %v19
  %v63 = vunpack.c.l.b16 %v20
  %v64 = vunpack.c.l.b16 %v21
  %v65 = vunpack.c.l.b16 %v22
  %v66 = vunpack.c.l.b16 %v23
  %v67 = vunpack.c.l.b16 %v24
  %v68 = vunpack.c.l.b16 %v25
  %v69 = vunpack.c.l.b16 %v26
  %v70 = vunpack.c.l.b16 %v27
  %v71 = vunpack.c.l.b16 %v28
  %v72 = vunpack.c.l.b16 %v29
  %v73 = vunpack.c.l.b16 %v30
  %v74 = vpack.c.b16 %v59, %v58
  %v75 = vpack.c.b16 %v61, %v60
  %v76 = vpack.c.b16 %v63, %v62
  %v77 = vpack.c.b16 %v65, %v64
  %v78 = vpack.c.b16 %v67, %v66
  %v79 = vpack.c.b16 %v69, %v68
  %v80 = vpack.c.b16 %v71, %v70
  %v81 = vpack.c.b16 %v73, %v72
  %v86 = vunpack.c.l.b16 %v31
  %v87 = vunpack.c.l.b16 %v32
  %v88 = vunpack.c.l.b16 %v33
  %v89 = vunpack.c.l.b16 %v34
  %v90 = vpack.c.b16 %v87, %v86
  %v91 = vpack.c.b16 %v89, %v88
  %vm94 = vcmask 261120
  %v96 = vsel %vm94, %v74, 0
  %v99 = vsel %vm94, %v75, 0
  %v102 = vsel %vm94, %v76, 0
  %v105 = vsel %vm94, %v77, 0
  %v108 = vsel %vm94, %v78, 0
  %v111 = vsel %vm94, %v79, 0
  %v114 = vsel %vm94, %v80, 0
  %v117 = vsel %vm94, %v81, 0
  %119 = vmatprep.subr.bf16.mxu0 0
  %120 = vmatpush1.bf16.msra.mxu0 0
  %121 = vmatprep.subr.bf16.mxu0 0
  %122 = vmatpush1.bf16.msra.mxu0 0
  %123 = vmatprep.subr.bf16.mxu0 0
  %124 = vmatpush1.bf16.msra.mxu0 0
  %125 = vmatprep.subr.bf16.mxu0 0
  %126 = vmatpush1.bf16.msra.mxu0 0
  %127 = vmatprep.subr.bf16.mxu0 0
  %128 = vmatpush1.bf16.msra.mxu0 0
  %129 = vmatprep.subr.bf16.mxu0 0
  %130 = vmatpush1.bf16.msra.mxu0 0
  %131 = vmatprep.subr.bf16.mxu0 0
  %132 = vmatpush1.bf16.msra.mxu0 %v91
  %133 = vmatprep.subr.bf16.mxu0 0
  %134 = vmatpush1.bf16.msra.mxu0 %v90
  %135 = vmatprep.subr.bf16.mxu0 0
  %136 = vmatpush2.bf16.msra.mxu0 0
  %137 = vmatprep.subr.bf16.mxu0 0
  %138 = vmatpush2.bf16.msra.mxu0 0
  %139 = vmatprep.subr.bf16.mxu0 0
  %140 = vmatpush2.bf16.msra.mxu0 0
  %141 = vmatprep.subr.bf16.mxu0 0
  %142 = vmatpush2.bf16.msra.mxu0 0
  %143 = vmatprep.subr.bf16.mxu0 0
  %144 = vmatpush2.bf16.msra.mxu0 0
  %145 = vmatprep.subr.bf16.mxu0 0
  %146 = vmatpush2.bf16.msra.mxu0 0
  %147 = vmatprep.subr.bf16.mxu0 0
  %148 = vmatpush2.bf16.msra.mxu0 0
  %149 = vmatprep.subr.bf16.mxu0 0
  %150 = vmatpush2.bf16.msra.mxu0 0
  %151 = vmatprep.mubr.bf16.mxu0 0
  %152 = vmatmul.mubr.bf16.gmra.mxu0 %v96
  %v153 = vpop.f32.mrf.mxu0
  %v154 = vadd.f32 %v40, %v153
  %v155 = vpop.f32.mrf.mxu0
  %v156 = vpop.f32.mrf.mxu0
  %v157 = vadd.f32 %v40, %v156
  %v158 = vpop.f32.mrf.mxu0
  %159 = vmatprep.mubr.bf16.mxu0 0
  %160 = vmatmul.mubr.bf16.gmra.mxu0 %v99
  %v161 = vpop.f32.mrf.mxu0
  %v162 = vadd.f32 %v40, %v161
  %v163 = vpop.f32.mrf.mxu0
  %v164 = vpop.f32.mrf.mxu0
  %v165 = vadd.f32 %v40, %v164
  %v166 = vpop.f32.mrf.mxu0
  %167 = vmatprep.mubr.bf16.mxu0 0
  %168 = vmatmul.mubr.bf16.gmra.mxu0 %v102
  %v169 = vpop.f32.mrf.mxu0
  %v170 = vadd.f32 %v40, %v169
  %v171 = vpop.f32.mrf.mxu0
  %v172 = vpop.f32.mrf.mxu0
  %v173 = vadd.f32 %v40, %v172
  %v174 = vpop.f32.mrf.mxu0
  %175 = vmatprep.mubr.bf16.mxu0 0
  %176 = vmatmul.mubr.bf16.gmra.mxu0 %v105
  %v177 = vpop.f32.mrf.mxu0
  %v178 = vadd.f32 %v40, %v177
  %v179 = vpop.f32.mrf.mxu0
  %v180 = vpop.f32.mrf.mxu0
  %v181 = vadd.f32 %v40, %v180
  %v182 = vpop.f32.mrf.mxu0
  %183 = vmatprep.mubr.bf16.mxu0 0
  %184 = vmatmul.mubr.bf16.gmra.mxu0 %v108
  %v185 = vpop.f32.mrf.mxu0
  %v186 = vadd.f32 %v40, %v185
  %v187 = vpop.f32.mrf.mxu0
  %v188 = vpop.f32.mrf.mxu0
  %v189 = vadd.f32 %v40, %v188
  %v190 = vpop.f32.mrf.mxu0
  %191 = vmatprep.mubr.bf16.mxu0 0
  %192 = vmatmul.mubr.bf16.gmra.mxu0 %v111
  %v193 = vpop.f32.mrf.mxu0
  %v194 = vadd.f32 %v40, %v193
  %v195 = vpop.f32.mrf.mxu0
  %v196 = vpop.f32.mrf.mxu0
  %v197 = vadd.f32 %v40, %v196
  %v198 = vpop.f32.mrf.mxu0
  %199 = vmatprep.mubr.bf16.mxu0 0
  %200 = vmatmul.mubr.bf16.gmra.mxu0 %v114
  %v201 = vpop.f32.mrf.mxu0
  %v202 = vadd.f32 %v40, %v201
  %v203 = vpop.f32.mrf.mxu0
  %v204 = vpop.f32.mrf.mxu0
  %v205 = vadd.f32 %v40, %v204
  %v206 = vpop.f32.mrf.mxu0
  %207 = vmatprep.mubr.bf16.mxu0 0
  %208 = vmatmul.mubr.bf16.gmra.mxu0 %v117
  %v209 = vpop.f32.mrf.mxu0
  %v210 = vadd.f32 %v40, %v209
  %v211 = vpop.f32.mrf.mxu0
  %v212 = vpop.f32.mrf.mxu0
  %v213 = vadd.f32 %v40, %v212
  %v214 = vpop.f32.mrf.mxu0
  %215 = vdwg.mxu0
  %v216 = vpack.c.bf16 %v157, %v154
  %v217 = vpack.c.bf16 %v165, %v162
  %v218 = vpack.c.bf16 %v173, %v170
  %v219 = vpack.c.bf16 %v181, %v178
  %v220 = vpack.c.bf16 %v189, %v186
  %v221 = vpack.c.bf16 %v197, %v194
  %v222 = vpack.c.bf16 %v205, %v202
  %v223 = vpack.c.bf16 %v213, %v210
  %v232 = vunpack.c.l.b16 %v216
  %v233 = vunpack.c.h.b16 %v216
  %v234 = vunpack.c.l.b16 %v217
  %v235 = vunpack.c.h.b16 %v217
  %v236 = vunpack.c.l.b16 %v218
  %v237 = vunpack.c.h.b16 %v218
  %v238 = vunpack.c.l.b16 %v219
  %v239 = vunpack.c.h.b16 %v219
  %v240 = vunpack.c.l.b16 %v220
  %v241 = vunpack.c.h.b16 %v220
  %v242 = vunpack.c.l.b16 %v221
  %v243 = vunpack.c.h.b16 %v221
  %v244 = vunpack.c.l.b16 %v222
  %v245 = vunpack.c.h.b16 %v222
  %v246 = vunpack.c.l.b16 %v223
  %v247 = vunpack.c.h.b16 %v223
  %v248 = vpack.c.b16 %v232, %v232
  %v249 = vpack.c.b16 %v233, %v233
  %v250 = vpack.c.b16 %v234, %v234
  %v251 = vpack.c.b16 %v235, %v235
  %v252 = vpack.c.b16 %v236, %v236
  %v253 = vpack.c.b16 %v237, %v237
  %v254 = vpack.c.b16 %v238, %v238
  %v255 = vpack.c.b16 %v239, %v239
  %v256 = vpack.c.b16 %v240, %v240
  %v257 = vpack.c.b16 %v241, %v241
  %v258 = vpack.c.b16 %v242, %v242
  %v259 = vpack.c.b16 %v243, %v243
  %v260 = vpack.c.b16 %v244, %v244
  %v261 = vpack.c.b16 %v245, %v245
  %v262 = vpack.c.b16 %v246, %v246
  %v263 = vpack.c.b16 %v247, %v247
  %vm280 = vcmask 257024
  %281 = vst.msk [vmem:[%s3] sm:$0xf] %vm280, %v248
  %282 = vst.msk [vmem:[%s3 + $0x4] sm:$0xf] %vm280, %v249
  %283 = vst.msk [vmem:[%s3 + $0x8] sm:$0xf] %vm280, %v250
  %284 = vst.msk [vmem:[%s3 + $0xc] sm:$0xf] %vm280, %v251
  %285 = vst.msk [vmem:[%s3 + $0x10] sm:$0xf] %vm280, %v252
  %286 = vst.msk [vmem:[%s3 + $0x14] sm:$0xf] %vm280, %v253
  %287 = vst.msk [vmem:[%s3 + $0x18] sm:$0xf] %vm280, %v254
  %288 = vst.msk [vmem:[%s3 + $0x1c] sm:$0xf] %vm280, %v255
  %289 = vst.msk [vmem:[%s3 + $0x20] sm:$0xf] %vm280, %v256
  %290 = vst.msk [vmem:[%s3 + $0x24] sm:$0xf] %vm280, %v257
  %291 = vst.msk [vmem:[%s3 + $0x28] sm:$0xf] %vm280, %v258
  %292 = vst.msk [vmem:[%s3 + $0x2c] sm:$0xf] %vm280, %v259
  %293 = vst.msk [vmem:[%s3 + $0x30] sm:$0xf] %vm280, %v260
  %294 = vst.msk [vmem:[%s3 + $0x34] sm:$0xf] %vm280, %v261
  %295 = vst.msk [vmem:[%s3 + $0x38] sm:$0xf] %vm280, %v262
  %296 = vst.msk [vmem:[%s3 + $0x3c] sm:$0xf] %vm280, %v263
  // Predicated region
  $region14: #{_lambda_.71} parent=0 // pred_check
    _
  $region15: #{_lambda_.71} parent=0 // pred_check_branch
    %298 = sbr.rel (0) target = $region17
  $region16: #{_lambda_.71} parent=0 // pred_region
    _
  $region17: #{_lambda_.71} parent=0 // pred_fallthru
    _
  // Predicated region
  $region18: #{_lambda_.71} parent=0 // pred_check
    _
  $region19: #{_lambda_.71} parent=0 // pred_check_branch
    %300 = sbr.rel (0) target = $region21
  $region20: #{_lambda_.71} parent=0 // pred_region
    _
  $region21: #{_lambda_.71} parent=0 // pred_fallthru
    _

// kernel: _lambda_.54
$region0: #{_lambda_.54}
  #allocation0 [shape = 'u32[]', space=smem, size = 0x4, offset = 0x4, fixed_abs, tag = 'smem constant byte address 0x4 - core index']
  #allocation1 [shape = 'u32[144,128]{1,0:T(1,128)}', space=vmem, size = 0x12000, scoped, tag = 'internal scratch']
  %s0 = inlined_call_operand.vmem [shape: bf16[128,16], index: 0, kind: input, shape index: {}]
  %s1 = inlined_call_operand.vmem [shape: bf16[16,8], index: 1, kind: input, shape index: {}]
  %s2 = inlined_call_operand.vmem [shape: f32[1,8], index: 2, kind: input, shape index: {}]
  %s3 = inlined_call_operand.vmem [shape: bf16[128,8], index: 3, kind: output, shape index: {}]
  %s4 = sld [smem:[#allocation0]]
  $region22: #{_lambda_.54} parent=0
    _
  %s6 = ssub.s32 1, %s4
  %s7 = scalar_select 0, %s6, %s4
  // Predicated region
  $region2: #{_lambda_.54} parent=0 // pred_check
    _
  $region3: #{_lambda_.54} parent=0 // pred_check_branch
    %9 = sbr.rel (0) target = $region5
  $region4: #{_lambda_.54} parent=0 // pred_region
    _
  $region5: #{_lambda_.54} parent=0 // pred_fallthru
    _
  // Predicated region
  $region6: #{_lambda_.54} parent=0 // pred_check
    _
  $region7: #{_lambda_.54} parent=0 // pred_check_branch
    %11 = sbr.rel (0) target = $region9
  $region8: #{_lambda_.54} parent=0 // pred_region
    _
  $region9: #{_lambda_.54} parent=0 // pred_fallthru
    _
  // Predicated region
  $region10: #{_lambda_.54} parent=0 // pred_check
    _
  $region11: #{_lambda_.54} parent=0 // pred_check_branch
    %13 = sbr.rel (0) target = $region13
  $region12: #{_lambda_.54} parent=0 // pred_region
    _
  $region13: #{_lambda_.54} parent=0 // pred_fallthru
    _
  %v15 = vld [vmem:[%s0] sm:$0xf]
  %v16 = vld [vmem:[%s0 + $0x4] sm:$0xf]
  %v17 = vld [vmem:[%s0 + $0x8] sm:$0xf]
  %v18 = vld [vmem:[%s0 + $0xc] sm:$0xf]
  %v19 = vld [vmem:[%s0 + $0x10] sm:$0xf]
  %v20 = vld [vmem:[%s0 + $0x14] sm:$0xf]
  %v21 = vld [vmem:[%s0 + $0x18] sm:$0xf]
  %v22 = vld [vmem:[%s0 + $0x1c] sm:$0xf]
  %v23 = vld [vmem:[%s0 + $0x20] sm:$0xf]
  %v24 = vld [vmem:[%s0 + $0x24] sm:$0xf]
  %v25 = vld [vmem:[%s0 + $0x28] sm:$0xf]
  %v26 = vld [vmem:[%s0 + $0x2c] sm:$0xf]
  %v27 = vld [vmem:[%s0 + $0x30] sm:$0xf]
  %v28 = vld [vmem:[%s0 + $0x34] sm:$0xf]
  %v29 = vld [vmem:[%s0 + $0x38] sm:$0xf]
  %v30 = vld [vmem:[%s0 + $0x3c] sm:$0xf]
  %v31 = vld [vmem:[%s1] sm:$0xf]
  %v32 = vld [vmem:[%s1 + $0x4] sm:$0xf]
  %v33 = vld [vmem:[%s2] sm:$0x1]
  %v35 = vlaneseq
  %v36 = vshrl.u32 %v35, 7
  %v37 = vsub.s32 0, %v36
  %v38 = vrot.slane %v33, %v37
  %v56 = vunpack.c.l.b16 %v15
  %v57 = vunpack.c.l.b16 %v16
  %v58 = vunpack.c.l.b16 %v17
  %v59 = vunpack.c.l.b16 %v18
  %v60 = vunpack.c.l.b16 %v19
  %v61 = vunpack.c.l.b16 %v20
  %v62 = vunpack.c.l.b16 %v21
  %v63 = vunpack.c.l.b16 %v22
  %v64 = vunpack.c.l.b16 %v23
  %v65 = vunpack.c.l.b16 %v24
  %v66 = vunpack.c.l.b16 %v25
  %v67 = vunpack.c.l.b16 %v26
  %v68 = vunpack.c.l.b16 %v27
  %v69 = vunpack.c.l.b16 %v28
  %v70 = vunpack.c.l.b16 %v29
  %v71 = vunpack.c.l.b16 %v30
  %v72 = vpack.c.b16 %v57, %v56
  %v73 = vpack.c.b16 %v59, %v58
  %v74 = vpack.c.b16 %v61, %v60
  %v75 = vpack.c.b16 %v63, %v62
  %v76 = vpack.c.b16 %v65, %v64
  %v77 = vpack.c.b16 %v67, %v66
  %v78 = vpack.c.b16 %v69, %v68
  %v79 = vpack.c.b16 %v71, %v70
  %v82 = vunpack.c.l.b16 %v31
  %v83 = vunpack.c.l.b16 %v32
  %v84 = vpack.c.b16 %v83, %v82
  %vm86 = vcmask 130048
  %v88 = vsel %vm86, %v72, 0
  %v91 = vsel %vm86, %v73, 0
  %v94 = vsel %vm86, %v74, 0
  %v97 = vsel %vm86, %v75, 0
  %v100 = vsel %vm86, %v76, 0
  %v103 = vsel %vm86, %v77, 0
  %v106 = vsel %vm86, %v78, 0
  %v109 = vsel %vm86, %v79, 0
  %111 = vmatprep.subr.bf16.mxu0 0
  %112 = vmatpush1.bf16.msra.mxu0 0
  %113 = vmatprep.subr.bf16.mxu0 0
  %114 = vmatpush1.bf16.msra.mxu0 0
  %115 = vmatprep.subr.bf16.mxu0 0
  %116 = vmatpush1.bf16.msra.mxu0 0
  %117 = vmatprep.subr.bf16.mxu0 0
  %118 = vmatpush1.bf16.msra.mxu0 0
  %119 = vmatprep.subr.bf16.mxu0 0
  %120 = vmatpush1.bf16.msra.mxu0 0
  %121 = vmatprep.subr.bf16.mxu0 0
  %122 = vmatpush1.bf16.msra.mxu0 0
  %123 = vmatprep.subr.bf16.mxu0 0
  %124 = vmatpush1.bf16.msra.mxu0 0
  %125 = vmatprep.subr.bf16.mxu0 0
  %126 = vmatpush1.bf16.msra.mxu0 %v84
  %127 = vmatprep.subr.bf16.mxu0 0
  %128 = vmatpush2.bf16.msra.mxu0 0
  %129 = vmatprep.subr.bf16.mxu0 0
  %130 = vmatpush2.bf16.msra.mxu0 0
  %131 = vmatprep.subr.bf16.mxu0 0
  %132 = vmatpush2.bf16.msra.mxu0 0
  %133 = vmatprep.subr.bf16.mxu0 0
  %134 = vmatpush2.bf16.msra.mxu0 0
  %135 = vmatprep.subr.bf16.mxu0 0
  %136 = vmatpush2.bf16.msra.mxu0 0
  %137 = vmatprep.subr.bf16.mxu0 0
  %138 = vmatpush2.bf16.msra.mxu0 0
  %139 = vmatprep.subr.bf16.mxu0 0
  %140 = vmatpush2.bf16.msra.mxu0 0
  %141 = vmatprep.subr.bf16.mxu0 0
  %142 = vmatpush2.bf16.msra.mxu0 0
  %143 = vmatprep.mubr.bf16.mxu0 0
  %144 = vmatmul.mubr.bf16.gmra.mxu0 %v88
  %v145 = vpop.f32.mrf.mxu0
  %v146 = vadd.f32 %v38, %v145
  %v147 = vpop.f32.mrf.mxu0
  %v148 = vpop.f32.mrf.mxu0
  %v149 = vadd.f32 %v38, %v148
  %v150 = vpop.f32.mrf.mxu0
  %151 = vmatprep.mubr.bf16.mxu0 0
  %152 = vmatmul.mubr.bf16.gmra.mxu0 %v91
  %v153 = vpop.f32.mrf.mxu0
  %v154 = vadd.f32 %v38, %v153
  %v155 = vpop.f32.mrf.mxu0
  %v156 = vpop.f32.mrf.mxu0
  %v157 = vadd.f32 %v38, %v156
  %v158 = vpop.f32.mrf.mxu0
  %159 = vmatprep.mubr.bf16.mxu0 0
  %160 = vmatmul.mubr.bf16.gmra.mxu0 %v94
  %v161 = vpop.f32.mrf.mxu0
  %v162 = vadd.f32 %v38, %v161
  %v163 = vpop.f32.mrf.mxu0
  %v164 = vpop.f32.mrf.mxu0
  %v165 = vadd.f32 %v38, %v164
  %v166 = vpop.f32.mrf.mxu0
  %167 = vmatprep.mubr.bf16.mxu0 0
  %168 = vmatmul.mubr.bf16.gmra.mxu0 %v97
  %v169 = vpop.f32.mrf.mxu0
  %v170 = vadd.f32 %v38, %v169
  %v171 = vpop.f32.mrf.mxu0
  %v172 = vpop.f32.mrf.mxu0
  %v173 = vadd.f32 %v38, %v172
  %v174 = vpop.f32.mrf.mxu0
  %175 = vmatprep.mubr.bf16.mxu0 0
  %176 = vmatmul.mubr.bf16.gmra.mxu0 %v100
  %v177 = vpop.f32.mrf.mxu0
  %v178 = vadd.f32 %v38, %v177
  %v179 = vpop.f32.mrf.mxu0
  %v180 = vpop.f32.mrf.mxu0
  %v181 = vadd.f32 %v38, %v180
  %v182 = vpop.f32.mrf.mxu0
  %183 = vmatprep.mubr.bf16.mxu0 0
  %184 = vmatmul.mubr.bf16.gmra.mxu0 %v103
  %v185 = vpop.f32.mrf.mxu0
  %v186 = vadd.f32 %v38, %v185
  %v187 = vpop.f32.mrf.mxu0
  %v188 = vpop.f32.mrf.mxu0
  %v189 = vadd.f32 %v38, %v188
  %v190 = vpop.f32.mrf.mxu0
  %191 = vmatprep.mubr.bf16.mxu0 0
  %192 = vmatmul.mubr.bf16.gmra.mxu0 %v106
  %v193 = vpop.f32.mrf.mxu0
  %v194 = vadd.f32 %v38, %v193
  %v195 = vpop.f32.mrf.mxu0
  %v196 = vpop.f32.mrf.mxu0
  %v197 = vadd.f32 %v38, %v196
  %v198 = vpop.f32.mrf.mxu0
  %199 = vmatprep.mubr.bf16.mxu0 0
  %200 = vmatmul.mubr.bf16.gmra.mxu0 %v109
  %v201 = vpop.f32.mrf.mxu0
  %v202 = vadd.f32 %v38, %v201
  %v203 = vpop.f32.mrf.mxu0
  %v204 = vpop.f32.mrf.mxu0
  %v205 = vadd.f32 %v38, %v204
  %v206 = vpop.f32.mrf.mxu0
  %207 = vdwg.mxu0
  %v208 = vpack.c.bf16 %v149, %v146
  %v209 = vpack.c.bf16 %v157, %v154
  %v210 = vpack.c.bf16 %v165, %v162
  %v211 = vpack.c.bf16 %v173, %v170
  %v212 = vpack.c.bf16 %v181, %v178
  %v213 = vpack.c.bf16 %v189, %v186
  %v214 = vpack.c.bf16 %v197, %v194
  %v215 = vpack.c.bf16 %v205, %v202
  %v224 = vunpack.c.l.b16 %v208
  %v225 = vunpack.c.h.b16 %v208
  %v226 = vunpack.c.l.b16 %v209
  %v227 = vunpack.c.h.b16 %v209
  %v228 = vunpack.c.l.b16 %v210
  %v229 = vunpack.c.h.b16 %v210
  %v230 = vunpack.c.l.b16 %v211
  %v231 = vunpack.c.h.b16 %v211
  %v232 = vunpack.c.l.b16 %v212
  %v233 = vunpack.c.h.b16 %v212
  %v234 = vunpack.c.l.b16 %v213
  %v235 = vunpack.c.h.b16 %v213
  %v236 = vunpack.c.l.b16 %v214
  %v237 = vunpack.c.h.b16 %v214
  %v238 = vunpack.c.l.b16 %v215
  %v239 = vunpack.c.h.b16 %v215
  %v240 = vpack.c.b16 %v224, %v224
  %v241 = vpack.c.b16 %v225, %v225
  %v242 = vpack.c.b16 %v226, %v226
  %v243 = vpack.c.b16 %v227, %v227
  %v244 = vpack.c.b16 %v228, %v228
  %v245 = vpack.c.b16 %v229, %v229
  %v246 = vpack.c.b16 %v230, %v230
  %v247 = vpack.c.b16 %v231, %v231
  %v248 = vpack.c.b16 %v232, %v232
  %v249 = vpack.c.b16 %v233, %v233
  %v250 = vpack.c.b16 %v234, %v234
  %v251 = vpack.c.b16 %v235, %v235
  %v252 = vpack.c.b16 %v236, %v236
  %v253 = vpack.c.b16 %v237, %v237
  %v254 = vpack.c.b16 %v238, %v238
  %v255 = vpack.c.b16 %v239, %v239
  %vm272 = vcmask 60416
  %273 = vst.msk [vmem:[%s3] sm:$0xf] %vm272, %v240
  %274 = vst.msk [vmem:[%s3 + $0x4] sm:$0xf] %vm272, %v241
  %275 = vst.msk [vmem:[%s3 + $0x8] sm:$0xf] %vm272, %v242
  %276 = vst.msk [vmem:[%s3 + $0xc] sm:$0xf] %vm272, %v243
  %277 = vst.msk [vmem:[%s3 + $0x10] sm:$0xf] %vm272, %v244
  %278 = vst.msk [vmem:[%s3 + $0x14] sm:$0xf] %vm272, %v245
  %279 = vst.msk [vmem:[%s3 + $0x18] sm:$0xf] %vm272, %v246
  %280 = vst.msk [vmem:[%s3 + $0x1c] sm:$0xf] %vm272, %v247
  %281 = vst.msk [vmem:[%s3 + $0x20] sm:$0xf] %vm272, %v248
  %282 = vst.msk [vmem:[%s3 + $0x24] sm:$0xf] %vm272, %v249
  %283 = vst.msk [vmem:[%s3 + $0x28] sm:$0xf] %vm272, %v250
  %284 = vst.msk [vmem:[%s3 + $0x2c] sm:$0xf] %vm272, %v251
  %285 = vst.msk [vmem:[%s3 + $0x30] sm:$0xf] %vm272, %v252
  %286 = vst.msk [vmem:[%s3 + $0x34] sm:$0xf] %vm272, %v253
  %287 = vst.msk [vmem:[%s3 + $0x38] sm:$0xf] %vm272, %v254
  %288 = vst.msk [vmem:[%s3 + $0x3c] sm:$0xf] %vm272, %v255
  // Predicated region
  $region14: #{_lambda_.54} parent=0 // pred_check
    _
  $region15: #{_lambda_.54} parent=0 // pred_check_branch
    %290 = sbr.rel (0) target = $region17
  $region16: #{_lambda_.54} parent=0 // pred_region
    _
  $region17: #{_lambda_.54} parent=0 // pred_fallthru
    _
  // Predicated region
  $region18: #{_lambda_.54} parent=0 // pred_check
    _
  $region19: #{_lambda_.54} parent=0 // pred_check_branch
    %292 = sbr.rel (0) target = $region21
  $region20: #{_lambda_.54} parent=0 // pred_region
    _
  $region21: #{_lambda_.54} parent=0 // pred_fallthru
    _

// kernel: _lambda_.55
$region0: #{_lambda_.55}
  #allocation0 [shape = 'u32[]', space=smem, size = 0x4, offset = 0x4, fixed_abs, tag = 'smem constant byte address 0x4 - core index']
  #allocation1 [shape = 'u32[144,128]{1,0:T(1,128)}', space=vmem, size = 0x12000, scoped, tag = 'internal scratch']
  %s0 = inlined_call_operand.vmem [shape: bf16[128,16], index: 0, kind: input, shape index: {}]
  %s1 = inlined_call_operand.vmem [shape: bf16[128,8], index: 1, kind: input, shape index: {}]
  %s2 = inlined_call_operand.vmem [shape: bf16[128,16], index: 2, kind: input, shape index: {}]
  %s3 = inlined_call_operand.vmem [shape: bf16[128,8], index: 3, kind: input, shape index: {}]
  %s4 = inlined_call_operand.vmem [shape: bf16[128,16], index: 4, kind: output, shape index: {}]
  %s5 = sld [smem:[#allocation0]]
  $region26: #{_lambda_.55} parent=0
    _
  %s7 = ssub.s32 1, %s5
  %s8 = scalar_select 0, %s7, %s5
  // Predicated region
  $region2: #{_lambda_.55} parent=0 // pred_check
    _
  $region3: #{_lambda_.55} parent=0 // pred_check_branch
    %10 = sbr.rel (0) target = $region5
  $region4: #{_lambda_.55} parent=0 // pred_region
    _
  $region5: #{_lambda_.55} parent=0 // pred_fallthru
    _
  // Predicated region
  $region6: #{_lambda_.55} parent=0 // pred_check
    _
  $region7: #{_lambda_.55} parent=0 // pred_check_branch
    %12 = sbr.rel (0) target = $region9
  $region8: #{_lambda_.55} parent=0 // pred_region
    _
  $region9: #{_lambda_.55} parent=0 // pred_fallthru
    _
  // Predicated region
  $region10: #{_lambda_.55} parent=0 // pred_check
    _
  $region11: #{_lambda_.55} parent=0 // pred_check_branch
    %14 = sbr.rel (0) target = $region13
  $region12: #{_lambda_.55} parent=0 // pred_region
    _
  $region13: #{_lambda_.55} parent=0 // pred_fallthru
    _
  // Predicated region
  $region14: #{_lambda_.55} parent=0 // pred_check
    _
  $region15: #{_lambda_.55} parent=0 // pred_check_branch
    %16 = sbr.rel (0) target = $region17
  $region16: #{_lambda_.55} parent=0 // pred_region
    _
  $region17: #{_lambda_.55} parent=0 // pred_fallthru
    _
  %v17 = vld [vmem:[%s1] sm:$0xf]
  %v18 = vld [vmem:[%s1 + $0x4] sm:$0xf]
  %v19 = vld [vmem:[%s1 + $0x8] sm:$0xf]
  %v20 = vld [vmem:[%s1 + $0xc] sm:$0xf]
  %v21 = vld [vmem:[%s1 + $0x10] sm:$0xf]
  %v22 = vld [vmem:[%s1 + $0x14] sm:$0xf]
  %v23 = vld [vmem:[%s1 + $0x18] sm:$0xf]
  %v24 = vld [vmem:[%s1 + $0x1c] sm:$0xf]
  %v25 = vld [vmem:[%s1 + $0x20] sm:$0xf]
  %v26 = vld [vmem:[%s1 + $0x24] sm:$0xf]
  %v27 = vld [vmem:[%s1 + $0x28] sm:$0xf]
  %v28 = vld [vmem:[%s1 + $0x2c] sm:$0xf]
  %v29 = vld [vmem:[%s1 + $0x30] sm:$0xf]
  %v30 = vld [vmem:[%s1 + $0x34] sm:$0xf]
  %v31 = vld [vmem:[%s1 + $0x38] sm:$0xf]
  %v32 = vld [vmem:[%s1 + $0x3c] sm:$0xf]
  %v33 = vunpack.c.l.bf16 %v17
  %v34 = vunpack.c.l.bf16 %v18
  %v35 = vunpack.c.l.bf16 %v19
  %v36 = vunpack.c.l.bf16 %v20
  %v37 = vunpack.c.l.bf16 %v21
  %v38 = vunpack.c.l.bf16 %v22
  %v39 = vunpack.c.l.bf16 %v23
  %v40 = vunpack.c.l.bf16 %v24
  %v41 = vunpack.c.l.bf16 %v25
  %v42 = vunpack.c.l.bf16 %v26
  %v43 = vunpack.c.l.bf16 %v27
  %v44 = vunpack.c.l.bf16 %v28
  %v45 = vunpack.c.l.bf16 %v29
  %v46 = vunpack.c.l.bf16 %v30
  %v47 = vunpack.c.l.bf16 %v31
  %v48 = vunpack.c.l.bf16 %v32
  %v49 = vld [vmem:[%s3] sm:$0xf]
  %v50 = vld [vmem:[%s3 + $0x4] sm:$0xf]
  %v51 = vld [vmem:[%s3 + $0x8] sm:$0xf]
  %v52 = vld [vmem:[%s3 + $0xc] sm:$0xf]
  %v53 = vld [vmem:[%s3 + $0x10] sm:$0xf]
  %v54 = vld [vmem:[%s3 + $0x14] sm:$0xf]
  %v55 = vld [vmem:[%s3 + $0x18] sm:$0xf]
  %v56 = vld [vmem:[%s3 + $0x1c] sm:$0xf]
  %v57 = vld [vmem:[%s3 + $0x20] sm:$0xf]
  %v58 = vld [vmem:[%s3 + $0x24] sm:$0xf]
  %v59 = vld [vmem:[%s3 + $0x28] sm:$0xf]
  %v60 = vld [vmem:[%s3 + $0x2c] sm:$0xf]
  %v61 = vld [vmem:[%s3 + $0x30] sm:$0xf]
  %v62 = vld [vmem:[%s3 + $0x34] sm:$0xf]
  %v63 = vld [vmem:[%s3 + $0x38] sm:$0xf]
  %v64 = vld [vmem:[%s3 + $0x3c] sm:$0xf]
  %v65 = vunpack.c.l.bf16 %v49
  %v66 = vunpack.c.l.bf16 %v50
  %v67 = vunpack.c.l.bf16 %v51
  %v68 = vunpack.c.l.bf16 %v52
  %v69 = vunpack.c.l.bf16 %v53
  %v70 = vunpack.c.l.bf16 %v54
  %v71 = vunpack.c.l.bf16 %v55
  %v72 = vunpack.c.l.bf16 %v56
  %v73 = vunpack.c.l.bf16 %v57
  %v74 = vunpack.c.l.bf16 %v58
  %v75 = vunpack.c.l.bf16 %v59
  %v76 = vunpack.c.l.bf16 %v60
  %v77 = vunpack.c.l.bf16 %v61
  %v78 = vunpack.c.l.bf16 %v62
  %v79 = vunpack.c.l.bf16 %v63
  %v80 = vunpack.c.l.bf16 %v64
  %v81 = vmul.f32 %v33, %v65
  %v82 = vmul.f32 %v34, %v66
  %v83 = vmul.f32 %v35, %v67
  %v84 = vmul.f32 %v36, %v68
  %v85 = vmul.f32 %v37, %v69
  %v86 = vmul.f32 %v38, %v70
  %v87 = vmul.f32 %v39, %v71
  %v88 = vmul.f32 %v40, %v72
  %v89 = vmul.f32 %v41, %v73
  %v90 = vmul.f32 %v42, %v74
  %v91 = vmul.f32 %v43, %v75
  %v92 = vmul.f32 %v44, %v76
  %v93 = vmul.f32 %v45, %v77
  %v94 = vmul.f32 %v46, %v78
  %v95 = vmul.f32 %v47, %v79
  %v96 = vmul.f32 %v48, %v80
  %vm97 = vcmask 64512
  %v98 = vsel %vm97, %v81, 0.0
  %99 = vadd.xlane.f32.xlu0 %v98
  %v100 = vpop.xlane.xlu0 %99
  %v101 = vsel %vm97, %v82, 0.0
  %102 = vadd.xlane.f32.xlu0 %v101
  %v103 = vpop.xlane.xlu0 %102
  %v104 = vsel %vm97, %v83, 0.0
  %105 = vadd.xlane.f32.xlu0 %v104
  %v106 = vpop.xlane.xlu0 %105
  %v107 = vsel %vm97, %v84, 0.0
  %108 = vadd.xlane.f32.xlu0 %v107
  %v109 = vpop.xlane.xlu0 %108
  %v110 = vsel %vm97, %v85, 0.0
  %111 = vadd.xlane.f32.xlu0 %v110
  %v112 = vpop.xlane.xlu0 %111
  %v113 = vsel %vm97, %v86, 0.0
  %114 = vadd.xlane.f32.xlu0 %v113
  %v115 = vpop.xlane.xlu0 %114
  %v116 = vsel %vm97, %v87, 0.0
  %117 = vadd.xlane.f32.xlu0 %v116
  %v118 = vpop.xlane.xlu0 %117
  %v119 = vsel %vm97, %v88, 0.0
  %120 = vadd.xlane.f32.xlu0 %v119
  %v121 = vpop.xlane.xlu0 %120
  %v122 = vsel %vm97, %v89, 0.0
  %123 = vadd.xlane.f32.xlu0 %v122
  %v124 = vpop.xlane.xlu0 %123
  %v125 = vsel %vm97, %v90, 0.0
  %126 = vadd.xlane.f32.xlu0 %v125
  %v127 = vpop.xlane.xlu0 %126
  %v128 = vsel %vm97, %v91, 0.0
  %129 = vadd.xlane.f32.xlu0 %v128
  %v130 = vpop.xlane.xlu0 %129
  %v131 = vsel %vm97, %v92, 0.0
  %132 = vadd.xlane.f32.xlu0 %v131
  %v133 = vpop.xlane.xlu0 %132
  %v134 = vsel %vm97, %v93, 0.0
  %135 = vadd.xlane.f32.xlu0 %v134
  %v136 = vpop.xlane.xlu0 %135
  %v137 = vsel %vm97, %v94, 0.0
  %138 = vadd.xlane.f32.xlu0 %v137
  %v139 = vpop.xlane.xlu0 %138
  %v140 = vsel %vm97, %v95, 0.0
  %141 = vadd.xlane.f32.xlu0 %v140
  %v142 = vpop.xlane.xlu0 %141
  %v143 = vsel %vm97, %v96, 0.0
  %144 = vadd.xlane.f32.xlu0 %v143
  %v145 = vpop.xlane.xlu0 %144
  %v146 = vxor.u32 %v100, 2147483648
  %v147 = vxor.u32 %v103, 2147483648
  %v148 = vxor.u32 %v106, 2147483648
  %v149 = vxor.u32 %v109, 2147483648
  %v150 = vxor.u32 %v112, 2147483648
  %v151 = vxor.u32 %v115, 2147483648
  %v152 = vxor.u32 %v118, 2147483648
  %v153 = vxor.u32 %v121, 2147483648
  %v154 = vxor.u32 %v124, 2147483648
  %v155 = vxor.u32 %v127, 2147483648
  %v156 = vxor.u32 %v130, 2147483648
  %v157 = vxor.u32 %v133, 2147483648
  %v158 = vxor.u32 %v136, 2147483648
  %v159 = vxor.u32 %v139, 2147483648
  %v160 = vxor.u32 %v142, 2147483648
  %v161 = vxor.u32 %v145, 2147483648
  %v162 = vmul.f32 %v146, 1.442695
  %v163 = vpow.pop %v162
  %v164 = vmul.f32 %v147, 1.442695
  %v165 = vpow.pop %v164
  %v166 = vmul.f32 %v148, 1.442695
  %v167 = vpow.pop %v166
  %v168 = vmul.f32 %v149, 1.442695
  %v169 = vpow.pop %v168
  %v170 = vmul.f32 %v150, 1.442695
  %v171 = vpow.pop %v170
  %v172 = vmul.f32 %v151, 1.442695
  %v173 = vpow.pop %v172
  %v174 = vmul.f32 %v152, 1.442695
  %v175 = vpow.pop %v174
  %v176 = vmul.f32 %v153, 1.442695
  %v177 = vpow.pop %v176
  %v178 = vmul.f32 %v154, 1.442695
  %v179 = vpow.pop %v178
  %v180 = vmul.f32 %v155, 1.442695
  %v181 = vpow.pop %v180
  %v182 = vmul.f32 %v156, 1.442695
  %v183 = vpow.pop %v182
  %v184 = vmul.f32 %v157, 1.442695
  %v185 = vpow.pop %v184
  %v186 = vmul.f32 %v158, 1.442695
  %v187 = vpow.pop %v186
  %v188 = vmul.f32 %v159, 1.442695
  %v189 = vpow.pop %v188
  %v190 = vmul.f32 %v160, 1.442695
  %v191 = vpow.pop %v190
  %v192 = vmul.f32 %v161, 1.442695
  %v193 = vpow.pop %v192
  %v194 = vadd.f32 %v163, 1.0
  %v195 = vadd.f32 %v165, 1.0
  %v196 = vadd.f32 %v167, 1.0
  %v197 = vadd.f32 %v169, 1.0
  %v198 = vadd.f32 %v171, 1.0
  %v199 = vadd.f32 %v173, 1.0
  %v200 = vadd.f32 %v175, 1.0
  %v201 = vadd.f32 %v177, 1.0
  %v202 = vadd.f32 %v179, 1.0
  %v203 = vadd.f32 %v181, 1.0
  %v204 = vadd.f32 %v183, 1.0
  %v205 = vadd.f32 %v185, 1.0
  %v206 = vadd.f32 %v187, 1.0
  %v207 = vadd.f32 %v189, 1.0
  %v208 = vadd.f32 %v191, 1.0
  %v209 = vadd.f32 %v193, 1.0
  %v210 = vrcp.pop %v194
  %v211 = vmul.f32 1.0, %v210
  %v212 = vrcp.pop %v195
  %v213 = vmul.f32 1.0, %v212
  %v214 = vrcp.pop %v196
  %v215 = vmul.f32 1.0, %v214
  %v216 = vrcp.pop %v197
  %v217 = vmul.f32 1.0, %v216
  %v218 = vrcp.pop %v198
  %v219 = vmul.f32 1.0, %v218
  %v220 = vrcp.pop %v199
  %v221 = vmul.f32 1.0, %v220
  %v222 = vrcp.pop %v200
  %v223 = vmul.f32 1.0, %v222
  %v224 = vrcp.pop %v201
  %v225 = vmul.f32 1.0, %v224
  %v226 = vrcp.pop %v202
  %v227 = vmul.f32 1.0, %v226
  %v228 = vrcp.pop %v203
  %v229 = vmul.f32 1.0, %v228
  %v230 = vrcp.pop %v204
  %v231 = vmul.f32 1.0, %v230
  %v232 = vrcp.pop %v205
  %v233 = vmul.f32 1.0, %v232
  %v234 = vrcp.pop %v206
  %v235 = vmul.f32 1.0, %v234
  %v236 = vrcp.pop %v207
  %v237 = vmul.f32 1.0, %v236
  %v238 = vrcp.pop %v208
  %v239 = vmul.f32 1.0, %v238
  %v240 = vrcp.pop %v209
  %v241 = vmul.f32 1.0, %v240
  %v242 = vld [vmem:[%s0] sm:$0xf]
  %v243 = vld [vmem:[%s0 + $0x4] sm:$0xf]
  %v244 = vld [vmem:[%s0 + $0x8] sm:$0xf]
  %v245 = vld [vmem:[%s0 + $0xc] sm:$0xf]
  %v246 = vld [vmem:[%s0 + $0x10] sm:$0xf]
  %v247 = vld [vmem:[%s0 + $0x14] sm:$0xf]
  %v248 = vld [vmem:[%s0 + $0x18] sm:$0xf]
  %v249 = vld [vmem:[%s0 + $0x1c] sm:$0xf]
  %v250 = vld [vmem:[%s0 + $0x20] sm:$0xf]
  %v251 = vld [vmem:[%s0 + $0x24] sm:$0xf]
  %v252 = vld [vmem:[%s0 + $0x28] sm:$0xf]
  %v253 = vld [vmem:[%s0 + $0x2c] sm:$0xf]
  %v254 = vld [vmem:[%s0 + $0x30] sm:$0xf]
  %v255 = vld [vmem:[%s0 + $0x34] sm:$0xf]
  %v256 = vld [vmem:[%s0 + $0x38] sm:$0xf]
  %v257 = vld [vmem:[%s0 + $0x3c] sm:$0xf]
  %v258 = vunpack.c.l.bf16 %v242
  %v259 = vunpack.c.l.bf16 %v243
  %v260 = vunpack.c.l.bf16 %v244
  %v261 = vunpack.c.l.bf16 %v245
  %v262 = vunpack.c.l.bf16 %v246
  %v263 = vunpack.c.l.bf16 %v247
  %v264 = vunpack.c.l.bf16 %v248
  %v265 = vunpack.c.l.bf16 %v249
  %v266 = vunpack.c.l.bf16 %v250
  %v267 = vunpack.c.l.bf16 %v251
  %v268 = vunpack.c.l.bf16 %v252
  %v269 = vunpack.c.l.bf16 %v253
  %v270 = vunpack.c.l.bf16 %v254
  %v271 = vunpack.c.l.bf16 %v255
  %v272 = vunpack.c.l.bf16 %v256
  %v273 = vunpack.c.l.bf16 %v257
  %v274 = vld [vmem:[%s2] sm:$0xf]
  %v275 = vld [vmem:[%s2 + $0x4] sm:$0xf]
  %v276 = vld [vmem:[%s2 + $0x8] sm:$0xf]
  %v277 = vld [vmem:[%s2 + $0xc] sm:$0xf]
  %v278 = vld [vmem:[%s2 + $0x10] sm:$0xf]
  %v279 = vld [vmem:[%s2 + $0x14] sm:$0xf]
  %v280 = vld [vmem:[%s2 + $0x18] sm:$0xf]
  %v281 = vld [vmem:[%s2 + $0x1c] sm:$0xf]
  %v282 = vld [vmem:[%s2 + $0x20] sm:$0xf]
  %v283 = vld [vmem:[%s2 + $0x24] sm:$0xf]
  %v284 = vld [vmem:[%s2 + $0x28] sm:$0xf]
  %v285 = vld [vmem:[%s2 + $0x2c] sm:$0xf]
  %v286 = vld [vmem:[%s2 + $0x30] sm:$0xf]
  %v287 = vld [vmem:[%s2 + $0x34] sm:$0xf]
  %v288 = vld [vmem:[%s2 + $0x38] sm:$0xf]
  %v289 = vld [vmem:[%s2 + $0x3c] sm:$0xf]
  %v290 = vunpack.c.l.bf16 %v274
  %v291 = vunpack.c.l.bf16 %v275
  %v292 = vunpack.c.l.bf16 %v276
  %v293 = vunpack.c.l.bf16 %v277
  %v294 = vunpack.c.l.bf16 %v278
  %v295 = vunpack.c.l.bf16 %v279
  %v296 = vunpack.c.l.bf16 %v280
  %v297 = vunpack.c.l.bf16 %v281
  %v298 = vunpack.c.l.bf16 %v282
  %v299 = vunpack.c.l.bf16 %v283
  %v300 = vunpack.c.l.bf16 %v284
  %v301 = vunpack.c.l.bf16 %v285
  %v302 = vunpack.c.l.bf16 %v286
  %v303 = vunpack.c.l.bf16 %v287
  %v304 = vunpack.c.l.bf16 %v288
  %v305 = vunpack.c.l.bf16 %v289
  %v306 = vsub.f32 1.0, %v211
  %v307 = vsub.f32 1.0, %v213
  %v308 = vsub.f32 1.0, %v215
  %v309 = vsub.f32 1.0, %v217
  %v310 = vsub.f32 1.0, %v219
  %v311 = vsub.f32 1.0, %v221
  %v312 = vsub.f32 1.0, %v223
  %v313 = vsub.f32 1.0, %v225
  %v314 = vsub.f32 1.0, %v227
  %v315 = vsub.f32 1.0, %v229
  %v316 = vsub.f32 1.0, %v231
  %v317 = vsub.f32 1.0, %v233
  %v318 = vsub.f32 1.0, %v235
  %v319 = vsub.f32 1.0, %v237
  %v320 = vsub.f32 1.0, %v239
  %v321 = vsub.f32 1.0, %v241
  %v322 = vmul.f32 %v306, %v258
  %v323 = vmul.f32 %v307, %v259
  %v324 = vmul.f32 %v308, %v260
  %v325 = vmul.f32 %v309, %v261
  %v326 = vmul.f32 %v310, %v262
  %v327 = vmul.f32 %v311, %v263
  %v328 = vmul.f32 %v312, %v264
  %v329 = vmul.f32 %v313, %v265
  %v330 = vmul.f32 %v314, %v266
  %v331 = vmul.f32 %v315, %v267
  %v332 = vmul.f32 %v316, %v268
  %v333 = vmul.f32 %v317, %v269
  %v334 = vmul.f32 %v318, %v270
  %v335 = vmul.f32 %v319, %v271
  %v336 = vmul.f32 %v320, %v272
  %v337 = vmul.f32 %v321, %v273
  %v338 = vmul.f32 %v211, %v290
  %v339 = vmul.f32 %v213, %v291
  %v340 = vmul.f32 %v215, %v292
  %v341 = vmul.f32 %v217, %v293
  %v342 = vmul.f32 %v219, %v294
  %v343 = vmul.f32 %v221, %v295
  %v344 = vmul.f32 %v223, %v296
  %v345 = vmul.f32 %v225, %v297
  %v346 = vmul.f32 %v227, %v298
  %v347 = vmul.f32 %v229, %v299
  %v348 = vmul.f32 %v231, %v300
  %v349 = vmul.f32 %v233, %v301
  %v350 = vmul.f32 %v235, %v302
  %v351 = vmul.f32 %v237, %v303
  %v352 = vmul.f32 %v239, %v304
  %v353 = vmul.f32 %v241, %v305
  %v354 = vadd.f32 %v322, %v338
  %v355 = vadd.f32 %v323, %v339
  %v356 = vadd.f32 %v324, %v340
  %v357 = vadd.f32 %v325, %v341
  %v358 = vadd.f32 %v326, %v342
  %v359 = vadd.f32 %v327, %v343
  %v360 = vadd.f32 %v328, %v344
  %v361 = vadd.f32 %v329, %v345
  %v362 = vadd.f32 %v330, %v346
  %v363 = vadd.f32 %v331, %v347
  %v364 = vadd.f32 %v332, %v348
  %v365 = vadd.f32 %v333, %v349
  %v366 = vadd.f32 %v334, %v350
  %v367 = vadd.f32 %v335, %v351
  %v368 = vadd.f32 %v336, %v352
  %v369 = vadd.f32 %v337, %v353
  %v370 = vpack.c.bf16 %v355, %v354
  %v371 = vpack.c.bf16 %v357, %v356
  %v372 = vpack.c.bf16 %v359, %v358
  %v373 = vpack.c.bf16 %v361, %v360
  %v374 = vpack.c.bf16 %v363, %v362
  %v375 = vpack.c.bf16 %v365, %v364
  %v376 = vpack.c.bf16 %v367, %v366
  %v377 = vpack.c.bf16 %v369, %v368
  %v386 = vunpack.c.l.b16 %v370
  %v387 = vunpack.c.h.b16 %v370
  %v388 = vunpack.c.l.b16 %v371
  %v389 = vunpack.c.h.b16 %v371
  %v390 = vunpack.c.l.b16 %v372
  %v391 = vunpack.c.h.b16 %v372
  %v392 = vunpack.c.l.b16 %v373
  %v393 = vunpack.c.h.b16 %v373
  %v394 = vunpack.c.l.b16 %v374
  %v395 = vunpack.c.h.b16 %v374
  %v396 = vunpack.c.l.b16 %v375
  %v397 = vunpack.c.h.b16 %v375
  %v398 = vunpack.c.l.b16 %v376
  %v399 = vunpack.c.h.b16 %v376
  %v400 = vunpack.c.l.b16 %v377
  %v401 = vunpack.c.h.b16 %v377
  %v402 = vpack.c.b16 %v386, %v386
  %v403 = vpack.c.b16 %v387, %v387
  %v404 = vpack.c.b16 %v388, %v388
  %v405 = vpack.c.b16 %v389, %v389
  %v406 = vpack.c.b16 %v390, %v390
  %v407 = vpack.c.b16 %v391, %v391
  %v408 = vpack.c.b16 %v392, %v392
  %v409 = vpack.c.b16 %v393, %v393
  %v410 = vpack.c.b16 %v394, %v394
  %v411 = vpack.c.b16 %v395, %v395
  %v412 = vpack.c.b16 %v396, %v396
  %v413 = vpack.c.b16 %v397, %v397
  %v414 = vpack.c.b16 %v398, %v398
  %v415 = vpack.c.b16 %v399, %v399
  %v416 = vpack.c.b16 %v400, %v400
  %v417 = vpack.c.b16 %v401, %v401
  %vm434 = vcmask 125952
  %435 = vst.msk [vmem:[%s4] sm:$0xf] %vm434, %v402
  %436 = vst.msk [vmem:[%s4 + $0x4] sm:$0xf] %vm434, %v403
  %437 = vst.msk [vmem:[%s4 + $0x8] sm:$0xf] %vm434, %v404
  %438 = vst.msk [vmem:[%s4 + $0xc] sm:$0xf] %vm434, %v405
  %439 = vst.msk [vmem:[%s4 + $0x10] sm:$0xf] %vm434, %v406
  %440 = vst.msk [vmem:[%s4 + $0x14] sm:$0xf] %vm434, %v407
  %441 = vst.msk [vmem:[%s4 + $0x18] sm:$0xf] %vm434, %v408
  %442 = vst.msk [vmem:[%s4 + $0x1c] sm:$0xf] %vm434, %v409
  %443 = vst.msk [vmem:[%s4 + $0x20] sm:$0xf] %vm434, %v410
  %444 = vst.msk [vmem:[%s4 + $0x24] sm:$0xf] %vm434, %v411
  %445 = vst.msk [vmem:[%s4 + $0x28] sm:$0xf] %vm434, %v412
  %446 = vst.msk [vmem:[%s4 + $0x2c] sm:$0xf] %vm434, %v413
  %447 = vst.msk [vmem:[%s4 + $0x30] sm:$0xf] %vm434, %v414
  %448 = vst.msk [vmem:[%s4 + $0x34] sm:$0xf] %vm434, %v415
  %449 = vst.msk [vmem:[%s4 + $0x38] sm:$0xf] %vm434, %v416
  %450 = vst.msk [vmem:[%s4 + $0x3c] sm:$0xf] %vm434, %v417
  // Predicated region
  $region18: #{_lambda_.55} parent=0 // pred_check
    _
  $region19: #{_lambda_.55} parent=0 // pred_check_branch
    %452 = sbr.rel (0) target = $region21
  $region20: #{_lambda_.55} parent=0 // pred_region
    _
  $region21: #{_lambda_.55} parent=0 // pred_fallthru
    _
  // Predicated region
  $region22: #{_lambda_.55} parent=0 // pred_check
    _
  $region23: #{_lambda_.55} parent=0 // pred_check_branch
    %454 = sbr.rel (0) target = $region25
  $region24: #{_lambda_.55} parent=0 // pred_region
    _
  $region25: #{_lambda_.55} parent=0 // pred_fallthru
    _

// kernel: _lambda_.72
$region0: #{_lambda_.72}
  #allocation0 [shape = 'u32[]', space=smem, size = 0x4, offset = 0x4, fixed_abs, tag = 'smem constant byte address 0x4 - core index']
  #allocation1 [shape = 'u32[144,128]{1,0:T(1,128)}', space=vmem, size = 0x12000, scoped, tag = 'internal scratch']
  %s0 = inlined_call_operand.vmem [shape: bf16[128,32], index: 0, kind: input, shape index: {}]
  %s1 = inlined_call_operand.vmem [shape: bf16[32,32], index: 1, kind: input, shape index: {}]
  %s2 = inlined_call_operand.vmem [shape: f32[1,32], index: 2, kind: input, shape index: {}]
  %s3 = inlined_call_operand.vmem [shape: bf16[128,32], index: 3, kind: input, shape index: {}]
  %s4 = inlined_call_operand.vmem [shape: bf16[128,32], index: 4, kind: output, shape index: {}]
  %s5 = sld [smem:[#allocation0]]
  $region26: #{_lambda_.72} parent=0
    _
  %s7 = ssub.s32 1, %s5
  %s8 = scalar_select 0, %s7, %s5
  // Predicated region
  $region2: #{_lambda_.72} parent=0 // pred_check
    _
  $region3: #{_lambda_.72} parent=0 // pred_check_branch
    %10 = sbr.rel (0) target = $region5
  $region4: #{_lambda_.72} parent=0 // pred_region
    _
  $region5: #{_lambda_.72} parent=0 // pred_fallthru
    _
  // Predicated region
  $region6: #{_lambda_.72} parent=0 // pred_check
    _
  $region7: #{_lambda_.72} parent=0 // pred_check_branch
    %12 = sbr.rel (0) target = $region9
  $region8: #{_lambda_.72} parent=0 // pred_region
    _
  $region9: #{_lambda_.72} parent=0 // pred_fallthru
    _
  // Predicated region
  $region10: #{_lambda_.72} parent=0 // pred_check
    _
  $region11: #{_lambda_.72} parent=0 // pred_check_branch
    %14 = sbr.rel (0) target = $region13
  $region12: #{_lambda_.72} parent=0 // pred_region
    _
  $region13: #{_lambda_.72} parent=0 // pred_fallthru
    _
  // Predicated region
  $region14: #{_lambda_.72} parent=0 // pred_check
    _
  $region15: #{_lambda_.72} parent=0 // pred_check_branch
    %16 = sbr.rel (0) target = $region17
  $region16: #{_lambda_.72} parent=0 // pred_region
    _
  $region17: #{_lambda_.72} parent=0 // pred_fallthru
    _
  %v18 = vld [vmem:[%s0] sm:$0xf]
  %v19 = vld [vmem:[%s0 + $0x4] sm:$0xf]
  %v20 = vld [vmem:[%s0 + $0x8] sm:$0xf]
  %v21 = vld [vmem:[%s0 + $0xc] sm:$0xf]
  %v22 = vld [vmem:[%s0 + $0x10] sm:$0xf]
  %v23 = vld [vmem:[%s0 + $0x14] sm:$0xf]
  %v24 = vld [vmem:[%s0 + $0x18] sm:$0xf]
  %v25 = vld [vmem:[%s0 + $0x1c] sm:$0xf]
  %v26 = vld [vmem:[%s0 + $0x20] sm:$0xf]
  %v27 = vld [vmem:[%s0 + $0x24] sm:$0xf]
  %v28 = vld [vmem:[%s0 + $0x28] sm:$0xf]
  %v29 = vld [vmem:[%s0 + $0x2c] sm:$0xf]
  %v30 = vld [vmem:[%s0 + $0x30] sm:$0xf]
  %v31 = vld [vmem:[%s0 + $0x34] sm:$0xf]
  %v32 = vld [vmem:[%s0 + $0x38] sm:$0xf]
  %v33 = vld [vmem:[%s0 + $0x3c] sm:$0xf]
  %v34 = vld [vmem:[%s1] sm:$0xf]
  %v35 = vld [vmem:[%s1 + $0x4] sm:$0xf]
  %v36 = vld [vmem:[%s1 + $0x8] sm:$0xf]
  %v37 = vld [vmem:[%s1 + $0xc] sm:$0xf]
  %v38 = vld [vmem:[%s2] sm:$0x1]
  %v40 = vlaneseq
  %v41 = vshrl.u32 %v40, 7
  %v42 = vsub.s32 0, %v41
  %v43 = vrot.slane %v38, %v42
  %v61 = vunpack.c.l.b16 %v18
  %v62 = vunpack.c.l.b16 %v19
  %v63 = vunpack.c.l.b16 %v20
  %v64 = vunpack.c.l.b16 %v21
  %v65 = vunpack.c.l.b16 %v22
  %v66 = vunpack.c.l.b16 %v23
  %v67 = vunpack.c.l.b16 %v24
  %v68 = vunpack.c.l.b16 %v25
  %v69 = vunpack.c.l.b16 %v26
  %v70 = vunpack.c.l.b16 %v27
  %v71 = vunpack.c.l.b16 %v28
  %v72 = vunpack.c.l.b16 %v29
  %v73 = vunpack.c.l.b16 %v30
  %v74 = vunpack.c.l.b16 %v31
  %v75 = vunpack.c.l.b16 %v32
  %v76 = vunpack.c.l.b16 %v33
  %v77 = vpack.c.b16 %v62, %v61
  %v78 = vpack.c.b16 %v64, %v63
  %v79 = vpack.c.b16 %v66, %v65
  %v80 = vpack.c.b16 %v68, %v67
  %v81 = vpack.c.b16 %v70, %v69
  %v82 = vpack.c.b16 %v72, %v71
  %v83 = vpack.c.b16 %v74, %v73
  %v84 = vpack.c.b16 %v76, %v75
  %v89 = vunpack.c.l.b16 %v34
  %v90 = vunpack.c.l.b16 %v35
  %v91 = vunpack.c.l.b16 %v36
  %v92 = vunpack.c.l.b16 %v37
  %v93 = vpack.c.b16 %v90, %v89
  %v94 = vpack.c.b16 %v92, %v91
  %vm97 = vcmask 261120
  %v99 = vsel %vm97, %v77, 0
  %v102 = vsel %vm97, %v78, 0
  %v105 = vsel %vm97, %v79, 0
  %v108 = vsel %vm97, %v80, 0
  %v111 = vsel %vm97, %v81, 0
  %v114 = vsel %vm97, %v82, 0
  %v117 = vsel %vm97, %v83, 0
  %v120 = vsel %vm97, %v84, 0
  %122 = vmatprep.subr.bf16.mxu0 0
  %123 = vmatpush1.bf16.msra.mxu0 0
  %124 = vmatprep.subr.bf16.mxu0 0
  %125 = vmatpush1.bf16.msra.mxu0 0
  %126 = vmatprep.subr.bf16.mxu0 0
  %127 = vmatpush1.bf16.msra.mxu0 0
  %128 = vmatprep.subr.bf16.mxu0 0
  %129 = vmatpush1.bf16.msra.mxu0 0
  %130 = vmatprep.subr.bf16.mxu0 0
  %131 = vmatpush1.bf16.msra.mxu0 0
  %132 = vmatprep.subr.bf16.mxu0 0
  %133 = vmatpush1.bf16.msra.mxu0 0
  %134 = vmatprep.subr.bf16.mxu0 0
  %135 = vmatpush1.bf16.msra.mxu0 %v94
  %136 = vmatprep.subr.bf16.mxu0 0
  %137 = vmatpush1.bf16.msra.mxu0 %v93
  %138 = vmatprep.subr.bf16.mxu0 0
  %139 = vmatpush2.bf16.msra.mxu0 0
  %140 = vmatprep.subr.bf16.mxu0 0
  %141 = vmatpush2.bf16.msra.mxu0 0
  %142 = vmatprep.subr.bf16.mxu0 0
  %143 = vmatpush2.bf16.msra.mxu0 0
  %144 = vmatprep.subr.bf16.mxu0 0
  %145 = vmatpush2.bf16.msra.mxu0 0
  %146 = vmatprep.subr.bf16.mxu0 0
  %147 = vmatpush2.bf16.msra.mxu0 0
  %148 = vmatprep.subr.bf16.mxu0 0
  %149 = vmatpush2.bf16.msra.mxu0 0
  %150 = vmatprep.subr.bf16.mxu0 0
  %151 = vmatpush2.bf16.msra.mxu0 0
  %152 = vmatprep.subr.bf16.mxu0 0
  %153 = vmatpush2.bf16.msra.mxu0 0
  %154 = vmatprep.mubr.bf16.mxu0 0
  %155 = vmatmul.mubr.bf16.gmra.mxu0 %v99
  %v156 = vpop.f32.mrf.mxu0
  %v157 = vadd.f32 %v43, %v156
  %v158 = vpop.f32.mrf.mxu0
  %v159 = vpop.f32.mrf.mxu0
  %v160 = vadd.f32 %v43, %v159
  %v161 = vpop.f32.mrf.mxu0
  %162 = vmatprep.mubr.bf16.mxu0 0
  %163 = vmatmul.mubr.bf16.gmra.mxu0 %v102
  %v164 = vpop.f32.mrf.mxu0
  %v165 = vadd.f32 %v43, %v164
  %v166 = vpop.f32.mrf.mxu0
  %v167 = vpop.f32.mrf.mxu0
  %v168 = vadd.f32 %v43, %v167
  %v169 = vpop.f32.mrf.mxu0
  %170 = vmatprep.mubr.bf16.mxu0 0
  %171 = vmatmul.mubr.bf16.gmra.mxu0 %v105
  %v172 = vpop.f32.mrf.mxu0
  %v173 = vadd.f32 %v43, %v172
  %v174 = vpop.f32.mrf.mxu0
  %v175 = vpop.f32.mrf.mxu0
  %v176 = vadd.f32 %v43, %v175
  %v177 = vpop.f32.mrf.mxu0
  %178 = vmatprep.mubr.bf16.mxu0 0
  %179 = vmatmul.mubr.bf16.gmra.mxu0 %v108
  %v180 = vpop.f32.mrf.mxu0
  %v181 = vadd.f32 %v43, %v180
  %v182 = vpop.f32.mrf.mxu0
  %v183 = vpop.f32.mrf.mxu0
  %v184 = vadd.f32 %v43, %v183
  %v185 = vpop.f32.mrf.mxu0
  %186 = vmatprep.mubr.bf16.mxu0 0
  %187 = vmatmul.mubr.bf16.gmra.mxu0 %v111
  %v188 = vpop.f32.mrf.mxu0
  %v189 = vadd.f32 %v43, %v188
  %v190 = vpop.f32.mrf.mxu0
  %v191 = vpop.f32.mrf.mxu0
  %v192 = vadd.f32 %v43, %v191
  %v193 = vpop.f32.mrf.mxu0
  %194 = vmatprep.mubr.bf16.mxu0 0
  %195 = vmatmul.mubr.bf16.gmra.mxu0 %v114
  %v196 = vpop.f32.mrf.mxu0
  %v197 = vadd.f32 %v43, %v196
  %v198 = vpop.f32.mrf.mxu0
  %v199 = vpop.f32.mrf.mxu0
  %v200 = vadd.f32 %v43, %v199
  %v201 = vpop.f32.mrf.mxu0
  %202 = vmatprep.mubr.bf16.mxu0 0
  %203 = vmatmul.mubr.bf16.gmra.mxu0 %v117
  %v204 = vpop.f32.mrf.mxu0
  %v205 = vadd.f32 %v43, %v204
  %v206 = vpop.f32.mrf.mxu0
  %v207 = vpop.f32.mrf.mxu0
  %v208 = vadd.f32 %v43, %v207
  %v209 = vpop.f32.mrf.mxu0
  %210 = vmatprep.mubr.bf16.mxu0 0
  %211 = vmatmul.mubr.bf16.gmra.mxu0 %v120
  %v212 = vpop.f32.mrf.mxu0
  %v213 = vadd.f32 %v43, %v212
  %v214 = vpop.f32.mrf.mxu0
  %v215 = vpop.f32.mrf.mxu0
  %v216 = vadd.f32 %v43, %v215
  %v217 = vpop.f32.mrf.mxu0
  %218 = vdwg.mxu0
  %v219 = vld [vmem:[%s3] sm:$0xf]
  %v220 = vld [vmem:[%s3 + $0x4] sm:$0xf]
  %v221 = vld [vmem:[%s3 + $0x8] sm:$0xf]
  %v222 = vld [vmem:[%s3 + $0xc] sm:$0xf]
  %v223 = vld [vmem:[%s3 + $0x10] sm:$0xf]
  %v224 = vld [vmem:[%s3 + $0x14] sm:$0xf]
  %v225 = vld [vmem:[%s3 + $0x18] sm:$0xf]
  %v226 = vld [vmem:[%s3 + $0x1c] sm:$0xf]
  %v227 = vld [vmem:[%s3 + $0x20] sm:$0xf]
  %v228 = vld [vmem:[%s3 + $0x24] sm:$0xf]
  %v229 = vld [vmem:[%s3 + $0x28] sm:$0xf]
  %v230 = vld [vmem:[%s3 + $0x2c] sm:$0xf]
  %v231 = vld [vmem:[%s3 + $0x30] sm:$0xf]
  %v232 = vld [vmem:[%s3 + $0x34] sm:$0xf]
  %v233 = vld [vmem:[%s3 + $0x38] sm:$0xf]
  %v234 = vld [vmem:[%s3 + $0x3c] sm:$0xf]
  %v235 = vunpack.c.l.bf16 %v219
  %v236 = vunpack.c.l.bf16 %v220
  %v237 = vunpack.c.l.bf16 %v221
  %v238 = vunpack.c.l.bf16 %v222
  %v239 = vunpack.c.l.bf16 %v223
  %v240 = vunpack.c.l.bf16 %v224
  %v241 = vunpack.c.l.bf16 %v225
  %v242 = vunpack.c.l.bf16 %v226
  %v243 = vunpack.c.l.bf16 %v227
  %v244 = vunpack.c.l.bf16 %v228
  %v245 = vunpack.c.l.bf16 %v229
  %v246 = vunpack.c.l.bf16 %v230
  %v247 = vunpack.c.l.bf16 %v231
  %v248 = vunpack.c.l.bf16 %v232
  %v249 = vunpack.c.l.bf16 %v233
  %v250 = vunpack.c.l.bf16 %v234
  %v251 = vadd.f32 %v157, %v235
  %v252 = vadd.f32 %v160, %v236
  %v253 = vadd.f32 %v165, %v237
  %v254 = vadd.f32 %v168, %v238
  %v255 = vadd.f32 %v173, %v239
  %v256 = vadd.f32 %v176, %v240
  %v257 = vadd.f32 %v181, %v241
  %v258 = vadd.f32 %v184, %v242
  %v259 = vadd.f32 %v189, %v243
  %v260 = vadd.f32 %v192, %v244
  %v261 = vadd.f32 %v197, %v245
  %v262 = vadd.f32 %v200, %v246
  %v263 = vadd.f32 %v205, %v247
  %v264 = vadd.f32 %v208, %v248
  %v265 = vadd.f32 %v213, %v249
  %v266 = vadd.f32 %v216, %v250
  %v267 = vpack.c.bf16 %v252, %v251
  %v268 = vpack.c.bf16 %v254, %v253
  %v269 = vpack.c.bf16 %v256, %v255
  %v270 = vpack.c.bf16 %v258, %v257
  %v271 = vpack.c.bf16 %v260, %v259
  %v272 = vpack.c.bf16 %v262, %v261
  %v273 = vpack.c.bf16 %v264, %v263
  %v274 = vpack.c.bf16 %v266, %v265
  %v283 = vunpack.c.l.b16 %v267
  %v284 = vunpack.c.h.b16 %v267
  %v285 = vunpack.c.l.b16 %v268
  %v286 = vunpack.c.h.b16 %v268
  %v287 = vunpack.c.l.b16 %v269
  %v288 = vunpack.c.h.b16 %v269
  %v289 = vunpack.c.l.b16 %v270
  %v290 = vunpack.c.h.b16 %v270
  %v291 = vunpack.c.l.b16 %v271
  %v292 = vunpack.c.h.b16 %v271
  %v293 = vunpack.c.l.b16 %v272
  %v294 = vunpack.c.h.b16 %v272
  %v295 = vunpack.c.l.b16 %v273
  %v296 = vunpack.c.h.b16 %v273
  %v297 = vunpack.c.l.b16 %v274
  %v298 = vunpack.c.h.b16 %v274
  %v299 = vpack.c.b16 %v283, %v283
  %v300 = vpack.c.b16 %v284, %v284
  %v301 = vpack.c.b16 %v285, %v285
  %v302 = vpack.c.b16 %v286, %v286
  %v303 = vpack.c.b16 %v287, %v287
  %v304 = vpack.c.b16 %v288, %v288
  %v305 = vpack.c.b16 %v289, %v289
  %v306 = vpack.c.b16 %v290, %v290
  %v307 = vpack.c.b16 %v291, %v291
  %v308 = vpack.c.b16 %v292, %v292
  %v309 = vpack.c.b16 %v293, %v293
  %v310 = vpack.c.b16 %v294, %v294
  %v311 = vpack.c.b16 %v295, %v295
  %v312 = vpack.c.b16 %v296, %v296
  %v313 = vpack.c.b16 %v297, %v297
  %v314 = vpack.c.b16 %v298, %v298
  %vm331 = vcmask 257024
  %332 = vst.msk [vmem:[%s4] sm:$0xf] %vm331, %v299
  %333 = vst.msk [vmem:[%s4 + $0x4] sm:$0xf] %vm331, %v300
  %334 = vst.msk [vmem:[%s4 + $0x8] sm:$0xf] %vm331, %v301
  %335 = vst.msk [vmem:[%s4 + $0xc] sm:$0xf] %vm331, %v302
  %336 = vst.msk [vmem:[%s4 + $0x10] sm:$0xf] %vm331, %v303
  %337 = vst.msk [vmem:[%s4 + $0x14] sm:$0xf] %vm331, %v304
  %338 = vst.msk [vmem:[%s4 + $0x18] sm:$0xf] %vm331, %v305
  %339 = vst.msk [vmem:[%s4 + $0x1c] sm:$0xf] %vm331, %v306
  %340 = vst.msk [vmem:[%s4 + $0x20] sm:$0xf] %vm331, %v307
  %341 = vst.msk [vmem:[%s4 + $0x24] sm:$0xf] %vm331, %v308
  %342 = vst.msk [vmem:[%s4 + $0x28] sm:$0xf] %vm331, %v309
  %343 = vst.msk [vmem:[%s4 + $0x2c] sm:$0xf] %vm331, %v310
  %344 = vst.msk [vmem:[%s4 + $0x30] sm:$0xf] %vm331, %v311
  %345 = vst.msk [vmem:[%s4 + $0x34] sm:$0xf] %vm331, %v312
  %346 = vst.msk [vmem:[%s4 + $0x38] sm:$0xf] %vm331, %v313
  %347 = vst.msk [vmem:[%s4 + $0x3c] sm:$0xf] %vm331, %v314
  // Predicated region
  $region18: #{_lambda_.72} parent=0 // pred_check
    _
  $region19: #{_lambda_.72} parent=0 // pred_check_branch
    %349 = sbr.rel (0) target = $region21
  $region20: #{_lambda_.72} parent=0 // pred_region
    _
  $region21: #{_lambda_.72} parent=0 // pred_fallthru
    _
  // Predicated region
  $region22: #{_lambda_.72} parent=0 // pred_check
    _
  $region23: #{_lambda_.72} parent=0 // pred_check_branch
    %351 = sbr.rel (0) target = $region25
  $region24: #{_lambda_.72} parent=0 // pred_region
    _
  $region25: #{_lambda_.72} parent=0 // pred_fallthru
    _

// kernel: _lambda_.73
$region0: #{_lambda_.73}
  #allocation0 [shape = 'u32[]', space=smem, size = 0x4, offset = 0x4, fixed_abs, tag = 'smem constant byte address 0x4 - core index']
  #allocation1 [shape = 'u32[144,128]{1,0:T(1,128)}', space=vmem, size = 0x12000, scoped, tag = 'internal scratch']
  %s0 = inlined_call_operand.vmem [shape: bf16[128,288], index: 0, kind: input, shape index: {}]
  %s1 = inlined_call_operand.vmem [shape: bf16[288,16], index: 1, kind: input, shape index: {}]
  %s2 = inlined_call_operand.vmem [shape: f32[1,16], index: 2, kind: input, shape index: {}]
  %s3 = inlined_call_operand.vmem [shape: bf16[128,16], index: 3, kind: output, shape index: {}]
  %s4 = sld [smem:[#allocation0]]
  $region22: #{_lambda_.73} parent=0
    _
  %s6 = ssub.s32 1, %s4
  %s7 = scalar_select 0, %s6, %s4
  // Predicated region
  $region2: #{_lambda_.73} parent=0 // pred_check
    _
  $region3: #{_lambda_.73} parent=0 // pred_check_branch
    %9 = sbr.rel (0) target = $region5
  $region4: #{_lambda_.73} parent=0 // pred_region
    _
  $region5: #{_lambda_.73} parent=0 // pred_fallthru
    _
  // Predicated region
  $region6: #{_lambda_.73} parent=0 // pred_check
    _
  $region7: #{_lambda_.73} parent=0 // pred_check_branch
    %11 = sbr.rel (0) target = $region9
  $region8: #{_lambda_.73} parent=0 // pred_region
    _
  $region9: #{_lambda_.73} parent=0 // pred_fallthru
    _
  // Predicated region
  $region10: #{_lambda_.73} parent=0 // pred_check
    _
  $region11: #{_lambda_.73} parent=0 // pred_check_branch
    %13 = sbr.rel (0) target = $region13
  $region12: #{_lambda_.73} parent=0 // pred_region
    _
  $region13: #{_lambda_.73} parent=0 // pred_fallthru
    _
  %v15 = vld [vmem:[%s0] sm:$0xff]
  %v16 = vld [vmem:[%s0 + $0x8] sm:$0xf]
  %v17 = vld [vmem:[%s0 + $0xc] sm:$0xff]
  %v18 = vld [vmem:[%s0 + $0x14] sm:$0xf]
  %v19 = vld [vmem:[%s0 + $0x18] sm:$0xff]
  %v20 = vld [vmem:[%s0 + $0x20] sm:$0xf]
  %v21 = vld [vmem:[%s0 + $0x24] sm:$0xff]
  %v22 = vld [vmem:[%s0 + $0x2c] sm:$0xf]
  %v23 = vld [vmem:[%s0 + $0x30] sm:$0xff]
  %v24 = vld [vmem:[%s0 + $0x38] sm:$0xf]
  %v25 = vld [vmem:[%s0 + $0x3c] sm:$0xff]
  %v26 = vld [vmem:[%s0 + $0x44] sm:$0xf]
  %v27 = vld [vmem:[%s0 + $0x48] sm:$0xff]
  %v28 = vld [vmem:[%s0 + $0x50] sm:$0xf]
  %v29 = vld [vmem:[%s0 + $0x54] sm:$0xff]
  %v30 = vld [vmem:[%s0 + $0x5c] sm:$0xf]
  %v31 = vld [vmem:[%s0 + $0x60] sm:$0xff]
  %v32 = vld [vmem:[%s0 + $0x68] sm:$0xf]
  %v33 = vld [vmem:[%s0 + $0x6c] sm:$0xff]
  %v34 = vld [vmem:[%s0 + $0x74] sm:$0xf]
  %v35 = vld [vmem:[%s0 + $0x78] sm:$0xff]
  %v36 = vld [vmem:[%s0 + $0x80] sm:$0xf]
  %v37 = vld [vmem:[%s0 + $0x84] sm:$0xff]
  %v38 = vld [vmem:[%s0 + $0x8c] sm:$0xf]
  %v39 = vld [vmem:[%s0 + $0x90] sm:$0xff]
  %v40 = vld [vmem:[%s0 + $0x98] sm:$0xf]
  %v41 = vld [vmem:[%s0 + $0x9c] sm:$0xff]
  %v42 = vld [vmem:[%s0 + $0xa4] sm:$0xf]
  %v43 = vld [vmem:[%s0 + $0xa8] sm:$0xff]
  %v44 = vld [vmem:[%s0 + $0xb0] sm:$0xf]
  %v45 = vld [vmem:[%s0 + $0xb4] sm:$0xff]
  %v46 = vld [vmem:[%s0 + $0xbc] sm:$0xf]
  %v47 = vld [vmem:[%s1] sm:$0xf]
  %v48 = vld [vmem:[%s1 + $0x4] sm:$0xf]
  %v49 = vld [vmem:[%s1 + $0x8] sm:$0xf]
  %v50 = vld [vmem:[%s1 + $0xc] sm:$0xf]
  %v51 = vld [vmem:[%s1 + $0x10] sm:$0xf]
  %v52 = vld [vmem:[%s1 + $0x14] sm:$0xf]
  %v53 = vld [vmem:[%s1 + $0x18] sm:$0xf]
  %v54 = vld [vmem:[%s1 + $0x1c] sm:$0xf]
  %v55 = vld [vmem:[%s1 + $0x20] sm:$0xf]
  %v56 = vld [vmem:[%s1 + $0x24] sm:$0xf]
  %v57 = vld [vmem:[%s1 + $0x28] sm:$0xf]
  %v58 = vld [vmem:[%s1 + $0x2c] sm:$0xf]
  %v59 = vld [vmem:[%s1 + $0x30] sm:$0xf]
  %v60 = vld [vmem:[%s1 + $0x34] sm:$0xf]
  %v61 = vld [vmem:[%s1 + $0x38] sm:$0xf]
  %v62 = vld [vmem:[%s1 + $0x3c] sm:$0xf]
  %v63 = vld [vmem:[%s1 + $0x40] sm:$0xf]
  %v64 = vld [vmem:[%s1 + $0x44] sm:$0xf]
  %v65 = vld [vmem:[%s1 + $0x48] sm:$0xf]
  %v66 = vld [vmem:[%s1 + $0x4c] sm:$0xf]
  %v67 = vld [vmem:[%s1 + $0x50] sm:$0xf]
  %v68 = vld [vmem:[%s1 + $0x54] sm:$0xf]
  %v69 = vld [vmem:[%s1 + $0x58] sm:$0xf]
  %v70 = vld [vmem:[%s1 + $0x5c] sm:$0xf]
  %v71 = vld [vmem:[%s1 + $0x60] sm:$0xf]
  %v72 = vld [vmem:[%s1 + $0x64] sm:$0xf]
  %v73 = vld [vmem:[%s1 + $0x68] sm:$0xf]
  %v74 = vld [vmem:[%s1 + $0x6c] sm:$0xf]
  %v75 = vld [vmem:[%s1 + $0x70] sm:$0xf]
  %v76 = vld [vmem:[%s1 + $0x74] sm:$0xf]
  %v77 = vld [vmem:[%s1 + $0x78] sm:$0xf]
  %v78 = vld [vmem:[%s1 + $0x7c] sm:$0xf]
  %v79 = vld [vmem:[%s1 + $0x80] sm:$0xf]
  %v80 = vld [vmem:[%s1 + $0x84] sm:$0xf]
  %v81 = vld [vmem:[%s1 + $0x88] sm:$0xf]
  %v82 = vld [vmem:[%s1 + $0x8c] sm:$0xf]
  %v83 = vld [vmem:[%s2] sm:$0x1]
  %v85 = vlaneseq
  %v86 = vshrl.u32 %v85, 7
  %v87 = vsub.s32 0, %v86
  %v88 = vrot.slane %v83, %v87
  %v122 = vunpack.c.l.b16 %v15
  %v123 = vunpack.c.h.b16 %v15
  %v124 = vunpack.c.l.b16 %v16
  %v125 = vunpack.c.l.b16 %v17
  %v126 = vunpack.c.h.b16 %v17
  %v127 = vunpack.c.l.b16 %v18
  %v128 = vunpack.c.l.b16 %v19
  %v129 = vunpack.c.h.b16 %v19
  %v130 = vunpack.c.l.b16 %v20
  %v131 = vunpack.c.l.b16 %v21
  %v132 = vunpack.c.h.b16 %v21
  %v133 = vunpack.c.l.b16 %v22
  %v134 = vunpack.c.l.b16 %v23
  %v135 = vunpack.c.h.b16 %v23
  %v136 = vunpack.c.l.b16 %v24
  %v137 = vunpack.c.l.b16 %v25
  %v138 = vunpack.c.h.b16 %v25
  %v139 = vunpack.c.l.b16 %v26
  %v140 = vunpack.c.l.b16 %v27
  %v141 = vunpack.c.h.b16 %v27
  %v142 = vunpack.c.l.b16 %v28
  %v143 = vunpack.c.l.b16 %v29
  %v144 = vunpack.c.h.b16 %v29
  %v145 = vunpack.c.l.b16 %v30
  %v146 = vunpack.c.l.b16 %v31
  %v147 = vunpack.c.h.b16 %v31
  %v148 = vunpack.c.l.b16 %v32
  %v149 = vunpack.c.l.b16 %v33
  %v150 = vunpack.c.h.b16 %v33
  %v151 = vunpack.c.l.b16 %v34
  %v152 = vunpack.c.l.b16 %v35
  %v153 = vunpack.c.h.b16 %v35
  %v154 = vunpack.c.l.b16 %v36
  %v155 = vunpack.c.l.b16 %v37
  %v156 = vunpack.c.h.b16 %v37
  %v157 = vunpack.c.l.b16 %v38
  %v158 = vunpack.c.l.b16 %v39
  %v159 = vunpack.c.h.b16 %v39
  %v160 = vunpack.c.l.b16 %v40
  %v161 = vunpack.c.l.b16 %v41
  %v162 = vunpack.c.h.b16 %v41
  %v163 = vunpack.c.l.b16 %v42
  %v164 = vunpack.c.l.b16 %v43
  %v165 = vunpack.c.h.b16 %v43
  %v166 = vunpack.c.l.b16 %v44
  %v167 = vunpack.c.l.b16 %v45
  %v168 = vunpack.c.h.b16 %v45
  %v169 = vunpack.c.l.b16 %v46
  %v170 = vpack.c.b16 %v125, %v122
  %v171 = vpack.c.b16 %v126, %v123
  %v172 = vpack.c.b16 %v127, %v124
  %v173 = vpack.c.b16 %v131, %v128
  %v174 = vpack.c.b16 %v132, %v129
  %v175 = vpack.c.b16 %v133, %v130
  %v176 = vpack.c.b16 %v137, %v134
  %v177 = vpack.c.b16 %v138, %v135
  %v178 = vpack.c.b16 %v139, %v136
  %v179 = vpack.c.b16 %v143, %v140
  %v180 = vpack.c.b16 %v144, %v141
  %v181 = vpack.c.b16 %v145, %v142
  %v182 = vpack.c.b16 %v149, %v146
  %v183 = vpack.c.b16 %v150, %v147
  %v184 = vpack.c.b16 %v151, %v148
  %v185 = vpack.c.b16 %v155, %v152
  %v186 = vpack.c.b16 %v156, %v153
  %v187 = vpack.c.b16 %v157, %v154
  %v188 = vpack.c.b16 %v161, %v158
  %v189 = vpack.c.b16 %v162, %v159
  %v190 = vpack.c.b16 %v163, %v160
  %v191 = vpack.c.b16 %v167, %v164
  %v192 = vpack.c.b16 %v168, %v165
  %v193 = vpack.c.b16 %v169, %v166
  %v246 = vunpack.c.l.b16 %v47
  %v247 = vunpack.c.l.b16 %v48
  %v248 = vunpack.c.l.b16 %v49
  %v249 = vunpack.c.l.b16 %v50
  %v250 = vunpack.c.l.b16 %v51
  %v251 = vunpack.c.l.b16 %v52
  %v252 = vunpack.c.l.b16 %v53
  %v253 = vunpack.c.l.b16 %v54
  %v254 = vunpack.c.l.b16 %v55
  %v255 = vunpack.c.l.b16 %v56
  %v256 = vunpack.c.l.b16 %v57
  %v257 = vunpack.c.l.b16 %v58
  %v258 = vunpack.c.l.b16 %v59
  %v259 = vunpack.c.l.b16 %v60
  %v260 = vunpack.c.l.b16 %v61
  %v261 = vunpack.c.l.b16 %v62
  %v262 = vunpack.c.l.b16 %v63
  %v263 = vunpack.c.l.b16 %v64
  %v264 = vunpack.c.l.b16 %v65
  %v265 = vunpack.c.l.b16 %v66
  %v266 = vunpack.c.l.b16 %v67
  %v267 = vunpack.c.l.b16 %v68
  %v268 = vunpack.c.l.b16 %v69
  %v269 = vunpack.c.l.b16 %v70
  %v270 = vunpack.c.l.b16 %v71
  %v271 = vunpack.c.l.b16 %v72
  %v272 = vunpack.c.l.b16 %v73
  %v273 = vunpack.c.l.b16 %v74
  %v274 = vunpack.c.l.b16 %v75
  %v275 = vunpack.c.l.b16 %v76
  %v276 = vunpack.c.l.b16 %v77
  %v277 = vunpack.c.l.b16 %v78
  %v278 = vunpack.c.l.b16 %v79
  %v279 = vunpack.c.l.b16 %v80
  %v280 = vunpack.c.l.b16 %v81
  %v281 = vunpack.c.l.b16 %v82
  %v282 = vpack.c.b16 %v247, %v246
  %v283 = vpack.c.b16 %v249, %v248
  %v284 = vpack.c.b16 %v251, %v250
  %v285 = vpack.c.b16 %v253, %v252
  %v286 = vpack.c.b16 %v255, %v254
  %v287 = vpack.c.b16 %v257, %v256
  %v288 = vpack.c.b16 %v259, %v258
  %v289 = vpack.c.b16 %v261, %v260
  %v290 = vpack.c.b16 %v263, %v262
  %v291 = vpack.c.b16 %v265, %v264
  %v292 = vpack.c.b16 %v267, %v266
  %v293 = vpack.c.b16 %v269, %v268
  %v294 = vpack.c.b16 %v271, %v270
  %v295 = vpack.c.b16 %v273, %v272
  %v296 = vpack.c.b16 %v275, %v274
  %v297 = vpack.c.b16 %v277, %v276
  %v298 = vpack.c.b16 %v279, %v278
  %v299 = vpack.c.b16 %v281, %v280
  %vm318 = vcmask 261120
  %v320 = vsel %vm318, %v172, 0
  %v323 = vsel %vm318, %v175, 0
  %v326 = vsel %vm318, %v178, 0
  %v329 = vsel %vm318, %v181, 0
  %v332 = vsel %vm318, %v184, 0
  %v335 = vsel %vm318, %v187, 0
  %v338 = vsel %vm318, %v190, 0
  %v341 = vsel %vm318, %v193, 0
  %343 = vmatprep.subr.bf16.mxu0 0
  %344 = vmatpush1.bf16.msra.mxu0 %v289
  %345 = vmatprep.subr.bf16.mxu0 0
  %346 = vmatpush1.bf16.msra.mxu0 %v288
  %347 = vmatprep.subr.bf16.mxu0 0
  %348 = vmatpush1.bf16.msra.mxu0 %v287
  %349 = vmatprep.subr.bf16.mxu0 0
  %350 = vmatpush1.bf16.msra.mxu0 %v286
  %351 = vmatprep.subr.bf16.mxu0 0
  %352 = vmatpush1.bf16.msra.mxu0 %v285
  %353 = vmatprep.subr.bf16.mxu0 0
  %354 = vmatpush1.bf16.msra.mxu0 %v284
  %355 = vmatprep.subr.bf16.mxu0 0
  %356 = vmatpush1.bf16.msra.mxu0 %v283
  %357 = vmatprep.subr.bf16.mxu0 0
  %358 = vmatpush1.bf16.msra.mxu0 %v282
  %359 = vmatprep.subr.bf16.mxu0 0
  %360 = vmatpush2.bf16.msra.mxu0 %v297
  %361 = vmatprep.subr.bf16.mxu0 0
  %362 = vmatpush2.bf16.msra.mxu0 %v296
  %363 = vmatprep.subr.bf16.mxu0 0
  %364 = vmatpush2.bf16.msra.mxu0 %v295
  %365 = vmatprep.subr.bf16.mxu0 0
  %366 = vmatpush2.bf16.msra.mxu0 %v294
  %367 = vmatprep.subr.bf16.mxu0 0
  %368 = vmatpush2.bf16.msra.mxu0 %v293
  %369 = vmatprep.subr.bf16.mxu0 0
  %370 = vmatpush2.bf16.msra.mxu0 %v292
  %371 = vmatprep.subr.bf16.mxu0 0
  %372 = vmatpush2.bf16.msra.mxu0 %v291
  %373 = vmatprep.subr.bf16.mxu0 0
  %374 = vmatpush2.bf16.msra.mxu0 %v290
  %375 = vmatprep.mubr.bf16.mxu0 %v171
  %376 = vmatmul.mubr.bf16.gmra.mxu0 %v170
  %v377 = vpop.f32.mrf.mxu0
  %v378 = vadd.f32 %v88, %v377
  %v379 = vpop.f32.mrf.mxu0
  %v380 = vpop.f32.mrf.mxu0
  %v381 = vadd.f32 %v88, %v380
  %v382 = vpop.f32.mrf.mxu0
  %383 = vmatprep.mubr.bf16.mxu0 %v174
  %384 = vmatmul.mubr.bf16.gmra.mxu0 %v173
  %v385 = vpop.f32.mrf.mxu0
  %v386 = vadd.f32 %v88, %v385
  %v387 = vpop.f32.mrf.mxu0
  %v388 = vpop.f32.mrf.mxu0
  %v389 = vadd.f32 %v88, %v388
  %v390 = vpop.f32.mrf.mxu0
  %391 = vmatprep.mubr.bf16.mxu0 %v177
  %392 = vmatmul.mubr.bf16.gmra.mxu0 %v176
  %v393 = vpop.f32.mrf.mxu0
  %v394 = vadd.f32 %v88, %v393
  %v395 = vpop.f32.mrf.mxu0
  %v396 = vpop.f32.mrf.mxu0
  %v397 = vadd.f32 %v88, %v396
  %v398 = vpop.f32.mrf.mxu0
  %399 = vmatprep.mubr.bf16.mxu0 %v180
  %400 = vmatmul.mubr.bf16.gmra.mxu0 %v179
  %v401 = vpop.f32.mrf.mxu0
  %v402 = vadd.f32 %v88, %v401
  %v403 = vpop.f32.mrf.mxu0
  %v404 = vpop.f32.mrf.mxu0
  %v405 = vadd.f32 %v88, %v404
  %v406 = vpop.f32.mrf.mxu0
  %407 = vmatprep.mubr.bf16.mxu0 %v183
  %408 = vmatmul.mubr.bf16.gmra.mxu0 %v182
  %v409 = vpop.f32.mrf.mxu0
  %v410 = vadd.f32 %v88, %v409
  %v411 = vpop.f32.mrf.mxu0
  %v412 = vpop.f32.mrf.mxu0
  %v413 = vadd.f32 %v88, %v412
  %v414 = vpop.f32.mrf.mxu0
  %415 = vmatprep.mubr.bf16.mxu0 %v186
  %416 = vmatmul.mubr.bf16.gmra.mxu0 %v185
  %v417 = vpop.f32.mrf.mxu0
  %v418 = vadd.f32 %v88, %v417
  %v419 = vpop.f32.mrf.mxu0
  %v420 = vpop.f32.mrf.mxu0
  %v421 = vadd.f32 %v88, %v420
  %v422 = vpop.f32.mrf.mxu0
  %423 = vmatprep.mubr.bf16.mxu0 %v189
  %424 = vmatmul.mubr.bf16.gmra.mxu0 %v188
  %v425 = vpop.f32.mrf.mxu0
  %v426 = vadd.f32 %v88, %v425
  %v427 = vpop.f32.mrf.mxu0
  %v428 = vpop.f32.mrf.mxu0
  %v429 = vadd.f32 %v88, %v428
  %v430 = vpop.f32.mrf.mxu0
  %431 = vmatprep.mubr.bf16.mxu0 %v192
  %432 = vmatmul.mubr.bf16.gmra.mxu0 %v191
  %v433 = vpop.f32.mrf.mxu0
  %v434 = vadd.f32 %v88, %v433
  %v435 = vpop.f32.mrf.mxu0
  %v436 = vpop.f32.mrf.mxu0
  %v437 = vadd.f32 %v88, %v436
  %v438 = vpop.f32.mrf.mxu0
  %439 = vdwg.mxu0
  %440 = vmatprep.subr.bf16.mxu0 0
  %441 = vmatpush1.bf16.msra.mxu0 0
  %442 = vmatprep.subr.bf16.mxu0 0
  %443 = vmatpush1.bf16.msra.mxu0 0
  %444 = vmatprep.subr.bf16.mxu0 0
  %445 = vmatpush1.bf16.msra.mxu0 0
  %446 = vmatprep.subr.bf16.mxu0 0
  %447 = vmatpush1.bf16.msra.mxu0 0
  %448 = vmatprep.subr.bf16.mxu0 0
  %449 = vmatpush1.bf16.msra.mxu0 0
  %450 = vmatprep.subr.bf16.mxu0 0
  %451 = vmatpush1.bf16.msra.mxu0 0
  %452 = vmatprep.subr.bf16.mxu0 0
  %453 = vmatpush1.bf16.msra.mxu0 %v299
  %454 = vmatprep.subr.bf16.mxu0 0
  %455 = vmatpush1.bf16.msra.mxu0 %v298
  %456 = vmatprep.subr.bf16.mxu0 0
  %457 = vmatpush2.bf16.msra.mxu0 0
  %458 = vmatprep.subr.bf16.mxu0 0
  %459 = vmatpush2.bf16.msra.mxu0 0
  %460 = vmatprep.subr.bf16.mxu0 0
  %461 = vmatpush2.bf16.msra.mxu0 0
  %462 = vmatprep.subr.bf16.mxu0 0
  %463 = vmatpush2.bf16.msra.mxu0 0
  %464 = vmatprep.subr.bf16.mxu0 0
  %465 = vmatpush2.bf16.msra.mxu0 0
  %466 = vmatprep.subr.bf16.mxu0 0
  %467 = vmatpush2.bf16.msra.mxu0 0
  %468 = vmatprep.subr.bf16.mxu0 0
  %469 = vmatpush2.bf16.msra.mxu0 0
  %470 = vmatprep.subr.bf16.mxu0 0
  %471 = vmatpush2.bf16.msra.mxu0 0
  %472 = vmatprep.mubr.bf16.mxu0 0
  %473 = vmatmul.mubr.bf16.gmra.mxu0 %v320
  %v474 = vpop.f32.mrf.mxu0
  %v475 = vadd.f32 %v378, %v474
  %v476 = vpop.f32.mrf.mxu0
  %v477 = vpop.f32.mrf.mxu0
  %v478 = vadd.f32 %v381, %v477
  %v479 = vpop.f32.mrf.mxu0
  %480 = vmatprep.mubr.bf16.mxu0 0
  %481 = vmatmul.mubr.bf16.gmra.mxu0 %v323
  %v482 = vpop.f32.mrf.mxu0
  %v483 = vadd.f32 %v386, %v482
  %v484 = vpop.f32.mrf.mxu0
  %v485 = vpop.f32.mrf.mxu0
  %v486 = vadd.f32 %v389, %v485
  %v487 = vpop.f32.mrf.mxu0
  %488 = vmatprep.mubr.bf16.mxu0 0
  %489 = vmatmul.mubr.bf16.gmra.mxu0 %v326
  %v490 = vpop.f32.mrf.mxu0
  %v491 = vadd.f32 %v394, %v490
  %v492 = vpop.f32.mrf.mxu0
  %v493 = vpop.f32.mrf.mxu0
  %v494 = vadd.f32 %v397, %v493
  %v495 = vpop.f32.mrf.mxu0
  %496 = vmatprep.mubr.bf16.mxu0 0
  %497 = vmatmul.mubr.bf16.gmra.mxu0 %v329
  %v498 = vpop.f32.mrf.mxu0
  %v499 = vadd.f32 %v402, %v498
  %v500 = vpop.f32.mrf.mxu0
  %v501 = vpop.f32.mrf.mxu0
  %v502 = vadd.f32 %v405, %v501
  %v503 = vpop.f32.mrf.mxu0
  %504 = vmatprep.mubr.bf16.mxu0 0
  %505 = vmatmul.mubr.bf16.gmra.mxu0 %v332
  %v506 = vpop.f32.mrf.mxu0
  %v507 = vadd.f32 %v410, %v506
  %v508 = vpop.f32.mrf.mxu0
  %v509 = vpop.f32.mrf.mxu0
  %v510 = vadd.f32 %v413, %v509
  %v511 = vpop.f32.mrf.mxu0
  %512 = vmatprep.mubr.bf16.mxu0 0
  %513 = vmatmul.mubr.bf16.gmra.mxu0 %v335
  %v514 = vpop.f32.mrf.mxu0
  %v515 = vadd.f32 %v418, %v514
  %v516 = vpop.f32.mrf.mxu0
  %v517 = vpop.f32.mrf.mxu0
  %v518 = vadd.f32 %v421, %v517
  %v519 = vpop.f32.mrf.mxu0
  %520 = vmatprep.mubr.bf16.mxu0 0
  %521 = vmatmul.mubr.bf16.gmra.mxu0 %v338
  %v522 = vpop.f32.mrf.mxu0
  %v523 = vadd.f32 %v426, %v522
  %v524 = vpop.f32.mrf.mxu0
  %v525 = vpop.f32.mrf.mxu0
  %v526 = vadd.f32 %v429, %v525
  %v527 = vpop.f32.mrf.mxu0
  %528 = vmatprep.mubr.bf16.mxu0 0
  %529 = vmatmul.mubr.bf16.gmra.mxu0 %v341
  %v530 = vpop.f32.mrf.mxu0
  %v531 = vadd.f32 %v434, %v530
  %v532 = vpop.f32.mrf.mxu0
  %v533 = vpop.f32.mrf.mxu0
  %v534 = vadd.f32 %v437, %v533
  %v535 = vpop.f32.mrf.mxu0
  %536 = vdwg.mxu0
  %v537 = vpack.c.bf16 %v478, %v475
  %v538 = vpack.c.bf16 %v486, %v483
  %v539 = vpack.c.bf16 %v494, %v491
  %v540 = vpack.c.bf16 %v502, %v499
  %v541 = vpack.c.bf16 %v510, %v507
  %v542 = vpack.c.bf16 %v518, %v515
  %v543 = vpack.c.bf16 %v526, %v523
  %v544 = vpack.c.bf16 %v534, %v531
  %v553 = vunpack.c.l.b16 %v537
  %v554 = vunpack.c.h.b16 %v537
  %v555 = vunpack.c.l.b16 %v538
  %v556 = vunpack.c.h.b16 %v538
  %v557 = vunpack.c.l.b16 %v539
  %v558 = vunpack.c.h.b16 %v539
  %v559 = vunpack.c.l.b16 %v540
  %v560 = vunpack.c.h.b16 %v540
  %v561 = vunpack.c.l.b16 %v541
  %v562 = vunpack.c.h.b16 %v541
  %v563 = vunpack.c.l.b16 %v542
  %v564 = vunpack.c.h.b16 %v542
  %v565 = vunpack.c.l.b16 %v543
  %v566 = vunpack.c.h.b16 %v543
  %v567 = vunpack.c.l.b16 %v544
  %v568 = vunpack.c.h.b16 %v544
  %v569 = vpack.c.b16 %v553, %v553
  %v570 = vpack.c.b16 %v554, %v554
  %v571 = vpack.c.b16 %v555, %v555
  %v572 = vpack.c.b16 %v556, %v556
  %v573 = vpack.c.b16 %v557, %v557
  %v574 = vpack.c.b16 %v558, %v558
  %v575 = vpack.c.b16 %v559, %v559
  %v576 = vpack.c.b16 %v560, %v560
  %v577 = vpack.c.b16 %v561, %v561
  %v578 = vpack.c.b16 %v562, %v562
  %v579 = vpack.c.b16 %v563, %v563
  %v580 = vpack.c.b16 %v564, %v564
  %v581 = vpack.c.b16 %v565, %v565
  %v582 = vpack.c.b16 %v566, %v566
  %v583 = vpack.c.b16 %v567, %v567
  %v584 = vpack.c.b16 %v568, %v568
  %vm601 = vcmask 125952
  %602 = vst.msk [vmem:[%s3] sm:$0xf] %vm601, %v569
  %603 = vst.msk [vmem:[%s3 + $0x4] sm:$0xf] %vm601, %v570
  %604 = vst.msk [vmem:[%s3 + $0x8] sm:$0xf] %vm601, %v571
  %605 = vst.msk [vmem:[%s3 + $0xc] sm:$0xf] %vm601, %v572
  %606 = vst.msk [vmem:[%s3 + $0x10] sm:$0xf] %vm601, %v573
  %607 = vst.msk [vmem:[%s3 + $0x14] sm:$0xf] %vm601, %v574
  %608 = vst.msk [vmem:[%s3 + $0x18] sm:$0xf] %vm601, %v575
  %609 = vst.msk [vmem:[%s3 + $0x1c] sm:$0xf] %vm601, %v576
  %610 = vst.msk [vmem:[%s3 + $0x20] sm:$0xf] %vm601, %v577
  %611 = vst.msk [vmem:[%s3 + $0x24] sm:$0xf] %vm601, %v578
  %612 = vst.msk [vmem:[%s3 + $0x28] sm:$0xf] %vm601, %v579
  %613 = vst.msk [vmem:[%s3 + $0x2c] sm:$0xf] %vm601, %v580
  %614 = vst.msk [vmem:[%s3 + $0x30] sm:$0xf] %vm601, %v581
  %615 = vst.msk [vmem:[%s3 + $0x34] sm:$0xf] %vm601, %v582
  %616 = vst.msk [vmem:[%s3 + $0x38] sm:$0xf] %vm601, %v583
  %617 = vst.msk [vmem:[%s3 + $0x3c] sm:$0xf] %vm601, %v584
  // Predicated region
  $region14: #{_lambda_.73} parent=0 // pred_check
    _
  $region15: #{_lambda_.73} parent=0 // pred_check_branch
    %619 = sbr.rel (0) target = $region17
  $region16: #{_lambda_.73} parent=0 // pred_region
    _
  $region17: #{_lambda_.73} parent=0 // pred_fallthru
    _
  // Predicated region
  $region18: #{_lambda_.73} parent=0 // pred_check
    _
  $region19: #{_lambda_.73} parent=0 // pred_check_branch
    %621 = sbr.rel (0) target = $region21
  $region20: #{_lambda_.73} parent=0 // pred_region
    _
  $region21: #{_lambda_.73} parent=0 // pred_fallthru
    _

// kernel: _lambda_.75
$region0: #{_lambda_.75}
  #allocation0 [shape = 'u32[]', space=smem, size = 0x4, offset = 0x4, fixed_abs, tag = 'smem constant byte address 0x4 - core index']
  #allocation1 [shape = 'u32[144,128]{1,0:T(1,128)}', space=vmem, size = 0x12000, scoped, tag = 'internal scratch']
  %s0 = inlined_call_operand.vmem [shape: bf16[128,144], index: 0, kind: input, shape index: {}]
  %s1 = inlined_call_operand.vmem [shape: bf16[144,8], index: 1, kind: input, shape index: {}]
  %s2 = inlined_call_operand.vmem [shape: f32[1,8], index: 2, kind: input, shape index: {}]
  %s3 = inlined_call_operand.vmem [shape: bf16[128,8], index: 3, kind: output, shape index: {}]
  %s4 = sld [smem:[#allocation0]]
  $region22: #{_lambda_.75} parent=0
    _
  %s6 = ssub.s32 1, %s4
  %s7 = scalar_select 0, %s6, %s4
  // Predicated region
  $region2: #{_lambda_.75} parent=0 // pred_check
    _
  $region3: #{_lambda_.75} parent=0 // pred_check_branch
    %9 = sbr.rel (0) target = $region5
  $region4: #{_lambda_.75} parent=0 // pred_region
    _
  $region5: #{_lambda_.75} parent=0 // pred_fallthru
    _
  // Predicated region
  $region6: #{_lambda_.75} parent=0 // pred_check
    _
  $region7: #{_lambda_.75} parent=0 // pred_check_branch
    %11 = sbr.rel (0) target = $region9
  $region8: #{_lambda_.75} parent=0 // pred_region
    _
  $region9: #{_lambda_.75} parent=0 // pred_fallthru
    _
  // Predicated region
  $region10: #{_lambda_.75} parent=0 // pred_check
    _
  $region11: #{_lambda_.75} parent=0 // pred_check_branch
    %13 = sbr.rel (0) target = $region13
  $region12: #{_lambda_.75} parent=0 // pred_region
    _
  $region13: #{_lambda_.75} parent=0 // pred_fallthru
    _
  %v15 = vld [vmem:[%s0] sm:$0xff]
  %v16 = vld [vmem:[%s0 + $0x8] sm:$0xff]
  %v17 = vld [vmem:[%s0 + $0x10] sm:$0xff]
  %v18 = vld [vmem:[%s0 + $0x18] sm:$0xff]
  %v19 = vld [vmem:[%s0 + $0x20] sm:$0xff]
  %v20 = vld [vmem:[%s0 + $0x28] sm:$0xff]
  %v21 = vld [vmem:[%s0 + $0x30] sm:$0xff]
  %v22 = vld [vmem:[%s0 + $0x38] sm:$0xff]
  %v23 = vld [vmem:[%s0 + $0x40] sm:$0xff]
  %v24 = vld [vmem:[%s0 + $0x48] sm:$0xff]
  %v25 = vld [vmem:[%s0 + $0x50] sm:$0xff]
  %v26 = vld [vmem:[%s0 + $0x58] sm:$0xff]
  %v27 = vld [vmem:[%s0 + $0x60] sm:$0xff]
  %v28 = vld [vmem:[%s0 + $0x68] sm:$0xff]
  %v29 = vld [vmem:[%s0 + $0x70] sm:$0xff]
  %v30 = vld [vmem:[%s0 + $0x78] sm:$0xff]
  %v31 = vld [vmem:[%s1] sm:$0xf]
  %v32 = vld [vmem:[%s1 + $0x4] sm:$0xf]
  %v33 = vld [vmem:[%s1 + $0x8] sm:$0xf]
  %v34 = vld [vmem:[%s1 + $0xc] sm:$0xf]
  %v35 = vld [vmem:[%s1 + $0x10] sm:$0xf]
  %v36 = vld [vmem:[%s1 + $0x14] sm:$0xf]
  %v37 = vld [vmem:[%s1 + $0x18] sm:$0xf]
  %v38 = vld [vmem:[%s1 + $0x1c] sm:$0xf]
  %v39 = vld [vmem:[%s1 + $0x20] sm:$0xf]
  %v40 = vld [vmem:[%s1 + $0x24] sm:$0xf]
  %v41 = vld [vmem:[%s1 + $0x28] sm:$0xf]
  %v42 = vld [vmem:[%s1 + $0x2c] sm:$0xf]
  %v43 = vld [vmem:[%s1 + $0x30] sm:$0xf]
  %v44 = vld [vmem:[%s1 + $0x34] sm:$0xf]
  %v45 = vld [vmem:[%s1 + $0x38] sm:$0xf]
  %v46 = vld [vmem:[%s1 + $0x3c] sm:$0xf]
  %v47 = vld [vmem:[%s1 + $0x40] sm:$0xf]
  %v48 = vld [vmem:[%s1 + $0x44] sm:$0xf]
  %v49 = vld [vmem:[%s2] sm:$0x1]
  %v51 = vlaneseq
  %v52 = vshrl.u32 %v51, 7
  %v53 = vsub.s32 0, %v52
  %v54 = vrot.slane %v49, %v53
  %v72 = vunpack.c.l.b16 %v15
  %v73 = vunpack.c.h.b16 %v15
  %v74 = vunpack.c.l.b16 %v16
  %v75 = vunpack.c.h.b16 %v16
  %v76 = vunpack.c.l.b16 %v17
  %v77 = vunpack.c.h.b16 %v17
  %v78 = vunpack.c.l.b16 %v18
  %v79 = vunpack.c.h.b16 %v18
  %v80 = vunpack.c.l.b16 %v19
  %v81 = vunpack.c.h.b16 %v19
  %v82 = vunpack.c.l.b16 %v20
  %v83 = vunpack.c.h.b16 %v20
  %v84 = vunpack.c.l.b16 %v21
  %v85 = vunpack.c.h.b16 %v21
  %v86 = vunpack.c.l.b16 %v22
  %v87 = vunpack.c.h.b16 %v22
  %v88 = vunpack.c.l.b16 %v23
  %v89 = vunpack.c.h.b16 %v23
  %v90 = vunpack.c.l.b16 %v24
  %v91 = vunpack.c.h.b16 %v24
  %v92 = vunpack.c.l.b16 %v25
  %v93 = vunpack.c.h.b16 %v25
  %v94 = vunpack.c.l.b16 %v26
  %v95 = vunpack.c.h.b16 %v26
  %v96 = vunpack.c.l.b16 %v27
  %v97 = vunpack.c.h.b16 %v27
  %v98 = vunpack.c.l.b16 %v28
  %v99 = vunpack.c.h.b16 %v28
  %v100 = vunpack.c.l.b16 %v29
  %v101 = vunpack.c.h.b16 %v29
  %v102 = vunpack.c.l.b16 %v30
  %v103 = vunpack.c.h.b16 %v30
  %v104 = vpack.c.b16 %v74, %v72
  %v105 = vpack.c.b16 %v75, %v73
  %v106 = vpack.c.b16 %v78, %v76
  %v107 = vpack.c.b16 %v79, %v77
  %v108 = vpack.c.b16 %v82, %v80
  %v109 = vpack.c.b16 %v83, %v81
  %v110 = vpack.c.b16 %v86, %v84
  %v111 = vpack.c.b16 %v87, %v85
  %v112 = vpack.c.b16 %v90, %v88
  %v113 = vpack.c.b16 %v91, %v89
  %v114 = vpack.c.b16 %v94, %v92
  %v115 = vpack.c.b16 %v95, %v93
  %v116 = vpack.c.b16 %v98, %v96
  %v117 = vpack.c.b16 %v99, %v97
  %v118 = vpack.c.b16 %v102, %v100
  %v119 = vpack.c.b16 %v103, %v101
  %v146 = vunpack.c.l.b16 %v31
  %v147 = vunpack.c.l.b16 %v32
  %v148 = vunpack.c.l.b16 %v33
  %v149 = vunpack.c.l.b16 %v34
  %v150 = vunpack.c.l.b16 %v35
  %v151 = vunpack.c.l.b16 %v36
  %v152 = vunpack.c.l.b16 %v37
  %v153 = vunpack.c.l.b16 %v38
  %v154 = vunpack.c.l.b16 %v39
  %v155 = vunpack.c.l.b16 %v40
  %v156 = vunpack.c.l.b16 %v41
  %v157 = vunpack.c.l.b16 %v42
  %v158 = vunpack.c.l.b16 %v43
  %v159 = vunpack.c.l.b16 %v44
  %v160 = vunpack.c.l.b16 %v45
  %v161 = vunpack.c.l.b16 %v46
  %v162 = vunpack.c.l.b16 %v47
  %v163 = vunpack.c.l.b16 %v48
  %v164 = vpack.c.b16 %v147, %v146
  %v165 = vpack.c.b16 %v149, %v148
  %v166 = vpack.c.b16 %v151, %v150
  %v167 = vpack.c.b16 %v153, %v152
  %v168 = vpack.c.b16 %v155, %v154
  %v169 = vpack.c.b16 %v157, %v156
  %v170 = vpack.c.b16 %v159, %v158
  %v171 = vpack.c.b16 %v161, %v160
  %v172 = vpack.c.b16 %v163, %v162
  %vm182 = vcmask 130048
  %v184 = vsel %vm182, %v105, 0
  %v187 = vsel %vm182, %v107, 0
  %v190 = vsel %vm182, %v109, 0
  %v193 = vsel %vm182, %v111, 0
  %v196 = vsel %vm182, %v113, 0
  %v199 = vsel %vm182, %v115, 0
  %v202 = vsel %vm182, %v117, 0
  %v205 = vsel %vm182, %v119, 0
  %207 = vmatprep.subr.bf16.mxu0 0
  %208 = vmatpush1.bf16.msra.mxu0 %v171
  %209 = vmatprep.subr.bf16.mxu0 0
  %210 = vmatpush1.bf16.msra.mxu0 %v170
  %211 = vmatprep.subr.bf16.mxu0 0
  %212 = vmatpush1.bf16.msra.mxu0 %v169
  %213 = vmatprep.subr.bf16.mxu0 0
  %214 = vmatpush1.bf16.msra.mxu0 %v168
  %215 = vmatprep.subr.bf16.mxu0 0
  %216 = vmatpush1.bf16.msra.mxu0 %v167
  %217 = vmatprep.subr.bf16.mxu0 0
  %218 = vmatpush1.bf16.msra.mxu0 %v166
  %219 = vmatprep.subr.bf16.mxu0 0
  %220 = vmatpush1.bf16.msra.mxu0 %v165
  %221 = vmatprep.subr.bf16.mxu0 0
  %222 = vmatpush1.bf16.msra.mxu0 %v164
  %223 = vmatprep.subr.bf16.mxu0 0
  %224 = vmatpush2.bf16.msra.mxu0 0
  %225 = vmatprep.subr.bf16.mxu0 0
  %226 = vmatpush2.bf16.msra.mxu0 0
  %227 = vmatprep.subr.bf16.mxu0 0
  %228 = vmatpush2.bf16.msra.mxu0 0
  %229 = vmatprep.subr.bf16.mxu0 0
  %230 = vmatpush2.bf16.msra.mxu0 0
  %231 = vmatprep.subr.bf16.mxu0 0
  %232 = vmatpush2.bf16.msra.mxu0 0
  %233 = vmatprep.subr.bf16.mxu0 0
  %234 = vmatpush2.bf16.msra.mxu0 0
  %235 = vmatprep.subr.bf16.mxu0 0
  %236 = vmatpush2.bf16.msra.mxu0 0
  %237 = vmatprep.subr.bf16.mxu0 0
  %238 = vmatpush2.bf16.msra.mxu0 %v172
  %239 = vmatprep.mubr.bf16.mxu0 %v184
  %240 = vmatmul.mubr.bf16.gmra.mxu0 %v104
  %v241 = vpop.f32.mrf.mxu0
  %v242 = vadd.f32 %v54, %v241
  %v243 = vpop.f32.mrf.mxu0
  %v244 = vpop.f32.mrf.mxu0
  %v245 = vadd.f32 %v54, %v244
  %v246 = vpop.f32.mrf.mxu0
  %247 = vmatprep.mubr.bf16.mxu0 %v187
  %248 = vmatmul.mubr.bf16.gmra.mxu0 %v106
  %v249 = vpop.f32.mrf.mxu0
  %v250 = vadd.f32 %v54, %v249
  %v251 = vpop.f32.mrf.mxu0
  %v252 = vpop.f32.mrf.mxu0
  %v253 = vadd.f32 %v54, %v252
  %v254 = vpop.f32.mrf.mxu0
  %255 = vmatprep.mubr.bf16.mxu0 %v190
  %256 = vmatmul.mubr.bf16.gmra.mxu0 %v108
  %v257 = vpop.f32.mrf.mxu0
  %v258 = vadd.f32 %v54, %v257
  %v259 = vpop.f32.mrf.mxu0
  %v260 = vpop.f32.mrf.mxu0
  %v261 = vadd.f32 %v54, %v260
  %v262 = vpop.f32.mrf.mxu0
  %263 = vmatprep.mubr.bf16.mxu0 %v193
  %264 = vmatmul.mubr.bf16.gmra.mxu0 %v110
  %v265 = vpop.f32.mrf.mxu0
  %v266 = vadd.f32 %v54, %v265
  %v267 = vpop.f32.mrf.mxu0
  %v268 = vpop.f32.mrf.mxu0
  %v269 = vadd.f32 %v54, %v268
  %v270 = vpop.f32.mrf.mxu0
  %271 = vmatprep.mubr.bf16.mxu0 %v196
  %272 = vmatmul.mubr.bf16.gmra.mxu0 %v112
  %v273 = vpop.f32.mrf.mxu0
  %v274 = vadd.f32 %v54, %v273
  %v275 = vpop.f32.mrf.mxu0
  %v276 = vpop.f32.mrf.mxu0
  %v277 = vadd.f32 %v54, %v276
  %v278 = vpop.f32.mrf.mxu0
  %279 = vmatprep.mubr.bf16.mxu0 %v199
  %280 = vmatmul.mubr.bf16.gmra.mxu0 %v114
  %v281 = vpop.f32.mrf.mxu0
  %v282 = vadd.f32 %v54, %v281
  %v283 = vpop.f32.mrf.mxu0
  %v284 = vpop.f32.mrf.mxu0
  %v285 = vadd.f32 %v54, %v284
  %v286 = vpop.f32.mrf.mxu0
  %287 = vmatprep.mubr.bf16.mxu0 %v202
  %288 = vmatmul.mubr.bf16.gmra.mxu0 %v116
  %v289 = vpop.f32.mrf.mxu0
  %v290 = vadd.f32 %v54, %v289
  %v291 = vpop.f32.mrf.mxu0
  %v292 = vpop.f32.mrf.mxu0
  %v293 = vadd.f32 %v54, %v292
  %v294 = vpop.f32.mrf.mxu0
  %295 = vmatprep.mubr.bf16.mxu0 %v205
  %296 = vmatmul.mubr.bf16.gmra.mxu0 %v118
  %v297 = vpop.f32.mrf.mxu0
  %v298 = vadd.f32 %v54, %v297
  %v299 = vpop.f32.mrf.mxu0
  %v300 = vpop.f32.mrf.mxu0
  %v301 = vadd.f32 %v54, %v300
  %v302 = vpop.f32.mrf.mxu0
  %303 = vdwg.mxu0
  %v304 = vpack.c.bf16 %v245, %v242
  %v305 = vpack.c.bf16 %v253, %v250
  %v306 = vpack.c.bf16 %v261, %v258
  %v307 = vpack.c.bf16 %v269, %v266
  %v308 = vpack.c.bf16 %v277, %v274
  %v309 = vpack.c.bf16 %v285, %v282
  %v310 = vpack.c.bf16 %v293, %v290
  %v311 = vpack.c.bf16 %v301, %v298
  %v320 = vunpack.c.l.b16 %v304
  %v321 = vunpack.c.h.b16 %v304
  %v322 = vunpack.c.l.b16 %v305
  %v323 = vunpack.c.h.b16 %v305
  %v324 = vunpack.c.l.b16 %v306
  %v325 = vunpack.c.h.b16 %v306
  %v326 = vunpack.c.l.b16 %v307
  %v327 = vunpack.c.h.b16 %v307
  %v328 = vunpack.c.l.b16 %v308
  %v329 = vunpack.c.h.b16 %v308
  %v330 = vunpack.c.l.b16 %v309
  %v331 = vunpack.c.h.b16 %v309
  %v332 = vunpack.c.l.b16 %v310
  %v333 = vunpack.c.h.b16 %v310
  %v334 = vunpack.c.l.b16 %v311
  %v335 = vunpack.c.h.b16 %v311
  %v336 = vpack.c.b16 %v320, %v320
  %v337 = vpack.c.b16 %v321, %v321
  %v338 = vpack.c.b16 %v322, %v322
  %v339 = vpack.c.b16 %v323, %v323
  %v340 = vpack.c.b16 %v324, %v324
  %v341 = vpack.c.b16 %v325, %v325
  %v342 = vpack.c.b16 %v326, %v326
  %v343 = vpack.c.b16 %v327, %v327
  %v344 = vpack.c.b16 %v328, %v328
  %v345 = vpack.c.b16 %v329, %v329
  %v346 = vpack.c.b16 %v330, %v330
  %v347 = vpack.c.b16 %v331, %v331
  %v348 = vpack.c.b16 %v332, %v332
  %v349 = vpack.c.b16 %v333, %v333
  %v350 = vpack.c.b16 %v334, %v334
  %v351 = vpack.c.b16 %v335, %v335
  %vm368 = vcmask 60416
  %369 = vst.msk [vmem:[%s3] sm:$0xf] %vm368, %v336
  %370 = vst.msk [vmem:[%s3 + $0x4] sm:$0xf] %vm368, %v337
  %371 = vst.msk [vmem:[%s3 + $0x8] sm:$0xf] %vm368, %v338
  %372 = vst.msk [vmem:[%s3 + $0xc] sm:$0xf] %vm368, %v339
  %373 = vst.msk [vmem:[%s3 + $0x10] sm:$0xf] %vm368, %v340
  %374 = vst.msk [vmem:[%s3 + $0x14] sm:$0xf] %vm368, %v341
  %375 = vst.msk [vmem:[%s3 + $0x18] sm:$0xf] %vm368, %v342
  %376 = vst.msk [vmem:[%s3 + $0x1c] sm:$0xf] %vm368, %v343
  %377 = vst.msk [vmem:[%s3 + $0x20] sm:$0xf] %vm368, %v344
  %378 = vst.msk [vmem:[%s3 + $0x24] sm:$0xf] %vm368, %v345
  %379 = vst.msk [vmem:[%s3 + $0x28] sm:$0xf] %vm368, %v346
  %380 = vst.msk [vmem:[%s3 + $0x2c] sm:$0xf] %vm368, %v347
  %381 = vst.msk [vmem:[%s3 + $0x30] sm:$0xf] %vm368, %v348
  %382 = vst.msk [vmem:[%s3 + $0x34] sm:$0xf] %vm368, %v349
  %383 = vst.msk [vmem:[%s3 + $0x38] sm:$0xf] %vm368, %v350
  %384 = vst.msk [vmem:[%s3 + $0x3c] sm:$0xf] %vm368, %v351
  // Predicated region
  $region14: #{_lambda_.75} parent=0 // pred_check
    _
  $region15: #{_lambda_.75} parent=0 // pred_check_branch
    %386 = sbr.rel (0) target = $region17
  $region16: #{_lambda_.75} parent=0 // pred_region
    _
  $region17: #{_lambda_.75} parent=0 // pred_fallthru
    _
  // Predicated region
  $region18: #{_lambda_.75} parent=0 // pred_check
    _
  $region19: #{_lambda_.75} parent=0 // pred_check_branch
    %388 = sbr.rel (0) target = $region21
  $region20: #{_lambda_.75} parent=0 // pred_region
    _
  $region21: #{_lambda_.75} parent=0 // pred_fallthru
    _

</llo_original>
